<compile_context>
chip_gen: v6e
topology: v6e:2x2x1
jax: 0.10.0
libtpu: 0.0.40
codegen_flags: <defaults>
</compile_context>

<pallas_src>
import numpy as np
import jax
import jax.numpy as jnp
from jax.experimental import pallas as pl
from jax.experimental.pallas import tpu as pltpu

# ---- small config consistent with the module (latent_dim must be 2) ----
BATCH = 2
DATA_DIM = 64          # module default 640; scaled down
GRID_DIM = 64          # grid_dim defaults to data_dim
COND_DIM = 4
WIDTH = 32             # module default 64; scaled down
WIDTH_SCALE = 32       # width_scale defaults to width
DEPTH = 2
LATENT_DIM = 2

LANE = 128             # TPU lane width; every packed layer is a 128x128 tile

_VMEM = pl.BlockSpec(memory_space=pltpu.MemorySpace.VMEM)
_PREC = jax.lax.Precision.HIGHEST


def _mlp_dims(in_dim, out_dim, width, depth):
    # get_fc_layers: Linear(in,w), depth x Linear(w,w), Linear(w,out)
    return [(in_dim, width)] + [(width, width)] * depth + [(width, out_dim)]


ENC_DIMS = _mlp_dims(DATA_DIM, 2 * LATENT_DIM - 1, WIDTH, DEPTH)
D0_DIMS = _mlp_dims(LATENT_DIM + COND_DIM, 1, WIDTH_SCALE, DEPTH)
# decoder1 + decoder2 merged block-diagonally (same shapes, same input).
D12_DIMS = _mlp_dims(LATENT_DIM, 2 * GRID_DIM, 2 * WIDTH, DEPTH)

# One 128-column tile per layer inside the single packed parameter slab.
ENC_BASE = 0
ENC_NL = len(ENC_DIMS)
D0_BASE = ENC_BASE + ENC_NL
D0_NL = len(D0_DIMS)
D12_BASE = D0_BASE + D0_NL
D12_NL = len(D12_DIMS)
N_TILES = D12_BASE + D12_NL

# Toy sizes must fit single 128x128 weight tiles (true here; at module
# defaults the first encoder layer / last grid-decoder layer would need a
# K/N-tiled variant).
assert all(k <= LANE and n <= LANE for k, n in ENC_DIMS + D0_DIMS + D12_DIMS)
assert DATA_DIM + COND_DIM + LATENT_DIM <= LANE
assert DATA_DIM + 2 * LATENT_DIM <= LANE


# ----------------------------------------------------------------------------
# Fused Pallas kernel
# ----------------------------------------------------------------------------
def _mlp(h, p_ref, base, n_layers):
    """MLP over full 128x128 weight tiles packed in `p_ref`.

    p_ref: (136, N_TILES*128).  Layer `base + i` occupies columns
    [(base+i)*128, (base+i+1)*128); rows 0..127 are the (zero-padded) weight
    tile, row 128 is the (zero-padded) bias.  `h` is (rows, 128), zero-padded
    beyond the real input width; outputs stay 128 lanes wide and zero-padded.
    ReLU after every layer except the last.
    """
    last = n_layers - 1
    for i in range(n_layers):
        off = (base + i) * LANE
        w = p_ref[:LANE, off:off + LANE]                 # (128, 128)
        b = p_ref[LANE:LANE + 1, off:off + LANE]         # (1, 128)
        h = jnp.dot(h, w, precision=_PREC,
                    preferred_element_type=jnp.float32) + b
        if i != last:
            h = jnp.maximum(h, 0.0)
    return h


def _vae_kernel(in_ref, p_ref, out_ref):
    B = in_ref.shape[0]

    inp = in_ref[...]                                    # (B, 128)
    x = inp[:, :DATA_DIM]                                # (B, D)
    cond = inp[:, DATA_DIM:DATA_DIM + COND_DIM]          # (B, C)
    eps = inp[:, DATA_DIM + COND_DIM:
              DATA_DIM + COND_DIM + LATENT_DIM]          # (B, 2)

    # ---- encoder: RMS-norm, stacked +/- rows, single 128-lane MLP pass ----
    # (no epsilon in the norm, matching the PyTorch module)
    rms = jnp.sqrt(jnp.mean(x * x, axis=-1, keepdims=True))
    xn = inp / rms                # lanes >= DATA_DIM hit zero weight rows
    x_pm = jnp.concatenate([xn, -xn], axis=0)                       # (2B, 128)
    enc_out = _mlp(x_pm, p_ref, ENC_BASE, ENC_NL)                   # (2B, 128)
    mu_pm = enc_out[:, :LATENT_DIM]
    lv_pm = enc_out[:, LATENT_DIM:LATENT_DIM + 1]                   # (2B, 1)
    mu = (mu_pm[:B] - mu_pm[B:]) * 0.5
    mu = mu / jnp.sqrt(jnp.sum(mu * mu, axis=-1, keepdims=True))
    lv = (lv_pm[:B] + lv_pm[B:]) * 0.5                              # (B, 1)
    logvar = jnp.concatenate([lv, lv], axis=-1)                     # (B, 2)

    # ---- varier: z = mu + exp(0.5*logvar)*eps, projected to unit circle ----
    z = mu + jnp.exp(0.5 * logvar) * eps
    z = z / jnp.sqrt(jnp.sum(z * z, axis=-1, keepdims=True))

    # ---- shared 128-lane padded decoder input [z | cond | 0] over +/- rows.
    # decoder0 reads lanes 0..5; decoder1/2 read lanes 0..1 (their cond-lane
    # weight rows are zero), so one stacked input feeds both trunks.
    z_pm = jnp.concatenate([z, -z], axis=0)                         # (2B, 2)
    cond_pm = jnp.concatenate([cond, cond], axis=0)                 # (2B, C)
    pad = jnp.zeros((2 * B, LANE - LATENT_DIM - COND_DIM), jnp.float32)
    zin_pm = jnp.concatenate([z_pm, cond_pm, pad], axis=-1)         # (2B, 128)

    # ---- decoder0 (cond-projected scale) ----
    x0_pm = _mlp(zin_pm, p_ref, D0_BASE, D0_NL)                     # (2B, 128)
    x0 = (x0_pm[:B, :1] + x0_pm[B:, :1]) * 0.5                      # (B, 1)

    # ---- decoder1 + decoder2, merged block-diagonally; single pass ----
    d12 = _mlp(zin_pm, p_ref, D12_BASE, D12_NL)                     # (2B, 128)
    x1 = (d12[:B, :GRID_DIM] - d12[B:, :GRID_DIM]) * 0.5            # (B, G)
    x2 = (d12[:B, GRID_DIM:2 * GRID_DIM]
          + d12[B:, GRID_DIM:2 * GRID_DIM]) * 0.5                   # (B, G)
    x1 = jnp.exp(x0) * x1                                           # (B, G)

    # ---- exponential-basis reconstruction (G-contraction on the MXU) ----
    # xout[b, i] = sum_j x1[b, j] * exp(x2[b, j] * xin[i]),  xin[i] = i/(D-1)
    xin_gd = (jax.lax.broadcasted_iota(jnp.int32, (GRID_DIM, DATA_DIM), 1)
              .astype(jnp.float32)) * (1.0 / (DATA_DIM - 1))        # (G, D)
    x2t = x2.T                                                      # (G, B)
    rows = []
    for b in range(B):                      # static unroll, B is tiny
        basis_t = jnp.exp(x2t[:, b:b + 1] * xin_gd)                 # (G, D)
        rows.append(jnp.dot(x1[b:b + 1, :], basis_t, precision=_PREC,
                            preferred_element_type=jnp.float32))    # (1, D)
    xr = jnp.concatenate(rows, axis=0)                              # (B, D)

    # ---- single lane-dense output slab: [xr | mu | logvar | 0] ----
    opad = jnp.zeros((B, LANE - DATA_DIM - 2 * LATENT_DIM), jnp.float32)
    out_ref[...] = jnp.concatenate([xr, mu, logvar, opad], axis=-1)


# ----------------------------------------------------------------------------
# Parameter construction (deterministic, PyTorch-default-like init) + packing
# ----------------------------------------------------------------------------
def _init_linear(key, fan_in, fan_out):
    kw, kb = jax.random.split(key)
    bound = 1.0 / np.sqrt(fan_in)
    w = jax.random.uniform(kw, (fan_in, fan_out), jnp.float32, -bound, bound)
    b = jax.random.uniform(kb, (1, fan_out), jnp.float32, -bound, bound)
    return w, b


def _init_mlp(key, in_dim, out_dim, width, depth):
    dims = _mlp_dims(in_dim, out_dim, width, depth)
    keys = jax.random.split(key, len(dims))
    return [_init_linear(k, ki, no) for k, (ki, no) in zip(keys, dims)]


def init_params(key):
    k_enc, k_d0, k_d1, k_d2 = jax.random.split(key, 4)
    return {
        "enc": _init_mlp(k_enc, DATA_DIM, 2 * LATENT_DIM - 1, WIDTH, DEPTH),
        "dec0": _init_mlp(k_d0, LATENT_DIM + COND_DIM, 1, WIDTH_SCALE, DEPTH),
        "dec1": _init_mlp(k_d1, LATENT_DIM, GRID_DIM, WIDTH, DEPTH),
        "dec2": _init_mlp(k_d2, LATENT_DIM, GRID_DIM, WIDTH, DEPTH),
    }


def _block_diag(a, b):
    ka, na = a.shape
    kb, nb = b.shape
    out = jnp.zeros((ka + kb, na + nb), a.dtype)
    out = out.at[:ka, :na].set(a)
    out = out.at[ka:, na:].set(b)
    return out


def _merge_grid_decoders(dec1, dec2):
    """Merge two identically-shaped MLPs into one block-diagonal MLP."""
    merged = []
    for i, ((w1, b1), (w2, b2)) in enumerate(zip(dec1, dec2)):
        if i == 0:
            w = jnp.concatenate([w1, w2], axis=1)        # same input z
        else:
            w = _block_diag(w1, w2)
        merged.append((w, jnp.concatenate([b1, b2], axis=1)))
    return merged


def pack_params(params):
    """Pack all layers into ONE (136, N_TILES*128) slab.

    Columns [t*128, (t+1)*128) hold layer-tile t: rows 0..127 = zero-padded
    (in, out) weights, row 128 = zero-padded bias, rows 129..135 = padding
    (keeps the sublane count a multiple of 8).
    """
    trunks = [params["enc"], params["dec0"],
              _merge_grid_decoders(params["dec1"], params["dec2"])]
    layers = [wb for trunk in trunks for wb in trunk]
    assert len(layers) == N_TILES
    slab = jnp.zeros((LANE + 8, N_TILES * LANE), jnp.float32)
    for t, (w, b) in enumerate(layers):
        k, n = w.shape
        off = t * LANE
        slab = slab.at[:k, off:off + n].set(w)
        slab = slab.at[LANE, off:off + n].set(b[0])
    return slab


# ----------------------------------------------------------------------------
# Wrapper: one fused, gridless pallas_call (2 input DMAs, 1 output DMA)
# ----------------------------------------------------------------------------
@jax.jit
def vae_forward(x, cond, eps, param_slab):
    B = x.shape[0]
    # Lane-dense input slab: [x | cond | eps | 0]
    inp = jnp.zeros((B, LANE), jnp.float32)
    inp = inp.at[:, :DATA_DIM].set(x.reshape(B, DATA_DIM))
    inp = inp.at[:, DATA_DIM:DATA_DIM + COND_DIM].set(cond)
    inp = inp.at[:, DATA_DIM + COND_DIM:
                 DATA_DIM + COND_DIM + LATENT_DIM].set(eps)

    out = pl.pallas_call(
        _vae_kernel,
        out_shape=jax.ShapeDtypeStruct((B, LANE), jnp.float32),
        in_specs=[_VMEM, _VMEM],
        out_specs=_VMEM,
    )(inp, param_slab)

    xr = out[:, :DATA_DIM].reshape(B, 1, DATA_DIM)
    mu = out[:, DATA_DIM:DATA_DIM + LATENT_DIM]
    logvar = out[:, DATA_DIM + LATENT_DIM:DATA_DIM + 2 * LATENT_DIM]
    return xr, mu, logvar


# ----------------------------------------------------------------------------
# Pure-JAX reference mirroring the PyTorch code (HIGHEST precision)
# ----------------------------------------------------------------------------
def _mlp_ref(h, layers):
    for i, (w, b) in enumerate(layers):
        h = jnp.dot(h, w, precision=jax.lax.Precision.HIGHEST,
                    preferred_element_type=jnp.float32) + b
        if i < len(layers) - 1:
            h = jnp.maximum(h, 0.0)
    return h


def vae_forward_ref(x, cond, eps, params):
    B = x.shape[0]
    xn = x / jnp.sqrt(jnp.mean(x * x, axis=-1, keepdims=True))
    xn = xn.reshape(-1, DATA_DIM)
    xx = jnp.concatenate([xn, -xn], axis=0)
    out = _mlp_ref(xx, params["enc"])
    mu, lvc = out[:, :LATENT_DIM], out[:, LATENT_DIM:]
    lv = jnp.concatenate([lvc, lvc], axis=-1)
    mu = (mu[:B] - mu[B:]) / 2
    mu = mu / jnp.sqrt(jnp.sum(mu * mu, axis=-1, keepdims=True))
    logvar = (lv[:B] + lv[B:]) / 2

    z = mu + jnp.exp(0.5 * logvar) * eps
    z = z / jnp.sqrt(jnp.sum(z * z, axis=-1, keepdims=True))

    zz = jnp.concatenate([z, -z], axis=0)
    cc = jnp.concatenate([cond, cond], axis=0)
    x0 = _mlp_ref(jnp.concatenate([zz, cc], axis=-1), params["dec0"])
    x1 = _mlp_ref(zz, params["dec1"])
    x2 = _mlp_ref(zz, params["dec2"])
    x0 = (x0[:B] + x0[B:]) / 2
    x1 = (x1[:B] - x1[B:]) / 2
    x2 = (x2[:B] + x2[B:]) / 2
    x1 = jnp.exp(x0) * x1

    xin = jnp.tile(jnp.linspace(0.0, 1.0, DATA_DIM, dtype=jnp.float32)[None, :],
                   (B, 1))
    xout = jnp.sum(x1[:, None, :] * jnp.exp(x2[:, None, :] * xin[:, :, None]),
                   axis=-1)
    return xout.reshape(B, 1, -1), mu, logvar


# ----------------------------------------------------------------------------
if __name__ == "__main__":
    root = jax.random.PRNGKey(0)
    k_params, k_x, k_cond, k_eps = jax.random.split(root, 4)

    params = init_params(k_params)
    param_slab = pack_params(params)

    x = jax.random.normal(k_x, (BATCH, 1, DATA_DIM), jnp.float32)
    cond = jax.random.normal(k_cond, (BATCH, COND_DIM), jnp.float32)
    # TODO(synk): torch.randn_like inside varier has no in-kernel equivalent
    # here; the Gaussian noise eps is drawn deterministically outside and fed
    # in via the packed input slab (pltpu.prng_* + Box-Muller would remove it).
    eps = jax.random.normal(k_eps, (BATCH, LATENT_DIM), jnp.float32)

    x_recon, mu, logvar = jax.block_until_ready(
        vae_forward(x, cond, eps, param_slab))

    xr_ref, mu_r, lv_r = vae_forward_ref(x, cond, eps, params)
    # Kernel now runs HIGHEST-precision matmuls like the reference, so the
    # tolerances are tight (residual noise is accumulation-order only).
    np.testing.assert_allclose(np.asarray(mu), np.asarray(mu_r),
                               rtol=1e-4, atol=1e-4)
    np.testing.assert_allclose(np.asarray(logvar), np.asarray(lv_r),
                               rtol=1e-4, atol=1e-4)
    np.testing.assert_allclose(np.asarray(x_recon), np.asarray(xr_ref),
                               rtol=1e-4, atol=1e-4)
    assert x_recon.shape == (BATCH, 1, DATA_DIM)
    assert mu.shape == (BATCH, LATENT_DIM) and logvar.shape == (BATCH, LATENT_DIM)

    print("KERNEL_OK")
</pallas_src>

<mosaic_0001>
module attributes {stable_mosaic.version = 11 : i64} {
  func.func @_vae_kernel(%arg0: memref<2x128xf32, #tpu.memory_space<vmem>>, %arg1: memref<136x1536xf32, #tpu.memory_space<vmem>>, %arg2: memref<2x128xf32, #tpu.memory_space<vmem>>) attributes {dimension_semantics = [], scalar_prefetch = 0 : i64, scratch_operands = 0 : i64, tpu.core_type = #tpu.core_type<tc>} {
    %c0 = arith.constant 0 : index
    %c0_0 = arith.constant 0 : index
    %0 = vector.load %arg0[%c0, %c0_0] : memref<2x128xf32, #tpu.memory_space<vmem>>, vector<2x128xf32>
    %1 = vector.extract_strided_slice %0 {offsets = [0, 0], sizes = [2, 64], strides = [1, 1]} : vector<2x128xf32> to vector<2x64xf32>
    %2 = vector.extract_strided_slice %0 {offsets = [0, 64], sizes = [2, 4], strides = [1, 1]} : vector<2x128xf32> to vector<2x4xf32>
    %3 = vector.extract_strided_slice %0 {offsets = [0, 68], sizes = [2, 2], strides = [1, 1]} : vector<2x128xf32> to vector<2x2xf32>
    %4 = arith.mulf %1, %1 : vector<2x64xf32>
    %cst = arith.constant dense<0.000000e+00> : vector<2xf32>
    %5 = vector.multi_reduction <add>, %4, %cst [1] : vector<2x64xf32> to vector<2xf32>
    %6 = vector.shape_cast %5 : vector<2xf32> to vector<2x1xf32>
    %cst_1 = arith.constant 6.400000e+01 : f32
    %7 = vector.broadcast %cst_1 : f32 to vector<2x1xf32>
    %8 = arith.divf %6, %7 : vector<2x1xf32>
    %9 = math.sqrt %8 : vector<2x1xf32>
    %10 = vector.broadcast %9 : vector<2x1xf32> to vector<2x128xf32>
    %11 = arith.divf %0, %10 : vector<2x128xf32>
    %cst_2 = arith.constant 0.000000e+00 : f32
    %12 = vector.broadcast %cst_2 : f32 to vector<2x128xf32>
    %13 = arith.subf %12, %11 : vector<2x128xf32>
    %14 = tpu.concatenate %11, %13 in 0 : vector<2x128xf32>, vector<2x128xf32> -> vector<4x128xf32>
    %c0_3 = arith.constant 0 : index
    %c0_4 = arith.constant 0 : index
    %15 = vector.load %arg1[%c0_3, %c0_4] : memref<136x1536xf32, #tpu.memory_space<vmem>>, vector<128x128xf32>
    %c128 = arith.constant 128 : index
    %c0_5 = arith.constant 0 : index
    %16 = vector.load %arg1[%c128, %c0_5] : memref<136x1536xf32, #tpu.memory_space<vmem>>, vector<1x128xf32>
    %cst_6 = arith.constant dense<0.000000e+00> : vector<4x128xf32>
    %17 = tpu.matmul %14, %15, %cst_6 {dimension_numbers = #tpu.dot_dimension_numbers<[1], [0], [0], [1], [0, 0, 1, 1], [], []>, precision = #tpu.contract_precision<fp32>} : vector<4x128xf32>, vector<128x128xf32>, vector<4x128xf32> -> vector<4x128xf32>
    %18 = vector.broadcast %16 : vector<1x128xf32> to vector<4x128xf32>
    %19 = arith.addf %17, %18 : vector<4x128xf32>
    %cst_7 = arith.constant 0.000000e+00 : f32
    %20 = vector.broadcast %cst_7 : f32 to vector<4x128xf32>
    %21 = arith.maximumf %19, %20 : vector<4x128xf32>
    %c0_8 = arith.constant 0 : index
    %c128_9 = arith.constant 128 : index
    %22 = vector.load %arg1[%c0_8, %c128_9] : memref<136x1536xf32, #tpu.memory_space<vmem>>, vector<128x128xf32>
    %c128_10 = arith.constant 128 : index
    %c128_11 = arith.constant 128 : index
    %23 = vector.load %arg1[%c128_10, %c128_11] : memref<136x1536xf32, #tpu.memory_space<vmem>>, vector<1x128xf32>
    %cst_12 = arith.constant dense<0.000000e+00> : vector<4x128xf32>
    %24 = tpu.matmul %21, %22, %cst_12 {dimension_numbers = #tpu.dot_dimension_numbers<[1], [0], [0], [1], [0, 0, 1, 1], [], []>, precision = #tpu.contract_precision<fp32>} : vector<4x128xf32>, vector<128x128xf32>, vector<4x128xf32> -> vector<4x128xf32>
    %25 = vector.broadcast %23 : vector<1x128xf32> to vector<4x128xf32>
    %26 = arith.addf %24, %25 : vector<4x128xf32>
    %cst_13 = arith.constant 0.000000e+00 : f32
    %27 = vector.broadcast %cst_13 : f32 to vector<4x128xf32>
    %28 = arith.maximumf %26, %27 : vector<4x128xf32>
    %c0_14 = arith.constant 0 : index
    %c256 = arith.constant 256 : index
    %29 = vector.load %arg1[%c0_14, %c256] : memref<136x1536xf32, #tpu.memory_space<vmem>>, vector<128x128xf32>
    %c128_15 = arith.constant 128 : index
    %c256_16 = arith.constant 256 : index
    %30 = vector.load %arg1[%c128_15, %c256_16] : memref<136x1536xf32, #tpu.memory_space<vmem>>, vector<1x128xf32>
    %cst_17 = arith.constant dense<0.000000e+00> : vector<4x128xf32>
    %31 = tpu.matmul %28, %29, %cst_17 {dimension_numbers = #tpu.dot_dimension_numbers<[1], [0], [0], [1], [0, 0, 1, 1], [], []>, precision = #tpu.contract_precision<fp32>} : vector<4x128xf32>, vector<128x128xf32>, vector<4x128xf32> -> vector<4x128xf32>
    %32 = vector.broadcast %30 : vector<1x128xf32> to vector<4x128xf32>
    %33 = arith.addf %31, %32 : vector<4x128xf32>
    %cst_18 = arith.constant 0.000000e+00 : f32
    %34 = vector.broadcast %cst_18 : f32 to vector<4x128xf32>
    %35 = arith.maximumf %33, %34 : vector<4x128xf32>
    %c0_19 = arith.constant 0 : index
    %c384 = arith.constant 384 : index
    %36 = vector.load %arg1[%c0_19, %c384] : memref<136x1536xf32, #tpu.memory_space<vmem>>, vector<128x128xf32>
    %c128_20 = arith.constant 128 : index
    %c384_21 = arith.constant 384 : index
    %37 = vector.load %arg1[%c128_20, %c384_21] : memref<136x1536xf32, #tpu.memory_space<vmem>>, vector<1x128xf32>
    %cst_22 = arith.constant dense<0.000000e+00> : vector<4x128xf32>
    %38 = tpu.matmul %35, %36, %cst_22 {dimension_numbers = #tpu.dot_dimension_numbers<[1], [0], [0], [1], [0, 0, 1, 1], [], []>, precision = #tpu.contract_precision<fp32>} : vector<4x128xf32>, vector<128x128xf32>, vector<4x128xf32> -> vector<4x128xf32>
    %39 = vector.broadcast %37 : vector<1x128xf32> to vector<4x128xf32>
    %40 = arith.addf %38, %39 : vector<4x128xf32>
    %41 = vector.extract_strided_slice %40 {offsets = [0, 0], sizes = [4, 2], strides = [1, 1]} : vector<4x128xf32> to vector<4x2xf32>
    %42 = vector.extract_strided_slice %40 {offsets = [0, 2], sizes = [4, 1], strides = [1, 1]} : vector<4x128xf32> to vector<4x1xf32>
    %43 = vector.extract_strided_slice %41 {offsets = [0, 0], sizes = [2, 2], strides = [1, 1]} : vector<4x2xf32> to vector<2x2xf32>
    %44 = vector.extract_strided_slice %41 {offsets = [2, 0], sizes = [2, 2], strides = [1, 1]} : vector<4x2xf32> to vector<2x2xf32>
    %45 = arith.subf %43, %44 : vector<2x2xf32>
    %cst_23 = arith.constant 5.000000e-01 : f32
    %46 = vector.broadcast %cst_23 : f32 to vector<2x2xf32>
    %47 = arith.mulf %45, %46 : vector<2x2xf32>
    %48 = arith.mulf %47, %47 : vector<2x2xf32>
    %cst_24 = arith.constant dense<0.000000e+00> : vector<2xf32>
    %49 = vector.multi_reduction <add>, %48, %cst_24 [1] : vector<2x2xf32> to vector<2xf32>
    %50 = vector.shape_cast %49 : vector<2xf32> to vector<2x1xf32>
    %51 = math.sqrt %50 : vector<2x1xf32>
    %52 = vector.broadcast %51 : vector<2x1xf32> to vector<2x2xf32>
    %53 = arith.divf %47, %52 : vector<2x2xf32>
    %54 = vector.extract_strided_slice %42 {offsets = [0, 0], sizes = [2, 1], strides = [1, 1]} : vector<4x1xf32> to vector<2x1xf32>
    %55 = vector.extract_strided_slice %42 {offsets = [2, 0], sizes = [2, 1], strides = [1, 1]} : vector<4x1xf32> to vector<2x1xf32>
    %56 = arith.addf %54, %55 : vector<2x1xf32>
    %cst_25 = arith.constant 5.000000e-01 : f32
    %57 = vector.broadcast %cst_25 : f32 to vector<2x1xf32>
    %58 = arith.mulf %56, %57 : vector<2x1xf32>
    %59 = tpu.concatenate %58, %58 in 1 : vector<2x1xf32>, vector<2x1xf32> -> vector<2x2xf32>
    %cst_26 = arith.constant 5.000000e-01 : f32
    %60 = vector.broadcast %cst_26 : f32 to vector<2x2xf32>
    %61 = arith.mulf %60, %59 : vector<2x2xf32>
    %62 = math.exp %61 : vector<2x2xf32>
    %63 = arith.mulf %62, %3 : vector<2x2xf32>
    %64 = arith.addf %53, %63 : vector<2x2xf32>
    %65 = arith.mulf %64, %64 : vector<2x2xf32>
    %cst_27 = arith.constant dense<0.000000e+00> : vector<2xf32>
    %66 = vector.multi_reduction <add>, %65, %cst_27 [1] : vector<2x2xf32> to vector<2xf32>
    %67 = vector.shape_cast %66 : vector<2xf32> to vector<2x1xf32>
    %68 = math.sqrt %67 : vector<2x1xf32>
    %69 = vector.broadcast %68 : vector<2x1xf32> to vector<2x2xf32>
    %70 = arith.divf %64, %69 : vector<2x2xf32>
    %cst_28 = arith.constant 0.000000e+00 : f32
    %71 = vector.broadcast %cst_28 : f32 to vector<2x2xf32>
    %72 = arith.subf %71, %70 : vector<2x2xf32>
    %73 = tpu.concatenate %70, %72 in 0 : vector<2x2xf32>, vector<2x2xf32> -> vector<4x2xf32>
    %74 = tpu.concatenate %2, %2 in 0 : vector<2x4xf32>, vector<2x4xf32> -> vector<4x4xf32>
    %cst_29 = arith.constant 0.000000e+00 : f32
    %75 = vector.broadcast %cst_29 : f32 to vector<4x122xf32>
    %76 = tpu.concatenate %73, %74, %75 in 1 : vector<4x2xf32>, vector<4x4xf32>, vector<4x122xf32> -> vector<4x128xf32>
    %c0_30 = arith.constant 0 : index
    %c512 = arith.constant 512 : index
    %77 = vector.load %arg1[%c0_30, %c512] : memref<136x1536xf32, #tpu.memory_space<vmem>>, vector<128x128xf32>
    %c128_31 = arith.constant 128 : index
    %c512_32 = arith.constant 512 : index
    %78 = vector.load %arg1[%c128_31, %c512_32] : memref<136x1536xf32, #tpu.memory_space<vmem>>, vector<1x128xf32>
    %cst_33 = arith.constant dense<0.000000e+00> : vector<4x128xf32>
    %79 = tpu.matmul %76, %77, %cst_33 {dimension_numbers = #tpu.dot_dimension_numbers<[1], [0], [0], [1], [0, 0, 1, 1], [], []>, precision = #tpu.contract_precision<fp32>} : vector<4x128xf32>, vector<128x128xf32>, vector<4x128xf32> -> vector<4x128xf32>
    %80 = vector.broadcast %78 : vector<1x128xf32> to vector<4x128xf32>
    %81 = arith.addf %79, %80 : vector<4x128xf32>
    %cst_34 = arith.constant 0.000000e+00 : f32
    %82 = vector.broadcast %cst_34 : f32 to vector<4x128xf32>
    %83 = arith.maximumf %81, %82 : vector<4x128xf32>
    %c0_35 = arith.constant 0 : index
    %c640 = arith.constant 640 : index
    %84 = vector.load %arg1[%c0_35, %c640] : memref<136x1536xf32, #tpu.memory_space<vmem>>, vector<128x128xf32>
    %c128_36 = arith.constant 128 : index
    %c640_37 = arith.constant 640 : index
    %85 = vector.load %arg1[%c128_36, %c640_37] : memref<136x1536xf32, #tpu.memory_space<vmem>>, vector<1x128xf32>
    %cst_38 = arith.constant dense<0.000000e+00> : vector<4x128xf32>
    %86 = tpu.matmul %83, %84, %cst_38 {dimension_numbers = #tpu.dot_dimension_numbers<[1], [0], [0], [1], [0, 0, 1, 1], [], []>, precision = #tpu.contract_precision<fp32>} : vector<4x128xf32>, vector<128x128xf32>, vector<4x128xf32> -> vector<4x128xf32>
    %87 = vector.broadcast %85 : vector<1x128xf32> to vector<4x128xf32>
    %88 = arith.addf %86, %87 : vector<4x128xf32>
    %cst_39 = arith.constant 0.000000e+00 : f32
    %89 = vector.broadcast %cst_39 : f32 to vector<4x128xf32>
    %90 = arith.maximumf %88, %89 : vector<4x128xf32>
    %c0_40 = arith.constant 0 : index
    %c768 = arith.constant 768 : index
    %91 = vector.load %arg1[%c0_40, %c768] : memref<136x1536xf32, #tpu.memory_space<vmem>>, vector<128x128xf32>
    %c128_41 = arith.constant 128 : index
    %c768_42 = arith.constant 768 : index
    %92 = vector.load %arg1[%c128_41, %c768_42] : memref<136x1536xf32, #tpu.memory_space<vmem>>, vector<1x128xf32>
    %cst_43 = arith.constant dense<0.000000e+00> : vector<4x128xf32>
    %93 = tpu.matmul %90, %91, %cst_43 {dimension_numbers = #tpu.dot_dimension_numbers<[1], [0], [0], [1], [0, 0, 1, 1], [], []>, precision = #tpu.contract_precision<fp32>} : vector<4x128xf32>, vector<128x128xf32>, vector<4x128xf32> -> vector<4x128xf32>
    %94 = vector.broadcast %92 : vector<1x128xf32> to vector<4x128xf32>
    %95 = arith.addf %93, %94 : vector<4x128xf32>
    %cst_44 = arith.constant 0.000000e+00 : f32
    %96 = vector.broadcast %cst_44 : f32 to vector<4x128xf32>
    %97 = arith.maximumf %95, %96 : vector<4x128xf32>
    %c0_45 = arith.constant 0 : index
    %c896 = arith.constant 896 : index
    %98 = vector.load %arg1[%c0_45, %c896] : memref<136x1536xf32, #tpu.memory_space<vmem>>, vector<128x128xf32>
    %c128_46 = arith.constant 128 : index
    %c896_47 = arith.constant 896 : index
    %99 = vector.load %arg1[%c128_46, %c896_47] : memref<136x1536xf32, #tpu.memory_space<vmem>>, vector<1x128xf32>
    %cst_48 = arith.constant dense<0.000000e+00> : vector<4x128xf32>
    %100 = tpu.matmul %97, %98, %cst_48 {dimension_numbers = #tpu.dot_dimension_numbers<[1], [0], [0], [1], [0, 0, 1, 1], [], []>, precision = #tpu.contract_precision<fp32>} : vector<4x128xf32>, vector<128x128xf32>, vector<4x128xf32> -> vector<4x128xf32>
    %101 = vector.broadcast %99 : vector<1x128xf32> to vector<4x128xf32>
    %102 = arith.addf %100, %101 : vector<4x128xf32>
    %103 = vector.extract_strided_slice %102 {offsets = [0, 0], sizes = [2, 1], strides = [1, 1]} : vector<4x128xf32> to vector<2x1xf32>
    %104 = vector.extract_strided_slice %102 {offsets = [2, 0], sizes = [2, 1], strides = [1, 1]} : vector<4x128xf32> to vector<2x1xf32>
    %105 = arith.addf %103, %104 : vector<2x1xf32>
    %cst_49 = arith.constant 5.000000e-01 : f32
    %106 = vector.broadcast %cst_49 : f32 to vector<2x1xf32>
    %107 = arith.mulf %105, %106 : vector<2x1xf32>
    %c0_50 = arith.constant 0 : index
    %c1024 = arith.constant 1024 : index
    %108 = vector.load %arg1[%c0_50, %c1024] : memref<136x1536xf32, #tpu.memory_space<vmem>>, vector<128x128xf32>
    %c128_51 = arith.constant 128 : index
    %c1024_52 = arith.constant 1024 : index
    %109 = vector.load %arg1[%c128_51, %c1024_52] : memref<136x1536xf32, #tpu.memory_space<vmem>>, vector<1x128xf32>
    %cst_53 = arith.constant dense<0.000000e+00> : vector<4x128xf32>
    %110 = tpu.matmul %76, %108, %cst_53 {dimension_numbers = #tpu.dot_dimension_numbers<[1], [0], [0], [1], [0, 0, 1, 1], [], []>, precision = #tpu.contract_precision<fp32>} : vector<4x128xf32>, vector<128x128xf32>, vector<4x128xf32> -> vector<4x128xf32>
    %111 = vector.broadcast %109 : vector<1x128xf32> to vector<4x128xf32>
    %112 = arith.addf %110, %111 : vector<4x128xf32>
    %cst_54 = arith.constant 0.000000e+00 : f32
    %113 = vector.broadcast %cst_54 : f32 to vector<4x128xf32>
    %114 = arith.maximumf %112, %113 : vector<4x128xf32>
    %c0_55 = arith.constant 0 : index
    %c1152 = arith.constant 1152 : index
    %115 = vector.load %arg1[%c0_55, %c1152] : memref<136x1536xf32, #tpu.memory_space<vmem>>, vector<128x128xf32>
    %c128_56 = arith.constant 128 : index
    %c1152_57 = arith.constant 1152 : index
    %116 = vector.load %arg1[%c128_56, %c1152_57] : memref<136x1536xf32, #tpu.memory_space<vmem>>, vector<1x128xf32>
    %cst_58 = arith.constant dense<0.000000e+00> : vector<4x128xf32>
    %117 = tpu.matmul %114, %115, %cst_58 {dimension_numbers = #tpu.dot_dimension_numbers<[1], [0], [0], [1], [0, 0, 1, 1], [], []>, precision = #tpu.contract_precision<fp32>} : vector<4x128xf32>, vector<128x128xf32>, vector<4x128xf32> -> vector<4x128xf32>
    %118 = vector.broadcast %116 : vector<1x128xf32> to vector<4x128xf32>
    %119 = arith.addf %117, %118 : vector<4x128xf32>
    %cst_59 = arith.constant 0.000000e+00 : f32
    %120 = vector.broadcast %cst_59 : f32 to vector<4x128xf32>
    %121 = arith.maximumf %119, %120 : vector<4x128xf32>
    %c0_60 = arith.constant 0 : index
    %c1280 = arith.constant 1280 : index
    %122 = vector.load %arg1[%c0_60, %c1280] : memref<136x1536xf32, #tpu.memory_space<vmem>>, vector<128x128xf32>
    %c128_61 = arith.constant 128 : index
    %c1280_62 = arith.constant 1280 : index
    %123 = vector.load %arg1[%c128_61, %c1280_62] : memref<136x1536xf32, #tpu.memory_space<vmem>>, vector<1x128xf32>
    %cst_63 = arith.constant dense<0.000000e+00> : vector<4x128xf32>
    %124 = tpu.matmul %121, %122, %cst_63 {dimension_numbers = #tpu.dot_dimension_numbers<[1], [0], [0], [1], [0, 0, 1, 1], [], []>, precision = #tpu.contract_precision<fp32>} : vector<4x128xf32>, vector<128x128xf32>, vector<4x128xf32> -> vector<4x128xf32>
    %125 = vector.broadcast %123 : vector<1x128xf32> to vector<4x128xf32>
    %126 = arith.addf %124, %125 : vector<4x128xf32>
    %cst_64 = arith.constant 0.000000e+00 : f32
    %127 = vector.broadcast %cst_64 : f32 to vector<4x128xf32>
    %128 = arith.maximumf %126, %127 : vector<4x128xf32>
    %c0_65 = arith.constant 0 : index
    %c1408 = arith.constant 1408 : index
    %129 = vector.load %arg1[%c0_65, %c1408] : memref<136x1536xf32, #tpu.memory_space<vmem>>, vector<128x128xf32>
    %c128_66 = arith.constant 128 : index
    %c1408_67 = arith.constant 1408 : index
    %130 = vector.load %arg1[%c128_66, %c1408_67] : memref<136x1536xf32, #tpu.memory_space<vmem>>, vector<1x128xf32>
    %cst_68 = arith.constant dense<0.000000e+00> : vector<4x128xf32>
    %131 = tpu.matmul %128, %129, %cst_68 {dimension_numbers = #tpu.dot_dimension_numbers<[1], [0], [0], [1], [0, 0, 1, 1], [], []>, precision = #tpu.contract_precision<fp32>} : vector<4x128xf32>, vector<128x128xf32>, vector<4x128xf32> -> vector<4x128xf32>
    %132 = vector.broadcast %130 : vector<1x128xf32> to vector<4x128xf32>
    %133 = arith.addf %131, %132 : vector<4x128xf32>
    %134 = vector.extract_strided_slice %133 {offsets = [0, 0], sizes = [2, 64], strides = [1, 1]} : vector<4x128xf32> to vector<2x64xf32>
    %135 = vector.extract_strided_slice %133 {offsets = [2, 0], sizes = [2, 64], strides = [1, 1]} : vector<4x128xf32> to vector<2x64xf32>
    %136 = arith.subf %134, %135 : vector<2x64xf32>
    %cst_69 = arith.constant 5.000000e-01 : f32
    %137 = vector.broadcast %cst_69 : f32 to vector<2x64xf32>
    %138 = arith.mulf %136, %137 : vector<2x64xf32>
    %139 = vector.extract_strided_slice %133 {offsets = [0, 64], sizes = [2, 64], strides = [1, 1]} : vector<4x128xf32> to vector<2x64xf32>
    %140 = vector.extract_strided_slice %133 {offsets = [2, 64], sizes = [2, 64], strides = [1, 1]} : vector<4x128xf32> to vector<2x64xf32>
    %141 = arith.addf %139, %140 : vector<2x64xf32>
    %cst_70 = arith.constant 5.000000e-01 : f32
    %142 = vector.broadcast %cst_70 : f32 to vector<2x64xf32>
    %143 = arith.mulf %141, %142 : vector<2x64xf32>
    %144 = math.exp %107 : vector<2x1xf32>
    %145 = vector.broadcast %144 : vector<2x1xf32> to vector<2x64xf32>
    %146 = arith.mulf %145, %138 : vector<2x64xf32>
    %147 = tpu.iota {dimensions = array<i32: 1>} : vector<64x64xi32>
    %148 = arith.sitofp %147 : vector<64x64xi32> to vector<64x64xf32>
    %cst_71 = arith.constant 0.0158730168 : f32
    %149 = vector.broadcast %cst_71 : f32 to vector<64x64xf32>
    %150 = arith.mulf %148, %149 : vector<64x64xf32>
    %151 = tpu.transpose %143, [1, 0] : vector<2x64xf32> -> vector<64x2xf32>
    %152 = vector.extract_strided_slice %151 {offsets = [0, 0], sizes = [64, 1], strides = [1, 1]} : vector<64x2xf32> to vector<64x1xf32>
    %153 = vector.broadcast %152 : vector<64x1xf32> to vector<64x64xf32>
    %154 = arith.mulf %153, %150 : vector<64x64xf32>
    %155 = math.exp %154 : vector<64x64xf32>
    %156 = vector.extract_strided_slice %146 {offsets = [0, 0], sizes = [1, 64], strides = [1, 1]} : vector<2x64xf32> to vector<1x64xf32>
    %cst_72 = arith.constant dense<0.000000e+00> : vector<1x64xf32>
    %157 = tpu.matmul %156, %155, %cst_72 {dimension_numbers = #tpu.dot_dimension_numbers<[1], [0], [0], [1], [0, 0, 1, 1], [], []>, precision = #tpu.contract_precision<fp32>} : vector<1x64xf32>, vector<64x64xf32>, vector<1x64xf32> -> vector<1x64xf32>
    %158 = vector.extract_strided_slice %151 {offsets = [0, 1], sizes = [64, 1], strides = [1, 1]} : vector<64x2xf32> to vector<64x1xf32>
    %159 = vector.broadcast %158 : vector<64x1xf32> to vector<64x64xf32>
    %160 = arith.mulf %159, %150 : vector<64x64xf32>
    %161 = math.exp %160 : vector<64x64xf32>
    %162 = vector.extract_strided_slice %146 {offsets = [1, 0], sizes = [1, 64], strides = [1, 1]} : vector<2x64xf32> to vector<1x64xf32>
    %cst_73 = arith.constant dense<0.000000e+00> : vector<1x64xf32>
    %163 = tpu.matmul %162, %161, %cst_73 {dimension_numbers = #tpu.dot_dimension_numbers<[1], [0], [0], [1], [0, 0, 1, 1], [], []>, precision = #tpu.contract_precision<fp32>} : vector<1x64xf32>, vector<64x64xf32>, vector<1x64xf32> -> vector<1x64xf32>
    %164 = tpu.concatenate %157, %163 in 0 : vector<1x64xf32>, vector<1x64xf32> -> vector<2x64xf32>
    %cst_74 = arith.constant 0.000000e+00 : f32
    %165 = vector.broadcast %cst_74 : f32 to vector<2x60xf32>
    %166 = tpu.concatenate %164, %53, %59, %165 in 1 : vector<2x64xf32>, vector<2x2xf32>, vector<2x2xf32>, vector<2x60xf32> -> vector<2x128xf32>
    %c0_75 = arith.constant 0 : index
    %c0_76 = arith.constant 0 : index
    %167 = vector.load %arg2[%c0_75, %c0_76] : memref<2x128xf32, #tpu.memory_space<vmem>>, vector<2x128xf32>
    tpu.vector_store %arg2[%c0_75, %c0_76], %166 {strides = array<i32>} : memref<2x128xf32, #tpu.memory_space<vmem>>, vector<2x128xf32>,
    return
  }
}

</mosaic_0001>

<llo_original>
// kernel: vae_forward.1
$region0: #{vae_forward.1}
  #allocation0 [shape = 'u32[]', space=smem, size = 0x4, offset = 0x4, fixed_abs, tag = 'smem constant byte address 0x4 - core index']
  #allocation1 [shape = 'u32[144,128]{1,0:T(1,128)}', space=vmem, size = 0x12000, scoped, tag = 'internal scratch']
  %s0 = inlined_call_operand.vmem [shape: f32[2,128], index: 0, kind: input, shape index: {}]
  %s1 = inlined_call_operand.hbm [shape: f32[136,1536], index: 1, kind: input, shape index: {}]
  %s2 = inlined_call_operand.vmem [shape: f32[2,128], index: 2, kind: output, shape index: {}]
  %s3 = sld [smem:[#allocation0]]
  $region22: #{vae_forward.1} parent=0
    _
  %s5 = ssub.s32 1, %s3
  %s6 = scalar_select 0, %s5, %s3
  $region1: #{vae_forward.1} parent=0
    #allocation2 [shape = 'u8[835584]{0}', space=vmem, size = 0xcc000, scoped, tag = 'input window, operand 1, single buffered']
    #allocation3 [shape = 's32[1]{0}', space=sflag, size = 0x4, scoped, tag = 'scoped memory for vae_forward.1']
    %7 = vsyncpa [#allocation3], 0
    // Predicated region
    $region2: #{vae_forward.1} parent=1 // pred_check
      _
    $region3: #{vae_forward.1} parent=1 // pred_check_branch
      %9 = sbr.rel (0) target = $region5
    $region4: #{vae_forward.1} parent=1 // pred_region
      _
    $region5: #{vae_forward.1} parent=1 // pred_fallthru
      _
    // Predicated region
    $region6: #{vae_forward.1} parent=1 // pred_check
      _
    $region7: #{vae_forward.1} parent=1 // pred_check_branch
      %11 = sbr.rel (0) target = $region9
    $region8: #{vae_forward.1} parent=1 // pred_region
      %s13 = ssub.s32 26112, 26112
      %14 = vsyncadd [#allocation3], %s13
      %s15 = sshll.u32 [#allocation2], 4
      %s16 = int_to_ptr.vmem [resolvable:$true] %s15
      %21 = dma.hbm_to_vmem [thread:$0]  %s1, 26112, %s16, [#allocation3], 1536, 1536, 96
    $region9: #{vae_forward.1} parent=1 // pred_fallthru
      _
    // Predicated region
    $region10: #{vae_forward.1} parent=1 // pred_check
      _
    $region11: #{vae_forward.1} parent=1 // pred_check_branch
      %23 = sbr.rel (0) target = $region13
    $region12: #{vae_forward.1} parent=1 // pred_region
      %24 = dma.done [#allocation3], 26112
    $region13: #{vae_forward.1} parent=1 // pred_fallthru
      _
    %v25 = vld [vmem:[%s0] sm:$0x3]
    %v26 = vmul.f32 %v25, %v25
    %vm27 = vcmask 517120
    %v28 = vsel %vm27, %v26, 0.0
    %29 = vadd.xlane.f32.xlu0 %v28
    %v30 = vpop.xlane.xlu0 %29
    %v31 = vrcp.pop 64.0
    %v32 = vmul.f32 %v30, %v31
    %v33 = vrsqrt.pop %v32
    %v34 = vmul.f32 %v32, %v33
    %vm35 = vcmp.eq.f32.partialorder %v32, inf
    %v36 = vsel %vm35, %v32, %v34
    %vm37 = vcmp.eq.f32.partialorder %v32, 0.0
    %v38 = vand.u32 %v32, 2147483648
    %v39 = vsel %vm37, %v38, %v36
    %v40 = vrcp.pop %v39
    %v41 = vmul.f32 %v25, %v40
    %v42 = vsub.f32 0.0, %v41
    %v44 = vrot.slane %v42, 6
    %vm46 = vcmask 1041408
    %v47 = vsel %vm46, %v41, %v44
    %v48 = vld [vmem:[#allocation2] sm:$0xff]
    %v49 = vld [vmem:[#allocation2 + $0x60] sm:$0xff]
    %v50 = vld [vmem:[#allocation2 + $0xc0] sm:$0xff]
    %v51 = vld [vmem:[#allocation2 + $0x120] sm:$0xff]
    %v52 = vld [vmem:[#allocation2 + $0x180] sm:$0xff]
    %v53 = vld [vmem:[#allocation2 + $0x1e0] sm:$0xff]
    %v54 = vld [vmem:[#allocation2 + $0x240] sm:$0xff]
    %v55 = vld [vmem:[#allocation2 + $0x2a0] sm:$0xff]
    %v56 = vld [vmem:[#allocation2 + $0x300] sm:$0xff]
    %v57 = vld [vmem:[#allocation2 + $0x360] sm:$0xff]
    %v58 = vld [vmem:[#allocation2 + $0x3c0] sm:$0xff]
    %v59 = vld [vmem:[#allocation2 + $0x420] sm:$0xff]
    %v60 = vld [vmem:[#allocation2 + $0x480] sm:$0xff]
    %v61 = vld [vmem:[#allocation2 + $0x4e0] sm:$0xff]
    %v62 = vld [vmem:[#allocation2 + $0x540] sm:$0xff]
    %v63 = vld [vmem:[#allocation2 + $0x5a0] sm:$0xff]
    %v64 = vld [vmem:[#allocation2 + $0x600] ss:$0 sm:$0xff]
    %65 = vmatprep.subr.mxu0 0.0
    %v66 = vand.u32 %v63, 4294901760
    %67 = vmatpush1.msra.mxu0 %v66
    %68 = vmatprep.subr.mxu0 0.0
    %v69 = vand.u32 %v62, 4294901760
    %70 = vmatpush1.msra.mxu0 %v69
    %71 = vmatprep.subr.mxu0 0.0
    %v72 = vand.u32 %v61, 4294901760
    %73 = vmatpush1.msra.mxu0 %v72
    %74 = vmatprep.subr.mxu0 0.0
    %v75 = vand.u32 %v60, 4294901760
    %76 = vmatpush1.msra.mxu0 %v75
    %77 = vmatprep.subr.mxu0 0.0
    %v78 = vand.u32 %v59, 4294901760
    %79 = vmatpush1.msra.mxu0 %v78
    %80 = vmatprep.subr.mxu0 0.0
    %v81 = vand.u32 %v58, 4294901760
    %82 = vmatpush1.msra.mxu0 %v81
    %83 = vmatprep.subr.mxu0 0.0
    %v84 = vand.u32 %v57, 4294901760
    %85 = vmatpush1.msra.mxu0 %v84
    %86 = vmatprep.subr.mxu0 0.0
    %v87 = vand.u32 %v56, 4294901760
    %88 = vmatpush1.msra.mxu0 %v87
    %89 = vmatprep.subr.mxu0 0.0
    %v90 = vand.u32 %v55, 4294901760
    %91 = vmatpush1.msra.mxu0 %v90
    %92 = vmatprep.subr.mxu0 0.0
    %v93 = vand.u32 %v54, 4294901760
    %94 = vmatpush1.msra.mxu0 %v93
    %95 = vmatprep.subr.mxu0 0.0
    %v96 = vand.u32 %v53, 4294901760
    %97 = vmatpush1.msra.mxu0 %v96
    %98 = vmatprep.subr.mxu0 0.0
    %v99 = vand.u32 %v52, 4294901760
    %100 = vmatpush1.msra.mxu0 %v99
    %101 = vmatprep.subr.mxu0 0.0
    %v102 = vand.u32 %v51, 4294901760
    %103 = vmatpush1.msra.mxu0 %v102
    %104 = vmatprep.subr.mxu0 0.0
    %v105 = vand.u32 %v50, 4294901760
    %106 = vmatpush1.msra.mxu0 %v105
    %107 = vmatprep.subr.mxu0 0.0
    %v108 = vand.u32 %v49, 4294901760
    %109 = vmatpush1.msra.mxu0 %v108
    %110 = vmatprep.subr.mxu0 0.0
    %v111 = vand.u32 %v48, 4294901760
    %112 = vmatpush1.msra.mxu0 %v111
    %113 = vmatprep.subr.mxu0 0.0
    %114 = vmatpush2.msra.mxu0 0.0
    %115 = vmatprep.subr.mxu0 0.0
    %116 = vmatpush2.msra.mxu0 0.0
    %117 = vmatprep.subr.mxu0 0.0
    %118 = vmatpush2.msra.mxu0 0.0
    %119 = vmatprep.subr.mxu0 0.0
    %120 = vmatpush2.msra.mxu0 0.0
    %121 = vmatprep.subr.mxu0 0.0
    %122 = vmatpush2.msra.mxu0 0.0
    %123 = vmatprep.subr.mxu0 0.0
    %124 = vmatpush2.msra.mxu0 0.0
    %125 = vmatprep.subr.mxu0 0.0
    %126 = vmatpush2.msra.mxu0 0.0
    %127 = vmatprep.subr.mxu0 0.0
    %128 = vmatpush2.msra.mxu0 0.0
    %129 = vmatprep.subr.mxu0 0.0
    %130 = vmatpush2.msra.mxu0 0.0
    %131 = vmatprep.subr.mxu0 0.0
    %132 = vmatpush2.msra.mxu0 0.0
    %133 = vmatprep.subr.mxu0 0.0
    %134 = vmatpush2.msra.mxu0 0.0
    %135 = vmatprep.subr.mxu0 0.0
    %136 = vmatpush2.msra.mxu0 0.0
    %137 = vmatprep.subr.mxu0 0.0
    %138 = vmatpush2.msra.mxu0 0.0
    %139 = vmatprep.subr.mxu0 0.0
    %140 = vmatpush2.msra.mxu0 0.0
    %141 = vmatprep.subr.mxu0 0.0
    %142 = vmatpush2.msra.mxu0 0.0
    %143 = vmatprep.subr.mxu0 0.0
    %144 = vmatpush2.msra.mxu0 0.0
    %145 = vmatprep.mubr.f32.mxu0 0.0
    %v146 = vand.u32 %v47, 4294901760
    %v147 = vsub.f32 %v47, %v146
    %v148 = vand.u32 %v147, 4294901760
    %v149 = vsub.f32 %v147, %v148
    %v150 = vand.u32 %v149, 4294901760
    %151 = vmatmul.mubr.f32.gmra.mxu0 %v150
    %v152 = vpop.f32.mrf.mxu0
    %v153 = vadd.f32 %v64, %v152
    %v154 = vpop.f32.mrf.mxu0
    %155 = vdwg.mxu0
    %156 = vmatprep.subr.mxu0 0.0
    %v157 = vand.u32 %v63, 4294901760
    %v158 = vsub.f32 %v63, %v157
    %v159 = vand.u32 %v158, 4294901760
    %v160 = vsub.f32 %v158, %v159
    %v161 = vand.u32 %v160, 4294901760
    %162 = vmatpush1.msra.mxu0 %v161
    %163 = vmatprep.subr.mxu0 0.0
    %v164 = vand.u32 %v62, 4294901760
    %v165 = vsub.f32 %v62, %v164
    %v166 = vand.u32 %v165, 4294901760
    %v167 = vsub.f32 %v165, %v166
    %v168 = vand.u32 %v167, 4294901760
    %169 = vmatpush1.msra.mxu0 %v168
    %170 = vmatprep.subr.mxu0 0.0
    %v171 = vand.u32 %v61, 4294901760
    %v172 = vsub.f32 %v61, %v171
    %v173 = vand.u32 %v172, 4294901760
    %v174 = vsub.f32 %v172, %v173
    %v175 = vand.u32 %v174, 4294901760
    %176 = vmatpush1.msra.mxu0 %v175
    %177 = vmatprep.subr.mxu0 0.0
    %v178 = vand.u32 %v60, 4294901760
    %v179 = vsub.f32 %v60, %v178
    %v180 = vand.u32 %v179, 4294901760
    %v181 = vsub.f32 %v179, %v180
    %v182 = vand.u32 %v181, 4294901760
    %183 = vmatpush1.msra.mxu0 %v182
    %184 = vmatprep.subr.mxu0 0.0
    %v185 = vand.u32 %v59, 4294901760
    %v186 = vsub.f32 %v59, %v185
    %v187 = vand.u32 %v186, 4294901760
    %v188 = vsub.f32 %v186, %v187
    %v189 = vand.u32 %v188, 4294901760
    %190 = vmatpush1.msra.mxu0 %v189
    %191 = vmatprep.subr.mxu0 0.0
    %v192 = vand.u32 %v58, 4294901760
    %v193 = vsub.f32 %v58, %v192
    %v194 = vand.u32 %v193, 4294901760
    %v195 = vsub.f32 %v193, %v194
    %v196 = vand.u32 %v195, 4294901760
    %197 = vmatpush1.msra.mxu0 %v196
    %198 = vmatprep.subr.mxu0 0.0
    %v199 = vand.u32 %v57, 4294901760
    %v200 = vsub.f32 %v57, %v199
    %v201 = vand.u32 %v200, 4294901760
    %v202 = vsub.f32 %v200, %v201
    %v203 = vand.u32 %v202, 4294901760
    %204 = vmatpush1.msra.mxu0 %v203
    %205 = vmatprep.subr.mxu0 0.0
    %v206 = vand.u32 %v56, 4294901760
    %v207 = vsub.f32 %v56, %v206
    %v208 = vand.u32 %v207, 4294901760
    %v209 = vsub.f32 %v207, %v208
    %v210 = vand.u32 %v209, 4294901760
    %211 = vmatpush1.msra.mxu0 %v210
    %212 = vmatprep.subr.mxu0 0.0
    %v213 = vand.u32 %v55, 4294901760
    %v214 = vsub.f32 %v55, %v213
    %v215 = vand.u32 %v214, 4294901760
    %v216 = vsub.f32 %v214, %v215
    %v217 = vand.u32 %v216, 4294901760
    %218 = vmatpush1.msra.mxu0 %v217
    %219 = vmatprep.subr.mxu0 0.0
    %v220 = vand.u32 %v54, 4294901760
    %v221 = vsub.f32 %v54, %v220
    %v222 = vand.u32 %v221, 4294901760
    %v223 = vsub.f32 %v221, %v222
    %v224 = vand.u32 %v223, 4294901760
    %225 = vmatpush1.msra.mxu0 %v224
    %226 = vmatprep.subr.mxu0 0.0
    %v227 = vand.u32 %v53, 4294901760
    %v228 = vsub.f32 %v53, %v227
    %v229 = vand.u32 %v228, 4294901760
    %v230 = vsub.f32 %v228, %v229
    %v231 = vand.u32 %v230, 4294901760
    %232 = vmatpush1.msra.mxu0 %v231
    %233 = vmatprep.subr.mxu0 0.0
    %v234 = vand.u32 %v52, 4294901760
    %v235 = vsub.f32 %v52, %v234
    %v236 = vand.u32 %v235, 4294901760
    %v237 = vsub.f32 %v235, %v236
    %v238 = vand.u32 %v237, 4294901760
    %239 = vmatpush1.msra.mxu0 %v238
    %240 = vmatprep.subr.mxu0 0.0
    %v241 = vand.u32 %v51, 4294901760
    %v242 = vsub.f32 %v51, %v241
    %v243 = vand.u32 %v242, 4294901760
    %v244 = vsub.f32 %v242, %v243
    %v245 = vand.u32 %v244, 4294901760
    %246 = vmatpush1.msra.mxu0 %v245
    %247 = vmatprep.subr.mxu0 0.0
    %v248 = vand.u32 %v50, 4294901760
    %v249 = vsub.f32 %v50, %v248
    %v250 = vand.u32 %v249, 4294901760
    %v251 = vsub.f32 %v249, %v250
    %v252 = vand.u32 %v251, 4294901760
    %253 = vmatpush1.msra.mxu0 %v252
    %254 = vmatprep.subr.mxu0 0.0
    %v255 = vand.u32 %v49, 4294901760
    %v256 = vsub.f32 %v49, %v255
    %v257 = vand.u32 %v256, 4294901760
    %v258 = vsub.f32 %v256, %v257
    %v259 = vand.u32 %v258, 4294901760
    %260 = vmatpush1.msra.mxu0 %v259
    %261 = vmatprep.subr.mxu0 0.0
    %v262 = vand.u32 %v48, 4294901760
    %v263 = vsub.f32 %v48, %v262
    %v264 = vand.u32 %v263, 4294901760
    %v265 = vsub.f32 %v263, %v264
    %v266 = vand.u32 %v265, 4294901760
    %267 = vmatpush1.msra.mxu0 %v266
    %268 = vmatprep.subr.mxu0 0.0
    %269 = vmatpush2.msra.mxu0 0.0
    %270 = vmatprep.subr.mxu0 0.0
    %271 = vmatpush2.msra.mxu0 0.0
    %272 = vmatprep.subr.mxu0 0.0
    %273 = vmatpush2.msra.mxu0 0.0
    %274 = vmatprep.subr.mxu0 0.0
    %275 = vmatpush2.msra.mxu0 0.0
    %276 = vmatprep.subr.mxu0 0.0
    %277 = vmatpush2.msra.mxu0 0.0
    %278 = vmatprep.subr.mxu0 0.0
    %279 = vmatpush2.msra.mxu0 0.0
    %280 = vmatprep.subr.mxu0 0.0
    %281 = vmatpush2.msra.mxu0 0.0
    %282 = vmatprep.subr.mxu0 0.0
    %283 = vmatpush2.msra.mxu0 0.0
    %284 = vmatprep.subr.mxu0 0.0
    %285 = vmatpush2.msra.mxu0 0.0
    %286 = vmatprep.subr.mxu0 0.0
    %287 = vmatpush2.msra.mxu0 0.0
    %288 = vmatprep.subr.mxu0 0.0
    %289 = vmatpush2.msra.mxu0 0.0
    %290 = vmatprep.subr.mxu0 0.0
    %291 = vmatpush2.msra.mxu0 0.0
    %292 = vmatprep.subr.mxu0 0.0
    %293 = vmatpush2.msra.mxu0 0.0
    %294 = vmatprep.subr.mxu0 0.0
    %295 = vmatpush2.msra.mxu0 0.0
    %296 = vmatprep.subr.mxu0 0.0
    %297 = vmatpush2.msra.mxu0 0.0
    %298 = vmatprep.subr.mxu0 0.0
    %299 = vmatpush2.msra.mxu0 0.0
    %300 = vmatprep.mubr.f32.mxu0 0.0
    %v301 = vand.u32 %v47, 4294901760
    %302 = vmatmul.mubr.f32.gmra.mxu0 %v301
    %v303 = vpop.f32.mrf.mxu0
    %v304 = vadd.f32 %v153, %v303
    %v305 = vpop.f32.mrf.mxu0
    %306 = vdwg.mxu0
    %307 = vmatprep.subr.mxu0 0.0
    %v308 = vand.u32 %v63, 4294901760
    %v309 = vsub.f32 %v63, %v308
    %310 = vmatpush1.msra.mxu0 %v309
    %311 = vmatprep.subr.mxu0 0.0
    %v312 = vand.u32 %v62, 4294901760
    %v313 = vsub.f32 %v62, %v312
    %314 = vmatpush1.msra.mxu0 %v313
    %315 = vmatprep.subr.mxu0 0.0
    %v316 = vand.u32 %v61, 4294901760
    %v317 = vsub.f32 %v61, %v316
    %318 = vmatpush1.msra.mxu0 %v317
    %319 = vmatprep.subr.mxu0 0.0
    %v320 = vand.u32 %v60, 4294901760
    %v321 = vsub.f32 %v60, %v320
    %322 = vmatpush1.msra.mxu0 %v321
    %323 = vmatprep.subr.mxu0 0.0
    %v324 = vand.u32 %v59, 4294901760
    %v325 = vsub.f32 %v59, %v324
    %326 = vmatpush1.msra.mxu0 %v325
    %327 = vmatprep.subr.mxu0 0.0
    %v328 = vand.u32 %v58, 4294901760
    %v329 = vsub.f32 %v58, %v328
    %330 = vmatpush1.msra.mxu0 %v329
    %331 = vmatprep.subr.mxu0 0.0
    %v332 = vand.u32 %v57, 4294901760
    %v333 = vsub.f32 %v57, %v332
    %334 = vmatpush1.msra.mxu0 %v333
    %335 = vmatprep.subr.mxu0 0.0
    %v336 = vand.u32 %v56, 4294901760
    %v337 = vsub.f32 %v56, %v336
    %338 = vmatpush1.msra.mxu0 %v337
    %339 = vmatprep.subr.mxu0 0.0
    %v340 = vand.u32 %v55, 4294901760
    %v341 = vsub.f32 %v55, %v340
    %342 = vmatpush1.msra.mxu0 %v341
    %343 = vmatprep.subr.mxu0 0.0
    %v344 = vand.u32 %v54, 4294901760
    %v345 = vsub.f32 %v54, %v344
    %346 = vmatpush1.msra.mxu0 %v345
    %347 = vmatprep.subr.mxu0 0.0
    %v348 = vand.u32 %v53, 4294901760
    %v349 = vsub.f32 %v53, %v348
    %350 = vmatpush1.msra.mxu0 %v349
    %351 = vmatprep.subr.mxu0 0.0
    %v352 = vand.u32 %v52, 4294901760
    %v353 = vsub.f32 %v52, %v352
    %354 = vmatpush1.msra.mxu0 %v353
    %355 = vmatprep.subr.mxu0 0.0
    %v356 = vand.u32 %v51, 4294901760
    %v357 = vsub.f32 %v51, %v356
    %358 = vmatpush1.msra.mxu0 %v357
    %359 = vmatprep.subr.mxu0 0.0
    %v360 = vand.u32 %v50, 4294901760
    %v361 = vsub.f32 %v50, %v360
    %362 = vmatpush1.msra.mxu0 %v361
    %363 = vmatprep.subr.mxu0 0.0
    %v364 = vand.u32 %v49, 4294901760
    %v365 = vsub.f32 %v49, %v364
    %366 = vmatpush1.msra.mxu0 %v365
    %367 = vmatprep.subr.mxu0 0.0
    %v368 = vand.u32 %v48, 4294901760
    %v369 = vsub.f32 %v48, %v368
    %370 = vmatpush1.msra.mxu0 %v369
    %371 = vmatprep.subr.mxu0 0.0
    %372 = vmatpush2.msra.mxu0 0.0
    %373 = vmatprep.subr.mxu0 0.0
    %374 = vmatpush2.msra.mxu0 0.0
    %375 = vmatprep.subr.mxu0 0.0
    %376 = vmatpush2.msra.mxu0 0.0
    %377 = vmatprep.subr.mxu0 0.0
    %378 = vmatpush2.msra.mxu0 0.0
    %379 = vmatprep.subr.mxu0 0.0
    %380 = vmatpush2.msra.mxu0 0.0
    %381 = vmatprep.subr.mxu0 0.0
    %382 = vmatpush2.msra.mxu0 0.0
    %383 = vmatprep.subr.mxu0 0.0
    %384 = vmatpush2.msra.mxu0 0.0
    %385 = vmatprep.subr.mxu0 0.0
    %386 = vmatpush2.msra.mxu0 0.0
    %387 = vmatprep.subr.mxu0 0.0
    %388 = vmatpush2.msra.mxu0 0.0
    %389 = vmatprep.subr.mxu0 0.0
    %390 = vmatpush2.msra.mxu0 0.0
    %391 = vmatprep.subr.mxu0 0.0
    %392 = vmatpush2.msra.mxu0 0.0
    %393 = vmatprep.subr.mxu0 0.0
    %394 = vmatpush2.msra.mxu0 0.0
    %395 = vmatprep.subr.mxu0 0.0
    %396 = vmatpush2.msra.mxu0 0.0
    %397 = vmatprep.subr.mxu0 0.0
    %398 = vmatpush2.msra.mxu0 0.0
    %399 = vmatprep.subr.mxu0 0.0
    %400 = vmatpush2.msra.mxu0 0.0
    %401 = vmatprep.subr.mxu0 0.0
    %402 = vmatpush2.msra.mxu0 0.0
    %403 = vmatprep.mubr.f32.mxu0 0.0
    %v404 = vand.u32 %v47, 4294901760
    %v405 = vsub.f32 %v47, %v404
    %406 = vmatmul.mubr.f32.gmra.mxu0 %v405
    %v407 = vpop.f32.mrf.mxu0
    %v408 = vadd.f32 %v304, %v407
    %v409 = vpop.f32.mrf.mxu0
    %410 = vdwg.mxu0
    %411 = vmatprep.subr.mxu0 0.0
    %v412 = vand.u32 %v63, 4294901760
    %413 = vmatpush1.msra.mxu0 %v412
    %414 = vmatprep.subr.mxu0 0.0
    %v415 = vand.u32 %v62, 4294901760
    %416 = vmatpush1.msra.mxu0 %v415
    %417 = vmatprep.subr.mxu0 0.0
    %v418 = vand.u32 %v61, 4294901760
    %419 = vmatpush1.msra.mxu0 %v418
    %420 = vmatprep.subr.mxu0 0.0
    %v421 = vand.u32 %v60, 4294901760
    %422 = vmatpush1.msra.mxu0 %v421
    %423 = vmatprep.subr.mxu0 0.0
    %v424 = vand.u32 %v59, 4294901760
    %425 = vmatpush1.msra.mxu0 %v424
    %426 = vmatprep.subr.mxu0 0.0
    %v427 = vand.u32 %v58, 4294901760
    %428 = vmatpush1.msra.mxu0 %v427
    %429 = vmatprep.subr.mxu0 0.0
    %v430 = vand.u32 %v57, 4294901760
    %431 = vmatpush1.msra.mxu0 %v430
    %432 = vmatprep.subr.mxu0 0.0
    %v433 = vand.u32 %v56, 4294901760
    %434 = vmatpush1.msra.mxu0 %v433
    %435 = vmatprep.subr.mxu0 0.0
    %v436 = vand.u32 %v55, 4294901760
    %437 = vmatpush1.msra.mxu0 %v436
    %438 = vmatprep.subr.mxu0 0.0
    %v439 = vand.u32 %v54, 4294901760
    %440 = vmatpush1.msra.mxu0 %v439
    %441 = vmatprep.subr.mxu0 0.0
    %v442 = vand.u32 %v53, 4294901760
    %443 = vmatpush1.msra.mxu0 %v442
    %444 = vmatprep.subr.mxu0 0.0
    %v445 = vand.u32 %v52, 4294901760
    %446 = vmatpush1.msra.mxu0 %v445
    %447 = vmatprep.subr.mxu0 0.0
    %v448 = vand.u32 %v51, 4294901760
    %449 = vmatpush1.msra.mxu0 %v448
    %450 = vmatprep.subr.mxu0 0.0
    %v451 = vand.u32 %v50, 4294901760
    %452 = vmatpush1.msra.mxu0 %v451
    %453 = vmatprep.subr.mxu0 0.0
    %v454 = vand.u32 %v49, 4294901760
    %455 = vmatpush1.msra.mxu0 %v454
    %456 = vmatprep.subr.mxu0 0.0
    %v457 = vand.u32 %v48, 4294901760
    %458 = vmatpush1.msra.mxu0 %v457
    %459 = vmatprep.subr.mxu0 0.0
    %460 = vmatpush2.msra.mxu0 0.0
    %461 = vmatprep.subr.mxu0 0.0
    %462 = vmatpush2.msra.mxu0 0.0
    %463 = vmatprep.subr.mxu0 0.0
    %464 = vmatpush2.msra.mxu0 0.0
    %465 = vmatprep.subr.mxu0 0.0
    %466 = vmatpush2.msra.mxu0 0.0
    %467 = vmatprep.subr.mxu0 0.0
    %468 = vmatpush2.msra.mxu0 0.0
    %469 = vmatprep.subr.mxu0 0.0
    %470 = vmatpush2.msra.mxu0 0.0
    %471 = vmatprep.subr.mxu0 0.0
    %472 = vmatpush2.msra.mxu0 0.0
    %473 = vmatprep.subr.mxu0 0.0
    %474 = vmatpush2.msra.mxu0 0.0
    %475 = vmatprep.subr.mxu0 0.0
    %476 = vmatpush2.msra.mxu0 0.0
    %477 = vmatprep.subr.mxu0 0.0
    %478 = vmatpush2.msra.mxu0 0.0
    %479 = vmatprep.subr.mxu0 0.0
    %480 = vmatpush2.msra.mxu0 0.0
    %481 = vmatprep.subr.mxu0 0.0
    %482 = vmatpush2.msra.mxu0 0.0
    %483 = vmatprep.subr.mxu0 0.0
    %484 = vmatpush2.msra.mxu0 0.0
    %485 = vmatprep.subr.mxu0 0.0
    %486 = vmatpush2.msra.mxu0 0.0
    %487 = vmatprep.subr.mxu0 0.0
    %488 = vmatpush2.msra.mxu0 0.0
    %489 = vmatprep.subr.mxu0 0.0
    %490 = vmatpush2.msra.mxu0 0.0
    %491 = vmatprep.mubr.f32.mxu0 0.0
    %v492 = vand.u32 %v47, 4294901760
    %v493 = vsub.f32 %v47, %v492
    %v494 = vand.u32 %v493, 4294901760
    %495 = vmatmul.mubr.f32.gmra.mxu0 %v494
    %v496 = vpop.f32.mrf.mxu0
    %v497 = vadd.f32 %v408, %v496
    %v498 = vpop.f32.mrf.mxu0
    %499 = vdwg.mxu0
    %500 = vmatprep.subr.mxu0 0.0
    %v501 = vand.u32 %v63, 4294901760
    %v502 = vsub.f32 %v63, %v501
    %v503 = vand.u32 %v502, 4294901760
    %504 = vmatpush1.msra.mxu0 %v503
    %505 = vmatprep.subr.mxu0 0.0
    %v506 = vand.u32 %v62, 4294901760
    %v507 = vsub.f32 %v62, %v506
    %v508 = vand.u32 %v507, 4294901760
    %509 = vmatpush1.msra.mxu0 %v508
    %510 = vmatprep.subr.mxu0 0.0
    %v511 = vand.u32 %v61, 4294901760
    %v512 = vsub.f32 %v61, %v511
    %v513 = vand.u32 %v512, 4294901760
    %514 = vmatpush1.msra.mxu0 %v513
    %515 = vmatprep.subr.mxu0 0.0
    %v516 = vand.u32 %v60, 4294901760
    %v517 = vsub.f32 %v60, %v516
    %v518 = vand.u32 %v517, 4294901760
    %519 = vmatpush1.msra.mxu0 %v518
    %520 = vmatprep.subr.mxu0 0.0
    %v521 = vand.u32 %v59, 4294901760
    %v522 = vsub.f32 %v59, %v521
    %v523 = vand.u32 %v522, 4294901760
    %524 = vmatpush1.msra.mxu0 %v523
    %525 = vmatprep.subr.mxu0 0.0
    %v526 = vand.u32 %v58, 4294901760
    %v527 = vsub.f32 %v58, %v526
    %v528 = vand.u32 %v527, 4294901760
    %529 = vmatpush1.msra.mxu0 %v528
    %530 = vmatprep.subr.mxu0 0.0
    %v531 = vand.u32 %v57, 4294901760
    %v532 = vsub.f32 %v57, %v531
    %v533 = vand.u32 %v532, 4294901760
    %534 = vmatpush1.msra.mxu0 %v533
    %535 = vmatprep.subr.mxu0 0.0
    %v536 = vand.u32 %v56, 4294901760
    %v537 = vsub.f32 %v56, %v536
    %v538 = vand.u32 %v537, 4294901760
    %539 = vmatpush1.msra.mxu0 %v538
    %540 = vmatprep.subr.mxu0 0.0
    %v541 = vand.u32 %v55, 4294901760
    %v542 = vsub.f32 %v55, %v541
    %v543 = vand.u32 %v542, 4294901760
    %544 = vmatpush1.msra.mxu0 %v543
    %545 = vmatprep.subr.mxu0 0.0
    %v546 = vand.u32 %v54, 4294901760
    %v547 = vsub.f32 %v54, %v546
    %v548 = vand.u32 %v547, 4294901760
    %549 = vmatpush1.msra.mxu0 %v548
    %550 = vmatprep.subr.mxu0 0.0
    %v551 = vand.u32 %v53, 4294901760
    %v552 = vsub.f32 %v53, %v551
    %v553 = vand.u32 %v552, 4294901760
    %554 = vmatpush1.msra.mxu0 %v553
    %555 = vmatprep.subr.mxu0 0.0
    %v556 = vand.u32 %v52, 4294901760
    %v557 = vsub.f32 %v52, %v556
    %v558 = vand.u32 %v557, 4294901760
    %559 = vmatpush1.msra.mxu0 %v558
    %560 = vmatprep.subr.mxu0 0.0
    %v561 = vand.u32 %v51, 4294901760
    %v562 = vsub.f32 %v51, %v561
    %v563 = vand.u32 %v562, 4294901760
    %564 = vmatpush1.msra.mxu0 %v563
    %565 = vmatprep.subr.mxu0 0.0
    %v566 = vand.u32 %v50, 4294901760
    %v567 = vsub.f32 %v50, %v566
    %v568 = vand.u32 %v567, 4294901760
    %569 = vmatpush1.msra.mxu0 %v568
    %570 = vmatprep.subr.mxu0 0.0
    %v571 = vand.u32 %v49, 4294901760
    %v572 = vsub.f32 %v49, %v571
    %v573 = vand.u32 %v572, 4294901760
    %574 = vmatpush1.msra.mxu0 %v573
    %575 = vmatprep.subr.mxu0 0.0
    %v576 = vand.u32 %v48, 4294901760
    %v577 = vsub.f32 %v48, %v576
    %v578 = vand.u32 %v577, 4294901760
    %579 = vmatpush1.msra.mxu0 %v578
    %580 = vmatprep.subr.mxu0 0.0
    %581 = vmatpush2.msra.mxu0 0.0
    %582 = vmatprep.subr.mxu0 0.0
    %583 = vmatpush2.msra.mxu0 0.0
    %584 = vmatprep.subr.mxu0 0.0
    %585 = vmatpush2.msra.mxu0 0.0
    %586 = vmatprep.subr.mxu0 0.0
    %587 = vmatpush2.msra.mxu0 0.0
    %588 = vmatprep.subr.mxu0 0.0
    %589 = vmatpush2.msra.mxu0 0.0
    %590 = vmatprep.subr.mxu0 0.0
    %591 = vmatpush2.msra.mxu0 0.0
    %592 = vmatprep.subr.mxu0 0.0
    %593 = vmatpush2.msra.mxu0 0.0
    %594 = vmatprep.subr.mxu0 0.0
    %595 = vmatpush2.msra.mxu0 0.0
    %596 = vmatprep.subr.mxu0 0.0
    %597 = vmatpush2.msra.mxu0 0.0
    %598 = vmatprep.subr.mxu0 0.0
    %599 = vmatpush2.msra.mxu0 0.0
    %600 = vmatprep.subr.mxu0 0.0
    %601 = vmatpush2.msra.mxu0 0.0
    %602 = vmatprep.subr.mxu0 0.0
    %603 = vmatpush2.msra.mxu0 0.0
    %604 = vmatprep.subr.mxu0 0.0
    %605 = vmatpush2.msra.mxu0 0.0
    %606 = vmatprep.subr.mxu0 0.0
    %607 = vmatpush2.msra.mxu0 0.0
    %608 = vmatprep.subr.mxu0 0.0
    %609 = vmatpush2.msra.mxu0 0.0
    %610 = vmatprep.subr.mxu0 0.0
    %611 = vmatpush2.msra.mxu0 0.0
    %612 = vmatprep.mubr.f32.mxu0 0.0
    %v613 = vand.u32 %v47, 4294901760
    %614 = vmatmul.mubr.f32.gmra.mxu0 %v613
    %v615 = vpop.f32.mrf.mxu0
    %v616 = vadd.f32 %v497, %v615
    %v617 = vpop.f32.mrf.mxu0
    %618 = vdwg.mxu0
    %619 = vmatprep.subr.mxu0 0.0
    %v620 = vand.u32 %v63, 4294901760
    %621 = vmatpush1.msra.mxu0 %v620
    %622 = vmatprep.subr.mxu0 0.0
    %v623 = vand.u32 %v62, 4294901760
    %624 = vmatpush1.msra.mxu0 %v623
    %625 = vmatprep.subr.mxu0 0.0
    %v626 = vand.u32 %v61, 4294901760
    %627 = vmatpush1.msra.mxu0 %v626
    %628 = vmatprep.subr.mxu0 0.0
    %v629 = vand.u32 %v60, 4294901760
    %630 = vmatpush1.msra.mxu0 %v629
    %631 = vmatprep.subr.mxu0 0.0
    %v632 = vand.u32 %v59, 4294901760
    %633 = vmatpush1.msra.mxu0 %v632
    %634 = vmatprep.subr.mxu0 0.0
    %v635 = vand.u32 %v58, 4294901760
    %636 = vmatpush1.msra.mxu0 %v635
    %637 = vmatprep.subr.mxu0 0.0
    %v638 = vand.u32 %v57, 4294901760
    %639 = vmatpush1.msra.mxu0 %v638
    %640 = vmatprep.subr.mxu0 0.0
    %v641 = vand.u32 %v56, 4294901760
    %642 = vmatpush1.msra.mxu0 %v641
    %643 = vmatprep.subr.mxu0 0.0
    %v644 = vand.u32 %v55, 4294901760
    %645 = vmatpush1.msra.mxu0 %v644
    %646 = vmatprep.subr.mxu0 0.0
    %v647 = vand.u32 %v54, 4294901760
    %648 = vmatpush1.msra.mxu0 %v647
    %649 = vmatprep.subr.mxu0 0.0
    %v650 = vand.u32 %v53, 4294901760
    %651 = vmatpush1.msra.mxu0 %v650
    %652 = vmatprep.subr.mxu0 0.0
    %v653 = vand.u32 %v52, 4294901760
    %654 = vmatpush1.msra.mxu0 %v653
    %655 = vmatprep.subr.mxu0 0.0
    %v656 = vand.u32 %v51, 4294901760
    %657 = vmatpush1.msra.mxu0 %v656
    %658 = vmatprep.subr.mxu0 0.0
    %v659 = vand.u32 %v50, 4294901760
    %660 = vmatpush1.msra.mxu0 %v659
    %661 = vmatprep.subr.mxu0 0.0
    %v662 = vand.u32 %v49, 4294901760
    %663 = vmatpush1.msra.mxu0 %v662
    %664 = vmatprep.subr.mxu0 0.0
    %v665 = vand.u32 %v48, 4294901760
    %666 = vmatpush1.msra.mxu0 %v665
    %667 = vmatprep.subr.mxu0 0.0
    %668 = vmatpush2.msra.mxu0 0.0
    %669 = vmatprep.subr.mxu0 0.0
    %670 = vmatpush2.msra.mxu0 0.0
    %671 = vmatprep.subr.mxu0 0.0
    %672 = vmatpush2.msra.mxu0 0.0
    %673 = vmatprep.subr.mxu0 0.0
    %674 = vmatpush2.msra.mxu0 0.0
    %675 = vmatprep.subr.mxu0 0.0
    %676 = vmatpush2.msra.mxu0 0.0
    %677 = vmatprep.subr.mxu0 0.0
    %678 = vmatpush2.msra.mxu0 0.0
    %679 = vmatprep.subr.mxu0 0.0
    %680 = vmatpush2.msra.mxu0 0.0
    %681 = vmatprep.subr.mxu0 0.0
    %682 = vmatpush2.msra.mxu0 0.0
    %683 = vmatprep.subr.mxu0 0.0
    %684 = vmatpush2.msra.mxu0 0.0
    %685 = vmatprep.subr.mxu0 0.0
    %686 = vmatpush2.msra.mxu0 0.0
    %687 = vmatprep.subr.mxu0 0.0
    %688 = vmatpush2.msra.mxu0 0.0
    %689 = vmatprep.subr.mxu0 0.0
    %690 = vmatpush2.msra.mxu0 0.0
    %691 = vmatprep.subr.mxu0 0.0
    %692 = vmatpush2.msra.mxu0 0.0
    %693 = vmatprep.subr.mxu0 0.0
    %694 = vmatpush2.msra.mxu0 0.0
    %695 = vmatprep.subr.mxu0 0.0
    %696 = vmatpush2.msra.mxu0 0.0
    %697 = vmatprep.subr.mxu0 0.0
    %698 = vmatpush2.msra.mxu0 0.0
    %699 = vmatprep.mubr.f32.mxu0 0.0
    %v700 = vand.u32 %v47, 4294901760
    %701 = vmatmul.mubr.f32.gmra.mxu0 %v700
    %v702 = vpop.f32.mrf.mxu0
    %v703 = vadd.f32 %v616, %v702
    %v704 = vpop.f32.mrf.mxu0
    %705 = vdwg.mxu0
    %v706 = vmax.f32 %v703, 0.0
    %v707 = vld [vmem:[#allocation2 + $0x8] sm:$0xff]
    %v708 = vld [vmem:[#allocation2 + $0x68] sm:$0xff]
    %v709 = vld [vmem:[#allocation2 + $0xc8] sm:$0xff]
    %v710 = vld [vmem:[#allocation2 + $0x128] sm:$0xff]
    %v711 = vld [vmem:[#allocation2 + $0x188] sm:$0xff]
    %v712 = vld [vmem:[#allocation2 + $0x1e8] sm:$0xff]
    %v713 = vld [vmem:[#allocation2 + $0x248] sm:$0xff]
    %v714 = vld [vmem:[#allocation2 + $0x2a8] sm:$0xff]
    %v715 = vld [vmem:[#allocation2 + $0x308] sm:$0xff]
    %v716 = vld [vmem:[#allocation2 + $0x368] sm:$0xff]
    %v717 = vld [vmem:[#allocation2 + $0x3c8] sm:$0xff]
    %v718 = vld [vmem:[#allocation2 + $0x428] sm:$0xff]
    %v719 = vld [vmem:[#allocation2 + $0x488] sm:$0xff]
    %v720 = vld [vmem:[#allocation2 + $0x4e8] sm:$0xff]
    %v721 = vld [vmem:[#allocation2 + $0x548] sm:$0xff]
    %v722 = vld [vmem:[#allocation2 + $0x5a8] sm:$0xff]
    %v723 = vld [vmem:[#allocation2 + $0x608] ss:$0 sm:$0xff]
    %724 = vmatprep.subr.mxu0 0.0
    %v725 = vand.u32 %v722, 4294901760
    %726 = vmatpush1.msra.mxu0 %v725
    %727 = vmatprep.subr.mxu0 0.0
    %v728 = vand.u32 %v721, 4294901760
    %729 = vmatpush1.msra.mxu0 %v728
    %730 = vmatprep.subr.mxu0 0.0
    %v731 = vand.u32 %v720, 4294901760
    %732 = vmatpush1.msra.mxu0 %v731
    %733 = vmatprep.subr.mxu0 0.0
    %v734 = vand.u32 %v719, 4294901760
    %735 = vmatpush1.msra.mxu0 %v734
    %736 = vmatprep.subr.mxu0 0.0
    %v737 = vand.u32 %v718, 4294901760
    %738 = vmatpush1.msra.mxu0 %v737
    %739 = vmatprep.subr.mxu0 0.0
    %v740 = vand.u32 %v717, 4294901760
    %741 = vmatpush1.msra.mxu0 %v740
    %742 = vmatprep.subr.mxu0 0.0
    %v743 = vand.u32 %v716, 4294901760
    %744 = vmatpush1.msra.mxu0 %v743
    %745 = vmatprep.subr.mxu0 0.0
    %v746 = vand.u32 %v715, 4294901760
    %747 = vmatpush1.msra.mxu0 %v746
    %748 = vmatprep.subr.mxu0 0.0
    %v749 = vand.u32 %v714, 4294901760
    %750 = vmatpush1.msra.mxu0 %v749
    %751 = vmatprep.subr.mxu0 0.0
    %v752 = vand.u32 %v713, 4294901760
    %753 = vmatpush1.msra.mxu0 %v752
    %754 = vmatprep.subr.mxu0 0.0
    %v755 = vand.u32 %v712, 4294901760
    %756 = vmatpush1.msra.mxu0 %v755
    %757 = vmatprep.subr.mxu0 0.0
    %v758 = vand.u32 %v711, 4294901760
    %759 = vmatpush1.msra.mxu0 %v758
    %760 = vmatprep.subr.mxu0 0.0
    %v761 = vand.u32 %v710, 4294901760
    %762 = vmatpush1.msra.mxu0 %v761
    %763 = vmatprep.subr.mxu0 0.0
    %v764 = vand.u32 %v709, 4294901760
    %765 = vmatpush1.msra.mxu0 %v764
    %766 = vmatprep.subr.mxu0 0.0
    %v767 = vand.u32 %v708, 4294901760
    %768 = vmatpush1.msra.mxu0 %v767
    %769 = vmatprep.subr.mxu0 0.0
    %v770 = vand.u32 %v707, 4294901760
    %771 = vmatpush1.msra.mxu0 %v770
    %772 = vmatprep.subr.mxu0 0.0
    %773 = vmatpush2.msra.mxu0 0.0
    %774 = vmatprep.subr.mxu0 0.0
    %775 = vmatpush2.msra.mxu0 0.0
    %776 = vmatprep.subr.mxu0 0.0
    %777 = vmatpush2.msra.mxu0 0.0
    %778 = vmatprep.subr.mxu0 0.0
    %779 = vmatpush2.msra.mxu0 0.0
    %780 = vmatprep.subr.mxu0 0.0
    %781 = vmatpush2.msra.mxu0 0.0
    %782 = vmatprep.subr.mxu0 0.0
    %783 = vmatpush2.msra.mxu0 0.0
    %784 = vmatprep.subr.mxu0 0.0
    %785 = vmatpush2.msra.mxu0 0.0
    %786 = vmatprep.subr.mxu0 0.0
    %787 = vmatpush2.msra.mxu0 0.0
    %788 = vmatprep.subr.mxu0 0.0
    %789 = vmatpush2.msra.mxu0 0.0
    %790 = vmatprep.subr.mxu0 0.0
    %791 = vmatpush2.msra.mxu0 0.0
    %792 = vmatprep.subr.mxu0 0.0
    %793 = vmatpush2.msra.mxu0 0.0
    %794 = vmatprep.subr.mxu0 0.0
    %795 = vmatpush2.msra.mxu0 0.0
    %796 = vmatprep.subr.mxu0 0.0
    %797 = vmatpush2.msra.mxu0 0.0
    %798 = vmatprep.subr.mxu0 0.0
    %799 = vmatpush2.msra.mxu0 0.0
    %800 = vmatprep.subr.mxu0 0.0
    %801 = vmatpush2.msra.mxu0 0.0
    %802 = vmatprep.subr.mxu0 0.0
    %803 = vmatpush2.msra.mxu0 0.0
    %804 = vmatprep.mubr.f32.mxu0 0.0
    %v805 = vand.u32 %v706, 4294901760
    %v806 = vsub.f32 %v706, %v805
    %v807 = vand.u32 %v806, 4294901760
    %v808 = vsub.f32 %v806, %v807
    %v809 = vand.u32 %v808, 4294901760
    %810 = vmatmul.mubr.f32.gmra.mxu0 %v809
    %v811 = vpop.f32.mrf.mxu0
    %v812 = vadd.f32 %v723, %v811
    %v813 = vpop.f32.mrf.mxu0
    %814 = vdwg.mxu0
    %815 = vmatprep.subr.mxu0 0.0
    %v816 = vand.u32 %v722, 4294901760
    %v817 = vsub.f32 %v722, %v816
    %v818 = vand.u32 %v817, 4294901760
    %v819 = vsub.f32 %v817, %v818
    %v820 = vand.u32 %v819, 4294901760
    %821 = vmatpush1.msra.mxu0 %v820
    %822 = vmatprep.subr.mxu0 0.0
    %v823 = vand.u32 %v721, 4294901760
    %v824 = vsub.f32 %v721, %v823
    %v825 = vand.u32 %v824, 4294901760
    %v826 = vsub.f32 %v824, %v825
    %v827 = vand.u32 %v826, 4294901760
    %828 = vmatpush1.msra.mxu0 %v827
    %829 = vmatprep.subr.mxu0 0.0
    %v830 = vand.u32 %v720, 4294901760
    %v831 = vsub.f32 %v720, %v830
    %v832 = vand.u32 %v831, 4294901760
    %v833 = vsub.f32 %v831, %v832
    %v834 = vand.u32 %v833, 4294901760
    %835 = vmatpush1.msra.mxu0 %v834
    %836 = vmatprep.subr.mxu0 0.0
    %v837 = vand.u32 %v719, 4294901760
    %v838 = vsub.f32 %v719, %v837
    %v839 = vand.u32 %v838, 4294901760
    %v840 = vsub.f32 %v838, %v839
    %v841 = vand.u32 %v840, 4294901760
    %842 = vmatpush1.msra.mxu0 %v841
    %843 = vmatprep.subr.mxu0 0.0
    %v844 = vand.u32 %v718, 4294901760
    %v845 = vsub.f32 %v718, %v844
    %v846 = vand.u32 %v845, 4294901760
    %v847 = vsub.f32 %v845, %v846
    %v848 = vand.u32 %v847, 4294901760
    %849 = vmatpush1.msra.mxu0 %v848
    %850 = vmatprep.subr.mxu0 0.0
    %v851 = vand.u32 %v717, 4294901760
    %v852 = vsub.f32 %v717, %v851
    %v853 = vand.u32 %v852, 4294901760
    %v854 = vsub.f32 %v852, %v853
    %v855 = vand.u32 %v854, 4294901760
    %856 = vmatpush1.msra.mxu0 %v855
    %857 = vmatprep.subr.mxu0 0.0
    %v858 = vand.u32 %v716, 4294901760
    %v859 = vsub.f32 %v716, %v858
    %v860 = vand.u32 %v859, 4294901760
    %v861 = vsub.f32 %v859, %v860
    %v862 = vand.u32 %v861, 4294901760
    %863 = vmatpush1.msra.mxu0 %v862
    %864 = vmatprep.subr.mxu0 0.0
    %v865 = vand.u32 %v715, 4294901760
    %v866 = vsub.f32 %v715, %v865
    %v867 = vand.u32 %v866, 4294901760
    %v868 = vsub.f32 %v866, %v867
    %v869 = vand.u32 %v868, 4294901760
    %870 = vmatpush1.msra.mxu0 %v869
    %871 = vmatprep.subr.mxu0 0.0
    %v872 = vand.u32 %v714, 4294901760
    %v873 = vsub.f32 %v714, %v872
    %v874 = vand.u32 %v873, 4294901760
    %v875 = vsub.f32 %v873, %v874
    %v876 = vand.u32 %v875, 4294901760
    %877 = vmatpush1.msra.mxu0 %v876
    %878 = vmatprep.subr.mxu0 0.0
    %v879 = vand.u32 %v713, 4294901760
    %v880 = vsub.f32 %v713, %v879
    %v881 = vand.u32 %v880, 4294901760
    %v882 = vsub.f32 %v880, %v881
    %v883 = vand.u32 %v882, 4294901760
    %884 = vmatpush1.msra.mxu0 %v883
    %885 = vmatprep.subr.mxu0 0.0
    %v886 = vand.u32 %v712, 4294901760
    %v887 = vsub.f32 %v712, %v886
    %v888 = vand.u32 %v887, 4294901760
    %v889 = vsub.f32 %v887, %v888
    %v890 = vand.u32 %v889, 4294901760
    %891 = vmatpush1.msra.mxu0 %v890
    %892 = vmatprep.subr.mxu0 0.0
    %v893 = vand.u32 %v711, 4294901760
    %v894 = vsub.f32 %v711, %v893
    %v895 = vand.u32 %v894, 4294901760
    %v896 = vsub.f32 %v894, %v895
    %v897 = vand.u32 %v896, 4294901760
    %898 = vmatpush1.msra.mxu0 %v897
    %899 = vmatprep.subr.mxu0 0.0
    %v900 = vand.u32 %v710, 4294901760
    %v901 = vsub.f32 %v710, %v900
    %v902 = vand.u32 %v901, 4294901760
    %v903 = vsub.f32 %v901, %v902
    %v904 = vand.u32 %v903, 4294901760
    %905 = vmatpush1.msra.mxu0 %v904
    %906 = vmatprep.subr.mxu0 0.0
    %v907 = vand.u32 %v709, 4294901760
    %v908 = vsub.f32 %v709, %v907
    %v909 = vand.u32 %v908, 4294901760
    %v910 = vsub.f32 %v908, %v909
    %v911 = vand.u32 %v910, 4294901760
    %912 = vmatpush1.msra.mxu0 %v911
    %913 = vmatprep.subr.mxu0 0.0
    %v914 = vand.u32 %v708, 4294901760
    %v915 = vsub.f32 %v708, %v914
    %v916 = vand.u32 %v915, 4294901760
    %v917 = vsub.f32 %v915, %v916
    %v918 = vand.u32 %v917, 4294901760
    %919 = vmatpush1.msra.mxu0 %v918
    %920 = vmatprep.subr.mxu0 0.0
    %v921 = vand.u32 %v707, 4294901760
    %v922 = vsub.f32 %v707, %v921
    %v923 = vand.u32 %v922, 4294901760
    %v924 = vsub.f32 %v922, %v923
    %v925 = vand.u32 %v924, 4294901760
    %926 = vmatpush1.msra.mxu0 %v925
    %927 = vmatprep.subr.mxu0 0.0
    %928 = vmatpush2.msra.mxu0 0.0
    %929 = vmatprep.subr.mxu0 0.0
    %930 = vmatpush2.msra.mxu0 0.0
    %931 = vmatprep.subr.mxu0 0.0
    %932 = vmatpush2.msra.mxu0 0.0
    %933 = vmatprep.subr.mxu0 0.0
    %934 = vmatpush2.msra.mxu0 0.0
    %935 = vmatprep.subr.mxu0 0.0
    %936 = vmatpush2.msra.mxu0 0.0
    %937 = vmatprep.subr.mxu0 0.0
    %938 = vmatpush2.msra.mxu0 0.0
    %939 = vmatprep.subr.mxu0 0.0
    %940 = vmatpush2.msra.mxu0 0.0
    %941 = vmatprep.subr.mxu0 0.0
    %942 = vmatpush2.msra.mxu0 0.0
    %943 = vmatprep.subr.mxu0 0.0
    %944 = vmatpush2.msra.mxu0 0.0
    %945 = vmatprep.subr.mxu0 0.0
    %946 = vmatpush2.msra.mxu0 0.0
    %947 = vmatprep.subr.mxu0 0.0
    %948 = vmatpush2.msra.mxu0 0.0
    %949 = vmatprep.subr.mxu0 0.0
    %950 = vmatpush2.msra.mxu0 0.0
    %951 = vmatprep.subr.mxu0 0.0
    %952 = vmatpush2.msra.mxu0 0.0
    %953 = vmatprep.subr.mxu0 0.0
    %954 = vmatpush2.msra.mxu0 0.0
    %955 = vmatprep.subr.mxu0 0.0
    %956 = vmatpush2.msra.mxu0 0.0
    %957 = vmatprep.subr.mxu0 0.0
    %958 = vmatpush2.msra.mxu0 0.0
    %959 = vmatprep.mubr.f32.mxu0 0.0
    %v960 = vand.u32 %v706, 4294901760
    %961 = vmatmul.mubr.f32.gmra.mxu0 %v960
    %v962 = vpop.f32.mrf.mxu0
    %v963 = vadd.f32 %v812, %v962
    %v964 = vpop.f32.mrf.mxu0
    %965 = vdwg.mxu0
    %966 = vmatprep.subr.mxu0 0.0
    %v967 = vand.u32 %v722, 4294901760
    %v968 = vsub.f32 %v722, %v967
    %969 = vmatpush1.msra.mxu0 %v968
    %970 = vmatprep.subr.mxu0 0.0
    %v971 = vand.u32 %v721, 4294901760
    %v972 = vsub.f32 %v721, %v971
    %973 = vmatpush1.msra.mxu0 %v972
    %974 = vmatprep.subr.mxu0 0.0
    %v975 = vand.u32 %v720, 4294901760
    %v976 = vsub.f32 %v720, %v975
    %977 = vmatpush1.msra.mxu0 %v976
    %978 = vmatprep.subr.mxu0 0.0
    %v979 = vand.u32 %v719, 4294901760
    %v980 = vsub.f32 %v719, %v979
    %981 = vmatpush1.msra.mxu0 %v980
    %982 = vmatprep.subr.mxu0 0.0
    %v983 = vand.u32 %v718, 4294901760
    %v984 = vsub.f32 %v718, %v983
    %985 = vmatpush1.msra.mxu0 %v984
    %986 = vmatprep.subr.mxu0 0.0
    %v987 = vand.u32 %v717, 4294901760
    %v988 = vsub.f32 %v717, %v987
    %989 = vmatpush1.msra.mxu0 %v988
    %990 = vmatprep.subr.mxu0 0.0
    %v991 = vand.u32 %v716, 4294901760
    %v992 = vsub.f32 %v716, %v991
    %993 = vmatpush1.msra.mxu0 %v992
    %994 = vmatprep.subr.mxu0 0.0
    %v995 = vand.u32 %v715, 4294901760
    %v996 = vsub.f32 %v715, %v995
    %997 = vmatpush1.msra.mxu0 %v996
    %998 = vmatprep.subr.mxu0 0.0
    %v999 = vand.u32 %v714, 4294901760
    %v1000 = vsub.f32 %v714, %v999
    %1001 = vmatpush1.msra.mxu0 %v1000
    %1002 = vmatprep.subr.mxu0 0.0
    %v1003 = vand.u32 %v713, 4294901760
    %v1004 = vsub.f32 %v713, %v1003
    %1005 = vmatpush1.msra.mxu0 %v1004
    %1006 = vmatprep.subr.mxu0 0.0
    %v1007 = vand.u32 %v712, 4294901760
    %v1008 = vsub.f32 %v712, %v1007
    %1009 = vmatpush1.msra.mxu0 %v1008
    %1010 = vmatprep.subr.mxu0 0.0
    %v1011 = vand.u32 %v711, 4294901760
    %v1012 = vsub.f32 %v711, %v1011
    %1013 = vmatpush1.msra.mxu0 %v1012
    %1014 = vmatprep.subr.mxu0 0.0
    %v1015 = vand.u32 %v710, 4294901760
    %v1016 = vsub.f32 %v710, %v1015
    %1017 = vmatpush1.msra.mxu0 %v1016
    %1018 = vmatprep.subr.mxu0 0.0
    %v1019 = vand.u32 %v709, 4294901760
    %v1020 = vsub.f32 %v709, %v1019
    %1021 = vmatpush1.msra.mxu0 %v1020
    %1022 = vmatprep.subr.mxu0 0.0
    %v1023 = vand.u32 %v708, 4294901760
    %v1024 = vsub.f32 %v708, %v1023
    %1025 = vmatpush1.msra.mxu0 %v1024
    %1026 = vmatprep.subr.mxu0 0.0
    %v1027 = vand.u32 %v707, 4294901760
    %v1028 = vsub.f32 %v707, %v1027
    %1029 = vmatpush1.msra.mxu0 %v1028
    %1030 = vmatprep.subr.mxu0 0.0
    %1031 = vmatpush2.msra.mxu0 0.0
    %1032 = vmatprep.subr.mxu0 0.0
    %1033 = vmatpush2.msra.mxu0 0.0
    %1034 = vmatprep.subr.mxu0 0.0
    %1035 = vmatpush2.msra.mxu0 0.0
    %1036 = vmatprep.subr.mxu0 0.0
    %1037 = vmatpush2.msra.mxu0 0.0
    %1038 = vmatprep.subr.mxu0 0.0
    %1039 = vmatpush2.msra.mxu0 0.0
    %1040 = vmatprep.subr.mxu0 0.0
    %1041 = vmatpush2.msra.mxu0 0.0
    %1042 = vmatprep.subr.mxu0 0.0
    %1043 = vmatpush2.msra.mxu0 0.0
    %1044 = vmatprep.subr.mxu0 0.0
    %1045 = vmatpush2.msra.mxu0 0.0
    %1046 = vmatprep.subr.mxu0 0.0
    %1047 = vmatpush2.msra.mxu0 0.0
    %1048 = vmatprep.subr.mxu0 0.0
    %1049 = vmatpush2.msra.mxu0 0.0
    %1050 = vmatprep.subr.mxu0 0.0
    %1051 = vmatpush2.msra.mxu0 0.0
    %1052 = vmatprep.subr.mxu0 0.0
    %1053 = vmatpush2.msra.mxu0 0.0
    %1054 = vmatprep.subr.mxu0 0.0
    %1055 = vmatpush2.msra.mxu0 0.0
    %1056 = vmatprep.subr.mxu0 0.0
    %1057 = vmatpush2.msra.mxu0 0.0
    %1058 = vmatprep.subr.mxu0 0.0
    %1059 = vmatpush2.msra.mxu0 0.0
    %1060 = vmatprep.subr.mxu0 0.0
    %1061 = vmatpush2.msra.mxu0 0.0
    %1062 = vmatprep.mubr.f32.mxu0 0.0
    %v1063 = vand.u32 %v706, 4294901760
    %v1064 = vsub.f32 %v706, %v1063
    %1065 = vmatmul.mubr.f32.gmra.mxu0 %v1064
    %v1066 = vpop.f32.mrf.mxu0
    %v1067 = vadd.f32 %v963, %v1066
    %v1068 = vpop.f32.mrf.mxu0
    %1069 = vdwg.mxu0
    %1070 = vmatprep.subr.mxu0 0.0
    %v1071 = vand.u32 %v722, 4294901760
    %1072 = vmatpush1.msra.mxu0 %v1071
    %1073 = vmatprep.subr.mxu0 0.0
    %v1074 = vand.u32 %v721, 4294901760
    %1075 = vmatpush1.msra.mxu0 %v1074
    %1076 = vmatprep.subr.mxu0 0.0
    %v1077 = vand.u32 %v720, 4294901760
    %1078 = vmatpush1.msra.mxu0 %v1077
    %1079 = vmatprep.subr.mxu0 0.0
    %v1080 = vand.u32 %v719, 4294901760
    %1081 = vmatpush1.msra.mxu0 %v1080
    %1082 = vmatprep.subr.mxu0 0.0
    %v1083 = vand.u32 %v718, 4294901760
    %1084 = vmatpush1.msra.mxu0 %v1083
    %1085 = vmatprep.subr.mxu0 0.0
    %v1086 = vand.u32 %v717, 4294901760
    %1087 = vmatpush1.msra.mxu0 %v1086
    %1088 = vmatprep.subr.mxu0 0.0
    %v1089 = vand.u32 %v716, 4294901760
    %1090 = vmatpush1.msra.mxu0 %v1089
    %1091 = vmatprep.subr.mxu0 0.0
    %v1092 = vand.u32 %v715, 4294901760
    %1093 = vmatpush1.msra.mxu0 %v1092
    %1094 = vmatprep.subr.mxu0 0.0
    %v1095 = vand.u32 %v714, 4294901760
    %1096 = vmatpush1.msra.mxu0 %v1095
    %1097 = vmatprep.subr.mxu0 0.0
    %v1098 = vand.u32 %v713, 4294901760
    %1099 = vmatpush1.msra.mxu0 %v1098
    %1100 = vmatprep.subr.mxu0 0.0
    %v1101 = vand.u32 %v712, 4294901760
    %1102 = vmatpush1.msra.mxu0 %v1101
    %1103 = vmatprep.subr.mxu0 0.0
    %v1104 = vand.u32 %v711, 4294901760
    %1105 = vmatpush1.msra.mxu0 %v1104
    %1106 = vmatprep.subr.mxu0 0.0
    %v1107 = vand.u32 %v710, 4294901760
    %1108 = vmatpush1.msra.mxu0 %v1107
    %1109 = vmatprep.subr.mxu0 0.0
    %v1110 = vand.u32 %v709, 4294901760
    %1111 = vmatpush1.msra.mxu0 %v1110
    %1112 = vmatprep.subr.mxu0 0.0
    %v1113 = vand.u32 %v708, 4294901760
    %1114 = vmatpush1.msra.mxu0 %v1113
    %1115 = vmatprep.subr.mxu0 0.0
    %v1116 = vand.u32 %v707, 4294901760
    %1117 = vmatpush1.msra.mxu0 %v1116
    %1118 = vmatprep.subr.mxu0 0.0
    %1119 = vmatpush2.msra.mxu0 0.0
    %1120 = vmatprep.subr.mxu0 0.0
    %1121 = vmatpush2.msra.mxu0 0.0
    %1122 = vmatprep.subr.mxu0 0.0
    %1123 = vmatpush2.msra.mxu0 0.0
    %1124 = vmatprep.subr.mxu0 0.0
    %1125 = vmatpush2.msra.mxu0 0.0
    %1126 = vmatprep.subr.mxu0 0.0
    %1127 = vmatpush2.msra.mxu0 0.0
    %1128 = vmatprep.subr.mxu0 0.0
    %1129 = vmatpush2.msra.mxu0 0.0
    %1130 = vmatprep.subr.mxu0 0.0
    %1131 = vmatpush2.msra.mxu0 0.0
    %1132 = vmatprep.subr.mxu0 0.0
    %1133 = vmatpush2.msra.mxu0 0.0
    %1134 = vmatprep.subr.mxu0 0.0
    %1135 = vmatpush2.msra.mxu0 0.0
    %1136 = vmatprep.subr.mxu0 0.0
    %1137 = vmatpush2.msra.mxu0 0.0
    %1138 = vmatprep.subr.mxu0 0.0
    %1139 = vmatpush2.msra.mxu0 0.0
    %1140 = vmatprep.subr.mxu0 0.0
    %1141 = vmatpush2.msra.mxu0 0.0
    %1142 = vmatprep.subr.mxu0 0.0
    %1143 = vmatpush2.msra.mxu0 0.0
    %1144 = vmatprep.subr.mxu0 0.0
    %1145 = vmatpush2.msra.mxu0 0.0
    %1146 = vmatprep.subr.mxu0 0.0
    %1147 = vmatpush2.msra.mxu0 0.0
    %1148 = vmatprep.subr.mxu0 0.0
    %1149 = vmatpush2.msra.mxu0 0.0
    %1150 = vmatprep.mubr.f32.mxu0 0.0
    %v1151 = vand.u32 %v706, 4294901760
    %v1152 = vsub.f32 %v706, %v1151
    %v1153 = vand.u32 %v1152, 4294901760
    %1154 = vmatmul.mubr.f32.gmra.mxu0 %v1153
    %v1155 = vpop.f32.mrf.mxu0
    %v1156 = vadd.f32 %v1067, %v1155
    %v1157 = vpop.f32.mrf.mxu0
    %1158 = vdwg.mxu0
    %1159 = vmatprep.subr.mxu0 0.0
    %v1160 = vand.u32 %v722, 4294901760
    %v1161 = vsub.f32 %v722, %v1160
    %v1162 = vand.u32 %v1161, 4294901760
    %1163 = vmatpush1.msra.mxu0 %v1162
    %1164 = vmatprep.subr.mxu0 0.0
    %v1165 = vand.u32 %v721, 4294901760
    %v1166 = vsub.f32 %v721, %v1165
    %v1167 = vand.u32 %v1166, 4294901760
    %1168 = vmatpush1.msra.mxu0 %v1167
    %1169 = vmatprep.subr.mxu0 0.0
    %v1170 = vand.u32 %v720, 4294901760
    %v1171 = vsub.f32 %v720, %v1170
    %v1172 = vand.u32 %v1171, 4294901760
    %1173 = vmatpush1.msra.mxu0 %v1172
    %1174 = vmatprep.subr.mxu0 0.0
    %v1175 = vand.u32 %v719, 4294901760
    %v1176 = vsub.f32 %v719, %v1175
    %v1177 = vand.u32 %v1176, 4294901760
    %1178 = vmatpush1.msra.mxu0 %v1177
    %1179 = vmatprep.subr.mxu0 0.0
    %v1180 = vand.u32 %v718, 4294901760
    %v1181 = vsub.f32 %v718, %v1180
    %v1182 = vand.u32 %v1181, 4294901760
    %1183 = vmatpush1.msra.mxu0 %v1182
    %1184 = vmatprep.subr.mxu0 0.0
    %v1185 = vand.u32 %v717, 4294901760
    %v1186 = vsub.f32 %v717, %v1185
    %v1187 = vand.u32 %v1186, 4294901760
    %1188 = vmatpush1.msra.mxu0 %v1187
    %1189 = vmatprep.subr.mxu0 0.0
    %v1190 = vand.u32 %v716, 4294901760
    %v1191 = vsub.f32 %v716, %v1190
    %v1192 = vand.u32 %v1191, 4294901760
    %1193 = vmatpush1.msra.mxu0 %v1192
    %1194 = vmatprep.subr.mxu0 0.0
    %v1195 = vand.u32 %v715, 4294901760
    %v1196 = vsub.f32 %v715, %v1195
    %v1197 = vand.u32 %v1196, 4294901760
    %1198 = vmatpush1.msra.mxu0 %v1197
    %1199 = vmatprep.subr.mxu0 0.0
    %v1200 = vand.u32 %v714, 4294901760
    %v1201 = vsub.f32 %v714, %v1200
    %v1202 = vand.u32 %v1201, 4294901760
    %1203 = vmatpush1.msra.mxu0 %v1202
    %1204 = vmatprep.subr.mxu0 0.0
    %v1205 = vand.u32 %v713, 4294901760
    %v1206 = vsub.f32 %v713, %v1205
    %v1207 = vand.u32 %v1206, 4294901760
    %1208 = vmatpush1.msra.mxu0 %v1207
    %1209 = vmatprep.subr.mxu0 0.0
    %v1210 = vand.u32 %v712, 4294901760
    %v1211 = vsub.f32 %v712, %v1210
    %v1212 = vand.u32 %v1211, 4294901760
    %1213 = vmatpush1.msra.mxu0 %v1212
    %1214 = vmatprep.subr.mxu0 0.0
    %v1215 = vand.u32 %v711, 4294901760
    %v1216 = vsub.f32 %v711, %v1215
    %v1217 = vand.u32 %v1216, 4294901760
    %1218 = vmatpush1.msra.mxu0 %v1217
    %1219 = vmatprep.subr.mxu0 0.0
    %v1220 = vand.u32 %v710, 4294901760
    %v1221 = vsub.f32 %v710, %v1220
    %v1222 = vand.u32 %v1221, 4294901760
    %1223 = vmatpush1.msra.mxu0 %v1222
    %1224 = vmatprep.subr.mxu0 0.0
    %v1225 = vand.u32 %v709, 4294901760
    %v1226 = vsub.f32 %v709, %v1225
    %v1227 = vand.u32 %v1226, 4294901760
    %1228 = vmatpush1.msra.mxu0 %v1227
    %1229 = vmatprep.subr.mxu0 0.0
    %v1230 = vand.u32 %v708, 4294901760
    %v1231 = vsub.f32 %v708, %v1230
    %v1232 = vand.u32 %v1231, 4294901760
    %1233 = vmatpush1.msra.mxu0 %v1232
    %1234 = vmatprep.subr.mxu0 0.0
    %v1235 = vand.u32 %v707, 4294901760
    %v1236 = vsub.f32 %v707, %v1235
    %v1237 = vand.u32 %v1236, 4294901760
    %1238 = vmatpush1.msra.mxu0 %v1237
    %1239 = vmatprep.subr.mxu0 0.0
    %1240 = vmatpush2.msra.mxu0 0.0
    %1241 = vmatprep.subr.mxu0 0.0
    %1242 = vmatpush2.msra.mxu0 0.0
    %1243 = vmatprep.subr.mxu0 0.0
    %1244 = vmatpush2.msra.mxu0 0.0
    %1245 = vmatprep.subr.mxu0 0.0
    %1246 = vmatpush2.msra.mxu0 0.0
    %1247 = vmatprep.subr.mxu0 0.0
    %1248 = vmatpush2.msra.mxu0 0.0
    %1249 = vmatprep.subr.mxu0 0.0
    %1250 = vmatpush2.msra.mxu0 0.0
    %1251 = vmatprep.subr.mxu0 0.0
    %1252 = vmatpush2.msra.mxu0 0.0
    %1253 = vmatprep.subr.mxu0 0.0
    %1254 = vmatpush2.msra.mxu0 0.0
    %1255 = vmatprep.subr.mxu0 0.0
    %1256 = vmatpush2.msra.mxu0 0.0
    %1257 = vmatprep.subr.mxu0 0.0
    %1258 = vmatpush2.msra.mxu0 0.0
    %1259 = vmatprep.subr.mxu0 0.0
    %1260 = vmatpush2.msra.mxu0 0.0
    %1261 = vmatprep.subr.mxu0 0.0
    %1262 = vmatpush2.msra.mxu0 0.0
    %1263 = vmatprep.subr.mxu0 0.0
    %1264 = vmatpush2.msra.mxu0 0.0
    %1265 = vmatprep.subr.mxu0 0.0
    %1266 = vmatpush2.msra.mxu0 0.0
    %1267 = vmatprep.subr.mxu0 0.0
    %1268 = vmatpush2.msra.mxu0 0.0
    %1269 = vmatprep.subr.mxu0 0.0
    %1270 = vmatpush2.msra.mxu0 0.0
    %1271 = vmatprep.mubr.f32.mxu0 0.0
    %v1272 = vand.u32 %v706, 4294901760
    %1273 = vmatmul.mubr.f32.gmra.mxu0 %v1272
    %v1274 = vpop.f32.mrf.mxu0
    %v1275 = vadd.f32 %v1156, %v1274
    %v1276 = vpop.f32.mrf.mxu0
    %1277 = vdwg.mxu0
    %1278 = vmatprep.subr.mxu0 0.0
    %v1279 = vand.u32 %v722, 4294901760
    %1280 = vmatpush1.msra.mxu0 %v1279
    %1281 = vmatprep.subr.mxu0 0.0
    %v1282 = vand.u32 %v721, 4294901760
    %1283 = vmatpush1.msra.mxu0 %v1282
    %1284 = vmatprep.subr.mxu0 0.0
    %v1285 = vand.u32 %v720, 4294901760
    %1286 = vmatpush1.msra.mxu0 %v1285
    %1287 = vmatprep.subr.mxu0 0.0
    %v1288 = vand.u32 %v719, 4294901760
    %1289 = vmatpush1.msra.mxu0 %v1288
    %1290 = vmatprep.subr.mxu0 0.0
    %v1291 = vand.u32 %v718, 4294901760
    %1292 = vmatpush1.msra.mxu0 %v1291
    %1293 = vmatprep.subr.mxu0 0.0
    %v1294 = vand.u32 %v717, 4294901760
    %1295 = vmatpush1.msra.mxu0 %v1294
    %1296 = vmatprep.subr.mxu0 0.0
    %v1297 = vand.u32 %v716, 4294901760
    %1298 = vmatpush1.msra.mxu0 %v1297
    %1299 = vmatprep.subr.mxu0 0.0
    %v1300 = vand.u32 %v715, 4294901760
    %1301 = vmatpush1.msra.mxu0 %v1300
    %1302 = vmatprep.subr.mxu0 0.0
    %v1303 = vand.u32 %v714, 4294901760
    %1304 = vmatpush1.msra.mxu0 %v1303
    %1305 = vmatprep.subr.mxu0 0.0
    %v1306 = vand.u32 %v713, 4294901760
    %1307 = vmatpush1.msra.mxu0 %v1306
    %1308 = vmatprep.subr.mxu0 0.0
    %v1309 = vand.u32 %v712, 4294901760
    %1310 = vmatpush1.msra.mxu0 %v1309
    %1311 = vmatprep.subr.mxu0 0.0
    %v1312 = vand.u32 %v711, 4294901760
    %1313 = vmatpush1.msra.mxu0 %v1312
    %1314 = vmatprep.subr.mxu0 0.0
    %v1315 = vand.u32 %v710, 4294901760
    %1316 = vmatpush1.msra.mxu0 %v1315
    %1317 = vmatprep.subr.mxu0 0.0
    %v1318 = vand.u32 %v709, 4294901760
    %1319 = vmatpush1.msra.mxu0 %v1318
    %1320 = vmatprep.subr.mxu0 0.0
    %v1321 = vand.u32 %v708, 4294901760
    %1322 = vmatpush1.msra.mxu0 %v1321
    %1323 = vmatprep.subr.mxu0 0.0
    %v1324 = vand.u32 %v707, 4294901760
    %1325 = vmatpush1.msra.mxu0 %v1324
    %1326 = vmatprep.subr.mxu0 0.0
    %1327 = vmatpush2.msra.mxu0 0.0
    %1328 = vmatprep.subr.mxu0 0.0
    %1329 = vmatpush2.msra.mxu0 0.0
    %1330 = vmatprep.subr.mxu0 0.0
    %1331 = vmatpush2.msra.mxu0 0.0
    %1332 = vmatprep.subr.mxu0 0.0
    %1333 = vmatpush2.msra.mxu0 0.0
    %1334 = vmatprep.subr.mxu0 0.0
    %1335 = vmatpush2.msra.mxu0 0.0
    %1336 = vmatprep.subr.mxu0 0.0
    %1337 = vmatpush2.msra.mxu0 0.0
    %1338 = vmatprep.subr.mxu0 0.0
    %1339 = vmatpush2.msra.mxu0 0.0
    %1340 = vmatprep.subr.mxu0 0.0
    %1341 = vmatpush2.msra.mxu0 0.0
    %1342 = vmatprep.subr.mxu0 0.0
    %1343 = vmatpush2.msra.mxu0 0.0
    %1344 = vmatprep.subr.mxu0 0.0
    %1345 = vmatpush2.msra.mxu0 0.0
    %1346 = vmatprep.subr.mxu0 0.0
    %1347 = vmatpush2.msra.mxu0 0.0
    %1348 = vmatprep.subr.mxu0 0.0
    %1349 = vmatpush2.msra.mxu0 0.0
    %1350 = vmatprep.subr.mxu0 0.0
    %1351 = vmatpush2.msra.mxu0 0.0
    %1352 = vmatprep.subr.mxu0 0.0
    %1353 = vmatpush2.msra.mxu0 0.0
    %1354 = vmatprep.subr.mxu0 0.0
    %1355 = vmatpush2.msra.mxu0 0.0
    %1356 = vmatprep.subr.mxu0 0.0
    %1357 = vmatpush2.msra.mxu0 0.0
    %1358 = vmatprep.mubr.f32.mxu0 0.0
    %v1359 = vand.u32 %v706, 4294901760
    %1360 = vmatmul.mubr.f32.gmra.mxu0 %v1359
    %v1361 = vpop.f32.mrf.mxu0
    %v1362 = vadd.f32 %v1275, %v1361
    %v1363 = vpop.f32.mrf.mxu0
    %1364 = vdwg.mxu0
    %v1365 = vmax.f32 %v1362, 0.0
    %v1366 = vld [vmem:[#allocation2 + $0x10] sm:$0xff]
    %v1367 = vld [vmem:[#allocation2 + $0x70] sm:$0xff]
    %v1368 = vld [vmem:[#allocation2 + $0xd0] sm:$0xff]
    %v1369 = vld [vmem:[#allocation2 + $0x130] sm:$0xff]
    %v1370 = vld [vmem:[#allocation2 + $0x190] sm:$0xff]
    %v1371 = vld [vmem:[#allocation2 + $0x1f0] sm:$0xff]
    %v1372 = vld [vmem:[#allocation2 + $0x250] sm:$0xff]
    %v1373 = vld [vmem:[#allocation2 + $0x2b0] sm:$0xff]
    %v1374 = vld [vmem:[#allocation2 + $0x310] sm:$0xff]
    %v1375 = vld [vmem:[#allocation2 + $0x370] sm:$0xff]
    %v1376 = vld [vmem:[#allocation2 + $0x3d0] sm:$0xff]
    %v1377 = vld [vmem:[#allocation2 + $0x430] sm:$0xff]
    %v1378 = vld [vmem:[#allocation2 + $0x490] sm:$0xff]
    %v1379 = vld [vmem:[#allocation2 + $0x4f0] sm:$0xff]
    %v1380 = vld [vmem:[#allocation2 + $0x550] sm:$0xff]
    %v1381 = vld [vmem:[#allocation2 + $0x5b0] sm:$0xff]
    %v1382 = vld [vmem:[#allocation2 + $0x610] ss:$0 sm:$0xff]
    %1383 = vmatprep.subr.mxu0 0.0
    %v1384 = vand.u32 %v1381, 4294901760
    %1385 = vmatpush1.msra.mxu0 %v1384
    %1386 = vmatprep.subr.mxu0 0.0
    %v1387 = vand.u32 %v1380, 4294901760
    %1388 = vmatpush1.msra.mxu0 %v1387
    %1389 = vmatprep.subr.mxu0 0.0
    %v1390 = vand.u32 %v1379, 4294901760
    %1391 = vmatpush1.msra.mxu0 %v1390
    %1392 = vmatprep.subr.mxu0 0.0
    %v1393 = vand.u32 %v1378, 4294901760
    %1394 = vmatpush1.msra.mxu0 %v1393
    %1395 = vmatprep.subr.mxu0 0.0
    %v1396 = vand.u32 %v1377, 4294901760
    %1397 = vmatpush1.msra.mxu0 %v1396
    %1398 = vmatprep.subr.mxu0 0.0
    %v1399 = vand.u32 %v1376, 4294901760
    %1400 = vmatpush1.msra.mxu0 %v1399
    %1401 = vmatprep.subr.mxu0 0.0
    %v1402 = vand.u32 %v1375, 4294901760
    %1403 = vmatpush1.msra.mxu0 %v1402
    %1404 = vmatprep.subr.mxu0 0.0
    %v1405 = vand.u32 %v1374, 4294901760
    %1406 = vmatpush1.msra.mxu0 %v1405
    %1407 = vmatprep.subr.mxu0 0.0
    %v1408 = vand.u32 %v1373, 4294901760
    %1409 = vmatpush1.msra.mxu0 %v1408
    %1410 = vmatprep.subr.mxu0 0.0
    %v1411 = vand.u32 %v1372, 4294901760
    %1412 = vmatpush1.msra.mxu0 %v1411
    %1413 = vmatprep.subr.mxu0 0.0
    %v1414 = vand.u32 %v1371, 4294901760
    %1415 = vmatpush1.msra.mxu0 %v1414
    %1416 = vmatprep.subr.mxu0 0.0
    %v1417 = vand.u32 %v1370, 4294901760
    %1418 = vmatpush1.msra.mxu0 %v1417
    %1419 = vmatprep.subr.mxu0 0.0
    %v1420 = vand.u32 %v1369, 4294901760
    %1421 = vmatpush1.msra.mxu0 %v1420
    %1422 = vmatprep.subr.mxu0 0.0
    %v1423 = vand.u32 %v1368, 4294901760
    %1424 = vmatpush1.msra.mxu0 %v1423
    %1425 = vmatprep.subr.mxu0 0.0
    %v1426 = vand.u32 %v1367, 4294901760
    %1427 = vmatpush1.msra.mxu0 %v1426
    %1428 = vmatprep.subr.mxu0 0.0
    %v1429 = vand.u32 %v1366, 4294901760
    %1430 = vmatpush1.msra.mxu0 %v1429
    %1431 = vmatprep.subr.mxu0 0.0
    %1432 = vmatpush2.msra.mxu0 0.0
    %1433 = vmatprep.subr.mxu0 0.0
    %1434 = vmatpush2.msra.mxu0 0.0
    %1435 = vmatprep.subr.mxu0 0.0
    %1436 = vmatpush2.msra.mxu0 0.0
    %1437 = vmatprep.subr.mxu0 0.0
    %1438 = vmatpush2.msra.mxu0 0.0
    %1439 = vmatprep.subr.mxu0 0.0
    %1440 = vmatpush2.msra.mxu0 0.0
    %1441 = vmatprep.subr.mxu0 0.0
    %1442 = vmatpush2.msra.mxu0 0.0
    %1443 = vmatprep.subr.mxu0 0.0
    %1444 = vmatpush2.msra.mxu0 0.0
    %1445 = vmatprep.subr.mxu0 0.0
    %1446 = vmatpush2.msra.mxu0 0.0
    %1447 = vmatprep.subr.mxu0 0.0
    %1448 = vmatpush2.msra.mxu0 0.0
    %1449 = vmatprep.subr.mxu0 0.0
    %1450 = vmatpush2.msra.mxu0 0.0
    %1451 = vmatprep.subr.mxu0 0.0
    %1452 = vmatpush2.msra.mxu0 0.0
    %1453 = vmatprep.subr.mxu0 0.0
    %1454 = vmatpush2.msra.mxu0 0.0
    %1455 = vmatprep.subr.mxu0 0.0
    %1456 = vmatpush2.msra.mxu0 0.0
    %1457 = vmatprep.subr.mxu0 0.0
    %1458 = vmatpush2.msra.mxu0 0.0
    %1459 = vmatprep.subr.mxu0 0.0
    %1460 = vmatpush2.msra.mxu0 0.0
    %1461 = vmatprep.subr.mxu0 0.0
    %1462 = vmatpush2.msra.mxu0 0.0
    %1463 = vmatprep.mubr.f32.mxu0 0.0
    %v1464 = vand.u32 %v1365, 4294901760
    %v1465 = vsub.f32 %v1365, %v1464
    %v1466 = vand.u32 %v1465, 4294901760
    %v1467 = vsub.f32 %v1465, %v1466
    %v1468 = vand.u32 %v1467, 4294901760
    %1469 = vmatmul.mubr.f32.gmra.mxu0 %v1468
    %v1470 = vpop.f32.mrf.mxu0
    %v1471 = vadd.f32 %v1382, %v1470
    %v1472 = vpop.f32.mrf.mxu0
    %1473 = vdwg.mxu0
    %1474 = vmatprep.subr.mxu0 0.0
    %v1475 = vand.u32 %v1381, 4294901760
    %v1476 = vsub.f32 %v1381, %v1475
    %v1477 = vand.u32 %v1476, 4294901760
    %v1478 = vsub.f32 %v1476, %v1477
    %v1479 = vand.u32 %v1478, 4294901760
    %1480 = vmatpush1.msra.mxu0 %v1479
    %1481 = vmatprep.subr.mxu0 0.0
    %v1482 = vand.u32 %v1380, 4294901760
    %v1483 = vsub.f32 %v1380, %v1482
    %v1484 = vand.u32 %v1483, 4294901760
    %v1485 = vsub.f32 %v1483, %v1484
    %v1486 = vand.u32 %v1485, 4294901760
    %1487 = vmatpush1.msra.mxu0 %v1486
    %1488 = vmatprep.subr.mxu0 0.0
    %v1489 = vand.u32 %v1379, 4294901760
    %v1490 = vsub.f32 %v1379, %v1489
    %v1491 = vand.u32 %v1490, 4294901760
    %v1492 = vsub.f32 %v1490, %v1491
    %v1493 = vand.u32 %v1492, 4294901760
    %1494 = vmatpush1.msra.mxu0 %v1493
    %1495 = vmatprep.subr.mxu0 0.0
    %v1496 = vand.u32 %v1378, 4294901760
    %v1497 = vsub.f32 %v1378, %v1496
    %v1498 = vand.u32 %v1497, 4294901760
    %v1499 = vsub.f32 %v1497, %v1498
    %v1500 = vand.u32 %v1499, 4294901760
    %1501 = vmatpush1.msra.mxu0 %v1500
    %1502 = vmatprep.subr.mxu0 0.0
    %v1503 = vand.u32 %v1377, 4294901760
    %v1504 = vsub.f32 %v1377, %v1503
    %v1505 = vand.u32 %v1504, 4294901760
    %v1506 = vsub.f32 %v1504, %v1505
    %v1507 = vand.u32 %v1506, 4294901760
    %1508 = vmatpush1.msra.mxu0 %v1507
    %1509 = vmatprep.subr.mxu0 0.0
    %v1510 = vand.u32 %v1376, 4294901760
    %v1511 = vsub.f32 %v1376, %v1510
    %v1512 = vand.u32 %v1511, 4294901760
    %v1513 = vsub.f32 %v1511, %v1512
    %v1514 = vand.u32 %v1513, 4294901760
    %1515 = vmatpush1.msra.mxu0 %v1514
    %1516 = vmatprep.subr.mxu0 0.0
    %v1517 = vand.u32 %v1375, 4294901760
    %v1518 = vsub.f32 %v1375, %v1517
    %v1519 = vand.u32 %v1518, 4294901760
    %v1520 = vsub.f32 %v1518, %v1519
    %v1521 = vand.u32 %v1520, 4294901760
    %1522 = vmatpush1.msra.mxu0 %v1521
    %1523 = vmatprep.subr.mxu0 0.0
    %v1524 = vand.u32 %v1374, 4294901760
    %v1525 = vsub.f32 %v1374, %v1524
    %v1526 = vand.u32 %v1525, 4294901760
    %v1527 = vsub.f32 %v1525, %v1526
    %v1528 = vand.u32 %v1527, 4294901760
    %1529 = vmatpush1.msra.mxu0 %v1528
    %1530 = vmatprep.subr.mxu0 0.0
    %v1531 = vand.u32 %v1373, 4294901760
    %v1532 = vsub.f32 %v1373, %v1531
    %v1533 = vand.u32 %v1532, 4294901760
    %v1534 = vsub.f32 %v1532, %v1533
    %v1535 = vand.u32 %v1534, 4294901760
    %1536 = vmatpush1.msra.mxu0 %v1535
    %1537 = vmatprep.subr.mxu0 0.0
    %v1538 = vand.u32 %v1372, 4294901760
    %v1539 = vsub.f32 %v1372, %v1538
    %v1540 = vand.u32 %v1539, 4294901760
    %v1541 = vsub.f32 %v1539, %v1540
    %v1542 = vand.u32 %v1541, 4294901760
    %1543 = vmatpush1.msra.mxu0 %v1542
    %1544 = vmatprep.subr.mxu0 0.0
    %v1545 = vand.u32 %v1371, 4294901760
    %v1546 = vsub.f32 %v1371, %v1545
    %v1547 = vand.u32 %v1546, 4294901760
    %v1548 = vsub.f32 %v1546, %v1547
    %v1549 = vand.u32 %v1548, 4294901760
    %1550 = vmatpush1.msra.mxu0 %v1549
    %1551 = vmatprep.subr.mxu0 0.0
    %v1552 = vand.u32 %v1370, 4294901760
    %v1553 = vsub.f32 %v1370, %v1552
    %v1554 = vand.u32 %v1553, 4294901760
    %v1555 = vsub.f32 %v1553, %v1554
    %v1556 = vand.u32 %v1555, 4294901760
    %1557 = vmatpush1.msra.mxu0 %v1556
    %1558 = vmatprep.subr.mxu0 0.0
    %v1559 = vand.u32 %v1369, 4294901760
    %v1560 = vsub.f32 %v1369, %v1559
    %v1561 = vand.u32 %v1560, 4294901760
    %v1562 = vsub.f32 %v1560, %v1561
    %v1563 = vand.u32 %v1562, 4294901760
    %1564 = vmatpush1.msra.mxu0 %v1563
    %1565 = vmatprep.subr.mxu0 0.0
    %v1566 = vand.u32 %v1368, 4294901760
    %v1567 = vsub.f32 %v1368, %v1566
    %v1568 = vand.u32 %v1567, 4294901760
    %v1569 = vsub.f32 %v1567, %v1568
    %v1570 = vand.u32 %v1569, 4294901760
    %1571 = vmatpush1.msra.mxu0 %v1570
    %1572 = vmatprep.subr.mxu0 0.0
    %v1573 = vand.u32 %v1367, 4294901760
    %v1574 = vsub.f32 %v1367, %v1573
    %v1575 = vand.u32 %v1574, 4294901760
    %v1576 = vsub.f32 %v1574, %v1575
    %v1577 = vand.u32 %v1576, 4294901760
    %1578 = vmatpush1.msra.mxu0 %v1577
    %1579 = vmatprep.subr.mxu0 0.0
    %v1580 = vand.u32 %v1366, 4294901760
    %v1581 = vsub.f32 %v1366, %v1580
    %v1582 = vand.u32 %v1581, 4294901760
    %v1583 = vsub.f32 %v1581, %v1582
    %v1584 = vand.u32 %v1583, 4294901760
    %1585 = vmatpush1.msra.mxu0 %v1584
    %1586 = vmatprep.subr.mxu0 0.0
    %1587 = vmatpush2.msra.mxu0 0.0
    %1588 = vmatprep.subr.mxu0 0.0
    %1589 = vmatpush2.msra.mxu0 0.0
    %1590 = vmatprep.subr.mxu0 0.0
    %1591 = vmatpush2.msra.mxu0 0.0
    %1592 = vmatprep.subr.mxu0 0.0
    %1593 = vmatpush2.msra.mxu0 0.0
    %1594 = vmatprep.subr.mxu0 0.0
    %1595 = vmatpush2.msra.mxu0 0.0
    %1596 = vmatprep.subr.mxu0 0.0
    %1597 = vmatpush2.msra.mxu0 0.0
    %1598 = vmatprep.subr.mxu0 0.0
    %1599 = vmatpush2.msra.mxu0 0.0
    %1600 = vmatprep.subr.mxu0 0.0
    %1601 = vmatpush2.msra.mxu0 0.0
    %1602 = vmatprep.subr.mxu0 0.0
    %1603 = vmatpush2.msra.mxu0 0.0
    %1604 = vmatprep.subr.mxu0 0.0
    %1605 = vmatpush2.msra.mxu0 0.0
    %1606 = vmatprep.subr.mxu0 0.0
    %1607 = vmatpush2.msra.mxu0 0.0
    %1608 = vmatprep.subr.mxu0 0.0
    %1609 = vmatpush2.msra.mxu0 0.0
    %1610 = vmatprep.subr.mxu0 0.0
    %1611 = vmatpush2.msra.mxu0 0.0
    %1612 = vmatprep.subr.mxu0 0.0
    %1613 = vmatpush2.msra.mxu0 0.0
    %1614 = vmatprep.subr.mxu0 0.0
    %1615 = vmatpush2.msra.mxu0 0.0
    %1616 = vmatprep.subr.mxu0 0.0
    %1617 = vmatpush2.msra.mxu0 0.0
    %1618 = vmatprep.mubr.f32.mxu0 0.0
    %v1619 = vand.u32 %v1365, 4294901760
    %1620 = vmatmul.mubr.f32.gmra.mxu0 %v1619
    %v1621 = vpop.f32.mrf.mxu0
    %v1622 = vadd.f32 %v1471, %v1621
    %v1623 = vpop.f32.mrf.mxu0
    %1624 = vdwg.mxu0
    %1625 = vmatprep.subr.mxu0 0.0
    %v1626 = vand.u32 %v1381, 4294901760
    %v1627 = vsub.f32 %v1381, %v1626
    %1628 = vmatpush1.msra.mxu0 %v1627
    %1629 = vmatprep.subr.mxu0 0.0
    %v1630 = vand.u32 %v1380, 4294901760
    %v1631 = vsub.f32 %v1380, %v1630
    %1632 = vmatpush1.msra.mxu0 %v1631
    %1633 = vmatprep.subr.mxu0 0.0
    %v1634 = vand.u32 %v1379, 4294901760
    %v1635 = vsub.f32 %v1379, %v1634
    %1636 = vmatpush1.msra.mxu0 %v1635
    %1637 = vmatprep.subr.mxu0 0.0
    %v1638 = vand.u32 %v1378, 4294901760
    %v1639 = vsub.f32 %v1378, %v1638
    %1640 = vmatpush1.msra.mxu0 %v1639
    %1641 = vmatprep.subr.mxu0 0.0
    %v1642 = vand.u32 %v1377, 4294901760
    %v1643 = vsub.f32 %v1377, %v1642
    %1644 = vmatpush1.msra.mxu0 %v1643
    %1645 = vmatprep.subr.mxu0 0.0
    %v1646 = vand.u32 %v1376, 4294901760
    %v1647 = vsub.f32 %v1376, %v1646
    %1648 = vmatpush1.msra.mxu0 %v1647
    %1649 = vmatprep.subr.mxu0 0.0
    %v1650 = vand.u32 %v1375, 4294901760
    %v1651 = vsub.f32 %v1375, %v1650
    %1652 = vmatpush1.msra.mxu0 %v1651
    %1653 = vmatprep.subr.mxu0 0.0
    %v1654 = vand.u32 %v1374, 4294901760
    %v1655 = vsub.f32 %v1374, %v1654
    %1656 = vmatpush1.msra.mxu0 %v1655
    %1657 = vmatprep.subr.mxu0 0.0
    %v1658 = vand.u32 %v1373, 4294901760
    %v1659 = vsub.f32 %v1373, %v1658
    %1660 = vmatpush1.msra.mxu0 %v1659
    %1661 = vmatprep.subr.mxu0 0.0
    %v1662 = vand.u32 %v1372, 4294901760
    %v1663 = vsub.f32 %v1372, %v1662
    %1664 = vmatpush1.msra.mxu0 %v1663
    %1665 = vmatprep.subr.mxu0 0.0
    %v1666 = vand.u32 %v1371, 4294901760
    %v1667 = vsub.f32 %v1371, %v1666
    %1668 = vmatpush1.msra.mxu0 %v1667
    %1669 = vmatprep.subr.mxu0 0.0
    %v1670 = vand.u32 %v1370, 4294901760
    %v1671 = vsub.f32 %v1370, %v1670
    %1672 = vmatpush1.msra.mxu0 %v1671
    %1673 = vmatprep.subr.mxu0 0.0
    %v1674 = vand.u32 %v1369, 4294901760
    %v1675 = vsub.f32 %v1369, %v1674
    %1676 = vmatpush1.msra.mxu0 %v1675
    %1677 = vmatprep.subr.mxu0 0.0
    %v1678 = vand.u32 %v1368, 4294901760
    %v1679 = vsub.f32 %v1368, %v1678
    %1680 = vmatpush1.msra.mxu0 %v1679
    %1681 = vmatprep.subr.mxu0 0.0
    %v1682 = vand.u32 %v1367, 4294901760
    %v1683 = vsub.f32 %v1367, %v1682
    %1684 = vmatpush1.msra.mxu0 %v1683
    %1685 = vmatprep.subr.mxu0 0.0
    %v1686 = vand.u32 %v1366, 4294901760
    %v1687 = vsub.f32 %v1366, %v1686
    %1688 = vmatpush1.msra.mxu0 %v1687
    %1689 = vmatprep.subr.mxu0 0.0
    %1690 = vmatpush2.msra.mxu0 0.0
    %1691 = vmatprep.subr.mxu0 0.0
    %1692 = vmatpush2.msra.mxu0 0.0
    %1693 = vmatprep.subr.mxu0 0.0
    %1694 = vmatpush2.msra.mxu0 0.0
    %1695 = vmatprep.subr.mxu0 0.0
    %1696 = vmatpush2.msra.mxu0 0.0
    %1697 = vmatprep.subr.mxu0 0.0
    %1698 = vmatpush2.msra.mxu0 0.0
    %1699 = vmatprep.subr.mxu0 0.0
    %1700 = vmatpush2.msra.mxu0 0.0
    %1701 = vmatprep.subr.mxu0 0.0
    %1702 = vmatpush2.msra.mxu0 0.0
    %1703 = vmatprep.subr.mxu0 0.0
    %1704 = vmatpush2.msra.mxu0 0.0
    %1705 = vmatprep.subr.mxu0 0.0
    %1706 = vmatpush2.msra.mxu0 0.0
    %1707 = vmatprep.subr.mxu0 0.0
    %1708 = vmatpush2.msra.mxu0 0.0
    %1709 = vmatprep.subr.mxu0 0.0
    %1710 = vmatpush2.msra.mxu0 0.0
    %1711 = vmatprep.subr.mxu0 0.0
    %1712 = vmatpush2.msra.mxu0 0.0
    %1713 = vmatprep.subr.mxu0 0.0
    %1714 = vmatpush2.msra.mxu0 0.0
    %1715 = vmatprep.subr.mxu0 0.0
    %1716 = vmatpush2.msra.mxu0 0.0
    %1717 = vmatprep.subr.mxu0 0.0
    %1718 = vmatpush2.msra.mxu0 0.0
    %1719 = vmatprep.subr.mxu0 0.0
    %1720 = vmatpush2.msra.mxu0 0.0
    %1721 = vmatprep.mubr.f32.mxu0 0.0
    %v1722 = vand.u32 %v1365, 4294901760
    %v1723 = vsub.f32 %v1365, %v1722
    %1724 = vmatmul.mubr.f32.gmra.mxu0 %v1723
    %v1725 = vpop.f32.mrf.mxu0
    %v1726 = vadd.f32 %v1622, %v1725
    %v1727 = vpop.f32.mrf.mxu0
    %1728 = vdwg.mxu0
    %1729 = vmatprep.subr.mxu0 0.0
    %v1730 = vand.u32 %v1381, 4294901760
    %1731 = vmatpush1.msra.mxu0 %v1730
    %1732 = vmatprep.subr.mxu0 0.0
    %v1733 = vand.u32 %v1380, 4294901760
    %1734 = vmatpush1.msra.mxu0 %v1733
    %1735 = vmatprep.subr.mxu0 0.0
    %v1736 = vand.u32 %v1379, 4294901760
    %1737 = vmatpush1.msra.mxu0 %v1736
    %1738 = vmatprep.subr.mxu0 0.0
    %v1739 = vand.u32 %v1378, 4294901760
    %1740 = vmatpush1.msra.mxu0 %v1739
    %1741 = vmatprep.subr.mxu0 0.0
    %v1742 = vand.u32 %v1377, 4294901760
    %1743 = vmatpush1.msra.mxu0 %v1742
    %1744 = vmatprep.subr.mxu0 0.0
    %v1745 = vand.u32 %v1376, 4294901760
    %1746 = vmatpush1.msra.mxu0 %v1745
    %1747 = vmatprep.subr.mxu0 0.0
    %v1748 = vand.u32 %v1375, 4294901760
    %1749 = vmatpush1.msra.mxu0 %v1748
    %1750 = vmatprep.subr.mxu0 0.0
    %v1751 = vand.u32 %v1374, 4294901760
    %1752 = vmatpush1.msra.mxu0 %v1751
    %1753 = vmatprep.subr.mxu0 0.0
    %v1754 = vand.u32 %v1373, 4294901760
    %1755 = vmatpush1.msra.mxu0 %v1754
    %1756 = vmatprep.subr.mxu0 0.0
    %v1757 = vand.u32 %v1372, 4294901760
    %1758 = vmatpush1.msra.mxu0 %v1757
    %1759 = vmatprep.subr.mxu0 0.0
    %v1760 = vand.u32 %v1371, 4294901760
    %1761 = vmatpush1.msra.mxu0 %v1760
    %1762 = vmatprep.subr.mxu0 0.0
    %v1763 = vand.u32 %v1370, 4294901760
    %1764 = vmatpush1.msra.mxu0 %v1763
    %1765 = vmatprep.subr.mxu0 0.0
    %v1766 = vand.u32 %v1369, 4294901760
    %1767 = vmatpush1.msra.mxu0 %v1766
    %1768 = vmatprep.subr.mxu0 0.0
    %v1769 = vand.u32 %v1368, 4294901760
    %1770 = vmatpush1.msra.mxu0 %v1769
    %1771 = vmatprep.subr.mxu0 0.0
    %v1772 = vand.u32 %v1367, 4294901760
    %1773 = vmatpush1.msra.mxu0 %v1772
    %1774 = vmatprep.subr.mxu0 0.0
    %v1775 = vand.u32 %v1366, 4294901760
    %1776 = vmatpush1.msra.mxu0 %v1775
    %1777 = vmatprep.subr.mxu0 0.0
    %1778 = vmatpush2.msra.mxu0 0.0
    %1779 = vmatprep.subr.mxu0 0.0
    %1780 = vmatpush2.msra.mxu0 0.0
    %1781 = vmatprep.subr.mxu0 0.0
    %1782 = vmatpush2.msra.mxu0 0.0
    %1783 = vmatprep.subr.mxu0 0.0
    %1784 = vmatpush2.msra.mxu0 0.0
    %1785 = vmatprep.subr.mxu0 0.0
    %1786 = vmatpush2.msra.mxu0 0.0
    %1787 = vmatprep.subr.mxu0 0.0
    %1788 = vmatpush2.msra.mxu0 0.0
    %1789 = vmatprep.subr.mxu0 0.0
    %1790 = vmatpush2.msra.mxu0 0.0
    %1791 = vmatprep.subr.mxu0 0.0
    %1792 = vmatpush2.msra.mxu0 0.0
    %1793 = vmatprep.subr.mxu0 0.0
    %1794 = vmatpush2.msra.mxu0 0.0
    %1795 = vmatprep.subr.mxu0 0.0
    %1796 = vmatpush2.msra.mxu0 0.0
    %1797 = vmatprep.subr.mxu0 0.0
    %1798 = vmatpush2.msra.mxu0 0.0
    %1799 = vmatprep.subr.mxu0 0.0
    %1800 = vmatpush2.msra.mxu0 0.0
    %1801 = vmatprep.subr.mxu0 0.0
    %1802 = vmatpush2.msra.mxu0 0.0
    %1803 = vmatprep.subr.mxu0 0.0
    %1804 = vmatpush2.msra.mxu0 0.0
    %1805 = vmatprep.subr.mxu0 0.0
    %1806 = vmatpush2.msra.mxu0 0.0
    %1807 = vmatprep.subr.mxu0 0.0
    %1808 = vmatpush2.msra.mxu0 0.0
    %1809 = vmatprep.mubr.f32.mxu0 0.0
    %v1810 = vand.u32 %v1365, 4294901760
    %v1811 = vsub.f32 %v1365, %v1810
    %v1812 = vand.u32 %v1811, 4294901760
    %1813 = vmatmul.mubr.f32.gmra.mxu0 %v1812
    %v1814 = vpop.f32.mrf.mxu0
    %v1815 = vadd.f32 %v1726, %v1814
    %v1816 = vpop.f32.mrf.mxu0
    %1817 = vdwg.mxu0
    %1818 = vmatprep.subr.mxu0 0.0
    %v1819 = vand.u32 %v1381, 4294901760
    %v1820 = vsub.f32 %v1381, %v1819
    %v1821 = vand.u32 %v1820, 4294901760
    %1822 = vmatpush1.msra.mxu0 %v1821
    %1823 = vmatprep.subr.mxu0 0.0
    %v1824 = vand.u32 %v1380, 4294901760
    %v1825 = vsub.f32 %v1380, %v1824
    %v1826 = vand.u32 %v1825, 4294901760
    %1827 = vmatpush1.msra.mxu0 %v1826
    %1828 = vmatprep.subr.mxu0 0.0
    %v1829 = vand.u32 %v1379, 4294901760
    %v1830 = vsub.f32 %v1379, %v1829
    %v1831 = vand.u32 %v1830, 4294901760
    %1832 = vmatpush1.msra.mxu0 %v1831
    %1833 = vmatprep.subr.mxu0 0.0
    %v1834 = vand.u32 %v1378, 4294901760
    %v1835 = vsub.f32 %v1378, %v1834
    %v1836 = vand.u32 %v1835, 4294901760
    %1837 = vmatpush1.msra.mxu0 %v1836
    %1838 = vmatprep.subr.mxu0 0.0
    %v1839 = vand.u32 %v1377, 4294901760
    %v1840 = vsub.f32 %v1377, %v1839
    %v1841 = vand.u32 %v1840, 4294901760
    %1842 = vmatpush1.msra.mxu0 %v1841
    %1843 = vmatprep.subr.mxu0 0.0
    %v1844 = vand.u32 %v1376, 4294901760
    %v1845 = vsub.f32 %v1376, %v1844
    %v1846 = vand.u32 %v1845, 4294901760
    %1847 = vmatpush1.msra.mxu0 %v1846
    %1848 = vmatprep.subr.mxu0 0.0
    %v1849 = vand.u32 %v1375, 4294901760
    %v1850 = vsub.f32 %v1375, %v1849
    %v1851 = vand.u32 %v1850, 4294901760
    %1852 = vmatpush1.msra.mxu0 %v1851
    %1853 = vmatprep.subr.mxu0 0.0
    %v1854 = vand.u32 %v1374, 4294901760
    %v1855 = vsub.f32 %v1374, %v1854
    %v1856 = vand.u32 %v1855, 4294901760
    %1857 = vmatpush1.msra.mxu0 %v1856
    %1858 = vmatprep.subr.mxu0 0.0
    %v1859 = vand.u32 %v1373, 4294901760
    %v1860 = vsub.f32 %v1373, %v1859
    %v1861 = vand.u32 %v1860, 4294901760
    %1862 = vmatpush1.msra.mxu0 %v1861
    %1863 = vmatprep.subr.mxu0 0.0
    %v1864 = vand.u32 %v1372, 4294901760
    %v1865 = vsub.f32 %v1372, %v1864
    %v1866 = vand.u32 %v1865, 4294901760
    %1867 = vmatpush1.msra.mxu0 %v1866
    %1868 = vmatprep.subr.mxu0 0.0
    %v1869 = vand.u32 %v1371, 4294901760
    %v1870 = vsub.f32 %v1371, %v1869
    %v1871 = vand.u32 %v1870, 4294901760
    %1872 = vmatpush1.msra.mxu0 %v1871
    %1873 = vmatprep.subr.mxu0 0.0
    %v1874 = vand.u32 %v1370, 4294901760
    %v1875 = vsub.f32 %v1370, %v1874
    %v1876 = vand.u32 %v1875, 4294901760
    %1877 = vmatpush1.msra.mxu0 %v1876
    %1878 = vmatprep.subr.mxu0 0.0
    %v1879 = vand.u32 %v1369, 4294901760
    %v1880 = vsub.f32 %v1369, %v1879
    %v1881 = vand.u32 %v1880, 4294901760
    %1882 = vmatpush1.msra.mxu0 %v1881
    %1883 = vmatprep.subr.mxu0 0.0
    %v1884 = vand.u32 %v1368, 4294901760
    %v1885 = vsub.f32 %v1368, %v1884
    %v1886 = vand.u32 %v1885, 4294901760
    %1887 = vmatpush1.msra.mxu0 %v1886
    %1888 = vmatprep.subr.mxu0 0.0
    %v1889 = vand.u32 %v1367, 4294901760
    %v1890 = vsub.f32 %v1367, %v1889
    %v1891 = vand.u32 %v1890, 4294901760
    %1892 = vmatpush1.msra.mxu0 %v1891
    %1893 = vmatprep.subr.mxu0 0.0
    %v1894 = vand.u32 %v1366, 4294901760
    %v1895 = vsub.f32 %v1366, %v1894
    %v1896 = vand.u32 %v1895, 4294901760
    %1897 = vmatpush1.msra.mxu0 %v1896
    %1898 = vmatprep.subr.mxu0 0.0
    %1899 = vmatpush2.msra.mxu0 0.0
    %1900 = vmatprep.subr.mxu0 0.0
    %1901 = vmatpush2.msra.mxu0 0.0
    %1902 = vmatprep.subr.mxu0 0.0
    %1903 = vmatpush2.msra.mxu0 0.0
    %1904 = vmatprep.subr.mxu0 0.0
    %1905 = vmatpush2.msra.mxu0 0.0
    %1906 = vmatprep.subr.mxu0 0.0
    %1907 = vmatpush2.msra.mxu0 0.0
    %1908 = vmatprep.subr.mxu0 0.0
    %1909 = vmatpush2.msra.mxu0 0.0
    %1910 = vmatprep.subr.mxu0 0.0
    %1911 = vmatpush2.msra.mxu0 0.0
    %1912 = vmatprep.subr.mxu0 0.0
    %1913 = vmatpush2.msra.mxu0 0.0
    %1914 = vmatprep.subr.mxu0 0.0
    %1915 = vmatpush2.msra.mxu0 0.0
    %1916 = vmatprep.subr.mxu0 0.0
    %1917 = vmatpush2.msra.mxu0 0.0
    %1918 = vmatprep.subr.mxu0 0.0
    %1919 = vmatpush2.msra.mxu0 0.0
    %1920 = vmatprep.subr.mxu0 0.0
    %1921 = vmatpush2.msra.mxu0 0.0
    %1922 = vmatprep.subr.mxu0 0.0
    %1923 = vmatpush2.msra.mxu0 0.0
    %1924 = vmatprep.subr.mxu0 0.0
    %1925 = vmatpush2.msra.mxu0 0.0
    %1926 = vmatprep.subr.mxu0 0.0
    %1927 = vmatpush2.msra.mxu0 0.0
    %1928 = vmatprep.subr.mxu0 0.0
    %1929 = vmatpush2.msra.mxu0 0.0
    %1930 = vmatprep.mubr.f32.mxu0 0.0
    %v1931 = vand.u32 %v1365, 4294901760
    %1932 = vmatmul.mubr.f32.gmra.mxu0 %v1931
    %v1933 = vpop.f32.mrf.mxu0
    %v1934 = vadd.f32 %v1815, %v1933
    %v1935 = vpop.f32.mrf.mxu0
    %1936 = vdwg.mxu0
    %1937 = vmatprep.subr.mxu0 0.0
    %v1938 = vand.u32 %v1381, 4294901760
    %1939 = vmatpush1.msra.mxu0 %v1938
    %1940 = vmatprep.subr.mxu0 0.0
    %v1941 = vand.u32 %v1380, 4294901760
    %1942 = vmatpush1.msra.mxu0 %v1941
    %1943 = vmatprep.subr.mxu0 0.0
    %v1944 = vand.u32 %v1379, 4294901760
    %1945 = vmatpush1.msra.mxu0 %v1944
    %1946 = vmatprep.subr.mxu0 0.0
    %v1947 = vand.u32 %v1378, 4294901760
    %1948 = vmatpush1.msra.mxu0 %v1947
    %1949 = vmatprep.subr.mxu0 0.0
    %v1950 = vand.u32 %v1377, 4294901760
    %1951 = vmatpush1.msra.mxu0 %v1950
    %1952 = vmatprep.subr.mxu0 0.0
    %v1953 = vand.u32 %v1376, 4294901760
    %1954 = vmatpush1.msra.mxu0 %v1953
    %1955 = vmatprep.subr.mxu0 0.0
    %v1956 = vand.u32 %v1375, 4294901760
    %1957 = vmatpush1.msra.mxu0 %v1956
    %1958 = vmatprep.subr.mxu0 0.0
    %v1959 = vand.u32 %v1374, 4294901760
    %1960 = vmatpush1.msra.mxu0 %v1959
    %1961 = vmatprep.subr.mxu0 0.0
    %v1962 = vand.u32 %v1373, 4294901760
    %1963 = vmatpush1.msra.mxu0 %v1962
    %1964 = vmatprep.subr.mxu0 0.0
    %v1965 = vand.u32 %v1372, 4294901760
    %1966 = vmatpush1.msra.mxu0 %v1965
    %1967 = vmatprep.subr.mxu0 0.0
    %v1968 = vand.u32 %v1371, 4294901760
    %1969 = vmatpush1.msra.mxu0 %v1968
    %1970 = vmatprep.subr.mxu0 0.0
    %v1971 = vand.u32 %v1370, 4294901760
    %1972 = vmatpush1.msra.mxu0 %v1971
    %1973 = vmatprep.subr.mxu0 0.0
    %v1974 = vand.u32 %v1369, 4294901760
    %1975 = vmatpush1.msra.mxu0 %v1974
    %1976 = vmatprep.subr.mxu0 0.0
    %v1977 = vand.u32 %v1368, 4294901760
    %1978 = vmatpush1.msra.mxu0 %v1977
    %1979 = vmatprep.subr.mxu0 0.0
    %v1980 = vand.u32 %v1367, 4294901760
    %1981 = vmatpush1.msra.mxu0 %v1980
    %1982 = vmatprep.subr.mxu0 0.0
    %v1983 = vand.u32 %v1366, 4294901760
    %1984 = vmatpush1.msra.mxu0 %v1983
    %1985 = vmatprep.subr.mxu0 0.0
    %1986 = vmatpush2.msra.mxu0 0.0
    %1987 = vmatprep.subr.mxu0 0.0
    %1988 = vmatpush2.msra.mxu0 0.0
    %1989 = vmatprep.subr.mxu0 0.0
    %1990 = vmatpush2.msra.mxu0 0.0
    %1991 = vmatprep.subr.mxu0 0.0
    %1992 = vmatpush2.msra.mxu0 0.0
    %1993 = vmatprep.subr.mxu0 0.0
    %1994 = vmatpush2.msra.mxu0 0.0
    %1995 = vmatprep.subr.mxu0 0.0
    %1996 = vmatpush2.msra.mxu0 0.0
    %1997 = vmatprep.subr.mxu0 0.0
    %1998 = vmatpush2.msra.mxu0 0.0
    %1999 = vmatprep.subr.mxu0 0.0
    %2000 = vmatpush2.msra.mxu0 0.0
    %2001 = vmatprep.subr.mxu0 0.0
    %2002 = vmatpush2.msra.mxu0 0.0
    %2003 = vmatprep.subr.mxu0 0.0
    %2004 = vmatpush2.msra.mxu0 0.0
    %2005 = vmatprep.subr.mxu0 0.0
    %2006 = vmatpush2.msra.mxu0 0.0
    %2007 = vmatprep.subr.mxu0 0.0
    %2008 = vmatpush2.msra.mxu0 0.0
    %2009 = vmatprep.subr.mxu0 0.0
    %2010 = vmatpush2.msra.mxu0 0.0
    %2011 = vmatprep.subr.mxu0 0.0
    %2012 = vmatpush2.msra.mxu0 0.0
    %2013 = vmatprep.subr.mxu0 0.0
    %2014 = vmatpush2.msra.mxu0 0.0
    %2015 = vmatprep.subr.mxu0 0.0
    %2016 = vmatpush2.msra.mxu0 0.0
    %2017 = vmatprep.mubr.f32.mxu0 0.0
    %v2018 = vand.u32 %v1365, 4294901760
    %2019 = vmatmul.mubr.f32.gmra.mxu0 %v2018
    %v2020 = vpop.f32.mrf.mxu0
    %v2021 = vadd.f32 %v1934, %v2020
    %v2022 = vpop.f32.mrf.mxu0
    %2023 = vdwg.mxu0
    %v2024 = vmax.f32 %v2021, 0.0
    %v2025 = vld [vmem:[#allocation2 + $0x18] sm:$0xff]
    %v2026 = vld [vmem:[#allocation2 + $0x78] sm:$0xff]
    %v2027 = vld [vmem:[#allocation2 + $0xd8] sm:$0xff]
    %v2028 = vld [vmem:[#allocation2 + $0x138] sm:$0xff]
    %v2029 = vld [vmem:[#allocation2 + $0x198] sm:$0xff]
    %v2030 = vld [vmem:[#allocation2 + $0x1f8] sm:$0xff]
    %v2031 = vld [vmem:[#allocation2 + $0x258] sm:$0xff]
    %v2032 = vld [vmem:[#allocation2 + $0x2b8] sm:$0xff]
    %v2033 = vld [vmem:[#allocation2 + $0x318] sm:$0xff]
    %v2034 = vld [vmem:[#allocation2 + $0x378] sm:$0xff]
    %v2035 = vld [vmem:[#allocation2 + $0x3d8] sm:$0xff]
    %v2036 = vld [vmem:[#allocation2 + $0x438] sm:$0xff]
    %v2037 = vld [vmem:[#allocation2 + $0x498] sm:$0xff]
    %v2038 = vld [vmem:[#allocation2 + $0x4f8] sm:$0xff]
    %v2039 = vld [vmem:[#allocation2 + $0x558] sm:$0xff]
    %v2040 = vld [vmem:[#allocation2 + $0x5b8] sm:$0xff]
    %v2041 = vld [vmem:[#allocation2 + $0x618] ss:$0 sm:$0xff]
    %2042 = vmatprep.subr.mxu0 0.0
    %v2043 = vand.u32 %v2040, 4294901760
    %2044 = vmatpush1.msra.mxu0 %v2043
    %2045 = vmatprep.subr.mxu0 0.0
    %v2046 = vand.u32 %v2039, 4294901760
    %2047 = vmatpush1.msra.mxu0 %v2046
    %2048 = vmatprep.subr.mxu0 0.0
    %v2049 = vand.u32 %v2038, 4294901760
    %2050 = vmatpush1.msra.mxu0 %v2049
    %2051 = vmatprep.subr.mxu0 0.0
    %v2052 = vand.u32 %v2037, 4294901760
    %2053 = vmatpush1.msra.mxu0 %v2052
    %2054 = vmatprep.subr.mxu0 0.0
    %v2055 = vand.u32 %v2036, 4294901760
    %2056 = vmatpush1.msra.mxu0 %v2055
    %2057 = vmatprep.subr.mxu0 0.0
    %v2058 = vand.u32 %v2035, 4294901760
    %2059 = vmatpush1.msra.mxu0 %v2058
    %2060 = vmatprep.subr.mxu0 0.0
    %v2061 = vand.u32 %v2034, 4294901760
    %2062 = vmatpush1.msra.mxu0 %v2061
    %2063 = vmatprep.subr.mxu0 0.0
    %v2064 = vand.u32 %v2033, 4294901760
    %2065 = vmatpush1.msra.mxu0 %v2064
    %2066 = vmatprep.subr.mxu0 0.0
    %v2067 = vand.u32 %v2032, 4294901760
    %2068 = vmatpush1.msra.mxu0 %v2067
    %2069 = vmatprep.subr.mxu0 0.0
    %v2070 = vand.u32 %v2031, 4294901760
    %2071 = vmatpush1.msra.mxu0 %v2070
    %2072 = vmatprep.subr.mxu0 0.0
    %v2073 = vand.u32 %v2030, 4294901760
    %2074 = vmatpush1.msra.mxu0 %v2073
    %2075 = vmatprep.subr.mxu0 0.0
    %v2076 = vand.u32 %v2029, 4294901760
    %2077 = vmatpush1.msra.mxu0 %v2076
    %2078 = vmatprep.subr.mxu0 0.0
    %v2079 = vand.u32 %v2028, 4294901760
    %2080 = vmatpush1.msra.mxu0 %v2079
    %2081 = vmatprep.subr.mxu0 0.0
    %v2082 = vand.u32 %v2027, 4294901760
    %2083 = vmatpush1.msra.mxu0 %v2082
    %2084 = vmatprep.subr.mxu0 0.0
    %v2085 = vand.u32 %v2026, 4294901760
    %2086 = vmatpush1.msra.mxu0 %v2085
    %2087 = vmatprep.subr.mxu0 0.0
    %v2088 = vand.u32 %v2025, 4294901760
    %2089 = vmatpush1.msra.mxu0 %v2088
    %2090 = vmatprep.subr.mxu0 0.0
    %2091 = vmatpush2.msra.mxu0 0.0
    %2092 = vmatprep.subr.mxu0 0.0
    %2093 = vmatpush2.msra.mxu0 0.0
    %2094 = vmatprep.subr.mxu0 0.0
    %2095 = vmatpush2.msra.mxu0 0.0
    %2096 = vmatprep.subr.mxu0 0.0
    %2097 = vmatpush2.msra.mxu0 0.0
    %2098 = vmatprep.subr.mxu0 0.0
    %2099 = vmatpush2.msra.mxu0 0.0
    %2100 = vmatprep.subr.mxu0 0.0
    %2101 = vmatpush2.msra.mxu0 0.0
    %2102 = vmatprep.subr.mxu0 0.0
    %2103 = vmatpush2.msra.mxu0 0.0
    %2104 = vmatprep.subr.mxu0 0.0
    %2105 = vmatpush2.msra.mxu0 0.0
    %2106 = vmatprep.subr.mxu0 0.0
    %2107 = vmatpush2.msra.mxu0 0.0
    %2108 = vmatprep.subr.mxu0 0.0
    %2109 = vmatpush2.msra.mxu0 0.0
    %2110 = vmatprep.subr.mxu0 0.0
    %2111 = vmatpush2.msra.mxu0 0.0
    %2112 = vmatprep.subr.mxu0 0.0
    %2113 = vmatpush2.msra.mxu0 0.0
    %2114 = vmatprep.subr.mxu0 0.0
    %2115 = vmatpush2.msra.mxu0 0.0
    %2116 = vmatprep.subr.mxu0 0.0
    %2117 = vmatpush2.msra.mxu0 0.0
    %2118 = vmatprep.subr.mxu0 0.0
    %2119 = vmatpush2.msra.mxu0 0.0
    %2120 = vmatprep.subr.mxu0 0.0
    %2121 = vmatpush2.msra.mxu0 0.0
    %2122 = vmatprep.mubr.f32.mxu0 0.0
    %v2123 = vand.u32 %v2024, 4294901760
    %v2124 = vsub.f32 %v2024, %v2123
    %v2125 = vand.u32 %v2124, 4294901760
    %v2126 = vsub.f32 %v2124, %v2125
    %v2127 = vand.u32 %v2126, 4294901760
    %2128 = vmatmul.mubr.f32.gmra.mxu0 %v2127
    %v2129 = vpop.f32.mrf.mxu0
    %v2130 = vadd.f32 %v2041, %v2129
    %v2131 = vpop.f32.mrf.mxu0
    %2132 = vdwg.mxu0
    %2133 = vmatprep.subr.mxu0 0.0
    %v2134 = vand.u32 %v2040, 4294901760
    %v2135 = vsub.f32 %v2040, %v2134
    %v2136 = vand.u32 %v2135, 4294901760
    %v2137 = vsub.f32 %v2135, %v2136
    %v2138 = vand.u32 %v2137, 4294901760
    %2139 = vmatpush1.msra.mxu0 %v2138
    %2140 = vmatprep.subr.mxu0 0.0
    %v2141 = vand.u32 %v2039, 4294901760
    %v2142 = vsub.f32 %v2039, %v2141
    %v2143 = vand.u32 %v2142, 4294901760
    %v2144 = vsub.f32 %v2142, %v2143
    %v2145 = vand.u32 %v2144, 4294901760
    %2146 = vmatpush1.msra.mxu0 %v2145
    %2147 = vmatprep.subr.mxu0 0.0
    %v2148 = vand.u32 %v2038, 4294901760
    %v2149 = vsub.f32 %v2038, %v2148
    %v2150 = vand.u32 %v2149, 4294901760
    %v2151 = vsub.f32 %v2149, %v2150
    %v2152 = vand.u32 %v2151, 4294901760
    %2153 = vmatpush1.msra.mxu0 %v2152
    %2154 = vmatprep.subr.mxu0 0.0
    %v2155 = vand.u32 %v2037, 4294901760
    %v2156 = vsub.f32 %v2037, %v2155
    %v2157 = vand.u32 %v2156, 4294901760
    %v2158 = vsub.f32 %v2156, %v2157
    %v2159 = vand.u32 %v2158, 4294901760
    %2160 = vmatpush1.msra.mxu0 %v2159
    %2161 = vmatprep.subr.mxu0 0.0
    %v2162 = vand.u32 %v2036, 4294901760
    %v2163 = vsub.f32 %v2036, %v2162
    %v2164 = vand.u32 %v2163, 4294901760
    %v2165 = vsub.f32 %v2163, %v2164
    %v2166 = vand.u32 %v2165, 4294901760
    %2167 = vmatpush1.msra.mxu0 %v2166
    %2168 = vmatprep.subr.mxu0 0.0
    %v2169 = vand.u32 %v2035, 4294901760
    %v2170 = vsub.f32 %v2035, %v2169
    %v2171 = vand.u32 %v2170, 4294901760
    %v2172 = vsub.f32 %v2170, %v2171
    %v2173 = vand.u32 %v2172, 4294901760
    %2174 = vmatpush1.msra.mxu0 %v2173
    %2175 = vmatprep.subr.mxu0 0.0
    %v2176 = vand.u32 %v2034, 4294901760
    %v2177 = vsub.f32 %v2034, %v2176
    %v2178 = vand.u32 %v2177, 4294901760
    %v2179 = vsub.f32 %v2177, %v2178
    %v2180 = vand.u32 %v2179, 4294901760
    %2181 = vmatpush1.msra.mxu0 %v2180
    %2182 = vmatprep.subr.mxu0 0.0
    %v2183 = vand.u32 %v2033, 4294901760
    %v2184 = vsub.f32 %v2033, %v2183
    %v2185 = vand.u32 %v2184, 4294901760
    %v2186 = vsub.f32 %v2184, %v2185
    %v2187 = vand.u32 %v2186, 4294901760
    %2188 = vmatpush1.msra.mxu0 %v2187
    %2189 = vmatprep.subr.mxu0 0.0
    %v2190 = vand.u32 %v2032, 4294901760
    %v2191 = vsub.f32 %v2032, %v2190
    %v2192 = vand.u32 %v2191, 4294901760
    %v2193 = vsub.f32 %v2191, %v2192
    %v2194 = vand.u32 %v2193, 4294901760
    %2195 = vmatpush1.msra.mxu0 %v2194
    %2196 = vmatprep.subr.mxu0 0.0
    %v2197 = vand.u32 %v2031, 4294901760
    %v2198 = vsub.f32 %v2031, %v2197
    %v2199 = vand.u32 %v2198, 4294901760
    %v2200 = vsub.f32 %v2198, %v2199
    %v2201 = vand.u32 %v2200, 4294901760
    %2202 = vmatpush1.msra.mxu0 %v2201
    %2203 = vmatprep.subr.mxu0 0.0
    %v2204 = vand.u32 %v2030, 4294901760
    %v2205 = vsub.f32 %v2030, %v2204
    %v2206 = vand.u32 %v2205, 4294901760
    %v2207 = vsub.f32 %v2205, %v2206
    %v2208 = vand.u32 %v2207, 4294901760
    %2209 = vmatpush1.msra.mxu0 %v2208
    %2210 = vmatprep.subr.mxu0 0.0
    %v2211 = vand.u32 %v2029, 4294901760
    %v2212 = vsub.f32 %v2029, %v2211
    %v2213 = vand.u32 %v2212, 4294901760
    %v2214 = vsub.f32 %v2212, %v2213
    %v2215 = vand.u32 %v2214, 4294901760
    %2216 = vmatpush1.msra.mxu0 %v2215
    %2217 = vmatprep.subr.mxu0 0.0
    %v2218 = vand.u32 %v2028, 4294901760
    %v2219 = vsub.f32 %v2028, %v2218
    %v2220 = vand.u32 %v2219, 4294901760
    %v2221 = vsub.f32 %v2219, %v2220
    %v2222 = vand.u32 %v2221, 4294901760
    %2223 = vmatpush1.msra.mxu0 %v2222
    %2224 = vmatprep.subr.mxu0 0.0
    %v2225 = vand.u32 %v2027, 4294901760
    %v2226 = vsub.f32 %v2027, %v2225
    %v2227 = vand.u32 %v2226, 4294901760
    %v2228 = vsub.f32 %v2226, %v2227
    %v2229 = vand.u32 %v2228, 4294901760
    %2230 = vmatpush1.msra.mxu0 %v2229
    %2231 = vmatprep.subr.mxu0 0.0
    %v2232 = vand.u32 %v2026, 4294901760
    %v2233 = vsub.f32 %v2026, %v2232
    %v2234 = vand.u32 %v2233, 4294901760
    %v2235 = vsub.f32 %v2233, %v2234
    %v2236 = vand.u32 %v2235, 4294901760
    %2237 = vmatpush1.msra.mxu0 %v2236
    %2238 = vmatprep.subr.mxu0 0.0
    %v2239 = vand.u32 %v2025, 4294901760
    %v2240 = vsub.f32 %v2025, %v2239
    %v2241 = vand.u32 %v2240, 4294901760
    %v2242 = vsub.f32 %v2240, %v2241
    %v2243 = vand.u32 %v2242, 4294901760
    %2244 = vmatpush1.msra.mxu0 %v2243
    %2245 = vmatprep.subr.mxu0 0.0
    %2246 = vmatpush2.msra.mxu0 0.0
    %2247 = vmatprep.subr.mxu0 0.0
    %2248 = vmatpush2.msra.mxu0 0.0
    %2249 = vmatprep.subr.mxu0 0.0
    %2250 = vmatpush2.msra.mxu0 0.0
    %2251 = vmatprep.subr.mxu0 0.0
    %2252 = vmatpush2.msra.mxu0 0.0
    %2253 = vmatprep.subr.mxu0 0.0
    %2254 = vmatpush2.msra.mxu0 0.0
    %2255 = vmatprep.subr.mxu0 0.0
    %2256 = vmatpush2.msra.mxu0 0.0
    %2257 = vmatprep.subr.mxu0 0.0
    %2258 = vmatpush2.msra.mxu0 0.0
    %2259 = vmatprep.subr.mxu0 0.0
    %2260 = vmatpush2.msra.mxu0 0.0
    %2261 = vmatprep.subr.mxu0 0.0
    %2262 = vmatpush2.msra.mxu0 0.0
    %2263 = vmatprep.subr.mxu0 0.0
    %2264 = vmatpush2.msra.mxu0 0.0
    %2265 = vmatprep.subr.mxu0 0.0
    %2266 = vmatpush2.msra.mxu0 0.0
    %2267 = vmatprep.subr.mxu0 0.0
    %2268 = vmatpush2.msra.mxu0 0.0
    %2269 = vmatprep.subr.mxu0 0.0
    %2270 = vmatpush2.msra.mxu0 0.0
    %2271 = vmatprep.subr.mxu0 0.0
    %2272 = vmatpush2.msra.mxu0 0.0
    %2273 = vmatprep.subr.mxu0 0.0
    %2274 = vmatpush2.msra.mxu0 0.0
    %2275 = vmatprep.subr.mxu0 0.0
    %2276 = vmatpush2.msra.mxu0 0.0
    %2277 = vmatprep.mubr.f32.mxu0 0.0
    %v2278 = vand.u32 %v2024, 4294901760
    %2279 = vmatmul.mubr.f32.gmra.mxu0 %v2278
    %v2280 = vpop.f32.mrf.mxu0
    %v2281 = vadd.f32 %v2130, %v2280
    %v2282 = vpop.f32.mrf.mxu0
    %2283 = vdwg.mxu0
    %2284 = vmatprep.subr.mxu0 0.0
    %v2285 = vand.u32 %v2040, 4294901760
    %v2286 = vsub.f32 %v2040, %v2285
    %2287 = vmatpush1.msra.mxu0 %v2286
    %2288 = vmatprep.subr.mxu0 0.0
    %v2289 = vand.u32 %v2039, 4294901760
    %v2290 = vsub.f32 %v2039, %v2289
    %2291 = vmatpush1.msra.mxu0 %v2290
    %2292 = vmatprep.subr.mxu0 0.0
    %v2293 = vand.u32 %v2038, 4294901760
    %v2294 = vsub.f32 %v2038, %v2293
    %2295 = vmatpush1.msra.mxu0 %v2294
    %2296 = vmatprep.subr.mxu0 0.0
    %v2297 = vand.u32 %v2037, 4294901760
    %v2298 = vsub.f32 %v2037, %v2297
    %2299 = vmatpush1.msra.mxu0 %v2298
    %2300 = vmatprep.subr.mxu0 0.0
    %v2301 = vand.u32 %v2036, 4294901760
    %v2302 = vsub.f32 %v2036, %v2301
    %2303 = vmatpush1.msra.mxu0 %v2302
    %2304 = vmatprep.subr.mxu0 0.0
    %v2305 = vand.u32 %v2035, 4294901760
    %v2306 = vsub.f32 %v2035, %v2305
    %2307 = vmatpush1.msra.mxu0 %v2306
    %2308 = vmatprep.subr.mxu0 0.0
    %v2309 = vand.u32 %v2034, 4294901760
    %v2310 = vsub.f32 %v2034, %v2309
    %2311 = vmatpush1.msra.mxu0 %v2310
    %2312 = vmatprep.subr.mxu0 0.0
    %v2313 = vand.u32 %v2033, 4294901760
    %v2314 = vsub.f32 %v2033, %v2313
    %2315 = vmatpush1.msra.mxu0 %v2314
    %2316 = vmatprep.subr.mxu0 0.0
    %v2317 = vand.u32 %v2032, 4294901760
    %v2318 = vsub.f32 %v2032, %v2317
    %2319 = vmatpush1.msra.mxu0 %v2318
    %2320 = vmatprep.subr.mxu0 0.0
    %v2321 = vand.u32 %v2031, 4294901760
    %v2322 = vsub.f32 %v2031, %v2321
    %2323 = vmatpush1.msra.mxu0 %v2322
    %2324 = vmatprep.subr.mxu0 0.0
    %v2325 = vand.u32 %v2030, 4294901760
    %v2326 = vsub.f32 %v2030, %v2325
    %2327 = vmatpush1.msra.mxu0 %v2326
    %2328 = vmatprep.subr.mxu0 0.0
    %v2329 = vand.u32 %v2029, 4294901760
    %v2330 = vsub.f32 %v2029, %v2329
    %2331 = vmatpush1.msra.mxu0 %v2330
    %2332 = vmatprep.subr.mxu0 0.0
    %v2333 = vand.u32 %v2028, 4294901760
    %v2334 = vsub.f32 %v2028, %v2333
    %2335 = vmatpush1.msra.mxu0 %v2334
    %2336 = vmatprep.subr.mxu0 0.0
    %v2337 = vand.u32 %v2027, 4294901760
    %v2338 = vsub.f32 %v2027, %v2337
    %2339 = vmatpush1.msra.mxu0 %v2338
    %2340 = vmatprep.subr.mxu0 0.0
    %v2341 = vand.u32 %v2026, 4294901760
    %v2342 = vsub.f32 %v2026, %v2341
    %2343 = vmatpush1.msra.mxu0 %v2342
    %2344 = vmatprep.subr.mxu0 0.0
    %v2345 = vand.u32 %v2025, 4294901760
    %v2346 = vsub.f32 %v2025, %v2345
    %2347 = vmatpush1.msra.mxu0 %v2346
    %2348 = vmatprep.subr.mxu0 0.0
    %2349 = vmatpush2.msra.mxu0 0.0
    %2350 = vmatprep.subr.mxu0 0.0
    %2351 = vmatpush2.msra.mxu0 0.0
    %2352 = vmatprep.subr.mxu0 0.0
    %2353 = vmatpush2.msra.mxu0 0.0
    %2354 = vmatprep.subr.mxu0 0.0
    %2355 = vmatpush2.msra.mxu0 0.0
    %2356 = vmatprep.subr.mxu0 0.0
    %2357 = vmatpush2.msra.mxu0 0.0
    %2358 = vmatprep.subr.mxu0 0.0
    %2359 = vmatpush2.msra.mxu0 0.0
    %2360 = vmatprep.subr.mxu0 0.0
    %2361 = vmatpush2.msra.mxu0 0.0
    %2362 = vmatprep.subr.mxu0 0.0
    %2363 = vmatpush2.msra.mxu0 0.0
    %2364 = vmatprep.subr.mxu0 0.0
    %2365 = vmatpush2.msra.mxu0 0.0
    %2366 = vmatprep.subr.mxu0 0.0
    %2367 = vmatpush2.msra.mxu0 0.0
    %2368 = vmatprep.subr.mxu0 0.0
    %2369 = vmatpush2.msra.mxu0 0.0
    %2370 = vmatprep.subr.mxu0 0.0
    %2371 = vmatpush2.msra.mxu0 0.0
    %2372 = vmatprep.subr.mxu0 0.0
    %2373 = vmatpush2.msra.mxu0 0.0
    %2374 = vmatprep.subr.mxu0 0.0
    %2375 = vmatpush2.msra.mxu0 0.0
    %2376 = vmatprep.subr.mxu0 0.0
    %2377 = vmatpush2.msra.mxu0 0.0
    %2378 = vmatprep.subr.mxu0 0.0
    %2379 = vmatpush2.msra.mxu0 0.0
    %2380 = vmatprep.mubr.f32.mxu0 0.0
    %v2381 = vand.u32 %v2024, 4294901760
    %v2382 = vsub.f32 %v2024, %v2381
    %2383 = vmatmul.mubr.f32.gmra.mxu0 %v2382
    %v2384 = vpop.f32.mrf.mxu0
    %v2385 = vadd.f32 %v2281, %v2384
    %v2386 = vpop.f32.mrf.mxu0
    %2387 = vdwg.mxu0
    %2388 = vmatprep.subr.mxu0 0.0
    %v2389 = vand.u32 %v2040, 4294901760
    %2390 = vmatpush1.msra.mxu0 %v2389
    %2391 = vmatprep.subr.mxu0 0.0
    %v2392 = vand.u32 %v2039, 4294901760
    %2393 = vmatpush1.msra.mxu0 %v2392
    %2394 = vmatprep.subr.mxu0 0.0
    %v2395 = vand.u32 %v2038, 4294901760
    %2396 = vmatpush1.msra.mxu0 %v2395
    %2397 = vmatprep.subr.mxu0 0.0
    %v2398 = vand.u32 %v2037, 4294901760
    %2399 = vmatpush1.msra.mxu0 %v2398
    %2400 = vmatprep.subr.mxu0 0.0
    %v2401 = vand.u32 %v2036, 4294901760
    %2402 = vmatpush1.msra.mxu0 %v2401
    %2403 = vmatprep.subr.mxu0 0.0
    %v2404 = vand.u32 %v2035, 4294901760
    %2405 = vmatpush1.msra.mxu0 %v2404
    %2406 = vmatprep.subr.mxu0 0.0
    %v2407 = vand.u32 %v2034, 4294901760
    %2408 = vmatpush1.msra.mxu0 %v2407
    %2409 = vmatprep.subr.mxu0 0.0
    %v2410 = vand.u32 %v2033, 4294901760
    %2411 = vmatpush1.msra.mxu0 %v2410
    %2412 = vmatprep.subr.mxu0 0.0
    %v2413 = vand.u32 %v2032, 4294901760
    %2414 = vmatpush1.msra.mxu0 %v2413
    %2415 = vmatprep.subr.mxu0 0.0
    %v2416 = vand.u32 %v2031, 4294901760
    %2417 = vmatpush1.msra.mxu0 %v2416
    %2418 = vmatprep.subr.mxu0 0.0
    %v2419 = vand.u32 %v2030, 4294901760
    %2420 = vmatpush1.msra.mxu0 %v2419
    %2421 = vmatprep.subr.mxu0 0.0
    %v2422 = vand.u32 %v2029, 4294901760
    %2423 = vmatpush1.msra.mxu0 %v2422
    %2424 = vmatprep.subr.mxu0 0.0
    %v2425 = vand.u32 %v2028, 4294901760
    %2426 = vmatpush1.msra.mxu0 %v2425
    %2427 = vmatprep.subr.mxu0 0.0
    %v2428 = vand.u32 %v2027, 4294901760
    %2429 = vmatpush1.msra.mxu0 %v2428
    %2430 = vmatprep.subr.mxu0 0.0
    %v2431 = vand.u32 %v2026, 4294901760
    %2432 = vmatpush1.msra.mxu0 %v2431
    %2433 = vmatprep.subr.mxu0 0.0
    %v2434 = vand.u32 %v2025, 4294901760
    %2435 = vmatpush1.msra.mxu0 %v2434
    %2436 = vmatprep.subr.mxu0 0.0
    %2437 = vmatpush2.msra.mxu0 0.0
    %2438 = vmatprep.subr.mxu0 0.0
    %2439 = vmatpush2.msra.mxu0 0.0
    %2440 = vmatprep.subr.mxu0 0.0
    %2441 = vmatpush2.msra.mxu0 0.0
    %2442 = vmatprep.subr.mxu0 0.0
    %2443 = vmatpush2.msra.mxu0 0.0
    %2444 = vmatprep.subr.mxu0 0.0
    %2445 = vmatpush2.msra.mxu0 0.0
    %2446 = vmatprep.subr.mxu0 0.0
    %2447 = vmatpush2.msra.mxu0 0.0
    %2448 = vmatprep.subr.mxu0 0.0
    %2449 = vmatpush2.msra.mxu0 0.0
    %2450 = vmatprep.subr.mxu0 0.0
    %2451 = vmatpush2.msra.mxu0 0.0
    %2452 = vmatprep.subr.mxu0 0.0
    %2453 = vmatpush2.msra.mxu0 0.0
    %2454 = vmatprep.subr.mxu0 0.0
    %2455 = vmatpush2.msra.mxu0 0.0
    %2456 = vmatprep.subr.mxu0 0.0
    %2457 = vmatpush2.msra.mxu0 0.0
    %2458 = vmatprep.subr.mxu0 0.0
    %2459 = vmatpush2.msra.mxu0 0.0
    %2460 = vmatprep.subr.mxu0 0.0
    %2461 = vmatpush2.msra.mxu0 0.0
    %2462 = vmatprep.subr.mxu0 0.0
    %2463 = vmatpush2.msra.mxu0 0.0
    %2464 = vmatprep.subr.mxu0 0.0
    %2465 = vmatpush2.msra.mxu0 0.0
    %2466 = vmatprep.subr.mxu0 0.0
    %2467 = vmatpush2.msra.mxu0 0.0
    %2468 = vmatprep.mubr.f32.mxu0 0.0
    %v2469 = vand.u32 %v2024, 4294901760
    %v2470 = vsub.f32 %v2024, %v2469
    %v2471 = vand.u32 %v2470, 4294901760
    %2472 = vmatmul.mubr.f32.gmra.mxu0 %v2471
    %v2473 = vpop.f32.mrf.mxu0
    %v2474 = vadd.f32 %v2385, %v2473
    %v2475 = vpop.f32.mrf.mxu0
    %2476 = vdwg.mxu0
    %2477 = vmatprep.subr.mxu0 0.0
    %v2478 = vand.u32 %v2040, 4294901760
    %v2479 = vsub.f32 %v2040, %v2478
    %v2480 = vand.u32 %v2479, 4294901760
    %2481 = vmatpush1.msra.mxu0 %v2480
    %2482 = vmatprep.subr.mxu0 0.0
    %v2483 = vand.u32 %v2039, 4294901760
    %v2484 = vsub.f32 %v2039, %v2483
    %v2485 = vand.u32 %v2484, 4294901760
    %2486 = vmatpush1.msra.mxu0 %v2485
    %2487 = vmatprep.subr.mxu0 0.0
    %v2488 = vand.u32 %v2038, 4294901760
    %v2489 = vsub.f32 %v2038, %v2488
    %v2490 = vand.u32 %v2489, 4294901760
    %2491 = vmatpush1.msra.mxu0 %v2490
    %2492 = vmatprep.subr.mxu0 0.0
    %v2493 = vand.u32 %v2037, 4294901760
    %v2494 = vsub.f32 %v2037, %v2493
    %v2495 = vand.u32 %v2494, 4294901760
    %2496 = vmatpush1.msra.mxu0 %v2495
    %2497 = vmatprep.subr.mxu0 0.0
    %v2498 = vand.u32 %v2036, 4294901760
    %v2499 = vsub.f32 %v2036, %v2498
    %v2500 = vand.u32 %v2499, 4294901760
    %2501 = vmatpush1.msra.mxu0 %v2500
    %2502 = vmatprep.subr.mxu0 0.0
    %v2503 = vand.u32 %v2035, 4294901760
    %v2504 = vsub.f32 %v2035, %v2503
    %v2505 = vand.u32 %v2504, 4294901760
    %2506 = vmatpush1.msra.mxu0 %v2505
    %2507 = vmatprep.subr.mxu0 0.0
    %v2508 = vand.u32 %v2034, 4294901760
    %v2509 = vsub.f32 %v2034, %v2508
    %v2510 = vand.u32 %v2509, 4294901760
    %2511 = vmatpush1.msra.mxu0 %v2510
    %2512 = vmatprep.subr.mxu0 0.0
    %v2513 = vand.u32 %v2033, 4294901760
    %v2514 = vsub.f32 %v2033, %v2513
    %v2515 = vand.u32 %v2514, 4294901760
    %2516 = vmatpush1.msra.mxu0 %v2515
    %2517 = vmatprep.subr.mxu0 0.0
    %v2518 = vand.u32 %v2032, 4294901760
    %v2519 = vsub.f32 %v2032, %v2518
    %v2520 = vand.u32 %v2519, 4294901760
    %2521 = vmatpush1.msra.mxu0 %v2520
    %2522 = vmatprep.subr.mxu0 0.0
    %v2523 = vand.u32 %v2031, 4294901760
    %v2524 = vsub.f32 %v2031, %v2523
    %v2525 = vand.u32 %v2524, 4294901760
    %2526 = vmatpush1.msra.mxu0 %v2525
    %2527 = vmatprep.subr.mxu0 0.0
    %v2528 = vand.u32 %v2030, 4294901760
    %v2529 = vsub.f32 %v2030, %v2528
    %v2530 = vand.u32 %v2529, 4294901760
    %2531 = vmatpush1.msra.mxu0 %v2530
    %2532 = vmatprep.subr.mxu0 0.0
    %v2533 = vand.u32 %v2029, 4294901760
    %v2534 = vsub.f32 %v2029, %v2533
    %v2535 = vand.u32 %v2534, 4294901760
    %2536 = vmatpush1.msra.mxu0 %v2535
    %2537 = vmatprep.subr.mxu0 0.0
    %v2538 = vand.u32 %v2028, 4294901760
    %v2539 = vsub.f32 %v2028, %v2538
    %v2540 = vand.u32 %v2539, 4294901760
    %2541 = vmatpush1.msra.mxu0 %v2540
    %2542 = vmatprep.subr.mxu0 0.0
    %v2543 = vand.u32 %v2027, 4294901760
    %v2544 = vsub.f32 %v2027, %v2543
    %v2545 = vand.u32 %v2544, 4294901760
    %2546 = vmatpush1.msra.mxu0 %v2545
    %2547 = vmatprep.subr.mxu0 0.0
    %v2548 = vand.u32 %v2026, 4294901760
    %v2549 = vsub.f32 %v2026, %v2548
    %v2550 = vand.u32 %v2549, 4294901760
    %2551 = vmatpush1.msra.mxu0 %v2550
    %2552 = vmatprep.subr.mxu0 0.0
    %v2553 = vand.u32 %v2025, 4294901760
    %v2554 = vsub.f32 %v2025, %v2553
    %v2555 = vand.u32 %v2554, 4294901760
    %2556 = vmatpush1.msra.mxu0 %v2555
    %2557 = vmatprep.subr.mxu0 0.0
    %2558 = vmatpush2.msra.mxu0 0.0
    %2559 = vmatprep.subr.mxu0 0.0
    %2560 = vmatpush2.msra.mxu0 0.0
    %2561 = vmatprep.subr.mxu0 0.0
    %2562 = vmatpush2.msra.mxu0 0.0
    %2563 = vmatprep.subr.mxu0 0.0
    %2564 = vmatpush2.msra.mxu0 0.0
    %2565 = vmatprep.subr.mxu0 0.0
    %2566 = vmatpush2.msra.mxu0 0.0
    %2567 = vmatprep.subr.mxu0 0.0
    %2568 = vmatpush2.msra.mxu0 0.0
    %2569 = vmatprep.subr.mxu0 0.0
    %2570 = vmatpush2.msra.mxu0 0.0
    %2571 = vmatprep.subr.mxu0 0.0
    %2572 = vmatpush2.msra.mxu0 0.0
    %2573 = vmatprep.subr.mxu0 0.0
    %2574 = vmatpush2.msra.mxu0 0.0
    %2575 = vmatprep.subr.mxu0 0.0
    %2576 = vmatpush2.msra.mxu0 0.0
    %2577 = vmatprep.subr.mxu0 0.0
    %2578 = vmatpush2.msra.mxu0 0.0
    %2579 = vmatprep.subr.mxu0 0.0
    %2580 = vmatpush2.msra.mxu0 0.0
    %2581 = vmatprep.subr.mxu0 0.0
    %2582 = vmatpush2.msra.mxu0 0.0
    %2583 = vmatprep.subr.mxu0 0.0
    %2584 = vmatpush2.msra.mxu0 0.0
    %2585 = vmatprep.subr.mxu0 0.0
    %2586 = vmatpush2.msra.mxu0 0.0
    %2587 = vmatprep.subr.mxu0 0.0
    %2588 = vmatpush2.msra.mxu0 0.0
    %2589 = vmatprep.mubr.f32.mxu0 0.0
    %v2590 = vand.u32 %v2024, 4294901760
    %2591 = vmatmul.mubr.f32.gmra.mxu0 %v2590
    %v2592 = vpop.f32.mrf.mxu0
    %v2593 = vadd.f32 %v2474, %v2592
    %v2594 = vpop.f32.mrf.mxu0
    %2595 = vdwg.mxu0
    %2596 = vmatprep.subr.mxu0 0.0
    %v2597 = vand.u32 %v2040, 4294901760
    %2598 = vmatpush1.msra.mxu0 %v2597
    %2599 = vmatprep.subr.mxu0 0.0
    %v2600 = vand.u32 %v2039, 4294901760
    %2601 = vmatpush1.msra.mxu0 %v2600
    %2602 = vmatprep.subr.mxu0 0.0
    %v2603 = vand.u32 %v2038, 4294901760
    %2604 = vmatpush1.msra.mxu0 %v2603
    %2605 = vmatprep.subr.mxu0 0.0
    %v2606 = vand.u32 %v2037, 4294901760
    %2607 = vmatpush1.msra.mxu0 %v2606
    %2608 = vmatprep.subr.mxu0 0.0
    %v2609 = vand.u32 %v2036, 4294901760
    %2610 = vmatpush1.msra.mxu0 %v2609
    %2611 = vmatprep.subr.mxu0 0.0
    %v2612 = vand.u32 %v2035, 4294901760
    %2613 = vmatpush1.msra.mxu0 %v2612
    %2614 = vmatprep.subr.mxu0 0.0
    %v2615 = vand.u32 %v2034, 4294901760
    %2616 = vmatpush1.msra.mxu0 %v2615
    %2617 = vmatprep.subr.mxu0 0.0
    %v2618 = vand.u32 %v2033, 4294901760
    %2619 = vmatpush1.msra.mxu0 %v2618
    %2620 = vmatprep.subr.mxu0 0.0
    %v2621 = vand.u32 %v2032, 4294901760
    %2622 = vmatpush1.msra.mxu0 %v2621
    %2623 = vmatprep.subr.mxu0 0.0
    %v2624 = vand.u32 %v2031, 4294901760
    %2625 = vmatpush1.msra.mxu0 %v2624
    %2626 = vmatprep.subr.mxu0 0.0
    %v2627 = vand.u32 %v2030, 4294901760
    %2628 = vmatpush1.msra.mxu0 %v2627
    %2629 = vmatprep.subr.mxu0 0.0
    %v2630 = vand.u32 %v2029, 4294901760
    %2631 = vmatpush1.msra.mxu0 %v2630
    %2632 = vmatprep.subr.mxu0 0.0
    %v2633 = vand.u32 %v2028, 4294901760
    %2634 = vmatpush1.msra.mxu0 %v2633
    %2635 = vmatprep.subr.mxu0 0.0
    %v2636 = vand.u32 %v2027, 4294901760
    %2637 = vmatpush1.msra.mxu0 %v2636
    %2638 = vmatprep.subr.mxu0 0.0
    %v2639 = vand.u32 %v2026, 4294901760
    %2640 = vmatpush1.msra.mxu0 %v2639
    %2641 = vmatprep.subr.mxu0 0.0
    %v2642 = vand.u32 %v2025, 4294901760
    %2643 = vmatpush1.msra.mxu0 %v2642
    %2644 = vmatprep.subr.mxu0 0.0
    %2645 = vmatpush2.msra.mxu0 0.0
    %2646 = vmatprep.subr.mxu0 0.0
    %2647 = vmatpush2.msra.mxu0 0.0
    %2648 = vmatprep.subr.mxu0 0.0
    %2649 = vmatpush2.msra.mxu0 0.0
    %2650 = vmatprep.subr.mxu0 0.0
    %2651 = vmatpush2.msra.mxu0 0.0
    %2652 = vmatprep.subr.mxu0 0.0
    %2653 = vmatpush2.msra.mxu0 0.0
    %2654 = vmatprep.subr.mxu0 0.0
    %2655 = vmatpush2.msra.mxu0 0.0
    %2656 = vmatprep.subr.mxu0 0.0
    %2657 = vmatpush2.msra.mxu0 0.0
    %2658 = vmatprep.subr.mxu0 0.0
    %2659 = vmatpush2.msra.mxu0 0.0
    %2660 = vmatprep.subr.mxu0 0.0
    %2661 = vmatpush2.msra.mxu0 0.0
    %2662 = vmatprep.subr.mxu0 0.0
    %2663 = vmatpush2.msra.mxu0 0.0
    %2664 = vmatprep.subr.mxu0 0.0
    %2665 = vmatpush2.msra.mxu0 0.0
    %2666 = vmatprep.subr.mxu0 0.0
    %2667 = vmatpush2.msra.mxu0 0.0
    %2668 = vmatprep.subr.mxu0 0.0
    %2669 = vmatpush2.msra.mxu0 0.0
    %2670 = vmatprep.subr.mxu0 0.0
    %2671 = vmatpush2.msra.mxu0 0.0
    %2672 = vmatprep.subr.mxu0 0.0
    %2673 = vmatpush2.msra.mxu0 0.0
    %2674 = vmatprep.subr.mxu0 0.0
    %2675 = vmatpush2.msra.mxu0 0.0
    %2676 = vmatprep.mubr.f32.mxu0 0.0
    %v2677 = vand.u32 %v2024, 4294901760
    %2678 = vmatmul.mubr.f32.gmra.mxu0 %v2677
    %v2679 = vpop.f32.mrf.mxu0
    %v2680 = vadd.f32 %v2593, %v2679
    %v2681 = vpop.f32.mrf.mxu0
    %2682 = vdwg.mxu0
    %v2684 = vrot.slane %v2680, 2
    %v2686 = vsub.f32 %v2680, %v2684
    %v2687 = vmul.f32 %v2686, 0.5
    %v2688 = vmul.f32 %v2687, %v2687
    %vm2689 = vcmask 9216
    %v2690 = vsel %vm2689, %v2688, 0.0
    %2691 = vadd.xlane.f32.xlu0 %v2690
    %v2692 = vpop.xlane.xlu0 %2691
    %v2693 = vrsqrt.pop %v2692
    %v2694 = vmul.f32 %v2692, %v2693
    %vm2695 = vcmp.eq.f32.partialorder %v2692, inf
    %v2696 = vsel %vm2695, %v2692, %v2694
    %vm2697 = vcmp.eq.f32.partialorder %v2692, 0.0
    %v2698 = vand.u32 %v2692, 2147483648
    %v2699 = vsel %vm2697, %v2698, %v2696
    %v2700 = vrcp.pop %v2699
    %v2701 = vmul.f32 %v2687, %v2700
    %v2702 = vadd.f32 %v2680, %v2684
    %v2703 = vmul.f32 %v2702, 0.5
    %2705 = vrot.lane.b32.xlu0 %v2703, 126
    %v2706 = vpop.permute.xlu0 %2705
    %2708 = vrot.lane.b32.xlu0 %v2703, 127
    %v2709 = vpop.permute.xlu0 %2708
    %vm2711 = vcmask 7168
    %v2712 = vsel %vm2711, %v2706, %v2709
    %v2713 = vmul.f32 %v2712, 0.5
    %v2714 = vmul.f32 %v2713, 1.442695
    %v2715 = vpow.pop %v2714
    %2717 = vrot.lane.b32.xlu0 %v25, 60
    %v2718 = vpop.permute.xlu0 %2717
    %v2720 = vmul.f32 %v2715, %v2718
    %v2721 = vadd.f32 %v2701, %v2720
    %v2722 = vmul.f32 %v2721, %v2721
    %v2723 = vsel %vm2689, %v2722, 0.0
    %2724 = vadd.xlane.f32.xlu0 %v2723
    %v2725 = vpop.xlane.xlu0 %2724
    %v2726 = vrsqrt.pop %v2725
    %v2727 = vmul.f32 %v2725, %v2726
    %vm2728 = vcmp.eq.f32.partialorder %v2725, inf
    %v2729 = vsel %vm2728, %v2725, %v2727
    %vm2730 = vcmp.eq.f32.partialorder %v2725, 0.0
    %v2731 = vand.u32 %v2725, 2147483648
    %v2732 = vsel %vm2730, %v2731, %v2729
    %v2733 = vrcp.pop %v2732
    %v2734 = vmul.f32 %v2721, %v2733
    %v2735 = vsub.f32 0.0, %v2734
    %v2737 = vrot.slane %v2735, 6
    %v2739 = vsel %vm46, %v2734, %v2737
    %v2740 = vrot.slane %v25, 6
    %v2742 = vsel %vm46, %v25, %v2740
    %2744 = vrot.lane.b32.xlu0 %v2742, 66
    %v2745 = vpop.permute.xlu0 %2744
    %vm2747 = vcmask 15360
    %v2748 = vsel %vm2747, %v2739, %v2745
    %vm2749 = vcmask 48128
    %v2750 = vsel %vm2749, %v2748, 0.0
    %v2751 = vld [vmem:[#allocation2 + $0x20] sm:$0xff]
    %v2752 = vld [vmem:[#allocation2 + $0x80] sm:$0xff]
    %v2753 = vld [vmem:[#allocation2 + $0xe0] sm:$0xff]
    %v2754 = vld [vmem:[#allocation2 + $0x140] sm:$0xff]
    %v2755 = vld [vmem:[#allocation2 + $0x1a0] sm:$0xff]
    %v2756 = vld [vmem:[#allocation2 + $0x200] sm:$0xff]
    %v2757 = vld [vmem:[#allocation2 + $0x260] sm:$0xff]
    %v2758 = vld [vmem:[#allocation2 + $0x2c0] sm:$0xff]
    %v2759 = vld [vmem:[#allocation2 + $0x320] sm:$0xff]
    %v2760 = vld [vmem:[#allocation2 + $0x380] sm:$0xff]
    %v2761 = vld [vmem:[#allocation2 + $0x3e0] sm:$0xff]
    %v2762 = vld [vmem:[#allocation2 + $0x440] sm:$0xff]
    %v2763 = vld [vmem:[#allocation2 + $0x4a0] sm:$0xff]
    %v2764 = vld [vmem:[#allocation2 + $0x500] sm:$0xff]
    %v2765 = vld [vmem:[#allocation2 + $0x560] sm:$0xff]
    %v2766 = vld [vmem:[#allocation2 + $0x5c0] sm:$0xff]
    %v2767 = vld [vmem:[#allocation2 + $0x620] ss:$0 sm:$0xff]
    %2768 = vmatprep.subr.mxu0 0.0
    %v2769 = vand.u32 %v2766, 4294901760
    %2770 = vmatpush1.msra.mxu0 %v2769
    %2771 = vmatprep.subr.mxu0 0.0
    %v2772 = vand.u32 %v2765, 4294901760
    %2773 = vmatpush1.msra.mxu0 %v2772
    %2774 = vmatprep.subr.mxu0 0.0
    %v2775 = vand.u32 %v2764, 4294901760
    %2776 = vmatpush1.msra.mxu0 %v2775
    %2777 = vmatprep.subr.mxu0 0.0
    %v2778 = vand.u32 %v2763, 4294901760
    %2779 = vmatpush1.msra.mxu0 %v2778
    %2780 = vmatprep.subr.mxu0 0.0
    %v2781 = vand.u32 %v2762, 4294901760
    %2782 = vmatpush1.msra.mxu0 %v2781
    %2783 = vmatprep.subr.mxu0 0.0
    %v2784 = vand.u32 %v2761, 4294901760
    %2785 = vmatpush1.msra.mxu0 %v2784
    %2786 = vmatprep.subr.mxu0 0.0
    %v2787 = vand.u32 %v2760, 4294901760
    %2788 = vmatpush1.msra.mxu0 %v2787
    %2789 = vmatprep.subr.mxu0 0.0
    %v2790 = vand.u32 %v2759, 4294901760
    %2791 = vmatpush1.msra.mxu0 %v2790
    %2792 = vmatprep.subr.mxu0 0.0
    %v2793 = vand.u32 %v2758, 4294901760
    %2794 = vmatpush1.msra.mxu0 %v2793
    %2795 = vmatprep.subr.mxu0 0.0
    %v2796 = vand.u32 %v2757, 4294901760
    %2797 = vmatpush1.msra.mxu0 %v2796
    %2798 = vmatprep.subr.mxu0 0.0
    %v2799 = vand.u32 %v2756, 4294901760
    %2800 = vmatpush1.msra.mxu0 %v2799
    %2801 = vmatprep.subr.mxu0 0.0
    %v2802 = vand.u32 %v2755, 4294901760
    %2803 = vmatpush1.msra.mxu0 %v2802
    %2804 = vmatprep.subr.mxu0 0.0
    %v2805 = vand.u32 %v2754, 4294901760
    %2806 = vmatpush1.msra.mxu0 %v2805
    %2807 = vmatprep.subr.mxu0 0.0
    %v2808 = vand.u32 %v2753, 4294901760
    %2809 = vmatpush1.msra.mxu0 %v2808
    %2810 = vmatprep.subr.mxu0 0.0
    %v2811 = vand.u32 %v2752, 4294901760
    %2812 = vmatpush1.msra.mxu0 %v2811
    %2813 = vmatprep.subr.mxu0 0.0
    %v2814 = vand.u32 %v2751, 4294901760
    %2815 = vmatpush1.msra.mxu0 %v2814
    %2816 = vmatprep.subr.mxu0 0.0
    %2817 = vmatpush2.msra.mxu0 0.0
    %2818 = vmatprep.subr.mxu0 0.0
    %2819 = vmatpush2.msra.mxu0 0.0
    %2820 = vmatprep.subr.mxu0 0.0
    %2821 = vmatpush2.msra.mxu0 0.0
    %2822 = vmatprep.subr.mxu0 0.0
    %2823 = vmatpush2.msra.mxu0 0.0
    %2824 = vmatprep.subr.mxu0 0.0
    %2825 = vmatpush2.msra.mxu0 0.0
    %2826 = vmatprep.subr.mxu0 0.0
    %2827 = vmatpush2.msra.mxu0 0.0
    %2828 = vmatprep.subr.mxu0 0.0
    %2829 = vmatpush2.msra.mxu0 0.0
    %2830 = vmatprep.subr.mxu0 0.0
    %2831 = vmatpush2.msra.mxu0 0.0
    %2832 = vmatprep.subr.mxu0 0.0
    %2833 = vmatpush2.msra.mxu0 0.0
    %2834 = vmatprep.subr.mxu0 0.0
    %2835 = vmatpush2.msra.mxu0 0.0
    %2836 = vmatprep.subr.mxu0 0.0
    %2837 = vmatpush2.msra.mxu0 0.0
    %2838 = vmatprep.subr.mxu0 0.0
    %2839 = vmatpush2.msra.mxu0 0.0
    %2840 = vmatprep.subr.mxu0 0.0
    %2841 = vmatpush2.msra.mxu0 0.0
    %2842 = vmatprep.subr.mxu0 0.0
    %2843 = vmatpush2.msra.mxu0 0.0
    %2844 = vmatprep.subr.mxu0 0.0
    %2845 = vmatpush2.msra.mxu0 0.0
    %2846 = vmatprep.subr.mxu0 0.0
    %2847 = vmatpush2.msra.mxu0 0.0
    %2848 = vmatprep.mubr.f32.mxu0 0.0
    %v2849 = vand.u32 %v2750, 4294901760
    %v2850 = vsub.f32 %v2750, %v2849
    %v2851 = vand.u32 %v2850, 4294901760
    %v2852 = vsub.f32 %v2850, %v2851
    %v2853 = vand.u32 %v2852, 4294901760
    %2854 = vmatmul.mubr.f32.gmra.mxu0 %v2853
    %v2855 = vpop.f32.mrf.mxu0
    %v2856 = vadd.f32 %v2767, %v2855
    %v2857 = vpop.f32.mrf.mxu0
    %2858 = vdwg.mxu0
    %2859 = vmatprep.subr.mxu0 0.0
    %v2860 = vand.u32 %v2766, 4294901760
    %v2861 = vsub.f32 %v2766, %v2860
    %v2862 = vand.u32 %v2861, 4294901760
    %v2863 = vsub.f32 %v2861, %v2862
    %v2864 = vand.u32 %v2863, 4294901760
    %2865 = vmatpush1.msra.mxu0 %v2864
    %2866 = vmatprep.subr.mxu0 0.0
    %v2867 = vand.u32 %v2765, 4294901760
    %v2868 = vsub.f32 %v2765, %v2867
    %v2869 = vand.u32 %v2868, 4294901760
    %v2870 = vsub.f32 %v2868, %v2869
    %v2871 = vand.u32 %v2870, 4294901760
    %2872 = vmatpush1.msra.mxu0 %v2871
    %2873 = vmatprep.subr.mxu0 0.0
    %v2874 = vand.u32 %v2764, 4294901760
    %v2875 = vsub.f32 %v2764, %v2874
    %v2876 = vand.u32 %v2875, 4294901760
    %v2877 = vsub.f32 %v2875, %v2876
    %v2878 = vand.u32 %v2877, 4294901760
    %2879 = vmatpush1.msra.mxu0 %v2878
    %2880 = vmatprep.subr.mxu0 0.0
    %v2881 = vand.u32 %v2763, 4294901760
    %v2882 = vsub.f32 %v2763, %v2881
    %v2883 = vand.u32 %v2882, 4294901760
    %v2884 = vsub.f32 %v2882, %v2883
    %v2885 = vand.u32 %v2884, 4294901760
    %2886 = vmatpush1.msra.mxu0 %v2885
    %2887 = vmatprep.subr.mxu0 0.0
    %v2888 = vand.u32 %v2762, 4294901760
    %v2889 = vsub.f32 %v2762, %v2888
    %v2890 = vand.u32 %v2889, 4294901760
    %v2891 = vsub.f32 %v2889, %v2890
    %v2892 = vand.u32 %v2891, 4294901760
    %2893 = vmatpush1.msra.mxu0 %v2892
    %2894 = vmatprep.subr.mxu0 0.0
    %v2895 = vand.u32 %v2761, 4294901760
    %v2896 = vsub.f32 %v2761, %v2895
    %v2897 = vand.u32 %v2896, 4294901760
    %v2898 = vsub.f32 %v2896, %v2897
    %v2899 = vand.u32 %v2898, 4294901760
    %2900 = vmatpush1.msra.mxu0 %v2899
    %2901 = vmatprep.subr.mxu0 0.0
    %v2902 = vand.u32 %v2760, 4294901760
    %v2903 = vsub.f32 %v2760, %v2902
    %v2904 = vand.u32 %v2903, 4294901760
    %v2905 = vsub.f32 %v2903, %v2904
    %v2906 = vand.u32 %v2905, 4294901760
    %2907 = vmatpush1.msra.mxu0 %v2906
    %2908 = vmatprep.subr.mxu0 0.0
    %v2909 = vand.u32 %v2759, 4294901760
    %v2910 = vsub.f32 %v2759, %v2909
    %v2911 = vand.u32 %v2910, 4294901760
    %v2912 = vsub.f32 %v2910, %v2911
    %v2913 = vand.u32 %v2912, 4294901760
    %2914 = vmatpush1.msra.mxu0 %v2913
    %2915 = vmatprep.subr.mxu0 0.0
    %v2916 = vand.u32 %v2758, 4294901760
    %v2917 = vsub.f32 %v2758, %v2916
    %v2918 = vand.u32 %v2917, 4294901760
    %v2919 = vsub.f32 %v2917, %v2918
    %v2920 = vand.u32 %v2919, 4294901760
    %2921 = vmatpush1.msra.mxu0 %v2920
    %2922 = vmatprep.subr.mxu0 0.0
    %v2923 = vand.u32 %v2757, 4294901760
    %v2924 = vsub.f32 %v2757, %v2923
    %v2925 = vand.u32 %v2924, 4294901760
    %v2926 = vsub.f32 %v2924, %v2925
    %v2927 = vand.u32 %v2926, 4294901760
    %2928 = vmatpush1.msra.mxu0 %v2927
    %2929 = vmatprep.subr.mxu0 0.0
    %v2930 = vand.u32 %v2756, 4294901760
    %v2931 = vsub.f32 %v2756, %v2930
    %v2932 = vand.u32 %v2931, 4294901760
    %v2933 = vsub.f32 %v2931, %v2932
    %v2934 = vand.u32 %v2933, 4294901760
    %2935 = vmatpush1.msra.mxu0 %v2934
    %2936 = vmatprep.subr.mxu0 0.0
    %v2937 = vand.u32 %v2755, 4294901760
    %v2938 = vsub.f32 %v2755, %v2937
    %v2939 = vand.u32 %v2938, 4294901760
    %v2940 = vsub.f32 %v2938, %v2939
    %v2941 = vand.u32 %v2940, 4294901760
    %2942 = vmatpush1.msra.mxu0 %v2941
    %2943 = vmatprep.subr.mxu0 0.0
    %v2944 = vand.u32 %v2754, 4294901760
    %v2945 = vsub.f32 %v2754, %v2944
    %v2946 = vand.u32 %v2945, 4294901760
    %v2947 = vsub.f32 %v2945, %v2946
    %v2948 = vand.u32 %v2947, 4294901760
    %2949 = vmatpush1.msra.mxu0 %v2948
    %2950 = vmatprep.subr.mxu0 0.0
    %v2951 = vand.u32 %v2753, 4294901760
    %v2952 = vsub.f32 %v2753, %v2951
    %v2953 = vand.u32 %v2952, 4294901760
    %v2954 = vsub.f32 %v2952, %v2953
    %v2955 = vand.u32 %v2954, 4294901760
    %2956 = vmatpush1.msra.mxu0 %v2955
    %2957 = vmatprep.subr.mxu0 0.0
    %v2958 = vand.u32 %v2752, 4294901760
    %v2959 = vsub.f32 %v2752, %v2958
    %v2960 = vand.u32 %v2959, 4294901760
    %v2961 = vsub.f32 %v2959, %v2960
    %v2962 = vand.u32 %v2961, 4294901760
    %2963 = vmatpush1.msra.mxu0 %v2962
    %2964 = vmatprep.subr.mxu0 0.0
    %v2965 = vand.u32 %v2751, 4294901760
    %v2966 = vsub.f32 %v2751, %v2965
    %v2967 = vand.u32 %v2966, 4294901760
    %v2968 = vsub.f32 %v2966, %v2967
    %v2969 = vand.u32 %v2968, 4294901760
    %2970 = vmatpush1.msra.mxu0 %v2969
    %2971 = vmatprep.subr.mxu0 0.0
    %2972 = vmatpush2.msra.mxu0 0.0
    %2973 = vmatprep.subr.mxu0 0.0
    %2974 = vmatpush2.msra.mxu0 0.0
    %2975 = vmatprep.subr.mxu0 0.0
    %2976 = vmatpush2.msra.mxu0 0.0
    %2977 = vmatprep.subr.mxu0 0.0
    %2978 = vmatpush2.msra.mxu0 0.0
    %2979 = vmatprep.subr.mxu0 0.0
    %2980 = vmatpush2.msra.mxu0 0.0
    %2981 = vmatprep.subr.mxu0 0.0
    %2982 = vmatpush2.msra.mxu0 0.0
    %2983 = vmatprep.subr.mxu0 0.0
    %2984 = vmatpush2.msra.mxu0 0.0
    %2985 = vmatprep.subr.mxu0 0.0
    %2986 = vmatpush2.msra.mxu0 0.0
    %2987 = vmatprep.subr.mxu0 0.0
    %2988 = vmatpush2.msra.mxu0 0.0
    %2989 = vmatprep.subr.mxu0 0.0
    %2990 = vmatpush2.msra.mxu0 0.0
    %2991 = vmatprep.subr.mxu0 0.0
    %2992 = vmatpush2.msra.mxu0 0.0
    %2993 = vmatprep.subr.mxu0 0.0
    %2994 = vmatpush2.msra.mxu0 0.0
    %2995 = vmatprep.subr.mxu0 0.0
    %2996 = vmatpush2.msra.mxu0 0.0
    %2997 = vmatprep.subr.mxu0 0.0
    %2998 = vmatpush2.msra.mxu0 0.0
    %2999 = vmatprep.subr.mxu0 0.0
    %3000 = vmatpush2.msra.mxu0 0.0
    %3001 = vmatprep.subr.mxu0 0.0
    %3002 = vmatpush2.msra.mxu0 0.0
    %3003 = vmatprep.mubr.f32.mxu0 0.0
    %v3004 = vand.u32 %v2750, 4294901760
    %3005 = vmatmul.mubr.f32.gmra.mxu0 %v3004
    %v3006 = vpop.f32.mrf.mxu0
    %v3007 = vadd.f32 %v2856, %v3006
    %v3008 = vpop.f32.mrf.mxu0
    %3009 = vdwg.mxu0
    %3010 = vmatprep.subr.mxu0 0.0
    %v3011 = vand.u32 %v2766, 4294901760
    %v3012 = vsub.f32 %v2766, %v3011
    %3013 = vmatpush1.msra.mxu0 %v3012
    %3014 = vmatprep.subr.mxu0 0.0
    %v3015 = vand.u32 %v2765, 4294901760
    %v3016 = vsub.f32 %v2765, %v3015
    %3017 = vmatpush1.msra.mxu0 %v3016
    %3018 = vmatprep.subr.mxu0 0.0
    %v3019 = vand.u32 %v2764, 4294901760
    %v3020 = vsub.f32 %v2764, %v3019
    %3021 = vmatpush1.msra.mxu0 %v3020
    %3022 = vmatprep.subr.mxu0 0.0
    %v3023 = vand.u32 %v2763, 4294901760
    %v3024 = vsub.f32 %v2763, %v3023
    %3025 = vmatpush1.msra.mxu0 %v3024
    %3026 = vmatprep.subr.mxu0 0.0
    %v3027 = vand.u32 %v2762, 4294901760
    %v3028 = vsub.f32 %v2762, %v3027
    %3029 = vmatpush1.msra.mxu0 %v3028
    %3030 = vmatprep.subr.mxu0 0.0
    %v3031 = vand.u32 %v2761, 4294901760
    %v3032 = vsub.f32 %v2761, %v3031
    %3033 = vmatpush1.msra.mxu0 %v3032
    %3034 = vmatprep.subr.mxu0 0.0
    %v3035 = vand.u32 %v2760, 4294901760
    %v3036 = vsub.f32 %v2760, %v3035
    %3037 = vmatpush1.msra.mxu0 %v3036
    %3038 = vmatprep.subr.mxu0 0.0
    %v3039 = vand.u32 %v2759, 4294901760
    %v3040 = vsub.f32 %v2759, %v3039
    %3041 = vmatpush1.msra.mxu0 %v3040
    %3042 = vmatprep.subr.mxu0 0.0
    %v3043 = vand.u32 %v2758, 4294901760
    %v3044 = vsub.f32 %v2758, %v3043
    %3045 = vmatpush1.msra.mxu0 %v3044
    %3046 = vmatprep.subr.mxu0 0.0
    %v3047 = vand.u32 %v2757, 4294901760
    %v3048 = vsub.f32 %v2757, %v3047
    %3049 = vmatpush1.msra.mxu0 %v3048
    %3050 = vmatprep.subr.mxu0 0.0
    %v3051 = vand.u32 %v2756, 4294901760
    %v3052 = vsub.f32 %v2756, %v3051
    %3053 = vmatpush1.msra.mxu0 %v3052
    %3054 = vmatprep.subr.mxu0 0.0
    %v3055 = vand.u32 %v2755, 4294901760
    %v3056 = vsub.f32 %v2755, %v3055
    %3057 = vmatpush1.msra.mxu0 %v3056
    %3058 = vmatprep.subr.mxu0 0.0
    %v3059 = vand.u32 %v2754, 4294901760
    %v3060 = vsub.f32 %v2754, %v3059
    %3061 = vmatpush1.msra.mxu0 %v3060
    %3062 = vmatprep.subr.mxu0 0.0
    %v3063 = vand.u32 %v2753, 4294901760
    %v3064 = vsub.f32 %v2753, %v3063
    %3065 = vmatpush1.msra.mxu0 %v3064
    %3066 = vmatprep.subr.mxu0 0.0
    %v3067 = vand.u32 %v2752, 4294901760
    %v3068 = vsub.f32 %v2752, %v3067
    %3069 = vmatpush1.msra.mxu0 %v3068
    %3070 = vmatprep.subr.mxu0 0.0
    %v3071 = vand.u32 %v2751, 4294901760
    %v3072 = vsub.f32 %v2751, %v3071
    %3073 = vmatpush1.msra.mxu0 %v3072
    %3074 = vmatprep.subr.mxu0 0.0
    %3075 = vmatpush2.msra.mxu0 0.0
    %3076 = vmatprep.subr.mxu0 0.0
    %3077 = vmatpush2.msra.mxu0 0.0
    %3078 = vmatprep.subr.mxu0 0.0
    %3079 = vmatpush2.msra.mxu0 0.0
    %3080 = vmatprep.subr.mxu0 0.0
    %3081 = vmatpush2.msra.mxu0 0.0
    %3082 = vmatprep.subr.mxu0 0.0
    %3083 = vmatpush2.msra.mxu0 0.0
    %3084 = vmatprep.subr.mxu0 0.0
    %3085 = vmatpush2.msra.mxu0 0.0
    %3086 = vmatprep.subr.mxu0 0.0
    %3087 = vmatpush2.msra.mxu0 0.0
    %3088 = vmatprep.subr.mxu0 0.0
    %3089 = vmatpush2.msra.mxu0 0.0
    %3090 = vmatprep.subr.mxu0 0.0
    %3091 = vmatpush2.msra.mxu0 0.0
    %3092 = vmatprep.subr.mxu0 0.0
    %3093 = vmatpush2.msra.mxu0 0.0
    %3094 = vmatprep.subr.mxu0 0.0
    %3095 = vmatpush2.msra.mxu0 0.0
    %3096 = vmatprep.subr.mxu0 0.0
    %3097 = vmatpush2.msra.mxu0 0.0
    %3098 = vmatprep.subr.mxu0 0.0
    %3099 = vmatpush2.msra.mxu0 0.0
    %3100 = vmatprep.subr.mxu0 0.0
    %3101 = vmatpush2.msra.mxu0 0.0
    %3102 = vmatprep.subr.mxu0 0.0
    %3103 = vmatpush2.msra.mxu0 0.0
    %3104 = vmatprep.subr.mxu0 0.0
    %3105 = vmatpush2.msra.mxu0 0.0
    %3106 = vmatprep.mubr.f32.mxu0 0.0
    %v3107 = vand.u32 %v2750, 4294901760
    %v3108 = vsub.f32 %v2750, %v3107
    %3109 = vmatmul.mubr.f32.gmra.mxu0 %v3108
    %v3110 = vpop.f32.mrf.mxu0
    %v3111 = vadd.f32 %v3007, %v3110
    %v3112 = vpop.f32.mrf.mxu0
    %3113 = vdwg.mxu0
    %3114 = vmatprep.subr.mxu0 0.0
    %v3115 = vand.u32 %v2766, 4294901760
    %3116 = vmatpush1.msra.mxu0 %v3115
    %3117 = vmatprep.subr.mxu0 0.0
    %v3118 = vand.u32 %v2765, 4294901760
    %3119 = vmatpush1.msra.mxu0 %v3118
    %3120 = vmatprep.subr.mxu0 0.0
    %v3121 = vand.u32 %v2764, 4294901760
    %3122 = vmatpush1.msra.mxu0 %v3121
    %3123 = vmatprep.subr.mxu0 0.0
    %v3124 = vand.u32 %v2763, 4294901760
    %3125 = vmatpush1.msra.mxu0 %v3124
    %3126 = vmatprep.subr.mxu0 0.0
    %v3127 = vand.u32 %v2762, 4294901760
    %3128 = vmatpush1.msra.mxu0 %v3127
    %3129 = vmatprep.subr.mxu0 0.0
    %v3130 = vand.u32 %v2761, 4294901760
    %3131 = vmatpush1.msra.mxu0 %v3130
    %3132 = vmatprep.subr.mxu0 0.0
    %v3133 = vand.u32 %v2760, 4294901760
    %3134 = vmatpush1.msra.mxu0 %v3133
    %3135 = vmatprep.subr.mxu0 0.0
    %v3136 = vand.u32 %v2759, 4294901760
    %3137 = vmatpush1.msra.mxu0 %v3136
    %3138 = vmatprep.subr.mxu0 0.0
    %v3139 = vand.u32 %v2758, 4294901760
    %3140 = vmatpush1.msra.mxu0 %v3139
    %3141 = vmatprep.subr.mxu0 0.0
    %v3142 = vand.u32 %v2757, 4294901760
    %3143 = vmatpush1.msra.mxu0 %v3142
    %3144 = vmatprep.subr.mxu0 0.0
    %v3145 = vand.u32 %v2756, 4294901760
    %3146 = vmatpush1.msra.mxu0 %v3145
    %3147 = vmatprep.subr.mxu0 0.0
    %v3148 = vand.u32 %v2755, 4294901760
    %3149 = vmatpush1.msra.mxu0 %v3148
    %3150 = vmatprep.subr.mxu0 0.0
    %v3151 = vand.u32 %v2754, 4294901760
    %3152 = vmatpush1.msra.mxu0 %v3151
    %3153 = vmatprep.subr.mxu0 0.0
    %v3154 = vand.u32 %v2753, 4294901760
    %3155 = vmatpush1.msra.mxu0 %v3154
    %3156 = vmatprep.subr.mxu0 0.0
    %v3157 = vand.u32 %v2752, 4294901760
    %3158 = vmatpush1.msra.mxu0 %v3157
    %3159 = vmatprep.subr.mxu0 0.0
    %v3160 = vand.u32 %v2751, 4294901760
    %3161 = vmatpush1.msra.mxu0 %v3160
    %3162 = vmatprep.subr.mxu0 0.0
    %3163 = vmatpush2.msra.mxu0 0.0
    %3164 = vmatprep.subr.mxu0 0.0
    %3165 = vmatpush2.msra.mxu0 0.0
    %3166 = vmatprep.subr.mxu0 0.0
    %3167 = vmatpush2.msra.mxu0 0.0
    %3168 = vmatprep.subr.mxu0 0.0
    %3169 = vmatpush2.msra.mxu0 0.0
    %3170 = vmatprep.subr.mxu0 0.0
    %3171 = vmatpush2.msra.mxu0 0.0
    %3172 = vmatprep.subr.mxu0 0.0
    %3173 = vmatpush2.msra.mxu0 0.0
    %3174 = vmatprep.subr.mxu0 0.0
    %3175 = vmatpush2.msra.mxu0 0.0
    %3176 = vmatprep.subr.mxu0 0.0
    %3177 = vmatpush2.msra.mxu0 0.0
    %3178 = vmatprep.subr.mxu0 0.0
    %3179 = vmatpush2.msra.mxu0 0.0
    %3180 = vmatprep.subr.mxu0 0.0
    %3181 = vmatpush2.msra.mxu0 0.0
    %3182 = vmatprep.subr.mxu0 0.0
    %3183 = vmatpush2.msra.mxu0 0.0
    %3184 = vmatprep.subr.mxu0 0.0
    %3185 = vmatpush2.msra.mxu0 0.0
    %3186 = vmatprep.subr.mxu0 0.0
    %3187 = vmatpush2.msra.mxu0 0.0
    %3188 = vmatprep.subr.mxu0 0.0
    %3189 = vmatpush2.msra.mxu0 0.0
    %3190 = vmatprep.subr.mxu0 0.0
    %3191 = vmatpush2.msra.mxu0 0.0
    %3192 = vmatprep.subr.mxu0 0.0
    %3193 = vmatpush2.msra.mxu0 0.0
    %3194 = vmatprep.mubr.f32.mxu0 0.0
    %v3195 = vand.u32 %v2750, 4294901760
    %v3196 = vsub.f32 %v2750, %v3195
    %v3197 = vand.u32 %v3196, 4294901760
    %3198 = vmatmul.mubr.f32.gmra.mxu0 %v3197
    %v3199 = vpop.f32.mrf.mxu0
    %v3200 = vadd.f32 %v3111, %v3199
    %v3201 = vpop.f32.mrf.mxu0
    %3202 = vdwg.mxu0
    %3203 = vmatprep.subr.mxu0 0.0
    %v3204 = vand.u32 %v2766, 4294901760
    %v3205 = vsub.f32 %v2766, %v3204
    %v3206 = vand.u32 %v3205, 4294901760
    %3207 = vmatpush1.msra.mxu0 %v3206
    %3208 = vmatprep.subr.mxu0 0.0
    %v3209 = vand.u32 %v2765, 4294901760
    %v3210 = vsub.f32 %v2765, %v3209
    %v3211 = vand.u32 %v3210, 4294901760
    %3212 = vmatpush1.msra.mxu0 %v3211
    %3213 = vmatprep.subr.mxu0 0.0
    %v3214 = vand.u32 %v2764, 4294901760
    %v3215 = vsub.f32 %v2764, %v3214
    %v3216 = vand.u32 %v3215, 4294901760
    %3217 = vmatpush1.msra.mxu0 %v3216
    %3218 = vmatprep.subr.mxu0 0.0
    %v3219 = vand.u32 %v2763, 4294901760
    %v3220 = vsub.f32 %v2763, %v3219
    %v3221 = vand.u32 %v3220, 4294901760
    %3222 = vmatpush1.msra.mxu0 %v3221
    %3223 = vmatprep.subr.mxu0 0.0
    %v3224 = vand.u32 %v2762, 4294901760
    %v3225 = vsub.f32 %v2762, %v3224
    %v3226 = vand.u32 %v3225, 4294901760
    %3227 = vmatpush1.msra.mxu0 %v3226
    %3228 = vmatprep.subr.mxu0 0.0
    %v3229 = vand.u32 %v2761, 4294901760
    %v3230 = vsub.f32 %v2761, %v3229
    %v3231 = vand.u32 %v3230, 4294901760
    %3232 = vmatpush1.msra.mxu0 %v3231
    %3233 = vmatprep.subr.mxu0 0.0
    %v3234 = vand.u32 %v2760, 4294901760
    %v3235 = vsub.f32 %v2760, %v3234
    %v3236 = vand.u32 %v3235, 4294901760
    %3237 = vmatpush1.msra.mxu0 %v3236
    %3238 = vmatprep.subr.mxu0 0.0
    %v3239 = vand.u32 %v2759, 4294901760
    %v3240 = vsub.f32 %v2759, %v3239
    %v3241 = vand.u32 %v3240, 4294901760
    %3242 = vmatpush1.msra.mxu0 %v3241
    %3243 = vmatprep.subr.mxu0 0.0
    %v3244 = vand.u32 %v2758, 4294901760
    %v3245 = vsub.f32 %v2758, %v3244
    %v3246 = vand.u32 %v3245, 4294901760
    %3247 = vmatpush1.msra.mxu0 %v3246
    %3248 = vmatprep.subr.mxu0 0.0
    %v3249 = vand.u32 %v2757, 4294901760
    %v3250 = vsub.f32 %v2757, %v3249
    %v3251 = vand.u32 %v3250, 4294901760
    %3252 = vmatpush1.msra.mxu0 %v3251
    %3253 = vmatprep.subr.mxu0 0.0
    %v3254 = vand.u32 %v2756, 4294901760
    %v3255 = vsub.f32 %v2756, %v3254
    %v3256 = vand.u32 %v3255, 4294901760
    %3257 = vmatpush1.msra.mxu0 %v3256
    %3258 = vmatprep.subr.mxu0 0.0
    %v3259 = vand.u32 %v2755, 4294901760
    %v3260 = vsub.f32 %v2755, %v3259
    %v3261 = vand.u32 %v3260, 4294901760
    %3262 = vmatpush1.msra.mxu0 %v3261
    %3263 = vmatprep.subr.mxu0 0.0
    %v3264 = vand.u32 %v2754, 4294901760
    %v3265 = vsub.f32 %v2754, %v3264
    %v3266 = vand.u32 %v3265, 4294901760
    %3267 = vmatpush1.msra.mxu0 %v3266
    %3268 = vmatprep.subr.mxu0 0.0
    %v3269 = vand.u32 %v2753, 4294901760
    %v3270 = vsub.f32 %v2753, %v3269
    %v3271 = vand.u32 %v3270, 4294901760
    %3272 = vmatpush1.msra.mxu0 %v3271
    %3273 = vmatprep.subr.mxu0 0.0
    %v3274 = vand.u32 %v2752, 4294901760
    %v3275 = vsub.f32 %v2752, %v3274
    %v3276 = vand.u32 %v3275, 4294901760
    %3277 = vmatpush1.msra.mxu0 %v3276
    %3278 = vmatprep.subr.mxu0 0.0
    %v3279 = vand.u32 %v2751, 4294901760
    %v3280 = vsub.f32 %v2751, %v3279
    %v3281 = vand.u32 %v3280, 4294901760
    %3282 = vmatpush1.msra.mxu0 %v3281
    %3283 = vmatprep.subr.mxu0 0.0
    %3284 = vmatpush2.msra.mxu0 0.0
    %3285 = vmatprep.subr.mxu0 0.0
    %3286 = vmatpush2.msra.mxu0 0.0
    %3287 = vmatprep.subr.mxu0 0.0
    %3288 = vmatpush2.msra.mxu0 0.0
    %3289 = vmatprep.subr.mxu0 0.0
    %3290 = vmatpush2.msra.mxu0 0.0
    %3291 = vmatprep.subr.mxu0 0.0
    %3292 = vmatpush2.msra.mxu0 0.0
    %3293 = vmatprep.subr.mxu0 0.0
    %3294 = vmatpush2.msra.mxu0 0.0
    %3295 = vmatprep.subr.mxu0 0.0
    %3296 = vmatpush2.msra.mxu0 0.0
    %3297 = vmatprep.subr.mxu0 0.0
    %3298 = vmatpush2.msra.mxu0 0.0
    %3299 = vmatprep.subr.mxu0 0.0
    %3300 = vmatpush2.msra.mxu0 0.0
    %3301 = vmatprep.subr.mxu0 0.0
    %3302 = vmatpush2.msra.mxu0 0.0
    %3303 = vmatprep.subr.mxu0 0.0
    %3304 = vmatpush2.msra.mxu0 0.0
    %3305 = vmatprep.subr.mxu0 0.0
    %3306 = vmatpush2.msra.mxu0 0.0
    %3307 = vmatprep.subr.mxu0 0.0
    %3308 = vmatpush2.msra.mxu0 0.0
    %3309 = vmatprep.subr.mxu0 0.0
    %3310 = vmatpush2.msra.mxu0 0.0
    %3311 = vmatprep.subr.mxu0 0.0
    %3312 = vmatpush2.msra.mxu0 0.0
    %3313 = vmatprep.subr.mxu0 0.0
    %3314 = vmatpush2.msra.mxu0 0.0
    %3315 = vmatprep.mubr.f32.mxu0 0.0
    %v3316 = vand.u32 %v2750, 4294901760
    %3317 = vmatmul.mubr.f32.gmra.mxu0 %v3316
    %v3318 = vpop.f32.mrf.mxu0
    %v3319 = vadd.f32 %v3200, %v3318
    %v3320 = vpop.f32.mrf.mxu0
    %3321 = vdwg.mxu0
    %3322 = vmatprep.subr.mxu0 0.0
    %v3323 = vand.u32 %v2766, 4294901760
    %3324 = vmatpush1.msra.mxu0 %v3323
    %3325 = vmatprep.subr.mxu0 0.0
    %v3326 = vand.u32 %v2765, 4294901760
    %3327 = vmatpush1.msra.mxu0 %v3326
    %3328 = vmatprep.subr.mxu0 0.0
    %v3329 = vand.u32 %v2764, 4294901760
    %3330 = vmatpush1.msra.mxu0 %v3329
    %3331 = vmatprep.subr.mxu0 0.0
    %v3332 = vand.u32 %v2763, 4294901760
    %3333 = vmatpush1.msra.mxu0 %v3332
    %3334 = vmatprep.subr.mxu0 0.0
    %v3335 = vand.u32 %v2762, 4294901760
    %3336 = vmatpush1.msra.mxu0 %v3335
    %3337 = vmatprep.subr.mxu0 0.0
    %v3338 = vand.u32 %v2761, 4294901760
    %3339 = vmatpush1.msra.mxu0 %v3338
    %3340 = vmatprep.subr.mxu0 0.0
    %v3341 = vand.u32 %v2760, 4294901760
    %3342 = vmatpush1.msra.mxu0 %v3341
    %3343 = vmatprep.subr.mxu0 0.0
    %v3344 = vand.u32 %v2759, 4294901760
    %3345 = vmatpush1.msra.mxu0 %v3344
    %3346 = vmatprep.subr.mxu0 0.0
    %v3347 = vand.u32 %v2758, 4294901760
    %3348 = vmatpush1.msra.mxu0 %v3347
    %3349 = vmatprep.subr.mxu0 0.0
    %v3350 = vand.u32 %v2757, 4294901760
    %3351 = vmatpush1.msra.mxu0 %v3350
    %3352 = vmatprep.subr.mxu0 0.0
    %v3353 = vand.u32 %v2756, 4294901760
    %3354 = vmatpush1.msra.mxu0 %v3353
    %3355 = vmatprep.subr.mxu0 0.0
    %v3356 = vand.u32 %v2755, 4294901760
    %3357 = vmatpush1.msra.mxu0 %v3356
    %3358 = vmatprep.subr.mxu0 0.0
    %v3359 = vand.u32 %v2754, 4294901760
    %3360 = vmatpush1.msra.mxu0 %v3359
    %3361 = vmatprep.subr.mxu0 0.0
    %v3362 = vand.u32 %v2753, 4294901760
    %3363 = vmatpush1.msra.mxu0 %v3362
    %3364 = vmatprep.subr.mxu0 0.0
    %v3365 = vand.u32 %v2752, 4294901760
    %3366 = vmatpush1.msra.mxu0 %v3365
    %3367 = vmatprep.subr.mxu0 0.0
    %v3368 = vand.u32 %v2751, 4294901760
    %3369 = vmatpush1.msra.mxu0 %v3368
    %3370 = vmatprep.subr.mxu0 0.0
    %3371 = vmatpush2.msra.mxu0 0.0
    %3372 = vmatprep.subr.mxu0 0.0
    %3373 = vmatpush2.msra.mxu0 0.0
    %3374 = vmatprep.subr.mxu0 0.0
    %3375 = vmatpush2.msra.mxu0 0.0
    %3376 = vmatprep.subr.mxu0 0.0
    %3377 = vmatpush2.msra.mxu0 0.0
    %3378 = vmatprep.subr.mxu0 0.0
    %3379 = vmatpush2.msra.mxu0 0.0
    %3380 = vmatprep.subr.mxu0 0.0
    %3381 = vmatpush2.msra.mxu0 0.0
    %3382 = vmatprep.subr.mxu0 0.0
    %3383 = vmatpush2.msra.mxu0 0.0
    %3384 = vmatprep.subr.mxu0 0.0
    %3385 = vmatpush2.msra.mxu0 0.0
    %3386 = vmatprep.subr.mxu0 0.0
    %3387 = vmatpush2.msra.mxu0 0.0
    %3388 = vmatprep.subr.mxu0 0.0
    %3389 = vmatpush2.msra.mxu0 0.0
    %3390 = vmatprep.subr.mxu0 0.0
    %3391 = vmatpush2.msra.mxu0 0.0
    %3392 = vmatprep.subr.mxu0 0.0
    %3393 = vmatpush2.msra.mxu0 0.0
    %3394 = vmatprep.subr.mxu0 0.0
    %3395 = vmatpush2.msra.mxu0 0.0
    %3396 = vmatprep.subr.mxu0 0.0
    %3397 = vmatpush2.msra.mxu0 0.0
    %3398 = vmatprep.subr.mxu0 0.0
    %3399 = vmatpush2.msra.mxu0 0.0
    %3400 = vmatprep.subr.mxu0 0.0
    %3401 = vmatpush2.msra.mxu0 0.0
    %3402 = vmatprep.mubr.f32.mxu0 0.0
    %v3403 = vand.u32 %v2750, 4294901760
    %3404 = vmatmul.mubr.f32.gmra.mxu0 %v3403
    %v3405 = vpop.f32.mrf.mxu0
    %v3406 = vadd.f32 %v3319, %v3405
    %v3407 = vpop.f32.mrf.mxu0
    %3408 = vdwg.mxu0
    %v3409 = vmax.f32 %v3406, 0.0
    %v3410 = vld [vmem:[#allocation2 + $0x28] sm:$0xff]
    %v3411 = vld [vmem:[#allocation2 + $0x88] sm:$0xff]
    %v3412 = vld [vmem:[#allocation2 + $0xe8] sm:$0xff]
    %v3413 = vld [vmem:[#allocation2 + $0x148] sm:$0xff]
    %v3414 = vld [vmem:[#allocation2 + $0x1a8] sm:$0xff]
    %v3415 = vld [vmem:[#allocation2 + $0x208] sm:$0xff]
    %v3416 = vld [vmem:[#allocation2 + $0x268] sm:$0xff]
    %v3417 = vld [vmem:[#allocation2 + $0x2c8] sm:$0xff]
    %v3418 = vld [vmem:[#allocation2 + $0x328] sm:$0xff]
    %v3419 = vld [vmem:[#allocation2 + $0x388] sm:$0xff]
    %v3420 = vld [vmem:[#allocation2 + $0x3e8] sm:$0xff]
    %v3421 = vld [vmem:[#allocation2 + $0x448] sm:$0xff]
    %v3422 = vld [vmem:[#allocation2 + $0x4a8] sm:$0xff]
    %v3423 = vld [vmem:[#allocation2 + $0x508] sm:$0xff]
    %v3424 = vld [vmem:[#allocation2 + $0x568] sm:$0xff]
    %v3425 = vld [vmem:[#allocation2 + $0x5c8] sm:$0xff]
    %v3426 = vld [vmem:[#allocation2 + $0x628] ss:$0 sm:$0xff]
    %3427 = vmatprep.subr.mxu0 0.0
    %v3428 = vand.u32 %v3425, 4294901760
    %3429 = vmatpush1.msra.mxu0 %v3428
    %3430 = vmatprep.subr.mxu0 0.0
    %v3431 = vand.u32 %v3424, 4294901760
    %3432 = vmatpush1.msra.mxu0 %v3431
    %3433 = vmatprep.subr.mxu0 0.0
    %v3434 = vand.u32 %v3423, 4294901760
    %3435 = vmatpush1.msra.mxu0 %v3434
    %3436 = vmatprep.subr.mxu0 0.0
    %v3437 = vand.u32 %v3422, 4294901760
    %3438 = vmatpush1.msra.mxu0 %v3437
    %3439 = vmatprep.subr.mxu0 0.0
    %v3440 = vand.u32 %v3421, 4294901760
    %3441 = vmatpush1.msra.mxu0 %v3440
    %3442 = vmatprep.subr.mxu0 0.0
    %v3443 = vand.u32 %v3420, 4294901760
    %3444 = vmatpush1.msra.mxu0 %v3443
    %3445 = vmatprep.subr.mxu0 0.0
    %v3446 = vand.u32 %v3419, 4294901760
    %3447 = vmatpush1.msra.mxu0 %v3446
    %3448 = vmatprep.subr.mxu0 0.0
    %v3449 = vand.u32 %v3418, 4294901760
    %3450 = vmatpush1.msra.mxu0 %v3449
    %3451 = vmatprep.subr.mxu0 0.0
    %v3452 = vand.u32 %v3417, 4294901760
    %3453 = vmatpush1.msra.mxu0 %v3452
    %3454 = vmatprep.subr.mxu0 0.0
    %v3455 = vand.u32 %v3416, 4294901760
    %3456 = vmatpush1.msra.mxu0 %v3455
    %3457 = vmatprep.subr.mxu0 0.0
    %v3458 = vand.u32 %v3415, 4294901760
    %3459 = vmatpush1.msra.mxu0 %v3458
    %3460 = vmatprep.subr.mxu0 0.0
    %v3461 = vand.u32 %v3414, 4294901760
    %3462 = vmatpush1.msra.mxu0 %v3461
    %3463 = vmatprep.subr.mxu0 0.0
    %v3464 = vand.u32 %v3413, 4294901760
    %3465 = vmatpush1.msra.mxu0 %v3464
    %3466 = vmatprep.subr.mxu0 0.0
    %v3467 = vand.u32 %v3412, 4294901760
    %3468 = vmatpush1.msra.mxu0 %v3467
    %3469 = vmatprep.subr.mxu0 0.0
    %v3470 = vand.u32 %v3411, 4294901760
    %3471 = vmatpush1.msra.mxu0 %v3470
    %3472 = vmatprep.subr.mxu0 0.0
    %v3473 = vand.u32 %v3410, 4294901760
    %3474 = vmatpush1.msra.mxu0 %v3473
    %3475 = vmatprep.subr.mxu0 0.0
    %3476 = vmatpush2.msra.mxu0 0.0
    %3477 = vmatprep.subr.mxu0 0.0
    %3478 = vmatpush2.msra.mxu0 0.0
    %3479 = vmatprep.subr.mxu0 0.0
    %3480 = vmatpush2.msra.mxu0 0.0
    %3481 = vmatprep.subr.mxu0 0.0
    %3482 = vmatpush2.msra.mxu0 0.0
    %3483 = vmatprep.subr.mxu0 0.0
    %3484 = vmatpush2.msra.mxu0 0.0
    %3485 = vmatprep.subr.mxu0 0.0
    %3486 = vmatpush2.msra.mxu0 0.0
    %3487 = vmatprep.subr.mxu0 0.0
    %3488 = vmatpush2.msra.mxu0 0.0
    %3489 = vmatprep.subr.mxu0 0.0
    %3490 = vmatpush2.msra.mxu0 0.0
    %3491 = vmatprep.subr.mxu0 0.0
    %3492 = vmatpush2.msra.mxu0 0.0
    %3493 = vmatprep.subr.mxu0 0.0
    %3494 = vmatpush2.msra.mxu0 0.0
    %3495 = vmatprep.subr.mxu0 0.0
    %3496 = vmatpush2.msra.mxu0 0.0
    %3497 = vmatprep.subr.mxu0 0.0
    %3498 = vmatpush2.msra.mxu0 0.0
    %3499 = vmatprep.subr.mxu0 0.0
    %3500 = vmatpush2.msra.mxu0 0.0
    %3501 = vmatprep.subr.mxu0 0.0
    %3502 = vmatpush2.msra.mxu0 0.0
    %3503 = vmatprep.subr.mxu0 0.0
    %3504 = vmatpush2.msra.mxu0 0.0
    %3505 = vmatprep.subr.mxu0 0.0
    %3506 = vmatpush2.msra.mxu0 0.0
    %3507 = vmatprep.mubr.f32.mxu0 0.0
    %v3508 = vand.u32 %v3409, 4294901760
    %v3509 = vsub.f32 %v3409, %v3508
    %v3510 = vand.u32 %v3509, 4294901760
    %v3511 = vsub.f32 %v3509, %v3510
    %v3512 = vand.u32 %v3511, 4294901760
    %3513 = vmatmul.mubr.f32.gmra.mxu0 %v3512
    %v3514 = vpop.f32.mrf.mxu0
    %v3515 = vadd.f32 %v3426, %v3514
    %v3516 = vpop.f32.mrf.mxu0
    %3517 = vdwg.mxu0
    %3518 = vmatprep.subr.mxu0 0.0
    %v3519 = vand.u32 %v3425, 4294901760
    %v3520 = vsub.f32 %v3425, %v3519
    %v3521 = vand.u32 %v3520, 4294901760
    %v3522 = vsub.f32 %v3520, %v3521
    %v3523 = vand.u32 %v3522, 4294901760
    %3524 = vmatpush1.msra.mxu0 %v3523
    %3525 = vmatprep.subr.mxu0 0.0
    %v3526 = vand.u32 %v3424, 4294901760
    %v3527 = vsub.f32 %v3424, %v3526
    %v3528 = vand.u32 %v3527, 4294901760
    %v3529 = vsub.f32 %v3527, %v3528
    %v3530 = vand.u32 %v3529, 4294901760
    %3531 = vmatpush1.msra.mxu0 %v3530
    %3532 = vmatprep.subr.mxu0 0.0
    %v3533 = vand.u32 %v3423, 4294901760
    %v3534 = vsub.f32 %v3423, %v3533
    %v3535 = vand.u32 %v3534, 4294901760
    %v3536 = vsub.f32 %v3534, %v3535
    %v3537 = vand.u32 %v3536, 4294901760
    %3538 = vmatpush1.msra.mxu0 %v3537
    %3539 = vmatprep.subr.mxu0 0.0
    %v3540 = vand.u32 %v3422, 4294901760
    %v3541 = vsub.f32 %v3422, %v3540
    %v3542 = vand.u32 %v3541, 4294901760
    %v3543 = vsub.f32 %v3541, %v3542
    %v3544 = vand.u32 %v3543, 4294901760
    %3545 = vmatpush1.msra.mxu0 %v3544
    %3546 = vmatprep.subr.mxu0 0.0
    %v3547 = vand.u32 %v3421, 4294901760
    %v3548 = vsub.f32 %v3421, %v3547
    %v3549 = vand.u32 %v3548, 4294901760
    %v3550 = vsub.f32 %v3548, %v3549
    %v3551 = vand.u32 %v3550, 4294901760
    %3552 = vmatpush1.msra.mxu0 %v3551
    %3553 = vmatprep.subr.mxu0 0.0
    %v3554 = vand.u32 %v3420, 4294901760
    %v3555 = vsub.f32 %v3420, %v3554
    %v3556 = vand.u32 %v3555, 4294901760
    %v3557 = vsub.f32 %v3555, %v3556
    %v3558 = vand.u32 %v3557, 4294901760
    %3559 = vmatpush1.msra.mxu0 %v3558
    %3560 = vmatprep.subr.mxu0 0.0
    %v3561 = vand.u32 %v3419, 4294901760
    %v3562 = vsub.f32 %v3419, %v3561
    %v3563 = vand.u32 %v3562, 4294901760
    %v3564 = vsub.f32 %v3562, %v3563
    %v3565 = vand.u32 %v3564, 4294901760
    %3566 = vmatpush1.msra.mxu0 %v3565
    %3567 = vmatprep.subr.mxu0 0.0
    %v3568 = vand.u32 %v3418, 4294901760
    %v3569 = vsub.f32 %v3418, %v3568
    %v3570 = vand.u32 %v3569, 4294901760
    %v3571 = vsub.f32 %v3569, %v3570
    %v3572 = vand.u32 %v3571, 4294901760
    %3573 = vmatpush1.msra.mxu0 %v3572
    %3574 = vmatprep.subr.mxu0 0.0
    %v3575 = vand.u32 %v3417, 4294901760
    %v3576 = vsub.f32 %v3417, %v3575
    %v3577 = vand.u32 %v3576, 4294901760
    %v3578 = vsub.f32 %v3576, %v3577
    %v3579 = vand.u32 %v3578, 4294901760
    %3580 = vmatpush1.msra.mxu0 %v3579
    %3581 = vmatprep.subr.mxu0 0.0
    %v3582 = vand.u32 %v3416, 4294901760
    %v3583 = vsub.f32 %v3416, %v3582
    %v3584 = vand.u32 %v3583, 4294901760
    %v3585 = vsub.f32 %v3583, %v3584
    %v3586 = vand.u32 %v3585, 4294901760
    %3587 = vmatpush1.msra.mxu0 %v3586
    %3588 = vmatprep.subr.mxu0 0.0
    %v3589 = vand.u32 %v3415, 4294901760
    %v3590 = vsub.f32 %v3415, %v3589
    %v3591 = vand.u32 %v3590, 4294901760
    %v3592 = vsub.f32 %v3590, %v3591
    %v3593 = vand.u32 %v3592, 4294901760
    %3594 = vmatpush1.msra.mxu0 %v3593
    %3595 = vmatprep.subr.mxu0 0.0
    %v3596 = vand.u32 %v3414, 4294901760
    %v3597 = vsub.f32 %v3414, %v3596
    %v3598 = vand.u32 %v3597, 4294901760
    %v3599 = vsub.f32 %v3597, %v3598
    %v3600 = vand.u32 %v3599, 4294901760
    %3601 = vmatpush1.msra.mxu0 %v3600
    %3602 = vmatprep.subr.mxu0 0.0
    %v3603 = vand.u32 %v3413, 4294901760
    %v3604 = vsub.f32 %v3413, %v3603
    %v3605 = vand.u32 %v3604, 4294901760
    %v3606 = vsub.f32 %v3604, %v3605
    %v3607 = vand.u32 %v3606, 4294901760
    %3608 = vmatpush1.msra.mxu0 %v3607
    %3609 = vmatprep.subr.mxu0 0.0
    %v3610 = vand.u32 %v3412, 4294901760
    %v3611 = vsub.f32 %v3412, %v3610
    %v3612 = vand.u32 %v3611, 4294901760
    %v3613 = vsub.f32 %v3611, %v3612
    %v3614 = vand.u32 %v3613, 4294901760
    %3615 = vmatpush1.msra.mxu0 %v3614
    %3616 = vmatprep.subr.mxu0 0.0
    %v3617 = vand.u32 %v3411, 4294901760
    %v3618 = vsub.f32 %v3411, %v3617
    %v3619 = vand.u32 %v3618, 4294901760
    %v3620 = vsub.f32 %v3618, %v3619
    %v3621 = vand.u32 %v3620, 4294901760
    %3622 = vmatpush1.msra.mxu0 %v3621
    %3623 = vmatprep.subr.mxu0 0.0
    %v3624 = vand.u32 %v3410, 4294901760
    %v3625 = vsub.f32 %v3410, %v3624
    %v3626 = vand.u32 %v3625, 4294901760
    %v3627 = vsub.f32 %v3625, %v3626
    %v3628 = vand.u32 %v3627, 4294901760
    %3629 = vmatpush1.msra.mxu0 %v3628
    %3630 = vmatprep.subr.mxu0 0.0
    %3631 = vmatpush2.msra.mxu0 0.0
    %3632 = vmatprep.subr.mxu0 0.0
    %3633 = vmatpush2.msra.mxu0 0.0
    %3634 = vmatprep.subr.mxu0 0.0
    %3635 = vmatpush2.msra.mxu0 0.0
    %3636 = vmatprep.subr.mxu0 0.0
    %3637 = vmatpush2.msra.mxu0 0.0
    %3638 = vmatprep.subr.mxu0 0.0
    %3639 = vmatpush2.msra.mxu0 0.0
    %3640 = vmatprep.subr.mxu0 0.0
    %3641 = vmatpush2.msra.mxu0 0.0
    %3642 = vmatprep.subr.mxu0 0.0
    %3643 = vmatpush2.msra.mxu0 0.0
    %3644 = vmatprep.subr.mxu0 0.0
    %3645 = vmatpush2.msra.mxu0 0.0
    %3646 = vmatprep.subr.mxu0 0.0
    %3647 = vmatpush2.msra.mxu0 0.0
    %3648 = vmatprep.subr.mxu0 0.0
    %3649 = vmatpush2.msra.mxu0 0.0
    %3650 = vmatprep.subr.mxu0 0.0
    %3651 = vmatpush2.msra.mxu0 0.0
    %3652 = vmatprep.subr.mxu0 0.0
    %3653 = vmatpush2.msra.mxu0 0.0
    %3654 = vmatprep.subr.mxu0 0.0
    %3655 = vmatpush2.msra.mxu0 0.0
    %3656 = vmatprep.subr.mxu0 0.0
    %3657 = vmatpush2.msra.mxu0 0.0
    %3658 = vmatprep.subr.mxu0 0.0
    %3659 = vmatpush2.msra.mxu0 0.0
    %3660 = vmatprep.subr.mxu0 0.0
    %3661 = vmatpush2.msra.mxu0 0.0
    %3662 = vmatprep.mubr.f32.mxu0 0.0
    %v3663 = vand.u32 %v3409, 4294901760
    %3664 = vmatmul.mubr.f32.gmra.mxu0 %v3663
    %v3665 = vpop.f32.mrf.mxu0
    %v3666 = vadd.f32 %v3515, %v3665
    %v3667 = vpop.f32.mrf.mxu0
    %3668 = vdwg.mxu0
    %3669 = vmatprep.subr.mxu0 0.0
    %v3670 = vand.u32 %v3425, 4294901760
    %v3671 = vsub.f32 %v3425, %v3670
    %3672 = vmatpush1.msra.mxu0 %v3671
    %3673 = vmatprep.subr.mxu0 0.0
    %v3674 = vand.u32 %v3424, 4294901760
    %v3675 = vsub.f32 %v3424, %v3674
    %3676 = vmatpush1.msra.mxu0 %v3675
    %3677 = vmatprep.subr.mxu0 0.0
    %v3678 = vand.u32 %v3423, 4294901760
    %v3679 = vsub.f32 %v3423, %v3678
    %3680 = vmatpush1.msra.mxu0 %v3679
    %3681 = vmatprep.subr.mxu0 0.0
    %v3682 = vand.u32 %v3422, 4294901760
    %v3683 = vsub.f32 %v3422, %v3682
    %3684 = vmatpush1.msra.mxu0 %v3683
    %3685 = vmatprep.subr.mxu0 0.0
    %v3686 = vand.u32 %v3421, 4294901760
    %v3687 = vsub.f32 %v3421, %v3686
    %3688 = vmatpush1.msra.mxu0 %v3687
    %3689 = vmatprep.subr.mxu0 0.0
    %v3690 = vand.u32 %v3420, 4294901760
    %v3691 = vsub.f32 %v3420, %v3690
    %3692 = vmatpush1.msra.mxu0 %v3691
    %3693 = vmatprep.subr.mxu0 0.0
    %v3694 = vand.u32 %v3419, 4294901760
    %v3695 = vsub.f32 %v3419, %v3694
    %3696 = vmatpush1.msra.mxu0 %v3695
    %3697 = vmatprep.subr.mxu0 0.0
    %v3698 = vand.u32 %v3418, 4294901760
    %v3699 = vsub.f32 %v3418, %v3698
    %3700 = vmatpush1.msra.mxu0 %v3699
    %3701 = vmatprep.subr.mxu0 0.0
    %v3702 = vand.u32 %v3417, 4294901760
    %v3703 = vsub.f32 %v3417, %v3702
    %3704 = vmatpush1.msra.mxu0 %v3703
    %3705 = vmatprep.subr.mxu0 0.0
    %v3706 = vand.u32 %v3416, 4294901760
    %v3707 = vsub.f32 %v3416, %v3706
    %3708 = vmatpush1.msra.mxu0 %v3707
    %3709 = vmatprep.subr.mxu0 0.0
    %v3710 = vand.u32 %v3415, 4294901760
    %v3711 = vsub.f32 %v3415, %v3710
    %3712 = vmatpush1.msra.mxu0 %v3711
    %3713 = vmatprep.subr.mxu0 0.0
    %v3714 = vand.u32 %v3414, 4294901760
    %v3715 = vsub.f32 %v3414, %v3714
    %3716 = vmatpush1.msra.mxu0 %v3715
    %3717 = vmatprep.subr.mxu0 0.0
    %v3718 = vand.u32 %v3413, 4294901760
    %v3719 = vsub.f32 %v3413, %v3718
    %3720 = vmatpush1.msra.mxu0 %v3719
    %3721 = vmatprep.subr.mxu0 0.0
    %v3722 = vand.u32 %v3412, 4294901760
    %v3723 = vsub.f32 %v3412, %v3722
    %3724 = vmatpush1.msra.mxu0 %v3723
    %3725 = vmatprep.subr.mxu0 0.0
    %v3726 = vand.u32 %v3411, 4294901760
    %v3727 = vsub.f32 %v3411, %v3726
    %3728 = vmatpush1.msra.mxu0 %v3727
    %3729 = vmatprep.subr.mxu0 0.0
    %v3730 = vand.u32 %v3410, 4294901760
    %v3731 = vsub.f32 %v3410, %v3730
    %3732 = vmatpush1.msra.mxu0 %v3731
    %3733 = vmatprep.subr.mxu0 0.0
    %3734 = vmatpush2.msra.mxu0 0.0
    %3735 = vmatprep.subr.mxu0 0.0
    %3736 = vmatpush2.msra.mxu0 0.0
    %3737 = vmatprep.subr.mxu0 0.0
    %3738 = vmatpush2.msra.mxu0 0.0
    %3739 = vmatprep.subr.mxu0 0.0
    %3740 = vmatpush2.msra.mxu0 0.0
    %3741 = vmatprep.subr.mxu0 0.0
    %3742 = vmatpush2.msra.mxu0 0.0
    %3743 = vmatprep.subr.mxu0 0.0
    %3744 = vmatpush2.msra.mxu0 0.0
    %3745 = vmatprep.subr.mxu0 0.0
    %3746 = vmatpush2.msra.mxu0 0.0
    %3747 = vmatprep.subr.mxu0 0.0
    %3748 = vmatpush2.msra.mxu0 0.0
    %3749 = vmatprep.subr.mxu0 0.0
    %3750 = vmatpush2.msra.mxu0 0.0
    %3751 = vmatprep.subr.mxu0 0.0
    %3752 = vmatpush2.msra.mxu0 0.0
    %3753 = vmatprep.subr.mxu0 0.0
    %3754 = vmatpush2.msra.mxu0 0.0
    %3755 = vmatprep.subr.mxu0 0.0
    %3756 = vmatpush2.msra.mxu0 0.0
    %3757 = vmatprep.subr.mxu0 0.0
    %3758 = vmatpush2.msra.mxu0 0.0
    %3759 = vmatprep.subr.mxu0 0.0
    %3760 = vmatpush2.msra.mxu0 0.0
    %3761 = vmatprep.subr.mxu0 0.0
    %3762 = vmatpush2.msra.mxu0 0.0
    %3763 = vmatprep.subr.mxu0 0.0
    %3764 = vmatpush2.msra.mxu0 0.0
    %3765 = vmatprep.mubr.f32.mxu0 0.0
    %v3766 = vand.u32 %v3409, 4294901760
    %v3767 = vsub.f32 %v3409, %v3766
    %3768 = vmatmul.mubr.f32.gmra.mxu0 %v3767
    %v3769 = vpop.f32.mrf.mxu0
    %v3770 = vadd.f32 %v3666, %v3769
    %v3771 = vpop.f32.mrf.mxu0
    %3772 = vdwg.mxu0
    %3773 = vmatprep.subr.mxu0 0.0
    %v3774 = vand.u32 %v3425, 4294901760
    %3775 = vmatpush1.msra.mxu0 %v3774
    %3776 = vmatprep.subr.mxu0 0.0
    %v3777 = vand.u32 %v3424, 4294901760
    %3778 = vmatpush1.msra.mxu0 %v3777
    %3779 = vmatprep.subr.mxu0 0.0
    %v3780 = vand.u32 %v3423, 4294901760
    %3781 = vmatpush1.msra.mxu0 %v3780
    %3782 = vmatprep.subr.mxu0 0.0
    %v3783 = vand.u32 %v3422, 4294901760
    %3784 = vmatpush1.msra.mxu0 %v3783
    %3785 = vmatprep.subr.mxu0 0.0
    %v3786 = vand.u32 %v3421, 4294901760
    %3787 = vmatpush1.msra.mxu0 %v3786
    %3788 = vmatprep.subr.mxu0 0.0
    %v3789 = vand.u32 %v3420, 4294901760
    %3790 = vmatpush1.msra.mxu0 %v3789
    %3791 = vmatprep.subr.mxu0 0.0
    %v3792 = vand.u32 %v3419, 4294901760
    %3793 = vmatpush1.msra.mxu0 %v3792
    %3794 = vmatprep.subr.mxu0 0.0
    %v3795 = vand.u32 %v3418, 4294901760
    %3796 = vmatpush1.msra.mxu0 %v3795
    %3797 = vmatprep.subr.mxu0 0.0
    %v3798 = vand.u32 %v3417, 4294901760
    %3799 = vmatpush1.msra.mxu0 %v3798
    %3800 = vmatprep.subr.mxu0 0.0
    %v3801 = vand.u32 %v3416, 4294901760
    %3802 = vmatpush1.msra.mxu0 %v3801
    %3803 = vmatprep.subr.mxu0 0.0
    %v3804 = vand.u32 %v3415, 4294901760
    %3805 = vmatpush1.msra.mxu0 %v3804
    %3806 = vmatprep.subr.mxu0 0.0
    %v3807 = vand.u32 %v3414, 4294901760
    %3808 = vmatpush1.msra.mxu0 %v3807
    %3809 = vmatprep.subr.mxu0 0.0
    %v3810 = vand.u32 %v3413, 4294901760
    %3811 = vmatpush1.msra.mxu0 %v3810
    %3812 = vmatprep.subr.mxu0 0.0
    %v3813 = vand.u32 %v3412, 4294901760
    %3814 = vmatpush1.msra.mxu0 %v3813
    %3815 = vmatprep.subr.mxu0 0.0
    %v3816 = vand.u32 %v3411, 4294901760
    %3817 = vmatpush1.msra.mxu0 %v3816
    %3818 = vmatprep.subr.mxu0 0.0
    %v3819 = vand.u32 %v3410, 4294901760
    %3820 = vmatpush1.msra.mxu0 %v3819
    %3821 = vmatprep.subr.mxu0 0.0
    %3822 = vmatpush2.msra.mxu0 0.0
    %3823 = vmatprep.subr.mxu0 0.0
    %3824 = vmatpush2.msra.mxu0 0.0
    %3825 = vmatprep.subr.mxu0 0.0
    %3826 = vmatpush2.msra.mxu0 0.0
    %3827 = vmatprep.subr.mxu0 0.0
    %3828 = vmatpush2.msra.mxu0 0.0
    %3829 = vmatprep.subr.mxu0 0.0
    %3830 = vmatpush2.msra.mxu0 0.0
    %3831 = vmatprep.subr.mxu0 0.0
    %3832 = vmatpush2.msra.mxu0 0.0
    %3833 = vmatprep.subr.mxu0 0.0
    %3834 = vmatpush2.msra.mxu0 0.0
    %3835 = vmatprep.subr.mxu0 0.0
    %3836 = vmatpush2.msra.mxu0 0.0
    %3837 = vmatprep.subr.mxu0 0.0
    %3838 = vmatpush2.msra.mxu0 0.0
    %3839 = vmatprep.subr.mxu0 0.0
    %3840 = vmatpush2.msra.mxu0 0.0
    %3841 = vmatprep.subr.mxu0 0.0
    %3842 = vmatpush2.msra.mxu0 0.0
    %3843 = vmatprep.subr.mxu0 0.0
    %3844 = vmatpush2.msra.mxu0 0.0
    %3845 = vmatprep.subr.mxu0 0.0
    %3846 = vmatpush2.msra.mxu0 0.0
    %3847 = vmatprep.subr.mxu0 0.0
    %3848 = vmatpush2.msra.mxu0 0.0
    %3849 = vmatprep.subr.mxu0 0.0
    %3850 = vmatpush2.msra.mxu0 0.0
    %3851 = vmatprep.subr.mxu0 0.0
    %3852 = vmatpush2.msra.mxu0 0.0
    %3853 = vmatprep.mubr.f32.mxu0 0.0
    %v3854 = vand.u32 %v3409, 4294901760
    %v3855 = vsub.f32 %v3409, %v3854
    %v3856 = vand.u32 %v3855, 4294901760
    %3857 = vmatmul.mubr.f32.gmra.mxu0 %v3856
    %v3858 = vpop.f32.mrf.mxu0
    %v3859 = vadd.f32 %v3770, %v3858
    %v3860 = vpop.f32.mrf.mxu0
    %3861 = vdwg.mxu0
    %3862 = vmatprep.subr.mxu0 0.0
    %v3863 = vand.u32 %v3425, 4294901760
    %v3864 = vsub.f32 %v3425, %v3863
    %v3865 = vand.u32 %v3864, 4294901760
    %3866 = vmatpush1.msra.mxu0 %v3865
    %3867 = vmatprep.subr.mxu0 0.0
    %v3868 = vand.u32 %v3424, 4294901760
    %v3869 = vsub.f32 %v3424, %v3868
    %v3870 = vand.u32 %v3869, 4294901760
    %3871 = vmatpush1.msra.mxu0 %v3870
    %3872 = vmatprep.subr.mxu0 0.0
    %v3873 = vand.u32 %v3423, 4294901760
    %v3874 = vsub.f32 %v3423, %v3873
    %v3875 = vand.u32 %v3874, 4294901760
    %3876 = vmatpush1.msra.mxu0 %v3875
    %3877 = vmatprep.subr.mxu0 0.0
    %v3878 = vand.u32 %v3422, 4294901760
    %v3879 = vsub.f32 %v3422, %v3878
    %v3880 = vand.u32 %v3879, 4294901760
    %3881 = vmatpush1.msra.mxu0 %v3880
    %3882 = vmatprep.subr.mxu0 0.0
    %v3883 = vand.u32 %v3421, 4294901760
    %v3884 = vsub.f32 %v3421, %v3883
    %v3885 = vand.u32 %v3884, 4294901760
    %3886 = vmatpush1.msra.mxu0 %v3885
    %3887 = vmatprep.subr.mxu0 0.0
    %v3888 = vand.u32 %v3420, 4294901760
    %v3889 = vsub.f32 %v3420, %v3888
    %v3890 = vand.u32 %v3889, 4294901760
    %3891 = vmatpush1.msra.mxu0 %v3890
    %3892 = vmatprep.subr.mxu0 0.0
    %v3893 = vand.u32 %v3419, 4294901760
    %v3894 = vsub.f32 %v3419, %v3893
    %v3895 = vand.u32 %v3894, 4294901760
    %3896 = vmatpush1.msra.mxu0 %v3895
    %3897 = vmatprep.subr.mxu0 0.0
    %v3898 = vand.u32 %v3418, 4294901760
    %v3899 = vsub.f32 %v3418, %v3898
    %v3900 = vand.u32 %v3899, 4294901760
    %3901 = vmatpush1.msra.mxu0 %v3900
    %3902 = vmatprep.subr.mxu0 0.0
    %v3903 = vand.u32 %v3417, 4294901760
    %v3904 = vsub.f32 %v3417, %v3903
    %v3905 = vand.u32 %v3904, 4294901760
    %3906 = vmatpush1.msra.mxu0 %v3905
    %3907 = vmatprep.subr.mxu0 0.0
    %v3908 = vand.u32 %v3416, 4294901760
    %v3909 = vsub.f32 %v3416, %v3908
    %v3910 = vand.u32 %v3909, 4294901760
    %3911 = vmatpush1.msra.mxu0 %v3910
    %3912 = vmatprep.subr.mxu0 0.0
    %v3913 = vand.u32 %v3415, 4294901760
    %v3914 = vsub.f32 %v3415, %v3913
    %v3915 = vand.u32 %v3914, 4294901760
    %3916 = vmatpush1.msra.mxu0 %v3915
    %3917 = vmatprep.subr.mxu0 0.0
    %v3918 = vand.u32 %v3414, 4294901760
    %v3919 = vsub.f32 %v3414, %v3918
    %v3920 = vand.u32 %v3919, 4294901760
    %3921 = vmatpush1.msra.mxu0 %v3920
    %3922 = vmatprep.subr.mxu0 0.0
    %v3923 = vand.u32 %v3413, 4294901760
    %v3924 = vsub.f32 %v3413, %v3923
    %v3925 = vand.u32 %v3924, 4294901760
    %3926 = vmatpush1.msra.mxu0 %v3925
    %3927 = vmatprep.subr.mxu0 0.0
    %v3928 = vand.u32 %v3412, 4294901760
    %v3929 = vsub.f32 %v3412, %v3928
    %v3930 = vand.u32 %v3929, 4294901760
    %3931 = vmatpush1.msra.mxu0 %v3930
    %3932 = vmatprep.subr.mxu0 0.0
    %v3933 = vand.u32 %v3411, 4294901760
    %v3934 = vsub.f32 %v3411, %v3933
    %v3935 = vand.u32 %v3934, 4294901760
    %3936 = vmatpush1.msra.mxu0 %v3935
    %3937 = vmatprep.subr.mxu0 0.0
    %v3938 = vand.u32 %v3410, 4294901760
    %v3939 = vsub.f32 %v3410, %v3938
    %v3940 = vand.u32 %v3939, 4294901760
    %3941 = vmatpush1.msra.mxu0 %v3940
    %3942 = vmatprep.subr.mxu0 0.0
    %3943 = vmatpush2.msra.mxu0 0.0
    %3944 = vmatprep.subr.mxu0 0.0
    %3945 = vmatpush2.msra.mxu0 0.0
    %3946 = vmatprep.subr.mxu0 0.0
    %3947 = vmatpush2.msra.mxu0 0.0
    %3948 = vmatprep.subr.mxu0 0.0
    %3949 = vmatpush2.msra.mxu0 0.0
    %3950 = vmatprep.subr.mxu0 0.0
    %3951 = vmatpush2.msra.mxu0 0.0
    %3952 = vmatprep.subr.mxu0 0.0
    %3953 = vmatpush2.msra.mxu0 0.0
    %3954 = vmatprep.subr.mxu0 0.0
    %3955 = vmatpush2.msra.mxu0 0.0
    %3956 = vmatprep.subr.mxu0 0.0
    %3957 = vmatpush2.msra.mxu0 0.0
    %3958 = vmatprep.subr.mxu0 0.0
    %3959 = vmatpush2.msra.mxu0 0.0
    %3960 = vmatprep.subr.mxu0 0.0
    %3961 = vmatpush2.msra.mxu0 0.0
    %3962 = vmatprep.subr.mxu0 0.0
    %3963 = vmatpush2.msra.mxu0 0.0
    %3964 = vmatprep.subr.mxu0 0.0
    %3965 = vmatpush2.msra.mxu0 0.0
    %3966 = vmatprep.subr.mxu0 0.0
    %3967 = vmatpush2.msra.mxu0 0.0
    %3968 = vmatprep.subr.mxu0 0.0
    %3969 = vmatpush2.msra.mxu0 0.0
    %3970 = vmatprep.subr.mxu0 0.0
    %3971 = vmatpush2.msra.mxu0 0.0
    %3972 = vmatprep.subr.mxu0 0.0
    %3973 = vmatpush2.msra.mxu0 0.0
    %3974 = vmatprep.mubr.f32.mxu0 0.0
    %v3975 = vand.u32 %v3409, 4294901760
    %3976 = vmatmul.mubr.f32.gmra.mxu0 %v3975
    %v3977 = vpop.f32.mrf.mxu0
    %v3978 = vadd.f32 %v3859, %v3977
    %v3979 = vpop.f32.mrf.mxu0
    %3980 = vdwg.mxu0
    %3981 = vmatprep.subr.mxu0 0.0
    %v3982 = vand.u32 %v3425, 4294901760
    %3983 = vmatpush1.msra.mxu0 %v3982
    %3984 = vmatprep.subr.mxu0 0.0
    %v3985 = vand.u32 %v3424, 4294901760
    %3986 = vmatpush1.msra.mxu0 %v3985
    %3987 = vmatprep.subr.mxu0 0.0
    %v3988 = vand.u32 %v3423, 4294901760
    %3989 = vmatpush1.msra.mxu0 %v3988
    %3990 = vmatprep.subr.mxu0 0.0
    %v3991 = vand.u32 %v3422, 4294901760
    %3992 = vmatpush1.msra.mxu0 %v3991
    %3993 = vmatprep.subr.mxu0 0.0
    %v3994 = vand.u32 %v3421, 4294901760
    %3995 = vmatpush1.msra.mxu0 %v3994
    %3996 = vmatprep.subr.mxu0 0.0
    %v3997 = vand.u32 %v3420, 4294901760
    %3998 = vmatpush1.msra.mxu0 %v3997
    %3999 = vmatprep.subr.mxu0 0.0
    %v4000 = vand.u32 %v3419, 4294901760
    %4001 = vmatpush1.msra.mxu0 %v4000
    %4002 = vmatprep.subr.mxu0 0.0
    %v4003 = vand.u32 %v3418, 4294901760
    %4004 = vmatpush1.msra.mxu0 %v4003
    %4005 = vmatprep.subr.mxu0 0.0
    %v4006 = vand.u32 %v3417, 4294901760
    %4007 = vmatpush1.msra.mxu0 %v4006
    %4008 = vmatprep.subr.mxu0 0.0
    %v4009 = vand.u32 %v3416, 4294901760
    %4010 = vmatpush1.msra.mxu0 %v4009
    %4011 = vmatprep.subr.mxu0 0.0
    %v4012 = vand.u32 %v3415, 4294901760
    %4013 = vmatpush1.msra.mxu0 %v4012
    %4014 = vmatprep.subr.mxu0 0.0
    %v4015 = vand.u32 %v3414, 4294901760
    %4016 = vmatpush1.msra.mxu0 %v4015
    %4017 = vmatprep.subr.mxu0 0.0
    %v4018 = vand.u32 %v3413, 4294901760
    %4019 = vmatpush1.msra.mxu0 %v4018
    %4020 = vmatprep.subr.mxu0 0.0
    %v4021 = vand.u32 %v3412, 4294901760
    %4022 = vmatpush1.msra.mxu0 %v4021
    %4023 = vmatprep.subr.mxu0 0.0
    %v4024 = vand.u32 %v3411, 4294901760
    %4025 = vmatpush1.msra.mxu0 %v4024
    %4026 = vmatprep.subr.mxu0 0.0
    %v4027 = vand.u32 %v3410, 4294901760
    %4028 = vmatpush1.msra.mxu0 %v4027
    %4029 = vmatprep.subr.mxu0 0.0
    %4030 = vmatpush2.msra.mxu0 0.0
    %4031 = vmatprep.subr.mxu0 0.0
    %4032 = vmatpush2.msra.mxu0 0.0
    %4033 = vmatprep.subr.mxu0 0.0
    %4034 = vmatpush2.msra.mxu0 0.0
    %4035 = vmatprep.subr.mxu0 0.0
    %4036 = vmatpush2.msra.mxu0 0.0
    %4037 = vmatprep.subr.mxu0 0.0
    %4038 = vmatpush2.msra.mxu0 0.0
    %4039 = vmatprep.subr.mxu0 0.0
    %4040 = vmatpush2.msra.mxu0 0.0
    %4041 = vmatprep.subr.mxu0 0.0
    %4042 = vmatpush2.msra.mxu0 0.0
    %4043 = vmatprep.subr.mxu0 0.0
    %4044 = vmatpush2.msra.mxu0 0.0
    %4045 = vmatprep.subr.mxu0 0.0
    %4046 = vmatpush2.msra.mxu0 0.0
    %4047 = vmatprep.subr.mxu0 0.0
    %4048 = vmatpush2.msra.mxu0 0.0
    %4049 = vmatprep.subr.mxu0 0.0
    %4050 = vmatpush2.msra.mxu0 0.0
    %4051 = vmatprep.subr.mxu0 0.0
    %4052 = vmatpush2.msra.mxu0 0.0
    %4053 = vmatprep.subr.mxu0 0.0
    %4054 = vmatpush2.msra.mxu0 0.0
    %4055 = vmatprep.subr.mxu0 0.0
    %4056 = vmatpush2.msra.mxu0 0.0
    %4057 = vmatprep.subr.mxu0 0.0
    %4058 = vmatpush2.msra.mxu0 0.0
    %4059 = vmatprep.subr.mxu0 0.0
    %4060 = vmatpush2.msra.mxu0 0.0
    %4061 = vmatprep.mubr.f32.mxu0 0.0
    %v4062 = vand.u32 %v3409, 4294901760
    %4063 = vmatmul.mubr.f32.gmra.mxu0 %v4062
    %v4064 = vpop.f32.mrf.mxu0
    %v4065 = vadd.f32 %v3978, %v4064
    %v4066 = vpop.f32.mrf.mxu0
    %4067 = vdwg.mxu0
    %v4068 = vmax.f32 %v4065, 0.0
    %v4069 = vld [vmem:[#allocation2 + $0x30] sm:$0xff]
    %v4070 = vld [vmem:[#allocation2 + $0x90] sm:$0xff]
    %v4071 = vld [vmem:[#allocation2 + $0xf0] sm:$0xff]
    %v4072 = vld [vmem:[#allocation2 + $0x150] sm:$0xff]
    %v4073 = vld [vmem:[#allocation2 + $0x1b0] sm:$0xff]
    %v4074 = vld [vmem:[#allocation2 + $0x210] sm:$0xff]
    %v4075 = vld [vmem:[#allocation2 + $0x270] sm:$0xff]
    %v4076 = vld [vmem:[#allocation2 + $0x2d0] sm:$0xff]
    %v4077 = vld [vmem:[#allocation2 + $0x330] sm:$0xff]
    %v4078 = vld [vmem:[#allocation2 + $0x390] sm:$0xff]
    %v4079 = vld [vmem:[#allocation2 + $0x3f0] sm:$0xff]
    %v4080 = vld [vmem:[#allocation2 + $0x450] sm:$0xff]
    %v4081 = vld [vmem:[#allocation2 + $0x4b0] sm:$0xff]
    %v4082 = vld [vmem:[#allocation2 + $0x510] sm:$0xff]
    %v4083 = vld [vmem:[#allocation2 + $0x570] sm:$0xff]
    %v4084 = vld [vmem:[#allocation2 + $0x5d0] sm:$0xff]
    %v4085 = vld [vmem:[#allocation2 + $0x630] ss:$0 sm:$0xff]
    %4086 = vmatprep.subr.mxu0 0.0
    %v4087 = vand.u32 %v4084, 4294901760
    %4088 = vmatpush1.msra.mxu0 %v4087
    %4089 = vmatprep.subr.mxu0 0.0
    %v4090 = vand.u32 %v4083, 4294901760
    %4091 = vmatpush1.msra.mxu0 %v4090
    %4092 = vmatprep.subr.mxu0 0.0
    %v4093 = vand.u32 %v4082, 4294901760
    %4094 = vmatpush1.msra.mxu0 %v4093
    %4095 = vmatprep.subr.mxu0 0.0
    %v4096 = vand.u32 %v4081, 4294901760
    %4097 = vmatpush1.msra.mxu0 %v4096
    %4098 = vmatprep.subr.mxu0 0.0
    %v4099 = vand.u32 %v4080, 4294901760
    %4100 = vmatpush1.msra.mxu0 %v4099
    %4101 = vmatprep.subr.mxu0 0.0
    %v4102 = vand.u32 %v4079, 4294901760
    %4103 = vmatpush1.msra.mxu0 %v4102
    %4104 = vmatprep.subr.mxu0 0.0
    %v4105 = vand.u32 %v4078, 4294901760
    %4106 = vmatpush1.msra.mxu0 %v4105
    %4107 = vmatprep.subr.mxu0 0.0
    %v4108 = vand.u32 %v4077, 4294901760
    %4109 = vmatpush1.msra.mxu0 %v4108
    %4110 = vmatprep.subr.mxu0 0.0
    %v4111 = vand.u32 %v4076, 4294901760
    %4112 = vmatpush1.msra.mxu0 %v4111
    %4113 = vmatprep.subr.mxu0 0.0
    %v4114 = vand.u32 %v4075, 4294901760
    %4115 = vmatpush1.msra.mxu0 %v4114
    %4116 = vmatprep.subr.mxu0 0.0
    %v4117 = vand.u32 %v4074, 4294901760
    %4118 = vmatpush1.msra.mxu0 %v4117
    %4119 = vmatprep.subr.mxu0 0.0
    %v4120 = vand.u32 %v4073, 4294901760
    %4121 = vmatpush1.msra.mxu0 %v4120
    %4122 = vmatprep.subr.mxu0 0.0
    %v4123 = vand.u32 %v4072, 4294901760
    %4124 = vmatpush1.msra.mxu0 %v4123
    %4125 = vmatprep.subr.mxu0 0.0
    %v4126 = vand.u32 %v4071, 4294901760
    %4127 = vmatpush1.msra.mxu0 %v4126
    %4128 = vmatprep.subr.mxu0 0.0
    %v4129 = vand.u32 %v4070, 4294901760
    %4130 = vmatpush1.msra.mxu0 %v4129
    %4131 = vmatprep.subr.mxu0 0.0
    %v4132 = vand.u32 %v4069, 4294901760
    %4133 = vmatpush1.msra.mxu0 %v4132
    %4134 = vmatprep.subr.mxu0 0.0
    %4135 = vmatpush2.msra.mxu0 0.0
    %4136 = vmatprep.subr.mxu0 0.0
    %4137 = vmatpush2.msra.mxu0 0.0
    %4138 = vmatprep.subr.mxu0 0.0
    %4139 = vmatpush2.msra.mxu0 0.0
    %4140 = vmatprep.subr.mxu0 0.0
    %4141 = vmatpush2.msra.mxu0 0.0
    %4142 = vmatprep.subr.mxu0 0.0
    %4143 = vmatpush2.msra.mxu0 0.0
    %4144 = vmatprep.subr.mxu0 0.0
    %4145 = vmatpush2.msra.mxu0 0.0
    %4146 = vmatprep.subr.mxu0 0.0
    %4147 = vmatpush2.msra.mxu0 0.0
    %4148 = vmatprep.subr.mxu0 0.0
    %4149 = vmatpush2.msra.mxu0 0.0
    %4150 = vmatprep.subr.mxu0 0.0
    %4151 = vmatpush2.msra.mxu0 0.0
    %4152 = vmatprep.subr.mxu0 0.0
    %4153 = vmatpush2.msra.mxu0 0.0
    %4154 = vmatprep.subr.mxu0 0.0
    %4155 = vmatpush2.msra.mxu0 0.0
    %4156 = vmatprep.subr.mxu0 0.0
    %4157 = vmatpush2.msra.mxu0 0.0
    %4158 = vmatprep.subr.mxu0 0.0
    %4159 = vmatpush2.msra.mxu0 0.0
    %4160 = vmatprep.subr.mxu0 0.0
    %4161 = vmatpush2.msra.mxu0 0.0
    %4162 = vmatprep.subr.mxu0 0.0
    %4163 = vmatpush2.msra.mxu0 0.0
    %4164 = vmatprep.subr.mxu0 0.0
    %4165 = vmatpush2.msra.mxu0 0.0
    %4166 = vmatprep.mubr.f32.mxu0 0.0
    %v4167 = vand.u32 %v4068, 4294901760
    %v4168 = vsub.f32 %v4068, %v4167
    %v4169 = vand.u32 %v4168, 4294901760
    %v4170 = vsub.f32 %v4168, %v4169
    %v4171 = vand.u32 %v4170, 4294901760
    %4172 = vmatmul.mubr.f32.gmra.mxu0 %v4171
    %v4173 = vpop.f32.mrf.mxu0
    %v4174 = vadd.f32 %v4085, %v4173
    %v4175 = vpop.f32.mrf.mxu0
    %4176 = vdwg.mxu0
    %4177 = vmatprep.subr.mxu0 0.0
    %v4178 = vand.u32 %v4084, 4294901760
    %v4179 = vsub.f32 %v4084, %v4178
    %v4180 = vand.u32 %v4179, 4294901760
    %v4181 = vsub.f32 %v4179, %v4180
    %v4182 = vand.u32 %v4181, 4294901760
    %4183 = vmatpush1.msra.mxu0 %v4182
    %4184 = vmatprep.subr.mxu0 0.0
    %v4185 = vand.u32 %v4083, 4294901760
    %v4186 = vsub.f32 %v4083, %v4185
    %v4187 = vand.u32 %v4186, 4294901760
    %v4188 = vsub.f32 %v4186, %v4187
    %v4189 = vand.u32 %v4188, 4294901760
    %4190 = vmatpush1.msra.mxu0 %v4189
    %4191 = vmatprep.subr.mxu0 0.0
    %v4192 = vand.u32 %v4082, 4294901760
    %v4193 = vsub.f32 %v4082, %v4192
    %v4194 = vand.u32 %v4193, 4294901760
    %v4195 = vsub.f32 %v4193, %v4194
    %v4196 = vand.u32 %v4195, 4294901760
    %4197 = vmatpush1.msra.mxu0 %v4196
    %4198 = vmatprep.subr.mxu0 0.0
    %v4199 = vand.u32 %v4081, 4294901760
    %v4200 = vsub.f32 %v4081, %v4199
    %v4201 = vand.u32 %v4200, 4294901760
    %v4202 = vsub.f32 %v4200, %v4201
    %v4203 = vand.u32 %v4202, 4294901760
    %4204 = vmatpush1.msra.mxu0 %v4203
    %4205 = vmatprep.subr.mxu0 0.0
    %v4206 = vand.u32 %v4080, 4294901760
    %v4207 = vsub.f32 %v4080, %v4206
    %v4208 = vand.u32 %v4207, 4294901760
    %v4209 = vsub.f32 %v4207, %v4208
    %v4210 = vand.u32 %v4209, 4294901760
    %4211 = vmatpush1.msra.mxu0 %v4210
    %4212 = vmatprep.subr.mxu0 0.0
    %v4213 = vand.u32 %v4079, 4294901760
    %v4214 = vsub.f32 %v4079, %v4213
    %v4215 = vand.u32 %v4214, 4294901760
    %v4216 = vsub.f32 %v4214, %v4215
    %v4217 = vand.u32 %v4216, 4294901760
    %4218 = vmatpush1.msra.mxu0 %v4217
    %4219 = vmatprep.subr.mxu0 0.0
    %v4220 = vand.u32 %v4078, 4294901760
    %v4221 = vsub.f32 %v4078, %v4220
    %v4222 = vand.u32 %v4221, 4294901760
    %v4223 = vsub.f32 %v4221, %v4222
    %v4224 = vand.u32 %v4223, 4294901760
    %4225 = vmatpush1.msra.mxu0 %v4224
    %4226 = vmatprep.subr.mxu0 0.0
    %v4227 = vand.u32 %v4077, 4294901760
    %v4228 = vsub.f32 %v4077, %v4227
    %v4229 = vand.u32 %v4228, 4294901760
    %v4230 = vsub.f32 %v4228, %v4229
    %v4231 = vand.u32 %v4230, 4294901760
    %4232 = vmatpush1.msra.mxu0 %v4231
    %4233 = vmatprep.subr.mxu0 0.0
    %v4234 = vand.u32 %v4076, 4294901760
    %v4235 = vsub.f32 %v4076, %v4234
    %v4236 = vand.u32 %v4235, 4294901760
    %v4237 = vsub.f32 %v4235, %v4236
    %v4238 = vand.u32 %v4237, 4294901760
    %4239 = vmatpush1.msra.mxu0 %v4238
    %4240 = vmatprep.subr.mxu0 0.0
    %v4241 = vand.u32 %v4075, 4294901760
    %v4242 = vsub.f32 %v4075, %v4241
    %v4243 = vand.u32 %v4242, 4294901760
    %v4244 = vsub.f32 %v4242, %v4243
    %v4245 = vand.u32 %v4244, 4294901760
    %4246 = vmatpush1.msra.mxu0 %v4245
    %4247 = vmatprep.subr.mxu0 0.0
    %v4248 = vand.u32 %v4074, 4294901760
    %v4249 = vsub.f32 %v4074, %v4248
    %v4250 = vand.u32 %v4249, 4294901760
    %v4251 = vsub.f32 %v4249, %v4250
    %v4252 = vand.u32 %v4251, 4294901760
    %4253 = vmatpush1.msra.mxu0 %v4252
    %4254 = vmatprep.subr.mxu0 0.0
    %v4255 = vand.u32 %v4073, 4294901760
    %v4256 = vsub.f32 %v4073, %v4255
    %v4257 = vand.u32 %v4256, 4294901760
    %v4258 = vsub.f32 %v4256, %v4257
    %v4259 = vand.u32 %v4258, 4294901760
    %4260 = vmatpush1.msra.mxu0 %v4259
    %4261 = vmatprep.subr.mxu0 0.0
    %v4262 = vand.u32 %v4072, 4294901760
    %v4263 = vsub.f32 %v4072, %v4262
    %v4264 = vand.u32 %v4263, 4294901760
    %v4265 = vsub.f32 %v4263, %v4264
    %v4266 = vand.u32 %v4265, 4294901760
    %4267 = vmatpush1.msra.mxu0 %v4266
    %4268 = vmatprep.subr.mxu0 0.0
    %v4269 = vand.u32 %v4071, 4294901760
    %v4270 = vsub.f32 %v4071, %v4269
    %v4271 = vand.u32 %v4270, 4294901760
    %v4272 = vsub.f32 %v4270, %v4271
    %v4273 = vand.u32 %v4272, 4294901760
    %4274 = vmatpush1.msra.mxu0 %v4273
    %4275 = vmatprep.subr.mxu0 0.0
    %v4276 = vand.u32 %v4070, 4294901760
    %v4277 = vsub.f32 %v4070, %v4276
    %v4278 = vand.u32 %v4277, 4294901760
    %v4279 = vsub.f32 %v4277, %v4278
    %v4280 = vand.u32 %v4279, 4294901760
    %4281 = vmatpush1.msra.mxu0 %v4280
    %4282 = vmatprep.subr.mxu0 0.0
    %v4283 = vand.u32 %v4069, 4294901760
    %v4284 = vsub.f32 %v4069, %v4283
    %v4285 = vand.u32 %v4284, 4294901760
    %v4286 = vsub.f32 %v4284, %v4285
    %v4287 = vand.u32 %v4286, 4294901760
    %4288 = vmatpush1.msra.mxu0 %v4287
    %4289 = vmatprep.subr.mxu0 0.0
    %4290 = vmatpush2.msra.mxu0 0.0
    %4291 = vmatprep.subr.mxu0 0.0
    %4292 = vmatpush2.msra.mxu0 0.0
    %4293 = vmatprep.subr.mxu0 0.0
    %4294 = vmatpush2.msra.mxu0 0.0
    %4295 = vmatprep.subr.mxu0 0.0
    %4296 = vmatpush2.msra.mxu0 0.0
    %4297 = vmatprep.subr.mxu0 0.0
    %4298 = vmatpush2.msra.mxu0 0.0
    %4299 = vmatprep.subr.mxu0 0.0
    %4300 = vmatpush2.msra.mxu0 0.0
    %4301 = vmatprep.subr.mxu0 0.0
    %4302 = vmatpush2.msra.mxu0 0.0
    %4303 = vmatprep.subr.mxu0 0.0
    %4304 = vmatpush2.msra.mxu0 0.0
    %4305 = vmatprep.subr.mxu0 0.0
    %4306 = vmatpush2.msra.mxu0 0.0
    %4307 = vmatprep.subr.mxu0 0.0
    %4308 = vmatpush2.msra.mxu0 0.0
    %4309 = vmatprep.subr.mxu0 0.0
    %4310 = vmatpush2.msra.mxu0 0.0
    %4311 = vmatprep.subr.mxu0 0.0
    %4312 = vmatpush2.msra.mxu0 0.0
    %4313 = vmatprep.subr.mxu0 0.0
    %4314 = vmatpush2.msra.mxu0 0.0
    %4315 = vmatprep.subr.mxu0 0.0
    %4316 = vmatpush2.msra.mxu0 0.0
    %4317 = vmatprep.subr.mxu0 0.0
    %4318 = vmatpush2.msra.mxu0 0.0
    %4319 = vmatprep.subr.mxu0 0.0
    %4320 = vmatpush2.msra.mxu0 0.0
    %4321 = vmatprep.mubr.f32.mxu0 0.0
    %v4322 = vand.u32 %v4068, 4294901760
    %4323 = vmatmul.mubr.f32.gmra.mxu0 %v4322
    %v4324 = vpop.f32.mrf.mxu0
    %v4325 = vadd.f32 %v4174, %v4324
    %v4326 = vpop.f32.mrf.mxu0
    %4327 = vdwg.mxu0
    %4328 = vmatprep.subr.mxu0 0.0
    %v4329 = vand.u32 %v4084, 4294901760
    %v4330 = vsub.f32 %v4084, %v4329
    %4331 = vmatpush1.msra.mxu0 %v4330
    %4332 = vmatprep.subr.mxu0 0.0
    %v4333 = vand.u32 %v4083, 4294901760
    %v4334 = vsub.f32 %v4083, %v4333
    %4335 = vmatpush1.msra.mxu0 %v4334
    %4336 = vmatprep.subr.mxu0 0.0
    %v4337 = vand.u32 %v4082, 4294901760
    %v4338 = vsub.f32 %v4082, %v4337
    %4339 = vmatpush1.msra.mxu0 %v4338
    %4340 = vmatprep.subr.mxu0 0.0
    %v4341 = vand.u32 %v4081, 4294901760
    %v4342 = vsub.f32 %v4081, %v4341
    %4343 = vmatpush1.msra.mxu0 %v4342
    %4344 = vmatprep.subr.mxu0 0.0
    %v4345 = vand.u32 %v4080, 4294901760
    %v4346 = vsub.f32 %v4080, %v4345
    %4347 = vmatpush1.msra.mxu0 %v4346
    %4348 = vmatprep.subr.mxu0 0.0
    %v4349 = vand.u32 %v4079, 4294901760
    %v4350 = vsub.f32 %v4079, %v4349
    %4351 = vmatpush1.msra.mxu0 %v4350
    %4352 = vmatprep.subr.mxu0 0.0
    %v4353 = vand.u32 %v4078, 4294901760
    %v4354 = vsub.f32 %v4078, %v4353
    %4355 = vmatpush1.msra.mxu0 %v4354
    %4356 = vmatprep.subr.mxu0 0.0
    %v4357 = vand.u32 %v4077, 4294901760
    %v4358 = vsub.f32 %v4077, %v4357
    %4359 = vmatpush1.msra.mxu0 %v4358
    %4360 = vmatprep.subr.mxu0 0.0
    %v4361 = vand.u32 %v4076, 4294901760
    %v4362 = vsub.f32 %v4076, %v4361
    %4363 = vmatpush1.msra.mxu0 %v4362
    %4364 = vmatprep.subr.mxu0 0.0
    %v4365 = vand.u32 %v4075, 4294901760
    %v4366 = vsub.f32 %v4075, %v4365
    %4367 = vmatpush1.msra.mxu0 %v4366
    %4368 = vmatprep.subr.mxu0 0.0
    %v4369 = vand.u32 %v4074, 4294901760
    %v4370 = vsub.f32 %v4074, %v4369
    %4371 = vmatpush1.msra.mxu0 %v4370
    %4372 = vmatprep.subr.mxu0 0.0
    %v4373 = vand.u32 %v4073, 4294901760
    %v4374 = vsub.f32 %v4073, %v4373
    %4375 = vmatpush1.msra.mxu0 %v4374
    %4376 = vmatprep.subr.mxu0 0.0
    %v4377 = vand.u32 %v4072, 4294901760
    %v4378 = vsub.f32 %v4072, %v4377
    %4379 = vmatpush1.msra.mxu0 %v4378
    %4380 = vmatprep.subr.mxu0 0.0
    %v4381 = vand.u32 %v4071, 4294901760
    %v4382 = vsub.f32 %v4071, %v4381
    %4383 = vmatpush1.msra.mxu0 %v4382
    %4384 = vmatprep.subr.mxu0 0.0
    %v4385 = vand.u32 %v4070, 4294901760
    %v4386 = vsub.f32 %v4070, %v4385
    %4387 = vmatpush1.msra.mxu0 %v4386
    %4388 = vmatprep.subr.mxu0 0.0
    %v4389 = vand.u32 %v4069, 4294901760
    %v4390 = vsub.f32 %v4069, %v4389
    %4391 = vmatpush1.msra.mxu0 %v4390
    %4392 = vmatprep.subr.mxu0 0.0
    %4393 = vmatpush2.msra.mxu0 0.0
    %4394 = vmatprep.subr.mxu0 0.0
    %4395 = vmatpush2.msra.mxu0 0.0
    %4396 = vmatprep.subr.mxu0 0.0
    %4397 = vmatpush2.msra.mxu0 0.0
    %4398 = vmatprep.subr.mxu0 0.0
    %4399 = vmatpush2.msra.mxu0 0.0
    %4400 = vmatprep.subr.mxu0 0.0
    %4401 = vmatpush2.msra.mxu0 0.0
    %4402 = vmatprep.subr.mxu0 0.0
    %4403 = vmatpush2.msra.mxu0 0.0
    %4404 = vmatprep.subr.mxu0 0.0
    %4405 = vmatpush2.msra.mxu0 0.0
    %4406 = vmatprep.subr.mxu0 0.0
    %4407 = vmatpush2.msra.mxu0 0.0
    %4408 = vmatprep.subr.mxu0 0.0
    %4409 = vmatpush2.msra.mxu0 0.0
    %4410 = vmatprep.subr.mxu0 0.0
    %4411 = vmatpush2.msra.mxu0 0.0
    %4412 = vmatprep.subr.mxu0 0.0
    %4413 = vmatpush2.msra.mxu0 0.0
    %4414 = vmatprep.subr.mxu0 0.0
    %4415 = vmatpush2.msra.mxu0 0.0
    %4416 = vmatprep.subr.mxu0 0.0
    %4417 = vmatpush2.msra.mxu0 0.0
    %4418 = vmatprep.subr.mxu0 0.0
    %4419 = vmatpush2.msra.mxu0 0.0
    %4420 = vmatprep.subr.mxu0 0.0
    %4421 = vmatpush2.msra.mxu0 0.0
    %4422 = vmatprep.subr.mxu0 0.0
    %4423 = vmatpush2.msra.mxu0 0.0
    %4424 = vmatprep.mubr.f32.mxu0 0.0
    %v4425 = vand.u32 %v4068, 4294901760
    %v4426 = vsub.f32 %v4068, %v4425
    %4427 = vmatmul.mubr.f32.gmra.mxu0 %v4426
    %v4428 = vpop.f32.mrf.mxu0
    %v4429 = vadd.f32 %v4325, %v4428
    %v4430 = vpop.f32.mrf.mxu0
    %4431 = vdwg.mxu0
    %4432 = vmatprep.subr.mxu0 0.0
    %v4433 = vand.u32 %v4084, 4294901760
    %4434 = vmatpush1.msra.mxu0 %v4433
    %4435 = vmatprep.subr.mxu0 0.0
    %v4436 = vand.u32 %v4083, 4294901760
    %4437 = vmatpush1.msra.mxu0 %v4436
    %4438 = vmatprep.subr.mxu0 0.0
    %v4439 = vand.u32 %v4082, 4294901760
    %4440 = vmatpush1.msra.mxu0 %v4439
    %4441 = vmatprep.subr.mxu0 0.0
    %v4442 = vand.u32 %v4081, 4294901760
    %4443 = vmatpush1.msra.mxu0 %v4442
    %4444 = vmatprep.subr.mxu0 0.0
    %v4445 = vand.u32 %v4080, 4294901760
    %4446 = vmatpush1.msra.mxu0 %v4445
    %4447 = vmatprep.subr.mxu0 0.0
    %v4448 = vand.u32 %v4079, 4294901760
    %4449 = vmatpush1.msra.mxu0 %v4448
    %4450 = vmatprep.subr.mxu0 0.0
    %v4451 = vand.u32 %v4078, 4294901760
    %4452 = vmatpush1.msra.mxu0 %v4451
    %4453 = vmatprep.subr.mxu0 0.0
    %v4454 = vand.u32 %v4077, 4294901760
    %4455 = vmatpush1.msra.mxu0 %v4454
    %4456 = vmatprep.subr.mxu0 0.0
    %v4457 = vand.u32 %v4076, 4294901760
    %4458 = vmatpush1.msra.mxu0 %v4457
    %4459 = vmatprep.subr.mxu0 0.0
    %v4460 = vand.u32 %v4075, 4294901760
    %4461 = vmatpush1.msra.mxu0 %v4460
    %4462 = vmatprep.subr.mxu0 0.0
    %v4463 = vand.u32 %v4074, 4294901760
    %4464 = vmatpush1.msra.mxu0 %v4463
    %4465 = vmatprep.subr.mxu0 0.0
    %v4466 = vand.u32 %v4073, 4294901760
    %4467 = vmatpush1.msra.mxu0 %v4466
    %4468 = vmatprep.subr.mxu0 0.0
    %v4469 = vand.u32 %v4072, 4294901760
    %4470 = vmatpush1.msra.mxu0 %v4469
    %4471 = vmatprep.subr.mxu0 0.0
    %v4472 = vand.u32 %v4071, 4294901760
    %4473 = vmatpush1.msra.mxu0 %v4472
    %4474 = vmatprep.subr.mxu0 0.0
    %v4475 = vand.u32 %v4070, 4294901760
    %4476 = vmatpush1.msra.mxu0 %v4475
    %4477 = vmatprep.subr.mxu0 0.0
    %v4478 = vand.u32 %v4069, 4294901760
    %4479 = vmatpush1.msra.mxu0 %v4478
    %4480 = vmatprep.subr.mxu0 0.0
    %4481 = vmatpush2.msra.mxu0 0.0
    %4482 = vmatprep.subr.mxu0 0.0
    %4483 = vmatpush2.msra.mxu0 0.0
    %4484 = vmatprep.subr.mxu0 0.0
    %4485 = vmatpush2.msra.mxu0 0.0
    %4486 = vmatprep.subr.mxu0 0.0
    %4487 = vmatpush2.msra.mxu0 0.0
    %4488 = vmatprep.subr.mxu0 0.0
    %4489 = vmatpush2.msra.mxu0 0.0
    %4490 = vmatprep.subr.mxu0 0.0
    %4491 = vmatpush2.msra.mxu0 0.0
    %4492 = vmatprep.subr.mxu0 0.0
    %4493 = vmatpush2.msra.mxu0 0.0
    %4494 = vmatprep.subr.mxu0 0.0
    %4495 = vmatpush2.msra.mxu0 0.0
    %4496 = vmatprep.subr.mxu0 0.0
    %4497 = vmatpush2.msra.mxu0 0.0
    %4498 = vmatprep.subr.mxu0 0.0
    %4499 = vmatpush2.msra.mxu0 0.0
    %4500 = vmatprep.subr.mxu0 0.0
    %4501 = vmatpush2.msra.mxu0 0.0
    %4502 = vmatprep.subr.mxu0 0.0
    %4503 = vmatpush2.msra.mxu0 0.0
    %4504 = vmatprep.subr.mxu0 0.0
    %4505 = vmatpush2.msra.mxu0 0.0
    %4506 = vmatprep.subr.mxu0 0.0
    %4507 = vmatpush2.msra.mxu0 0.0
    %4508 = vmatprep.subr.mxu0 0.0
    %4509 = vmatpush2.msra.mxu0 0.0
    %4510 = vmatprep.subr.mxu0 0.0
    %4511 = vmatpush2.msra.mxu0 0.0
    %4512 = vmatprep.mubr.f32.mxu0 0.0
    %v4513 = vand.u32 %v4068, 4294901760
    %v4514 = vsub.f32 %v4068, %v4513
    %v4515 = vand.u32 %v4514, 4294901760
    %4516 = vmatmul.mubr.f32.gmra.mxu0 %v4515
    %v4517 = vpop.f32.mrf.mxu0
    %v4518 = vadd.f32 %v4429, %v4517
    %v4519 = vpop.f32.mrf.mxu0
    %4520 = vdwg.mxu0
    %4521 = vmatprep.subr.mxu0 0.0
    %v4522 = vand.u32 %v4084, 4294901760
    %v4523 = vsub.f32 %v4084, %v4522
    %v4524 = vand.u32 %v4523, 4294901760
    %4525 = vmatpush1.msra.mxu0 %v4524
    %4526 = vmatprep.subr.mxu0 0.0
    %v4527 = vand.u32 %v4083, 4294901760
    %v4528 = vsub.f32 %v4083, %v4527
    %v4529 = vand.u32 %v4528, 4294901760
    %4530 = vmatpush1.msra.mxu0 %v4529
    %4531 = vmatprep.subr.mxu0 0.0
    %v4532 = vand.u32 %v4082, 4294901760
    %v4533 = vsub.f32 %v4082, %v4532
    %v4534 = vand.u32 %v4533, 4294901760
    %4535 = vmatpush1.msra.mxu0 %v4534
    %4536 = vmatprep.subr.mxu0 0.0
    %v4537 = vand.u32 %v4081, 4294901760
    %v4538 = vsub.f32 %v4081, %v4537
    %v4539 = vand.u32 %v4538, 4294901760
    %4540 = vmatpush1.msra.mxu0 %v4539
    %4541 = vmatprep.subr.mxu0 0.0
    %v4542 = vand.u32 %v4080, 4294901760
    %v4543 = vsub.f32 %v4080, %v4542
    %v4544 = vand.u32 %v4543, 4294901760
    %4545 = vmatpush1.msra.mxu0 %v4544
    %4546 = vmatprep.subr.mxu0 0.0
    %v4547 = vand.u32 %v4079, 4294901760
    %v4548 = vsub.f32 %v4079, %v4547
    %v4549 = vand.u32 %v4548, 4294901760
    %4550 = vmatpush1.msra.mxu0 %v4549
    %4551 = vmatprep.subr.mxu0 0.0
    %v4552 = vand.u32 %v4078, 4294901760
    %v4553 = vsub.f32 %v4078, %v4552
    %v4554 = vand.u32 %v4553, 4294901760
    %4555 = vmatpush1.msra.mxu0 %v4554
    %4556 = vmatprep.subr.mxu0 0.0
    %v4557 = vand.u32 %v4077, 4294901760
    %v4558 = vsub.f32 %v4077, %v4557
    %v4559 = vand.u32 %v4558, 4294901760
    %4560 = vmatpush1.msra.mxu0 %v4559
    %4561 = vmatprep.subr.mxu0 0.0
    %v4562 = vand.u32 %v4076, 4294901760
    %v4563 = vsub.f32 %v4076, %v4562
    %v4564 = vand.u32 %v4563, 4294901760
    %4565 = vmatpush1.msra.mxu0 %v4564
    %4566 = vmatprep.subr.mxu0 0.0
    %v4567 = vand.u32 %v4075, 4294901760
    %v4568 = vsub.f32 %v4075, %v4567
    %v4569 = vand.u32 %v4568, 4294901760
    %4570 = vmatpush1.msra.mxu0 %v4569
    %4571 = vmatprep.subr.mxu0 0.0
    %v4572 = vand.u32 %v4074, 4294901760
    %v4573 = vsub.f32 %v4074, %v4572
    %v4574 = vand.u32 %v4573, 4294901760
    %4575 = vmatpush1.msra.mxu0 %v4574
    %4576 = vmatprep.subr.mxu0 0.0
    %v4577 = vand.u32 %v4073, 4294901760
    %v4578 = vsub.f32 %v4073, %v4577
    %v4579 = vand.u32 %v4578, 4294901760
    %4580 = vmatpush1.msra.mxu0 %v4579
    %4581 = vmatprep.subr.mxu0 0.0
    %v4582 = vand.u32 %v4072, 4294901760
    %v4583 = vsub.f32 %v4072, %v4582
    %v4584 = vand.u32 %v4583, 4294901760
    %4585 = vmatpush1.msra.mxu0 %v4584
    %4586 = vmatprep.subr.mxu0 0.0
    %v4587 = vand.u32 %v4071, 4294901760
    %v4588 = vsub.f32 %v4071, %v4587
    %v4589 = vand.u32 %v4588, 4294901760
    %4590 = vmatpush1.msra.mxu0 %v4589
    %4591 = vmatprep.subr.mxu0 0.0
    %v4592 = vand.u32 %v4070, 4294901760
    %v4593 = vsub.f32 %v4070, %v4592
    %v4594 = vand.u32 %v4593, 4294901760
    %4595 = vmatpush1.msra.mxu0 %v4594
    %4596 = vmatprep.subr.mxu0 0.0
    %v4597 = vand.u32 %v4069, 4294901760
    %v4598 = vsub.f32 %v4069, %v4597
    %v4599 = vand.u32 %v4598, 4294901760
    %4600 = vmatpush1.msra.mxu0 %v4599
    %4601 = vmatprep.subr.mxu0 0.0
    %4602 = vmatpush2.msra.mxu0 0.0
    %4603 = vmatprep.subr.mxu0 0.0
    %4604 = vmatpush2.msra.mxu0 0.0
    %4605 = vmatprep.subr.mxu0 0.0
    %4606 = vmatpush2.msra.mxu0 0.0
    %4607 = vmatprep.subr.mxu0 0.0
    %4608 = vmatpush2.msra.mxu0 0.0
    %4609 = vmatprep.subr.mxu0 0.0
    %4610 = vmatpush2.msra.mxu0 0.0
    %4611 = vmatprep.subr.mxu0 0.0
    %4612 = vmatpush2.msra.mxu0 0.0
    %4613 = vmatprep.subr.mxu0 0.0
    %4614 = vmatpush2.msra.mxu0 0.0
    %4615 = vmatprep.subr.mxu0 0.0
    %4616 = vmatpush2.msra.mxu0 0.0
    %4617 = vmatprep.subr.mxu0 0.0
    %4618 = vmatpush2.msra.mxu0 0.0
    %4619 = vmatprep.subr.mxu0 0.0
    %4620 = vmatpush2.msra.mxu0 0.0
    %4621 = vmatprep.subr.mxu0 0.0
    %4622 = vmatpush2.msra.mxu0 0.0
    %4623 = vmatprep.subr.mxu0 0.0
    %4624 = vmatpush2.msra.mxu0 0.0
    %4625 = vmatprep.subr.mxu0 0.0
    %4626 = vmatpush2.msra.mxu0 0.0
    %4627 = vmatprep.subr.mxu0 0.0
    %4628 = vmatpush2.msra.mxu0 0.0
    %4629 = vmatprep.subr.mxu0 0.0
    %4630 = vmatpush2.msra.mxu0 0.0
    %4631 = vmatprep.subr.mxu0 0.0
    %4632 = vmatpush2.msra.mxu0 0.0
    %4633 = vmatprep.mubr.f32.mxu0 0.0
    %v4634 = vand.u32 %v4068, 4294901760
    %4635 = vmatmul.mubr.f32.gmra.mxu0 %v4634
    %v4636 = vpop.f32.mrf.mxu0
    %v4637 = vadd.f32 %v4518, %v4636
    %v4638 = vpop.f32.mrf.mxu0
    %4639 = vdwg.mxu0
    %4640 = vmatprep.subr.mxu0 0.0
    %v4641 = vand.u32 %v4084, 4294901760
    %4642 = vmatpush1.msra.mxu0 %v4641
    %4643 = vmatprep.subr.mxu0 0.0
    %v4644 = vand.u32 %v4083, 4294901760
    %4645 = vmatpush1.msra.mxu0 %v4644
    %4646 = vmatprep.subr.mxu0 0.0
    %v4647 = vand.u32 %v4082, 4294901760
    %4648 = vmatpush1.msra.mxu0 %v4647
    %4649 = vmatprep.subr.mxu0 0.0
    %v4650 = vand.u32 %v4081, 4294901760
    %4651 = vmatpush1.msra.mxu0 %v4650
    %4652 = vmatprep.subr.mxu0 0.0
    %v4653 = vand.u32 %v4080, 4294901760
    %4654 = vmatpush1.msra.mxu0 %v4653
    %4655 = vmatprep.subr.mxu0 0.0
    %v4656 = vand.u32 %v4079, 4294901760
    %4657 = vmatpush1.msra.mxu0 %v4656
    %4658 = vmatprep.subr.mxu0 0.0
    %v4659 = vand.u32 %v4078, 4294901760
    %4660 = vmatpush1.msra.mxu0 %v4659
    %4661 = vmatprep.subr.mxu0 0.0
    %v4662 = vand.u32 %v4077, 4294901760
    %4663 = vmatpush1.msra.mxu0 %v4662
    %4664 = vmatprep.subr.mxu0 0.0
    %v4665 = vand.u32 %v4076, 4294901760
    %4666 = vmatpush1.msra.mxu0 %v4665
    %4667 = vmatprep.subr.mxu0 0.0
    %v4668 = vand.u32 %v4075, 4294901760
    %4669 = vmatpush1.msra.mxu0 %v4668
    %4670 = vmatprep.subr.mxu0 0.0
    %v4671 = vand.u32 %v4074, 4294901760
    %4672 = vmatpush1.msra.mxu0 %v4671
    %4673 = vmatprep.subr.mxu0 0.0
    %v4674 = vand.u32 %v4073, 4294901760
    %4675 = vmatpush1.msra.mxu0 %v4674
    %4676 = vmatprep.subr.mxu0 0.0
    %v4677 = vand.u32 %v4072, 4294901760
    %4678 = vmatpush1.msra.mxu0 %v4677
    %4679 = vmatprep.subr.mxu0 0.0
    %v4680 = vand.u32 %v4071, 4294901760
    %4681 = vmatpush1.msra.mxu0 %v4680
    %4682 = vmatprep.subr.mxu0 0.0
    %v4683 = vand.u32 %v4070, 4294901760
    %4684 = vmatpush1.msra.mxu0 %v4683
    %4685 = vmatprep.subr.mxu0 0.0
    %v4686 = vand.u32 %v4069, 4294901760
    %4687 = vmatpush1.msra.mxu0 %v4686
    %4688 = vmatprep.subr.mxu0 0.0
    %4689 = vmatpush2.msra.mxu0 0.0
    %4690 = vmatprep.subr.mxu0 0.0
    %4691 = vmatpush2.msra.mxu0 0.0
    %4692 = vmatprep.subr.mxu0 0.0
    %4693 = vmatpush2.msra.mxu0 0.0
    %4694 = vmatprep.subr.mxu0 0.0
    %4695 = vmatpush2.msra.mxu0 0.0
    %4696 = vmatprep.subr.mxu0 0.0
    %4697 = vmatpush2.msra.mxu0 0.0
    %4698 = vmatprep.subr.mxu0 0.0
    %4699 = vmatpush2.msra.mxu0 0.0
    %4700 = vmatprep.subr.mxu0 0.0
    %4701 = vmatpush2.msra.mxu0 0.0
    %4702 = vmatprep.subr.mxu0 0.0
    %4703 = vmatpush2.msra.mxu0 0.0
    %4704 = vmatprep.subr.mxu0 0.0
    %4705 = vmatpush2.msra.mxu0 0.0
    %4706 = vmatprep.subr.mxu0 0.0
    %4707 = vmatpush2.msra.mxu0 0.0
    %4708 = vmatprep.subr.mxu0 0.0
    %4709 = vmatpush2.msra.mxu0 0.0
    %4710 = vmatprep.subr.mxu0 0.0
    %4711 = vmatpush2.msra.mxu0 0.0
    %4712 = vmatprep.subr.mxu0 0.0
    %4713 = vmatpush2.msra.mxu0 0.0
    %4714 = vmatprep.subr.mxu0 0.0
    %4715 = vmatpush2.msra.mxu0 0.0
    %4716 = vmatprep.subr.mxu0 0.0
    %4717 = vmatpush2.msra.mxu0 0.0
    %4718 = vmatprep.subr.mxu0 0.0
    %4719 = vmatpush2.msra.mxu0 0.0
    %4720 = vmatprep.mubr.f32.mxu0 0.0
    %v4721 = vand.u32 %v4068, 4294901760
    %4722 = vmatmul.mubr.f32.gmra.mxu0 %v4721
    %v4723 = vpop.f32.mrf.mxu0
    %v4724 = vadd.f32 %v4637, %v4723
    %v4725 = vpop.f32.mrf.mxu0
    %4726 = vdwg.mxu0
    %v4727 = vmax.f32 %v4724, 0.0
    %v4728 = vld [vmem:[#allocation2 + $0x38] sm:$0xff]
    %v4729 = vld [vmem:[#allocation2 + $0x98] sm:$0xff]
    %v4730 = vld [vmem:[#allocation2 + $0xf8] sm:$0xff]
    %v4731 = vld [vmem:[#allocation2 + $0x158] sm:$0xff]
    %v4732 = vld [vmem:[#allocation2 + $0x1b8] sm:$0xff]
    %v4733 = vld [vmem:[#allocation2 + $0x218] sm:$0xff]
    %v4734 = vld [vmem:[#allocation2 + $0x278] sm:$0xff]
    %v4735 = vld [vmem:[#allocation2 + $0x2d8] sm:$0xff]
    %v4736 = vld [vmem:[#allocation2 + $0x338] sm:$0xff]
    %v4737 = vld [vmem:[#allocation2 + $0x398] sm:$0xff]
    %v4738 = vld [vmem:[#allocation2 + $0x3f8] sm:$0xff]
    %v4739 = vld [vmem:[#allocation2 + $0x458] sm:$0xff]
    %v4740 = vld [vmem:[#allocation2 + $0x4b8] sm:$0xff]
    %v4741 = vld [vmem:[#allocation2 + $0x518] sm:$0xff]
    %v4742 = vld [vmem:[#allocation2 + $0x578] sm:$0xff]
    %v4743 = vld [vmem:[#allocation2 + $0x5d8] sm:$0xff]
    %v4744 = vld [vmem:[#allocation2 + $0x638] ss:$0 sm:$0xff]
    %4745 = vmatprep.subr.mxu0 0.0
    %v4746 = vand.u32 %v4743, 4294901760
    %4747 = vmatpush1.msra.mxu0 %v4746
    %4748 = vmatprep.subr.mxu0 0.0
    %v4749 = vand.u32 %v4742, 4294901760
    %4750 = vmatpush1.msra.mxu0 %v4749
    %4751 = vmatprep.subr.mxu0 0.0
    %v4752 = vand.u32 %v4741, 4294901760
    %4753 = vmatpush1.msra.mxu0 %v4752
    %4754 = vmatprep.subr.mxu0 0.0
    %v4755 = vand.u32 %v4740, 4294901760
    %4756 = vmatpush1.msra.mxu0 %v4755
    %4757 = vmatprep.subr.mxu0 0.0
    %v4758 = vand.u32 %v4739, 4294901760
    %4759 = vmatpush1.msra.mxu0 %v4758
    %4760 = vmatprep.subr.mxu0 0.0
    %v4761 = vand.u32 %v4738, 4294901760
    %4762 = vmatpush1.msra.mxu0 %v4761
    %4763 = vmatprep.subr.mxu0 0.0
    %v4764 = vand.u32 %v4737, 4294901760
    %4765 = vmatpush1.msra.mxu0 %v4764
    %4766 = vmatprep.subr.mxu0 0.0
    %v4767 = vand.u32 %v4736, 4294901760
    %4768 = vmatpush1.msra.mxu0 %v4767
    %4769 = vmatprep.subr.mxu0 0.0
    %v4770 = vand.u32 %v4735, 4294901760
    %4771 = vmatpush1.msra.mxu0 %v4770
    %4772 = vmatprep.subr.mxu0 0.0
    %v4773 = vand.u32 %v4734, 4294901760
    %4774 = vmatpush1.msra.mxu0 %v4773
    %4775 = vmatprep.subr.mxu0 0.0
    %v4776 = vand.u32 %v4733, 4294901760
    %4777 = vmatpush1.msra.mxu0 %v4776
    %4778 = vmatprep.subr.mxu0 0.0
    %v4779 = vand.u32 %v4732, 4294901760
    %4780 = vmatpush1.msra.mxu0 %v4779
    %4781 = vmatprep.subr.mxu0 0.0
    %v4782 = vand.u32 %v4731, 4294901760
    %4783 = vmatpush1.msra.mxu0 %v4782
    %4784 = vmatprep.subr.mxu0 0.0
    %v4785 = vand.u32 %v4730, 4294901760
    %4786 = vmatpush1.msra.mxu0 %v4785
    %4787 = vmatprep.subr.mxu0 0.0
    %v4788 = vand.u32 %v4729, 4294901760
    %4789 = vmatpush1.msra.mxu0 %v4788
    %4790 = vmatprep.subr.mxu0 0.0
    %v4791 = vand.u32 %v4728, 4294901760
    %4792 = vmatpush1.msra.mxu0 %v4791
    %4793 = vmatprep.subr.mxu0 0.0
    %4794 = vmatpush2.msra.mxu0 0.0
    %4795 = vmatprep.subr.mxu0 0.0
    %4796 = vmatpush2.msra.mxu0 0.0
    %4797 = vmatprep.subr.mxu0 0.0
    %4798 = vmatpush2.msra.mxu0 0.0
    %4799 = vmatprep.subr.mxu0 0.0
    %4800 = vmatpush2.msra.mxu0 0.0
    %4801 = vmatprep.subr.mxu0 0.0
    %4802 = vmatpush2.msra.mxu0 0.0
    %4803 = vmatprep.subr.mxu0 0.0
    %4804 = vmatpush2.msra.mxu0 0.0
    %4805 = vmatprep.subr.mxu0 0.0
    %4806 = vmatpush2.msra.mxu0 0.0
    %4807 = vmatprep.subr.mxu0 0.0
    %4808 = vmatpush2.msra.mxu0 0.0
    %4809 = vmatprep.subr.mxu0 0.0
    %4810 = vmatpush2.msra.mxu0 0.0
    %4811 = vmatprep.subr.mxu0 0.0
    %4812 = vmatpush2.msra.mxu0 0.0
    %4813 = vmatprep.subr.mxu0 0.0
    %4814 = vmatpush2.msra.mxu0 0.0
    %4815 = vmatprep.subr.mxu0 0.0
    %4816 = vmatpush2.msra.mxu0 0.0
    %4817 = vmatprep.subr.mxu0 0.0
    %4818 = vmatpush2.msra.mxu0 0.0
    %4819 = vmatprep.subr.mxu0 0.0
    %4820 = vmatpush2.msra.mxu0 0.0
    %4821 = vmatprep.subr.mxu0 0.0
    %4822 = vmatpush2.msra.mxu0 0.0
    %4823 = vmatprep.subr.mxu0 0.0
    %4824 = vmatpush2.msra.mxu0 0.0
    %4825 = vmatprep.mubr.f32.mxu0 0.0
    %v4826 = vand.u32 %v4727, 4294901760
    %v4827 = vsub.f32 %v4727, %v4826
    %v4828 = vand.u32 %v4827, 4294901760
    %v4829 = vsub.f32 %v4827, %v4828
    %v4830 = vand.u32 %v4829, 4294901760
    %4831 = vmatmul.mubr.f32.gmra.mxu0 %v4830
    %v4832 = vpop.f32.mrf.mxu0
    %v4833 = vadd.f32 %v4744, %v4832
    %v4834 = vpop.f32.mrf.mxu0
    %4835 = vdwg.mxu0
    %4836 = vmatprep.subr.mxu0 0.0
    %v4837 = vand.u32 %v4743, 4294901760
    %v4838 = vsub.f32 %v4743, %v4837
    %v4839 = vand.u32 %v4838, 4294901760
    %v4840 = vsub.f32 %v4838, %v4839
    %v4841 = vand.u32 %v4840, 4294901760
    %4842 = vmatpush1.msra.mxu0 %v4841
    %4843 = vmatprep.subr.mxu0 0.0
    %v4844 = vand.u32 %v4742, 4294901760
    %v4845 = vsub.f32 %v4742, %v4844
    %v4846 = vand.u32 %v4845, 4294901760
    %v4847 = vsub.f32 %v4845, %v4846
    %v4848 = vand.u32 %v4847, 4294901760
    %4849 = vmatpush1.msra.mxu0 %v4848
    %4850 = vmatprep.subr.mxu0 0.0
    %v4851 = vand.u32 %v4741, 4294901760
    %v4852 = vsub.f32 %v4741, %v4851
    %v4853 = vand.u32 %v4852, 4294901760
    %v4854 = vsub.f32 %v4852, %v4853
    %v4855 = vand.u32 %v4854, 4294901760
    %4856 = vmatpush1.msra.mxu0 %v4855
    %4857 = vmatprep.subr.mxu0 0.0
    %v4858 = vand.u32 %v4740, 4294901760
    %v4859 = vsub.f32 %v4740, %v4858
    %v4860 = vand.u32 %v4859, 4294901760
    %v4861 = vsub.f32 %v4859, %v4860
    %v4862 = vand.u32 %v4861, 4294901760
    %4863 = vmatpush1.msra.mxu0 %v4862
    %4864 = vmatprep.subr.mxu0 0.0
    %v4865 = vand.u32 %v4739, 4294901760
    %v4866 = vsub.f32 %v4739, %v4865
    %v4867 = vand.u32 %v4866, 4294901760
    %v4868 = vsub.f32 %v4866, %v4867
    %v4869 = vand.u32 %v4868, 4294901760
    %4870 = vmatpush1.msra.mxu0 %v4869
    %4871 = vmatprep.subr.mxu0 0.0
    %v4872 = vand.u32 %v4738, 4294901760
    %v4873 = vsub.f32 %v4738, %v4872
    %v4874 = vand.u32 %v4873, 4294901760
    %v4875 = vsub.f32 %v4873, %v4874
    %v4876 = vand.u32 %v4875, 4294901760
    %4877 = vmatpush1.msra.mxu0 %v4876
    %4878 = vmatprep.subr.mxu0 0.0
    %v4879 = vand.u32 %v4737, 4294901760
    %v4880 = vsub.f32 %v4737, %v4879
    %v4881 = vand.u32 %v4880, 4294901760
    %v4882 = vsub.f32 %v4880, %v4881
    %v4883 = vand.u32 %v4882, 4294901760
    %4884 = vmatpush1.msra.mxu0 %v4883
    %4885 = vmatprep.subr.mxu0 0.0
    %v4886 = vand.u32 %v4736, 4294901760
    %v4887 = vsub.f32 %v4736, %v4886
    %v4888 = vand.u32 %v4887, 4294901760
    %v4889 = vsub.f32 %v4887, %v4888
    %v4890 = vand.u32 %v4889, 4294901760
    %4891 = vmatpush1.msra.mxu0 %v4890
    %4892 = vmatprep.subr.mxu0 0.0
    %v4893 = vand.u32 %v4735, 4294901760
    %v4894 = vsub.f32 %v4735, %v4893
    %v4895 = vand.u32 %v4894, 4294901760
    %v4896 = vsub.f32 %v4894, %v4895
    %v4897 = vand.u32 %v4896, 4294901760
    %4898 = vmatpush1.msra.mxu0 %v4897
    %4899 = vmatprep.subr.mxu0 0.0
    %v4900 = vand.u32 %v4734, 4294901760
    %v4901 = vsub.f32 %v4734, %v4900
    %v4902 = vand.u32 %v4901, 4294901760
    %v4903 = vsub.f32 %v4901, %v4902
    %v4904 = vand.u32 %v4903, 4294901760
    %4905 = vmatpush1.msra.mxu0 %v4904
    %4906 = vmatprep.subr.mxu0 0.0
    %v4907 = vand.u32 %v4733, 4294901760
    %v4908 = vsub.f32 %v4733, %v4907
    %v4909 = vand.u32 %v4908, 4294901760
    %v4910 = vsub.f32 %v4908, %v4909
    %v4911 = vand.u32 %v4910, 4294901760
    %4912 = vmatpush1.msra.mxu0 %v4911
    %4913 = vmatprep.subr.mxu0 0.0
    %v4914 = vand.u32 %v4732, 4294901760
    %v4915 = vsub.f32 %v4732, %v4914
    %v4916 = vand.u32 %v4915, 4294901760
    %v4917 = vsub.f32 %v4915, %v4916
    %v4918 = vand.u32 %v4917, 4294901760
    %4919 = vmatpush1.msra.mxu0 %v4918
    %4920 = vmatprep.subr.mxu0 0.0
    %v4921 = vand.u32 %v4731, 4294901760
    %v4922 = vsub.f32 %v4731, %v4921
    %v4923 = vand.u32 %v4922, 4294901760
    %v4924 = vsub.f32 %v4922, %v4923
    %v4925 = vand.u32 %v4924, 4294901760
    %4926 = vmatpush1.msra.mxu0 %v4925
    %4927 = vmatprep.subr.mxu0 0.0
    %v4928 = vand.u32 %v4730, 4294901760
    %v4929 = vsub.f32 %v4730, %v4928
    %v4930 = vand.u32 %v4929, 4294901760
    %v4931 = vsub.f32 %v4929, %v4930
    %v4932 = vand.u32 %v4931, 4294901760
    %4933 = vmatpush1.msra.mxu0 %v4932
    %4934 = vmatprep.subr.mxu0 0.0
    %v4935 = vand.u32 %v4729, 4294901760
    %v4936 = vsub.f32 %v4729, %v4935
    %v4937 = vand.u32 %v4936, 4294901760
    %v4938 = vsub.f32 %v4936, %v4937
    %v4939 = vand.u32 %v4938, 4294901760
    %4940 = vmatpush1.msra.mxu0 %v4939
    %4941 = vmatprep.subr.mxu0 0.0
    %v4942 = vand.u32 %v4728, 4294901760
    %v4943 = vsub.f32 %v4728, %v4942
    %v4944 = vand.u32 %v4943, 4294901760
    %v4945 = vsub.f32 %v4943, %v4944
    %v4946 = vand.u32 %v4945, 4294901760
    %4947 = vmatpush1.msra.mxu0 %v4946
    %4948 = vmatprep.subr.mxu0 0.0
    %4949 = vmatpush2.msra.mxu0 0.0
    %4950 = vmatprep.subr.mxu0 0.0
    %4951 = vmatpush2.msra.mxu0 0.0
    %4952 = vmatprep.subr.mxu0 0.0
    %4953 = vmatpush2.msra.mxu0 0.0
    %4954 = vmatprep.subr.mxu0 0.0
    %4955 = vmatpush2.msra.mxu0 0.0
    %4956 = vmatprep.subr.mxu0 0.0
    %4957 = vmatpush2.msra.mxu0 0.0
    %4958 = vmatprep.subr.mxu0 0.0
    %4959 = vmatpush2.msra.mxu0 0.0
    %4960 = vmatprep.subr.mxu0 0.0
    %4961 = vmatpush2.msra.mxu0 0.0
    %4962 = vmatprep.subr.mxu0 0.0
    %4963 = vmatpush2.msra.mxu0 0.0
    %4964 = vmatprep.subr.mxu0 0.0
    %4965 = vmatpush2.msra.mxu0 0.0
    %4966 = vmatprep.subr.mxu0 0.0
    %4967 = vmatpush2.msra.mxu0 0.0
    %4968 = vmatprep.subr.mxu0 0.0
    %4969 = vmatpush2.msra.mxu0 0.0
    %4970 = vmatprep.subr.mxu0 0.0
    %4971 = vmatpush2.msra.mxu0 0.0
    %4972 = vmatprep.subr.mxu0 0.0
    %4973 = vmatpush2.msra.mxu0 0.0
    %4974 = vmatprep.subr.mxu0 0.0
    %4975 = vmatpush2.msra.mxu0 0.0
    %4976 = vmatprep.subr.mxu0 0.0
    %4977 = vmatpush2.msra.mxu0 0.0
    %4978 = vmatprep.subr.mxu0 0.0
    %4979 = vmatpush2.msra.mxu0 0.0
    %4980 = vmatprep.mubr.f32.mxu0 0.0
    %v4981 = vand.u32 %v4727, 4294901760
    %4982 = vmatmul.mubr.f32.gmra.mxu0 %v4981
    %v4983 = vpop.f32.mrf.mxu0
    %v4984 = vadd.f32 %v4833, %v4983
    %v4985 = vpop.f32.mrf.mxu0
    %4986 = vdwg.mxu0
    %4987 = vmatprep.subr.mxu0 0.0
    %v4988 = vand.u32 %v4743, 4294901760
    %v4989 = vsub.f32 %v4743, %v4988
    %4990 = vmatpush1.msra.mxu0 %v4989
    %4991 = vmatprep.subr.mxu0 0.0
    %v4992 = vand.u32 %v4742, 4294901760
    %v4993 = vsub.f32 %v4742, %v4992
    %4994 = vmatpush1.msra.mxu0 %v4993
    %4995 = vmatprep.subr.mxu0 0.0
    %v4996 = vand.u32 %v4741, 4294901760
    %v4997 = vsub.f32 %v4741, %v4996
    %4998 = vmatpush1.msra.mxu0 %v4997
    %4999 = vmatprep.subr.mxu0 0.0
    %v5000 = vand.u32 %v4740, 4294901760
    %v5001 = vsub.f32 %v4740, %v5000
    %5002 = vmatpush1.msra.mxu0 %v5001
    %5003 = vmatprep.subr.mxu0 0.0
    %v5004 = vand.u32 %v4739, 4294901760
    %v5005 = vsub.f32 %v4739, %v5004
    %5006 = vmatpush1.msra.mxu0 %v5005
    %5007 = vmatprep.subr.mxu0 0.0
    %v5008 = vand.u32 %v4738, 4294901760
    %v5009 = vsub.f32 %v4738, %v5008
    %5010 = vmatpush1.msra.mxu0 %v5009
    %5011 = vmatprep.subr.mxu0 0.0
    %v5012 = vand.u32 %v4737, 4294901760
    %v5013 = vsub.f32 %v4737, %v5012
    %5014 = vmatpush1.msra.mxu0 %v5013
    %5015 = vmatprep.subr.mxu0 0.0
    %v5016 = vand.u32 %v4736, 4294901760
    %v5017 = vsub.f32 %v4736, %v5016
    %5018 = vmatpush1.msra.mxu0 %v5017
    %5019 = vmatprep.subr.mxu0 0.0
    %v5020 = vand.u32 %v4735, 4294901760
    %v5021 = vsub.f32 %v4735, %v5020
    %5022 = vmatpush1.msra.mxu0 %v5021
    %5023 = vmatprep.subr.mxu0 0.0
    %v5024 = vand.u32 %v4734, 4294901760
    %v5025 = vsub.f32 %v4734, %v5024
    %5026 = vmatpush1.msra.mxu0 %v5025
    %5027 = vmatprep.subr.mxu0 0.0
    %v5028 = vand.u32 %v4733, 4294901760
    %v5029 = vsub.f32 %v4733, %v5028
    %5030 = vmatpush1.msra.mxu0 %v5029
    %5031 = vmatprep.subr.mxu0 0.0
    %v5032 = vand.u32 %v4732, 4294901760
    %v5033 = vsub.f32 %v4732, %v5032
    %5034 = vmatpush1.msra.mxu0 %v5033
    %5035 = vmatprep.subr.mxu0 0.0
    %v5036 = vand.u32 %v4731, 4294901760
    %v5037 = vsub.f32 %v4731, %v5036
    %5038 = vmatpush1.msra.mxu0 %v5037
    %5039 = vmatprep.subr.mxu0 0.0
    %v5040 = vand.u32 %v4730, 4294901760
    %v5041 = vsub.f32 %v4730, %v5040
    %5042 = vmatpush1.msra.mxu0 %v5041
    %5043 = vmatprep.subr.mxu0 0.0
    %v5044 = vand.u32 %v4729, 4294901760
    %v5045 = vsub.f32 %v4729, %v5044
    %5046 = vmatpush1.msra.mxu0 %v5045
    %5047 = vmatprep.subr.mxu0 0.0
    %v5048 = vand.u32 %v4728, 4294901760
    %v5049 = vsub.f32 %v4728, %v5048
    %5050 = vmatpush1.msra.mxu0 %v5049
    %5051 = vmatprep.subr.mxu0 0.0
    %5052 = vmatpush2.msra.mxu0 0.0
    %5053 = vmatprep.subr.mxu0 0.0
    %5054 = vmatpush2.msra.mxu0 0.0
    %5055 = vmatprep.subr.mxu0 0.0
    %5056 = vmatpush2.msra.mxu0 0.0
    %5057 = vmatprep.subr.mxu0 0.0
    %5058 = vmatpush2.msra.mxu0 0.0
    %5059 = vmatprep.subr.mxu0 0.0
    %5060 = vmatpush2.msra.mxu0 0.0
    %5061 = vmatprep.subr.mxu0 0.0
    %5062 = vmatpush2.msra.mxu0 0.0
    %5063 = vmatprep.subr.mxu0 0.0
    %5064 = vmatpush2.msra.mxu0 0.0
    %5065 = vmatprep.subr.mxu0 0.0
    %5066 = vmatpush2.msra.mxu0 0.0
    %5067 = vmatprep.subr.mxu0 0.0
    %5068 = vmatpush2.msra.mxu0 0.0
    %5069 = vmatprep.subr.mxu0 0.0
    %5070 = vmatpush2.msra.mxu0 0.0
    %5071 = vmatprep.subr.mxu0 0.0
    %5072 = vmatpush2.msra.mxu0 0.0
    %5073 = vmatprep.subr.mxu0 0.0
    %5074 = vmatpush2.msra.mxu0 0.0
    %5075 = vmatprep.subr.mxu0 0.0
    %5076 = vmatpush2.msra.mxu0 0.0
    %5077 = vmatprep.subr.mxu0 0.0
    %5078 = vmatpush2.msra.mxu0 0.0
    %5079 = vmatprep.subr.mxu0 0.0
    %5080 = vmatpush2.msra.mxu0 0.0
    %5081 = vmatprep.subr.mxu0 0.0
    %5082 = vmatpush2.msra.mxu0 0.0
    %5083 = vmatprep.mubr.f32.mxu0 0.0
    %v5084 = vand.u32 %v4727, 4294901760
    %v5085 = vsub.f32 %v4727, %v5084
    %5086 = vmatmul.mubr.f32.gmra.mxu0 %v5085
    %v5087 = vpop.f32.mrf.mxu0
    %v5088 = vadd.f32 %v4984, %v5087
    %v5089 = vpop.f32.mrf.mxu0
    %5090 = vdwg.mxu0
    %5091 = vmatprep.subr.mxu0 0.0
    %v5092 = vand.u32 %v4743, 4294901760
    %5093 = vmatpush1.msra.mxu0 %v5092
    %5094 = vmatprep.subr.mxu0 0.0
    %v5095 = vand.u32 %v4742, 4294901760
    %5096 = vmatpush1.msra.mxu0 %v5095
    %5097 = vmatprep.subr.mxu0 0.0
    %v5098 = vand.u32 %v4741, 4294901760
    %5099 = vmatpush1.msra.mxu0 %v5098
    %5100 = vmatprep.subr.mxu0 0.0
    %v5101 = vand.u32 %v4740, 4294901760
    %5102 = vmatpush1.msra.mxu0 %v5101
    %5103 = vmatprep.subr.mxu0 0.0
    %v5104 = vand.u32 %v4739, 4294901760
    %5105 = vmatpush1.msra.mxu0 %v5104
    %5106 = vmatprep.subr.mxu0 0.0
    %v5107 = vand.u32 %v4738, 4294901760
    %5108 = vmatpush1.msra.mxu0 %v5107
    %5109 = vmatprep.subr.mxu0 0.0
    %v5110 = vand.u32 %v4737, 4294901760
    %5111 = vmatpush1.msra.mxu0 %v5110
    %5112 = vmatprep.subr.mxu0 0.0
    %v5113 = vand.u32 %v4736, 4294901760
    %5114 = vmatpush1.msra.mxu0 %v5113
    %5115 = vmatprep.subr.mxu0 0.0
    %v5116 = vand.u32 %v4735, 4294901760
    %5117 = vmatpush1.msra.mxu0 %v5116
    %5118 = vmatprep.subr.mxu0 0.0
    %v5119 = vand.u32 %v4734, 4294901760
    %5120 = vmatpush1.msra.mxu0 %v5119
    %5121 = vmatprep.subr.mxu0 0.0
    %v5122 = vand.u32 %v4733, 4294901760
    %5123 = vmatpush1.msra.mxu0 %v5122
    %5124 = vmatprep.subr.mxu0 0.0
    %v5125 = vand.u32 %v4732, 4294901760
    %5126 = vmatpush1.msra.mxu0 %v5125
    %5127 = vmatprep.subr.mxu0 0.0
    %v5128 = vand.u32 %v4731, 4294901760
    %5129 = vmatpush1.msra.mxu0 %v5128
    %5130 = vmatprep.subr.mxu0 0.0
    %v5131 = vand.u32 %v4730, 4294901760
    %5132 = vmatpush1.msra.mxu0 %v5131
    %5133 = vmatprep.subr.mxu0 0.0
    %v5134 = vand.u32 %v4729, 4294901760
    %5135 = vmatpush1.msra.mxu0 %v5134
    %5136 = vmatprep.subr.mxu0 0.0
    %v5137 = vand.u32 %v4728, 4294901760
    %5138 = vmatpush1.msra.mxu0 %v5137
    %5139 = vmatprep.subr.mxu0 0.0
    %5140 = vmatpush2.msra.mxu0 0.0
    %5141 = vmatprep.subr.mxu0 0.0
    %5142 = vmatpush2.msra.mxu0 0.0
    %5143 = vmatprep.subr.mxu0 0.0
    %5144 = vmatpush2.msra.mxu0 0.0
    %5145 = vmatprep.subr.mxu0 0.0
    %5146 = vmatpush2.msra.mxu0 0.0
    %5147 = vmatprep.subr.mxu0 0.0
    %5148 = vmatpush2.msra.mxu0 0.0
    %5149 = vmatprep.subr.mxu0 0.0
    %5150 = vmatpush2.msra.mxu0 0.0
    %5151 = vmatprep.subr.mxu0 0.0
    %5152 = vmatpush2.msra.mxu0 0.0
    %5153 = vmatprep.subr.mxu0 0.0
    %5154 = vmatpush2.msra.mxu0 0.0
    %5155 = vmatprep.subr.mxu0 0.0
    %5156 = vmatpush2.msra.mxu0 0.0
    %5157 = vmatprep.subr.mxu0 0.0
    %5158 = vmatpush2.msra.mxu0 0.0
    %5159 = vmatprep.subr.mxu0 0.0
    %5160 = vmatpush2.msra.mxu0 0.0
    %5161 = vmatprep.subr.mxu0 0.0
    %5162 = vmatpush2.msra.mxu0 0.0
    %5163 = vmatprep.subr.mxu0 0.0
    %5164 = vmatpush2.msra.mxu0 0.0
    %5165 = vmatprep.subr.mxu0 0.0
    %5166 = vmatpush2.msra.mxu0 0.0
    %5167 = vmatprep.subr.mxu0 0.0
    %5168 = vmatpush2.msra.mxu0 0.0
    %5169 = vmatprep.subr.mxu0 0.0
    %5170 = vmatpush2.msra.mxu0 0.0
    %5171 = vmatprep.mubr.f32.mxu0 0.0
    %v5172 = vand.u32 %v4727, 4294901760
    %v5173 = vsub.f32 %v4727, %v5172
    %v5174 = vand.u32 %v5173, 4294901760
    %5175 = vmatmul.mubr.f32.gmra.mxu0 %v5174
    %v5176 = vpop.f32.mrf.mxu0
    %v5177 = vadd.f32 %v5088, %v5176
    %v5178 = vpop.f32.mrf.mxu0
    %5179 = vdwg.mxu0
    %5180 = vmatprep.subr.mxu0 0.0
    %v5181 = vand.u32 %v4743, 4294901760
    %v5182 = vsub.f32 %v4743, %v5181
    %v5183 = vand.u32 %v5182, 4294901760
    %5184 = vmatpush1.msra.mxu0 %v5183
    %5185 = vmatprep.subr.mxu0 0.0
    %v5186 = vand.u32 %v4742, 4294901760
    %v5187 = vsub.f32 %v4742, %v5186
    %v5188 = vand.u32 %v5187, 4294901760
    %5189 = vmatpush1.msra.mxu0 %v5188
    %5190 = vmatprep.subr.mxu0 0.0
    %v5191 = vand.u32 %v4741, 4294901760
    %v5192 = vsub.f32 %v4741, %v5191
    %v5193 = vand.u32 %v5192, 4294901760
    %5194 = vmatpush1.msra.mxu0 %v5193
    %5195 = vmatprep.subr.mxu0 0.0
    %v5196 = vand.u32 %v4740, 4294901760
    %v5197 = vsub.f32 %v4740, %v5196
    %v5198 = vand.u32 %v5197, 4294901760
    %5199 = vmatpush1.msra.mxu0 %v5198
    %5200 = vmatprep.subr.mxu0 0.0
    %v5201 = vand.u32 %v4739, 4294901760
    %v5202 = vsub.f32 %v4739, %v5201
    %v5203 = vand.u32 %v5202, 4294901760
    %5204 = vmatpush1.msra.mxu0 %v5203
    %5205 = vmatprep.subr.mxu0 0.0
    %v5206 = vand.u32 %v4738, 4294901760
    %v5207 = vsub.f32 %v4738, %v5206
    %v5208 = vand.u32 %v5207, 4294901760
    %5209 = vmatpush1.msra.mxu0 %v5208
    %5210 = vmatprep.subr.mxu0 0.0
    %v5211 = vand.u32 %v4737, 4294901760
    %v5212 = vsub.f32 %v4737, %v5211
    %v5213 = vand.u32 %v5212, 4294901760
    %5214 = vmatpush1.msra.mxu0 %v5213
    %5215 = vmatprep.subr.mxu0 0.0
    %v5216 = vand.u32 %v4736, 4294901760
    %v5217 = vsub.f32 %v4736, %v5216
    %v5218 = vand.u32 %v5217, 4294901760
    %5219 = vmatpush1.msra.mxu0 %v5218
    %5220 = vmatprep.subr.mxu0 0.0
    %v5221 = vand.u32 %v4735, 4294901760
    %v5222 = vsub.f32 %v4735, %v5221
    %v5223 = vand.u32 %v5222, 4294901760
    %5224 = vmatpush1.msra.mxu0 %v5223
    %5225 = vmatprep.subr.mxu0 0.0
    %v5226 = vand.u32 %v4734, 4294901760
    %v5227 = vsub.f32 %v4734, %v5226
    %v5228 = vand.u32 %v5227, 4294901760
    %5229 = vmatpush1.msra.mxu0 %v5228
    %5230 = vmatprep.subr.mxu0 0.0
    %v5231 = vand.u32 %v4733, 4294901760
    %v5232 = vsub.f32 %v4733, %v5231
    %v5233 = vand.u32 %v5232, 4294901760
    %5234 = vmatpush1.msra.mxu0 %v5233
    %5235 = vmatprep.subr.mxu0 0.0
    %v5236 = vand.u32 %v4732, 4294901760
    %v5237 = vsub.f32 %v4732, %v5236
    %v5238 = vand.u32 %v5237, 4294901760
    %5239 = vmatpush1.msra.mxu0 %v5238
    %5240 = vmatprep.subr.mxu0 0.0
    %v5241 = vand.u32 %v4731, 4294901760
    %v5242 = vsub.f32 %v4731, %v5241
    %v5243 = vand.u32 %v5242, 4294901760
    %5244 = vmatpush1.msra.mxu0 %v5243
    %5245 = vmatprep.subr.mxu0 0.0
    %v5246 = vand.u32 %v4730, 4294901760
    %v5247 = vsub.f32 %v4730, %v5246
    %v5248 = vand.u32 %v5247, 4294901760
    %5249 = vmatpush1.msra.mxu0 %v5248
    %5250 = vmatprep.subr.mxu0 0.0
    %v5251 = vand.u32 %v4729, 4294901760
    %v5252 = vsub.f32 %v4729, %v5251
    %v5253 = vand.u32 %v5252, 4294901760
    %5254 = vmatpush1.msra.mxu0 %v5253
    %5255 = vmatprep.subr.mxu0 0.0
    %v5256 = vand.u32 %v4728, 4294901760
    %v5257 = vsub.f32 %v4728, %v5256
    %v5258 = vand.u32 %v5257, 4294901760
    %5259 = vmatpush1.msra.mxu0 %v5258
    %5260 = vmatprep.subr.mxu0 0.0
    %5261 = vmatpush2.msra.mxu0 0.0
    %5262 = vmatprep.subr.mxu0 0.0
    %5263 = vmatpush2.msra.mxu0 0.0
    %5264 = vmatprep.subr.mxu0 0.0
    %5265 = vmatpush2.msra.mxu0 0.0
    %5266 = vmatprep.subr.mxu0 0.0
    %5267 = vmatpush2.msra.mxu0 0.0
    %5268 = vmatprep.subr.mxu0 0.0
    %5269 = vmatpush2.msra.mxu0 0.0
    %5270 = vmatprep.subr.mxu0 0.0
    %5271 = vmatpush2.msra.mxu0 0.0
    %5272 = vmatprep.subr.mxu0 0.0
    %5273 = vmatpush2.msra.mxu0 0.0
    %5274 = vmatprep.subr.mxu0 0.0
    %5275 = vmatpush2.msra.mxu0 0.0
    %5276 = vmatprep.subr.mxu0 0.0
    %5277 = vmatpush2.msra.mxu0 0.0
    %5278 = vmatprep.subr.mxu0 0.0
    %5279 = vmatpush2.msra.mxu0 0.0
    %5280 = vmatprep.subr.mxu0 0.0
    %5281 = vmatpush2.msra.mxu0 0.0
    %5282 = vmatprep.subr.mxu0 0.0
    %5283 = vmatpush2.msra.mxu0 0.0
    %5284 = vmatprep.subr.mxu0 0.0
    %5285 = vmatpush2.msra.mxu0 0.0
    %5286 = vmatprep.subr.mxu0 0.0
    %5287 = vmatpush2.msra.mxu0 0.0
    %5288 = vmatprep.subr.mxu0 0.0
    %5289 = vmatpush2.msra.mxu0 0.0
    %5290 = vmatprep.subr.mxu0 0.0
    %5291 = vmatpush2.msra.mxu0 0.0
    %5292 = vmatprep.mubr.f32.mxu0 0.0
    %v5293 = vand.u32 %v4727, 4294901760
    %5294 = vmatmul.mubr.f32.gmra.mxu0 %v5293
    %v5295 = vpop.f32.mrf.mxu0
    %v5296 = vadd.f32 %v5177, %v5295
    %v5297 = vpop.f32.mrf.mxu0
    %5298 = vdwg.mxu0
    %5299 = vmatprep.subr.mxu0 0.0
    %v5300 = vand.u32 %v4743, 4294901760
    %5301 = vmatpush1.msra.mxu0 %v5300
    %5302 = vmatprep.subr.mxu0 0.0
    %v5303 = vand.u32 %v4742, 4294901760
    %5304 = vmatpush1.msra.mxu0 %v5303
    %5305 = vmatprep.subr.mxu0 0.0
    %v5306 = vand.u32 %v4741, 4294901760
    %5307 = vmatpush1.msra.mxu0 %v5306
    %5308 = vmatprep.subr.mxu0 0.0
    %v5309 = vand.u32 %v4740, 4294901760
    %5310 = vmatpush1.msra.mxu0 %v5309
    %5311 = vmatprep.subr.mxu0 0.0
    %v5312 = vand.u32 %v4739, 4294901760
    %5313 = vmatpush1.msra.mxu0 %v5312
    %5314 = vmatprep.subr.mxu0 0.0
    %v5315 = vand.u32 %v4738, 4294901760
    %5316 = vmatpush1.msra.mxu0 %v5315
    %5317 = vmatprep.subr.mxu0 0.0
    %v5318 = vand.u32 %v4737, 4294901760
    %5319 = vmatpush1.msra.mxu0 %v5318
    %5320 = vmatprep.subr.mxu0 0.0
    %v5321 = vand.u32 %v4736, 4294901760
    %5322 = vmatpush1.msra.mxu0 %v5321
    %5323 = vmatprep.subr.mxu0 0.0
    %v5324 = vand.u32 %v4735, 4294901760
    %5325 = vmatpush1.msra.mxu0 %v5324
    %5326 = vmatprep.subr.mxu0 0.0
    %v5327 = vand.u32 %v4734, 4294901760
    %5328 = vmatpush1.msra.mxu0 %v5327
    %5329 = vmatprep.subr.mxu0 0.0
    %v5330 = vand.u32 %v4733, 4294901760
    %5331 = vmatpush1.msra.mxu0 %v5330
    %5332 = vmatprep.subr.mxu0 0.0
    %v5333 = vand.u32 %v4732, 4294901760
    %5334 = vmatpush1.msra.mxu0 %v5333
    %5335 = vmatprep.subr.mxu0 0.0
    %v5336 = vand.u32 %v4731, 4294901760
    %5337 = vmatpush1.msra.mxu0 %v5336
    %5338 = vmatprep.subr.mxu0 0.0
    %v5339 = vand.u32 %v4730, 4294901760
    %5340 = vmatpush1.msra.mxu0 %v5339
    %5341 = vmatprep.subr.mxu0 0.0
    %v5342 = vand.u32 %v4729, 4294901760
    %5343 = vmatpush1.msra.mxu0 %v5342
    %5344 = vmatprep.subr.mxu0 0.0
    %v5345 = vand.u32 %v4728, 4294901760
    %5346 = vmatpush1.msra.mxu0 %v5345
    %5347 = vmatprep.subr.mxu0 0.0
    %5348 = vmatpush2.msra.mxu0 0.0
    %5349 = vmatprep.subr.mxu0 0.0
    %5350 = vmatpush2.msra.mxu0 0.0
    %5351 = vmatprep.subr.mxu0 0.0
    %5352 = vmatpush2.msra.mxu0 0.0
    %5353 = vmatprep.subr.mxu0 0.0
    %5354 = vmatpush2.msra.mxu0 0.0
    %5355 = vmatprep.subr.mxu0 0.0
    %5356 = vmatpush2.msra.mxu0 0.0
    %5357 = vmatprep.subr.mxu0 0.0
    %5358 = vmatpush2.msra.mxu0 0.0
    %5359 = vmatprep.subr.mxu0 0.0
    %5360 = vmatpush2.msra.mxu0 0.0
    %5361 = vmatprep.subr.mxu0 0.0
    %5362 = vmatpush2.msra.mxu0 0.0
    %5363 = vmatprep.subr.mxu0 0.0
    %5364 = vmatpush2.msra.mxu0 0.0
    %5365 = vmatprep.subr.mxu0 0.0
    %5366 = vmatpush2.msra.mxu0 0.0
    %5367 = vmatprep.subr.mxu0 0.0
    %5368 = vmatpush2.msra.mxu0 0.0
    %5369 = vmatprep.subr.mxu0 0.0
    %5370 = vmatpush2.msra.mxu0 0.0
    %5371 = vmatprep.subr.mxu0 0.0
    %5372 = vmatpush2.msra.mxu0 0.0
    %5373 = vmatprep.subr.mxu0 0.0
    %5374 = vmatpush2.msra.mxu0 0.0
    %5375 = vmatprep.subr.mxu0 0.0
    %5376 = vmatpush2.msra.mxu0 0.0
    %5377 = vmatprep.subr.mxu0 0.0
    %5378 = vmatpush2.msra.mxu0 0.0
    %5379 = vmatprep.mubr.f32.mxu0 0.0
    %v5380 = vand.u32 %v4727, 4294901760
    %5381 = vmatmul.mubr.f32.gmra.mxu0 %v5380
    %v5382 = vpop.f32.mrf.mxu0
    %v5383 = vadd.f32 %v5296, %v5382
    %v5384 = vpop.f32.mrf.mxu0
    %5385 = vdwg.mxu0
    %v5387 = vrot.slane %v5383, 2
    %v5389 = vadd.f32 %v5383, %v5387
    %v5390 = vmul.f32 %v5389, 0.5
    %v5391 = vld [vmem:[#allocation2 + $0x40] sm:$0xff]
    %v5392 = vld [vmem:[#allocation2 + $0xa0] sm:$0xff]
    %v5393 = vld [vmem:[#allocation2 + $0x100] sm:$0xff]
    %v5394 = vld [vmem:[#allocation2 + $0x160] sm:$0xff]
    %v5395 = vld [vmem:[#allocation2 + $0x1c0] sm:$0xff]
    %v5396 = vld [vmem:[#allocation2 + $0x220] sm:$0xff]
    %v5397 = vld [vmem:[#allocation2 + $0x280] sm:$0xff]
    %v5398 = vld [vmem:[#allocation2 + $0x2e0] sm:$0xff]
    %v5399 = vld [vmem:[#allocation2 + $0x340] sm:$0xff]
    %v5400 = vld [vmem:[#allocation2 + $0x3a0] sm:$0xff]
    %v5401 = vld [vmem:[#allocation2 + $0x400] sm:$0xff]
    %v5402 = vld [vmem:[#allocation2 + $0x460] sm:$0xff]
    %v5403 = vld [vmem:[#allocation2 + $0x4c0] sm:$0xff]
    %v5404 = vld [vmem:[#allocation2 + $0x520] sm:$0xff]
    %v5405 = vld [vmem:[#allocation2 + $0x580] sm:$0xff]
    %v5406 = vld [vmem:[#allocation2 + $0x5e0] sm:$0xff]
    %v5407 = vld [vmem:[#allocation2 + $0x640] ss:$0 sm:$0xff]
    %5408 = vmatprep.subr.mxu0 0.0
    %v5409 = vand.u32 %v5406, 4294901760
    %5410 = vmatpush1.msra.mxu0 %v5409
    %5411 = vmatprep.subr.mxu0 0.0
    %v5412 = vand.u32 %v5405, 4294901760
    %5413 = vmatpush1.msra.mxu0 %v5412
    %5414 = vmatprep.subr.mxu0 0.0
    %v5415 = vand.u32 %v5404, 4294901760
    %5416 = vmatpush1.msra.mxu0 %v5415
    %5417 = vmatprep.subr.mxu0 0.0
    %v5418 = vand.u32 %v5403, 4294901760
    %5419 = vmatpush1.msra.mxu0 %v5418
    %5420 = vmatprep.subr.mxu0 0.0
    %v5421 = vand.u32 %v5402, 4294901760
    %5422 = vmatpush1.msra.mxu0 %v5421
    %5423 = vmatprep.subr.mxu0 0.0
    %v5424 = vand.u32 %v5401, 4294901760
    %5425 = vmatpush1.msra.mxu0 %v5424
    %5426 = vmatprep.subr.mxu0 0.0
    %v5427 = vand.u32 %v5400, 4294901760
    %5428 = vmatpush1.msra.mxu0 %v5427
    %5429 = vmatprep.subr.mxu0 0.0
    %v5430 = vand.u32 %v5399, 4294901760
    %5431 = vmatpush1.msra.mxu0 %v5430
    %5432 = vmatprep.subr.mxu0 0.0
    %v5433 = vand.u32 %v5398, 4294901760
    %5434 = vmatpush1.msra.mxu0 %v5433
    %5435 = vmatprep.subr.mxu0 0.0
    %v5436 = vand.u32 %v5397, 4294901760
    %5437 = vmatpush1.msra.mxu0 %v5436
    %5438 = vmatprep.subr.mxu0 0.0
    %v5439 = vand.u32 %v5396, 4294901760
    %5440 = vmatpush1.msra.mxu0 %v5439
    %5441 = vmatprep.subr.mxu0 0.0
    %v5442 = vand.u32 %v5395, 4294901760
    %5443 = vmatpush1.msra.mxu0 %v5442
    %5444 = vmatprep.subr.mxu0 0.0
    %v5445 = vand.u32 %v5394, 4294901760
    %5446 = vmatpush1.msra.mxu0 %v5445
    %5447 = vmatprep.subr.mxu0 0.0
    %v5448 = vand.u32 %v5393, 4294901760
    %5449 = vmatpush1.msra.mxu0 %v5448
    %5450 = vmatprep.subr.mxu0 0.0
    %v5451 = vand.u32 %v5392, 4294901760
    %5452 = vmatpush1.msra.mxu0 %v5451
    %5453 = vmatprep.subr.mxu0 0.0
    %v5454 = vand.u32 %v5391, 4294901760
    %5455 = vmatpush1.msra.mxu0 %v5454
    %5456 = vmatprep.subr.mxu0 0.0
    %5457 = vmatpush2.msra.mxu0 0.0
    %5458 = vmatprep.subr.mxu0 0.0
    %5459 = vmatpush2.msra.mxu0 0.0
    %5460 = vmatprep.subr.mxu0 0.0
    %5461 = vmatpush2.msra.mxu0 0.0
    %5462 = vmatprep.subr.mxu0 0.0
    %5463 = vmatpush2.msra.mxu0 0.0
    %5464 = vmatprep.subr.mxu0 0.0
    %5465 = vmatpush2.msra.mxu0 0.0
    %5466 = vmatprep.subr.mxu0 0.0
    %5467 = vmatpush2.msra.mxu0 0.0
    %5468 = vmatprep.subr.mxu0 0.0
    %5469 = vmatpush2.msra.mxu0 0.0
    %5470 = vmatprep.subr.mxu0 0.0
    %5471 = vmatpush2.msra.mxu0 0.0
    %5472 = vmatprep.subr.mxu0 0.0
    %5473 = vmatpush2.msra.mxu0 0.0
    %5474 = vmatprep.subr.mxu0 0.0
    %5475 = vmatpush2.msra.mxu0 0.0
    %5476 = vmatprep.subr.mxu0 0.0
    %5477 = vmatpush2.msra.mxu0 0.0
    %5478 = vmatprep.subr.mxu0 0.0
    %5479 = vmatpush2.msra.mxu0 0.0
    %5480 = vmatprep.subr.mxu0 0.0
    %5481 = vmatpush2.msra.mxu0 0.0
    %5482 = vmatprep.subr.mxu0 0.0
    %5483 = vmatpush2.msra.mxu0 0.0
    %5484 = vmatprep.subr.mxu0 0.0
    %5485 = vmatpush2.msra.mxu0 0.0
    %5486 = vmatprep.subr.mxu0 0.0
    %5487 = vmatpush2.msra.mxu0 0.0
    %5488 = vmatprep.mubr.f32.mxu0 0.0
    %v5489 = vand.u32 %v2750, 4294901760
    %v5490 = vsub.f32 %v2750, %v5489
    %v5491 = vand.u32 %v5490, 4294901760
    %v5492 = vsub.f32 %v5490, %v5491
    %v5493 = vand.u32 %v5492, 4294901760
    %5494 = vmatmul.mubr.f32.gmra.mxu0 %v5493
    %v5495 = vpop.f32.mrf.mxu0
    %v5496 = vadd.f32 %v5407, %v5495
    %v5497 = vpop.f32.mrf.mxu0
    %5498 = vdwg.mxu0
    %5499 = vmatprep.subr.mxu0 0.0
    %v5500 = vand.u32 %v5406, 4294901760
    %v5501 = vsub.f32 %v5406, %v5500
    %v5502 = vand.u32 %v5501, 4294901760
    %v5503 = vsub.f32 %v5501, %v5502
    %v5504 = vand.u32 %v5503, 4294901760
    %5505 = vmatpush1.msra.mxu0 %v5504
    %5506 = vmatprep.subr.mxu0 0.0
    %v5507 = vand.u32 %v5405, 4294901760
    %v5508 = vsub.f32 %v5405, %v5507
    %v5509 = vand.u32 %v5508, 4294901760
    %v5510 = vsub.f32 %v5508, %v5509
    %v5511 = vand.u32 %v5510, 4294901760
    %5512 = vmatpush1.msra.mxu0 %v5511
    %5513 = vmatprep.subr.mxu0 0.0
    %v5514 = vand.u32 %v5404, 4294901760
    %v5515 = vsub.f32 %v5404, %v5514
    %v5516 = vand.u32 %v5515, 4294901760
    %v5517 = vsub.f32 %v5515, %v5516
    %v5518 = vand.u32 %v5517, 4294901760
    %5519 = vmatpush1.msra.mxu0 %v5518
    %5520 = vmatprep.subr.mxu0 0.0
    %v5521 = vand.u32 %v5403, 4294901760
    %v5522 = vsub.f32 %v5403, %v5521
    %v5523 = vand.u32 %v5522, 4294901760
    %v5524 = vsub.f32 %v5522, %v5523
    %v5525 = vand.u32 %v5524, 4294901760
    %5526 = vmatpush1.msra.mxu0 %v5525
    %5527 = vmatprep.subr.mxu0 0.0
    %v5528 = vand.u32 %v5402, 4294901760
    %v5529 = vsub.f32 %v5402, %v5528
    %v5530 = vand.u32 %v5529, 4294901760
    %v5531 = vsub.f32 %v5529, %v5530
    %v5532 = vand.u32 %v5531, 4294901760
    %5533 = vmatpush1.msra.mxu0 %v5532
    %5534 = vmatprep.subr.mxu0 0.0
    %v5535 = vand.u32 %v5401, 4294901760
    %v5536 = vsub.f32 %v5401, %v5535
    %v5537 = vand.u32 %v5536, 4294901760
    %v5538 = vsub.f32 %v5536, %v5537
    %v5539 = vand.u32 %v5538, 4294901760
    %5540 = vmatpush1.msra.mxu0 %v5539
    %5541 = vmatprep.subr.mxu0 0.0
    %v5542 = vand.u32 %v5400, 4294901760
    %v5543 = vsub.f32 %v5400, %v5542
    %v5544 = vand.u32 %v5543, 4294901760
    %v5545 = vsub.f32 %v5543, %v5544
    %v5546 = vand.u32 %v5545, 4294901760
    %5547 = vmatpush1.msra.mxu0 %v5546
    %5548 = vmatprep.subr.mxu0 0.0
    %v5549 = vand.u32 %v5399, 4294901760
    %v5550 = vsub.f32 %v5399, %v5549
    %v5551 = vand.u32 %v5550, 4294901760
    %v5552 = vsub.f32 %v5550, %v5551
    %v5553 = vand.u32 %v5552, 4294901760
    %5554 = vmatpush1.msra.mxu0 %v5553
    %5555 = vmatprep.subr.mxu0 0.0
    %v5556 = vand.u32 %v5398, 4294901760
    %v5557 = vsub.f32 %v5398, %v5556
    %v5558 = vand.u32 %v5557, 4294901760
    %v5559 = vsub.f32 %v5557, %v5558
    %v5560 = vand.u32 %v5559, 4294901760
    %5561 = vmatpush1.msra.mxu0 %v5560
    %5562 = vmatprep.subr.mxu0 0.0
    %v5563 = vand.u32 %v5397, 4294901760
    %v5564 = vsub.f32 %v5397, %v5563
    %v5565 = vand.u32 %v5564, 4294901760
    %v5566 = vsub.f32 %v5564, %v5565
    %v5567 = vand.u32 %v5566, 4294901760
    %5568 = vmatpush1.msra.mxu0 %v5567
    %5569 = vmatprep.subr.mxu0 0.0
    %v5570 = vand.u32 %v5396, 4294901760
    %v5571 = vsub.f32 %v5396, %v5570
    %v5572 = vand.u32 %v5571, 4294901760
    %v5573 = vsub.f32 %v5571, %v5572
    %v5574 = vand.u32 %v5573, 4294901760
    %5575 = vmatpush1.msra.mxu0 %v5574
    %5576 = vmatprep.subr.mxu0 0.0
    %v5577 = vand.u32 %v5395, 4294901760
    %v5578 = vsub.f32 %v5395, %v5577
    %v5579 = vand.u32 %v5578, 4294901760
    %v5580 = vsub.f32 %v5578, %v5579
    %v5581 = vand.u32 %v5580, 4294901760
    %5582 = vmatpush1.msra.mxu0 %v5581
    %5583 = vmatprep.subr.mxu0 0.0
    %v5584 = vand.u32 %v5394, 4294901760
    %v5585 = vsub.f32 %v5394, %v5584
    %v5586 = vand.u32 %v5585, 4294901760
    %v5587 = vsub.f32 %v5585, %v5586
    %v5588 = vand.u32 %v5587, 4294901760
    %5589 = vmatpush1.msra.mxu0 %v5588
    %5590 = vmatprep.subr.mxu0 0.0
    %v5591 = vand.u32 %v5393, 4294901760
    %v5592 = vsub.f32 %v5393, %v5591
    %v5593 = vand.u32 %v5592, 4294901760
    %v5594 = vsub.f32 %v5592, %v5593
    %v5595 = vand.u32 %v5594, 4294901760
    %5596 = vmatpush1.msra.mxu0 %v5595
    %5597 = vmatprep.subr.mxu0 0.0
    %v5598 = vand.u32 %v5392, 4294901760
    %v5599 = vsub.f32 %v5392, %v5598
    %v5600 = vand.u32 %v5599, 4294901760
    %v5601 = vsub.f32 %v5599, %v5600
    %v5602 = vand.u32 %v5601, 4294901760
    %5603 = vmatpush1.msra.mxu0 %v5602
    %5604 = vmatprep.subr.mxu0 0.0
    %v5605 = vand.u32 %v5391, 4294901760
    %v5606 = vsub.f32 %v5391, %v5605
    %v5607 = vand.u32 %v5606, 4294901760
    %v5608 = vsub.f32 %v5606, %v5607
    %v5609 = vand.u32 %v5608, 4294901760
    %5610 = vmatpush1.msra.mxu0 %v5609
    %5611 = vmatprep.subr.mxu0 0.0
    %5612 = vmatpush2.msra.mxu0 0.0
    %5613 = vmatprep.subr.mxu0 0.0
    %5614 = vmatpush2.msra.mxu0 0.0
    %5615 = vmatprep.subr.mxu0 0.0
    %5616 = vmatpush2.msra.mxu0 0.0
    %5617 = vmatprep.subr.mxu0 0.0
    %5618 = vmatpush2.msra.mxu0 0.0
    %5619 = vmatprep.subr.mxu0 0.0
    %5620 = vmatpush2.msra.mxu0 0.0
    %5621 = vmatprep.subr.mxu0 0.0
    %5622 = vmatpush2.msra.mxu0 0.0
    %5623 = vmatprep.subr.mxu0 0.0
    %5624 = vmatpush2.msra.mxu0 0.0
    %5625 = vmatprep.subr.mxu0 0.0
    %5626 = vmatpush2.msra.mxu0 0.0
    %5627 = vmatprep.subr.mxu0 0.0
    %5628 = vmatpush2.msra.mxu0 0.0
    %5629 = vmatprep.subr.mxu0 0.0
    %5630 = vmatpush2.msra.mxu0 0.0
    %5631 = vmatprep.subr.mxu0 0.0
    %5632 = vmatpush2.msra.mxu0 0.0
    %5633 = vmatprep.subr.mxu0 0.0
    %5634 = vmatpush2.msra.mxu0 0.0
    %5635 = vmatprep.subr.mxu0 0.0
    %5636 = vmatpush2.msra.mxu0 0.0
    %5637 = vmatprep.subr.mxu0 0.0
    %5638 = vmatpush2.msra.mxu0 0.0
    %5639 = vmatprep.subr.mxu0 0.0
    %5640 = vmatpush2.msra.mxu0 0.0
    %5641 = vmatprep.subr.mxu0 0.0
    %5642 = vmatpush2.msra.mxu0 0.0
    %5643 = vmatprep.mubr.f32.mxu0 0.0
    %v5644 = vand.u32 %v2750, 4294901760
    %5645 = vmatmul.mubr.f32.gmra.mxu0 %v5644
    %v5646 = vpop.f32.mrf.mxu0
    %v5647 = vadd.f32 %v5496, %v5646
    %v5648 = vpop.f32.mrf.mxu0
    %5649 = vdwg.mxu0
    %5650 = vmatprep.subr.mxu0 0.0
    %v5651 = vand.u32 %v5406, 4294901760
    %v5652 = vsub.f32 %v5406, %v5651
    %5653 = vmatpush1.msra.mxu0 %v5652
    %5654 = vmatprep.subr.mxu0 0.0
    %v5655 = vand.u32 %v5405, 4294901760
    %v5656 = vsub.f32 %v5405, %v5655
    %5657 = vmatpush1.msra.mxu0 %v5656
    %5658 = vmatprep.subr.mxu0 0.0
    %v5659 = vand.u32 %v5404, 4294901760
    %v5660 = vsub.f32 %v5404, %v5659
    %5661 = vmatpush1.msra.mxu0 %v5660
    %5662 = vmatprep.subr.mxu0 0.0
    %v5663 = vand.u32 %v5403, 4294901760
    %v5664 = vsub.f32 %v5403, %v5663
    %5665 = vmatpush1.msra.mxu0 %v5664
    %5666 = vmatprep.subr.mxu0 0.0
    %v5667 = vand.u32 %v5402, 4294901760
    %v5668 = vsub.f32 %v5402, %v5667
    %5669 = vmatpush1.msra.mxu0 %v5668
    %5670 = vmatprep.subr.mxu0 0.0
    %v5671 = vand.u32 %v5401, 4294901760
    %v5672 = vsub.f32 %v5401, %v5671
    %5673 = vmatpush1.msra.mxu0 %v5672
    %5674 = vmatprep.subr.mxu0 0.0
    %v5675 = vand.u32 %v5400, 4294901760
    %v5676 = vsub.f32 %v5400, %v5675
    %5677 = vmatpush1.msra.mxu0 %v5676
    %5678 = vmatprep.subr.mxu0 0.0
    %v5679 = vand.u32 %v5399, 4294901760
    %v5680 = vsub.f32 %v5399, %v5679
    %5681 = vmatpush1.msra.mxu0 %v5680
    %5682 = vmatprep.subr.mxu0 0.0
    %v5683 = vand.u32 %v5398, 4294901760
    %v5684 = vsub.f32 %v5398, %v5683
    %5685 = vmatpush1.msra.mxu0 %v5684
    %5686 = vmatprep.subr.mxu0 0.0
    %v5687 = vand.u32 %v5397, 4294901760
    %v5688 = vsub.f32 %v5397, %v5687
    %5689 = vmatpush1.msra.mxu0 %v5688
    %5690 = vmatprep.subr.mxu0 0.0
    %v5691 = vand.u32 %v5396, 4294901760
    %v5692 = vsub.f32 %v5396, %v5691
    %5693 = vmatpush1.msra.mxu0 %v5692
    %5694 = vmatprep.subr.mxu0 0.0
    %v5695 = vand.u32 %v5395, 4294901760
    %v5696 = vsub.f32 %v5395, %v5695
    %5697 = vmatpush1.msra.mxu0 %v5696
    %5698 = vmatprep.subr.mxu0 0.0
    %v5699 = vand.u32 %v5394, 4294901760
    %v5700 = vsub.f32 %v5394, %v5699
    %5701 = vmatpush1.msra.mxu0 %v5700
    %5702 = vmatprep.subr.mxu0 0.0
    %v5703 = vand.u32 %v5393, 4294901760
    %v5704 = vsub.f32 %v5393, %v5703
    %5705 = vmatpush1.msra.mxu0 %v5704
    %5706 = vmatprep.subr.mxu0 0.0
    %v5707 = vand.u32 %v5392, 4294901760
    %v5708 = vsub.f32 %v5392, %v5707
    %5709 = vmatpush1.msra.mxu0 %v5708
    %5710 = vmatprep.subr.mxu0 0.0
    %v5711 = vand.u32 %v5391, 4294901760
    %v5712 = vsub.f32 %v5391, %v5711
    %5713 = vmatpush1.msra.mxu0 %v5712
    %5714 = vmatprep.subr.mxu0 0.0
    %5715 = vmatpush2.msra.mxu0 0.0
    %5716 = vmatprep.subr.mxu0 0.0
    %5717 = vmatpush2.msra.mxu0 0.0
    %5718 = vmatprep.subr.mxu0 0.0
    %5719 = vmatpush2.msra.mxu0 0.0
    %5720 = vmatprep.subr.mxu0 0.0
    %5721 = vmatpush2.msra.mxu0 0.0
    %5722 = vmatprep.subr.mxu0 0.0
    %5723 = vmatpush2.msra.mxu0 0.0
    %5724 = vmatprep.subr.mxu0 0.0
    %5725 = vmatpush2.msra.mxu0 0.0
    %5726 = vmatprep.subr.mxu0 0.0
    %5727 = vmatpush2.msra.mxu0 0.0
    %5728 = vmatprep.subr.mxu0 0.0
    %5729 = vmatpush2.msra.mxu0 0.0
    %5730 = vmatprep.subr.mxu0 0.0
    %5731 = vmatpush2.msra.mxu0 0.0
    %5732 = vmatprep.subr.mxu0 0.0
    %5733 = vmatpush2.msra.mxu0 0.0
    %5734 = vmatprep.subr.mxu0 0.0
    %5735 = vmatpush2.msra.mxu0 0.0
    %5736 = vmatprep.subr.mxu0 0.0
    %5737 = vmatpush2.msra.mxu0 0.0
    %5738 = vmatprep.subr.mxu0 0.0
    %5739 = vmatpush2.msra.mxu0 0.0
    %5740 = vmatprep.subr.mxu0 0.0
    %5741 = vmatpush2.msra.mxu0 0.0
    %5742 = vmatprep.subr.mxu0 0.0
    %5743 = vmatpush2.msra.mxu0 0.0
    %5744 = vmatprep.subr.mxu0 0.0
    %5745 = vmatpush2.msra.mxu0 0.0
    %5746 = vmatprep.mubr.f32.mxu0 0.0
    %v5747 = vand.u32 %v2750, 4294901760
    %v5748 = vsub.f32 %v2750, %v5747
    %5749 = vmatmul.mubr.f32.gmra.mxu0 %v5748
    %v5750 = vpop.f32.mrf.mxu0
    %v5751 = vadd.f32 %v5647, %v5750
    %v5752 = vpop.f32.mrf.mxu0
    %5753 = vdwg.mxu0
    %5754 = vmatprep.subr.mxu0 0.0
    %v5755 = vand.u32 %v5406, 4294901760
    %5756 = vmatpush1.msra.mxu0 %v5755
    %5757 = vmatprep.subr.mxu0 0.0
    %v5758 = vand.u32 %v5405, 4294901760
    %5759 = vmatpush1.msra.mxu0 %v5758
    %5760 = vmatprep.subr.mxu0 0.0
    %v5761 = vand.u32 %v5404, 4294901760
    %5762 = vmatpush1.msra.mxu0 %v5761
    %5763 = vmatprep.subr.mxu0 0.0
    %v5764 = vand.u32 %v5403, 4294901760
    %5765 = vmatpush1.msra.mxu0 %v5764
    %5766 = vmatprep.subr.mxu0 0.0
    %v5767 = vand.u32 %v5402, 4294901760
    %5768 = vmatpush1.msra.mxu0 %v5767
    %5769 = vmatprep.subr.mxu0 0.0
    %v5770 = vand.u32 %v5401, 4294901760
    %5771 = vmatpush1.msra.mxu0 %v5770
    %5772 = vmatprep.subr.mxu0 0.0
    %v5773 = vand.u32 %v5400, 4294901760
    %5774 = vmatpush1.msra.mxu0 %v5773
    %5775 = vmatprep.subr.mxu0 0.0
    %v5776 = vand.u32 %v5399, 4294901760
    %5777 = vmatpush1.msra.mxu0 %v5776
    %5778 = vmatprep.subr.mxu0 0.0
    %v5779 = vand.u32 %v5398, 4294901760
    %5780 = vmatpush1.msra.mxu0 %v5779
    %5781 = vmatprep.subr.mxu0 0.0
    %v5782 = vand.u32 %v5397, 4294901760
    %5783 = vmatpush1.msra.mxu0 %v5782
    %5784 = vmatprep.subr.mxu0 0.0
    %v5785 = vand.u32 %v5396, 4294901760
    %5786 = vmatpush1.msra.mxu0 %v5785
    %5787 = vmatprep.subr.mxu0 0.0
    %v5788 = vand.u32 %v5395, 4294901760
    %5789 = vmatpush1.msra.mxu0 %v5788
    %5790 = vmatprep.subr.mxu0 0.0
    %v5791 = vand.u32 %v5394, 4294901760
    %5792 = vmatpush1.msra.mxu0 %v5791
    %5793 = vmatprep.subr.mxu0 0.0
    %v5794 = vand.u32 %v5393, 4294901760
    %5795 = vmatpush1.msra.mxu0 %v5794
    %5796 = vmatprep.subr.mxu0 0.0
    %v5797 = vand.u32 %v5392, 4294901760
    %5798 = vmatpush1.msra.mxu0 %v5797
    %5799 = vmatprep.subr.mxu0 0.0
    %v5800 = vand.u32 %v5391, 4294901760
    %5801 = vmatpush1.msra.mxu0 %v5800
    %5802 = vmatprep.subr.mxu0 0.0
    %5803 = vmatpush2.msra.mxu0 0.0
    %5804 = vmatprep.subr.mxu0 0.0
    %5805 = vmatpush2.msra.mxu0 0.0
    %5806 = vmatprep.subr.mxu0 0.0
    %5807 = vmatpush2.msra.mxu0 0.0
    %5808 = vmatprep.subr.mxu0 0.0
    %5809 = vmatpush2.msra.mxu0 0.0
    %5810 = vmatprep.subr.mxu0 0.0
    %5811 = vmatpush2.msra.mxu0 0.0
    %5812 = vmatprep.subr.mxu0 0.0
    %5813 = vmatpush2.msra.mxu0 0.0
    %5814 = vmatprep.subr.mxu0 0.0
    %5815 = vmatpush2.msra.mxu0 0.0
    %5816 = vmatprep.subr.mxu0 0.0
    %5817 = vmatpush2.msra.mxu0 0.0
    %5818 = vmatprep.subr.mxu0 0.0
    %5819 = vmatpush2.msra.mxu0 0.0
    %5820 = vmatprep.subr.mxu0 0.0
    %5821 = vmatpush2.msra.mxu0 0.0
    %5822 = vmatprep.subr.mxu0 0.0
    %5823 = vmatpush2.msra.mxu0 0.0
    %5824 = vmatprep.subr.mxu0 0.0
    %5825 = vmatpush2.msra.mxu0 0.0
    %5826 = vmatprep.subr.mxu0 0.0
    %5827 = vmatpush2.msra.mxu0 0.0
    %5828 = vmatprep.subr.mxu0 0.0
    %5829 = vmatpush2.msra.mxu0 0.0
    %5830 = vmatprep.subr.mxu0 0.0
    %5831 = vmatpush2.msra.mxu0 0.0
    %5832 = vmatprep.subr.mxu0 0.0
    %5833 = vmatpush2.msra.mxu0 0.0
    %5834 = vmatprep.mubr.f32.mxu0 0.0
    %v5835 = vand.u32 %v2750, 4294901760
    %v5836 = vsub.f32 %v2750, %v5835
    %v5837 = vand.u32 %v5836, 4294901760
    %5838 = vmatmul.mubr.f32.gmra.mxu0 %v5837
    %v5839 = vpop.f32.mrf.mxu0
    %v5840 = vadd.f32 %v5751, %v5839
    %v5841 = vpop.f32.mrf.mxu0
    %5842 = vdwg.mxu0
    %5843 = vmatprep.subr.mxu0 0.0
    %v5844 = vand.u32 %v5406, 4294901760
    %v5845 = vsub.f32 %v5406, %v5844
    %v5846 = vand.u32 %v5845, 4294901760
    %5847 = vmatpush1.msra.mxu0 %v5846
    %5848 = vmatprep.subr.mxu0 0.0
    %v5849 = vand.u32 %v5405, 4294901760
    %v5850 = vsub.f32 %v5405, %v5849
    %v5851 = vand.u32 %v5850, 4294901760
    %5852 = vmatpush1.msra.mxu0 %v5851
    %5853 = vmatprep.subr.mxu0 0.0
    %v5854 = vand.u32 %v5404, 4294901760
    %v5855 = vsub.f32 %v5404, %v5854
    %v5856 = vand.u32 %v5855, 4294901760
    %5857 = vmatpush1.msra.mxu0 %v5856
    %5858 = vmatprep.subr.mxu0 0.0
    %v5859 = vand.u32 %v5403, 4294901760
    %v5860 = vsub.f32 %v5403, %v5859
    %v5861 = vand.u32 %v5860, 4294901760
    %5862 = vmatpush1.msra.mxu0 %v5861
    %5863 = vmatprep.subr.mxu0 0.0
    %v5864 = vand.u32 %v5402, 4294901760
    %v5865 = vsub.f32 %v5402, %v5864
    %v5866 = vand.u32 %v5865, 4294901760
    %5867 = vmatpush1.msra.mxu0 %v5866
    %5868 = vmatprep.subr.mxu0 0.0
    %v5869 = vand.u32 %v5401, 4294901760
    %v5870 = vsub.f32 %v5401, %v5869
    %v5871 = vand.u32 %v5870, 4294901760
    %5872 = vmatpush1.msra.mxu0 %v5871
    %5873 = vmatprep.subr.mxu0 0.0
    %v5874 = vand.u32 %v5400, 4294901760
    %v5875 = vsub.f32 %v5400, %v5874
    %v5876 = vand.u32 %v5875, 4294901760
    %5877 = vmatpush1.msra.mxu0 %v5876
    %5878 = vmatprep.subr.mxu0 0.0
    %v5879 = vand.u32 %v5399, 4294901760
    %v5880 = vsub.f32 %v5399, %v5879
    %v5881 = vand.u32 %v5880, 4294901760
    %5882 = vmatpush1.msra.mxu0 %v5881
    %5883 = vmatprep.subr.mxu0 0.0
    %v5884 = vand.u32 %v5398, 4294901760
    %v5885 = vsub.f32 %v5398, %v5884
    %v5886 = vand.u32 %v5885, 4294901760
    %5887 = vmatpush1.msra.mxu0 %v5886
    %5888 = vmatprep.subr.mxu0 0.0
    %v5889 = vand.u32 %v5397, 4294901760
    %v5890 = vsub.f32 %v5397, %v5889
    %v5891 = vand.u32 %v5890, 4294901760
    %5892 = vmatpush1.msra.mxu0 %v5891
    %5893 = vmatprep.subr.mxu0 0.0
    %v5894 = vand.u32 %v5396, 4294901760
    %v5895 = vsub.f32 %v5396, %v5894
    %v5896 = vand.u32 %v5895, 4294901760
    %5897 = vmatpush1.msra.mxu0 %v5896
    %5898 = vmatprep.subr.mxu0 0.0
    %v5899 = vand.u32 %v5395, 4294901760
    %v5900 = vsub.f32 %v5395, %v5899
    %v5901 = vand.u32 %v5900, 4294901760
    %5902 = vmatpush1.msra.mxu0 %v5901
    %5903 = vmatprep.subr.mxu0 0.0
    %v5904 = vand.u32 %v5394, 4294901760
    %v5905 = vsub.f32 %v5394, %v5904
    %v5906 = vand.u32 %v5905, 4294901760
    %5907 = vmatpush1.msra.mxu0 %v5906
    %5908 = vmatprep.subr.mxu0 0.0
    %v5909 = vand.u32 %v5393, 4294901760
    %v5910 = vsub.f32 %v5393, %v5909
    %v5911 = vand.u32 %v5910, 4294901760
    %5912 = vmatpush1.msra.mxu0 %v5911
    %5913 = vmatprep.subr.mxu0 0.0
    %v5914 = vand.u32 %v5392, 4294901760
    %v5915 = vsub.f32 %v5392, %v5914
    %v5916 = vand.u32 %v5915, 4294901760
    %5917 = vmatpush1.msra.mxu0 %v5916
    %5918 = vmatprep.subr.mxu0 0.0
    %v5919 = vand.u32 %v5391, 4294901760
    %v5920 = vsub.f32 %v5391, %v5919
    %v5921 = vand.u32 %v5920, 4294901760
    %5922 = vmatpush1.msra.mxu0 %v5921
    %5923 = vmatprep.subr.mxu0 0.0
    %5924 = vmatpush2.msra.mxu0 0.0
    %5925 = vmatprep.subr.mxu0 0.0
    %5926 = vmatpush2.msra.mxu0 0.0
    %5927 = vmatprep.subr.mxu0 0.0
    %5928 = vmatpush2.msra.mxu0 0.0
    %5929 = vmatprep.subr.mxu0 0.0
    %5930 = vmatpush2.msra.mxu0 0.0
    %5931 = vmatprep.subr.mxu0 0.0
    %5932 = vmatpush2.msra.mxu0 0.0
    %5933 = vmatprep.subr.mxu0 0.0
    %5934 = vmatpush2.msra.mxu0 0.0
    %5935 = vmatprep.subr.mxu0 0.0
    %5936 = vmatpush2.msra.mxu0 0.0
    %5937 = vmatprep.subr.mxu0 0.0
    %5938 = vmatpush2.msra.mxu0 0.0
    %5939 = vmatprep.subr.mxu0 0.0
    %5940 = vmatpush2.msra.mxu0 0.0
    %5941 = vmatprep.subr.mxu0 0.0
    %5942 = vmatpush2.msra.mxu0 0.0
    %5943 = vmatprep.subr.mxu0 0.0
    %5944 = vmatpush2.msra.mxu0 0.0
    %5945 = vmatprep.subr.mxu0 0.0
    %5946 = vmatpush2.msra.mxu0 0.0
    %5947 = vmatprep.subr.mxu0 0.0
    %5948 = vmatpush2.msra.mxu0 0.0
    %5949 = vmatprep.subr.mxu0 0.0
    %5950 = vmatpush2.msra.mxu0 0.0
    %5951 = vmatprep.subr.mxu0 0.0
    %5952 = vmatpush2.msra.mxu0 0.0
    %5953 = vmatprep.subr.mxu0 0.0
    %5954 = vmatpush2.msra.mxu0 0.0
    %5955 = vmatprep.mubr.f32.mxu0 0.0
    %v5956 = vand.u32 %v2750, 4294901760
    %5957 = vmatmul.mubr.f32.gmra.mxu0 %v5956
    %v5958 = vpop.f32.mrf.mxu0
    %v5959 = vadd.f32 %v5840, %v5958
    %v5960 = vpop.f32.mrf.mxu0
    %5961 = vdwg.mxu0
    %5962 = vmatprep.subr.mxu0 0.0
    %v5963 = vand.u32 %v5406, 4294901760
    %5964 = vmatpush1.msra.mxu0 %v5963
    %5965 = vmatprep.subr.mxu0 0.0
    %v5966 = vand.u32 %v5405, 4294901760
    %5967 = vmatpush1.msra.mxu0 %v5966
    %5968 = vmatprep.subr.mxu0 0.0
    %v5969 = vand.u32 %v5404, 4294901760
    %5970 = vmatpush1.msra.mxu0 %v5969
    %5971 = vmatprep.subr.mxu0 0.0
    %v5972 = vand.u32 %v5403, 4294901760
    %5973 = vmatpush1.msra.mxu0 %v5972
    %5974 = vmatprep.subr.mxu0 0.0
    %v5975 = vand.u32 %v5402, 4294901760
    %5976 = vmatpush1.msra.mxu0 %v5975
    %5977 = vmatprep.subr.mxu0 0.0
    %v5978 = vand.u32 %v5401, 4294901760
    %5979 = vmatpush1.msra.mxu0 %v5978
    %5980 = vmatprep.subr.mxu0 0.0
    %v5981 = vand.u32 %v5400, 4294901760
    %5982 = vmatpush1.msra.mxu0 %v5981
    %5983 = vmatprep.subr.mxu0 0.0
    %v5984 = vand.u32 %v5399, 4294901760
    %5985 = vmatpush1.msra.mxu0 %v5984
    %5986 = vmatprep.subr.mxu0 0.0
    %v5987 = vand.u32 %v5398, 4294901760
    %5988 = vmatpush1.msra.mxu0 %v5987
    %5989 = vmatprep.subr.mxu0 0.0
    %v5990 = vand.u32 %v5397, 4294901760
    %5991 = vmatpush1.msra.mxu0 %v5990
    %5992 = vmatprep.subr.mxu0 0.0
    %v5993 = vand.u32 %v5396, 4294901760
    %5994 = vmatpush1.msra.mxu0 %v5993
    %5995 = vmatprep.subr.mxu0 0.0
    %v5996 = vand.u32 %v5395, 4294901760
    %5997 = vmatpush1.msra.mxu0 %v5996
    %5998 = vmatprep.subr.mxu0 0.0
    %v5999 = vand.u32 %v5394, 4294901760
    %6000 = vmatpush1.msra.mxu0 %v5999
    %6001 = vmatprep.subr.mxu0 0.0
    %v6002 = vand.u32 %v5393, 4294901760
    %6003 = vmatpush1.msra.mxu0 %v6002
    %6004 = vmatprep.subr.mxu0 0.0
    %v6005 = vand.u32 %v5392, 4294901760
    %6006 = vmatpush1.msra.mxu0 %v6005
    %6007 = vmatprep.subr.mxu0 0.0
    %v6008 = vand.u32 %v5391, 4294901760
    %6009 = vmatpush1.msra.mxu0 %v6008
    %6010 = vmatprep.subr.mxu0 0.0
    %6011 = vmatpush2.msra.mxu0 0.0
    %6012 = vmatprep.subr.mxu0 0.0
    %6013 = vmatpush2.msra.mxu0 0.0
    %6014 = vmatprep.subr.mxu0 0.0
    %6015 = vmatpush2.msra.mxu0 0.0
    %6016 = vmatprep.subr.mxu0 0.0
    %6017 = vmatpush2.msra.mxu0 0.0
    %6018 = vmatprep.subr.mxu0 0.0
    %6019 = vmatpush2.msra.mxu0 0.0
    %6020 = vmatprep.subr.mxu0 0.0
    %6021 = vmatpush2.msra.mxu0 0.0
    %6022 = vmatprep.subr.mxu0 0.0
    %6023 = vmatpush2.msra.mxu0 0.0
    %6024 = vmatprep.subr.mxu0 0.0
    %6025 = vmatpush2.msra.mxu0 0.0
    %6026 = vmatprep.subr.mxu0 0.0
    %6027 = vmatpush2.msra.mxu0 0.0
    %6028 = vmatprep.subr.mxu0 0.0
    %6029 = vmatpush2.msra.mxu0 0.0
    %6030 = vmatprep.subr.mxu0 0.0
    %6031 = vmatpush2.msra.mxu0 0.0
    %6032 = vmatprep.subr.mxu0 0.0
    %6033 = vmatpush2.msra.mxu0 0.0
    %6034 = vmatprep.subr.mxu0 0.0
    %6035 = vmatpush2.msra.mxu0 0.0
    %6036 = vmatprep.subr.mxu0 0.0
    %6037 = vmatpush2.msra.mxu0 0.0
    %6038 = vmatprep.subr.mxu0 0.0
    %6039 = vmatpush2.msra.mxu0 0.0
    %6040 = vmatprep.subr.mxu0 0.0
    %6041 = vmatpush2.msra.mxu0 0.0
    %6042 = vmatprep.mubr.f32.mxu0 0.0
    %v6043 = vand.u32 %v2750, 4294901760
    %6044 = vmatmul.mubr.f32.gmra.mxu0 %v6043
    %v6045 = vpop.f32.mrf.mxu0
    %v6046 = vadd.f32 %v5959, %v6045
    %v6047 = vpop.f32.mrf.mxu0
    %6048 = vdwg.mxu0
    %v6049 = vmax.f32 %v6046, 0.0
    %v6050 = vld [vmem:[#allocation2 + $0x48] sm:$0xff]
    %v6051 = vld [vmem:[#allocation2 + $0xa8] sm:$0xff]
    %v6052 = vld [vmem:[#allocation2 + $0x108] sm:$0xff]
    %v6053 = vld [vmem:[#allocation2 + $0x168] sm:$0xff]
    %v6054 = vld [vmem:[#allocation2 + $0x1c8] sm:$0xff]
    %v6055 = vld [vmem:[#allocation2 + $0x228] sm:$0xff]
    %v6056 = vld [vmem:[#allocation2 + $0x288] sm:$0xff]
    %v6057 = vld [vmem:[#allocation2 + $0x2e8] sm:$0xff]
    %v6058 = vld [vmem:[#allocation2 + $0x348] sm:$0xff]
    %v6059 = vld [vmem:[#allocation2 + $0x3a8] sm:$0xff]
    %v6060 = vld [vmem:[#allocation2 + $0x408] sm:$0xff]
    %v6061 = vld [vmem:[#allocation2 + $0x468] sm:$0xff]
    %v6062 = vld [vmem:[#allocation2 + $0x4c8] sm:$0xff]
    %v6063 = vld [vmem:[#allocation2 + $0x528] sm:$0xff]
    %v6064 = vld [vmem:[#allocation2 + $0x588] sm:$0xff]
    %v6065 = vld [vmem:[#allocation2 + $0x5e8] sm:$0xff]
    %v6066 = vld [vmem:[#allocation2 + $0x648] ss:$0 sm:$0xff]
    %6067 = vmatprep.subr.mxu0 0.0
    %v6068 = vand.u32 %v6065, 4294901760
    %6069 = vmatpush1.msra.mxu0 %v6068
    %6070 = vmatprep.subr.mxu0 0.0
    %v6071 = vand.u32 %v6064, 4294901760
    %6072 = vmatpush1.msra.mxu0 %v6071
    %6073 = vmatprep.subr.mxu0 0.0
    %v6074 = vand.u32 %v6063, 4294901760
    %6075 = vmatpush1.msra.mxu0 %v6074
    %6076 = vmatprep.subr.mxu0 0.0
    %v6077 = vand.u32 %v6062, 4294901760
    %6078 = vmatpush1.msra.mxu0 %v6077
    %6079 = vmatprep.subr.mxu0 0.0
    %v6080 = vand.u32 %v6061, 4294901760
    %6081 = vmatpush1.msra.mxu0 %v6080
    %6082 = vmatprep.subr.mxu0 0.0
    %v6083 = vand.u32 %v6060, 4294901760
    %6084 = vmatpush1.msra.mxu0 %v6083
    %6085 = vmatprep.subr.mxu0 0.0
    %v6086 = vand.u32 %v6059, 4294901760
    %6087 = vmatpush1.msra.mxu0 %v6086
    %6088 = vmatprep.subr.mxu0 0.0
    %v6089 = vand.u32 %v6058, 4294901760
    %6090 = vmatpush1.msra.mxu0 %v6089
    %6091 = vmatprep.subr.mxu0 0.0
    %v6092 = vand.u32 %v6057, 4294901760
    %6093 = vmatpush1.msra.mxu0 %v6092
    %6094 = vmatprep.subr.mxu0 0.0
    %v6095 = vand.u32 %v6056, 4294901760
    %6096 = vmatpush1.msra.mxu0 %v6095
    %6097 = vmatprep.subr.mxu0 0.0
    %v6098 = vand.u32 %v6055, 4294901760
    %6099 = vmatpush1.msra.mxu0 %v6098
    %6100 = vmatprep.subr.mxu0 0.0
    %v6101 = vand.u32 %v6054, 4294901760
    %6102 = vmatpush1.msra.mxu0 %v6101
    %6103 = vmatprep.subr.mxu0 0.0
    %v6104 = vand.u32 %v6053, 4294901760
    %6105 = vmatpush1.msra.mxu0 %v6104
    %6106 = vmatprep.subr.mxu0 0.0
    %v6107 = vand.u32 %v6052, 4294901760
    %6108 = vmatpush1.msra.mxu0 %v6107
    %6109 = vmatprep.subr.mxu0 0.0
    %v6110 = vand.u32 %v6051, 4294901760
    %6111 = vmatpush1.msra.mxu0 %v6110
    %6112 = vmatprep.subr.mxu0 0.0
    %v6113 = vand.u32 %v6050, 4294901760
    %6114 = vmatpush1.msra.mxu0 %v6113
    %6115 = vmatprep.subr.mxu0 0.0
    %6116 = vmatpush2.msra.mxu0 0.0
    %6117 = vmatprep.subr.mxu0 0.0
    %6118 = vmatpush2.msra.mxu0 0.0
    %6119 = vmatprep.subr.mxu0 0.0
    %6120 = vmatpush2.msra.mxu0 0.0
    %6121 = vmatprep.subr.mxu0 0.0
    %6122 = vmatpush2.msra.mxu0 0.0
    %6123 = vmatprep.subr.mxu0 0.0
    %6124 = vmatpush2.msra.mxu0 0.0
    %6125 = vmatprep.subr.mxu0 0.0
    %6126 = vmatpush2.msra.mxu0 0.0
    %6127 = vmatprep.subr.mxu0 0.0
    %6128 = vmatpush2.msra.mxu0 0.0
    %6129 = vmatprep.subr.mxu0 0.0
    %6130 = vmatpush2.msra.mxu0 0.0
    %6131 = vmatprep.subr.mxu0 0.0
    %6132 = vmatpush2.msra.mxu0 0.0
    %6133 = vmatprep.subr.mxu0 0.0
    %6134 = vmatpush2.msra.mxu0 0.0
    %6135 = vmatprep.subr.mxu0 0.0
    %6136 = vmatpush2.msra.mxu0 0.0
    %6137 = vmatprep.subr.mxu0 0.0
    %6138 = vmatpush2.msra.mxu0 0.0
    %6139 = vmatprep.subr.mxu0 0.0
    %6140 = vmatpush2.msra.mxu0 0.0
    %6141 = vmatprep.subr.mxu0 0.0
    %6142 = vmatpush2.msra.mxu0 0.0
    %6143 = vmatprep.subr.mxu0 0.0
    %6144 = vmatpush2.msra.mxu0 0.0
    %6145 = vmatprep.subr.mxu0 0.0
    %6146 = vmatpush2.msra.mxu0 0.0
    %6147 = vmatprep.mubr.f32.mxu0 0.0
    %v6148 = vand.u32 %v6049, 4294901760
    %v6149 = vsub.f32 %v6049, %v6148
    %v6150 = vand.u32 %v6149, 4294901760
    %v6151 = vsub.f32 %v6149, %v6150
    %v6152 = vand.u32 %v6151, 4294901760
    %6153 = vmatmul.mubr.f32.gmra.mxu0 %v6152
    %v6154 = vpop.f32.mrf.mxu0
    %v6155 = vadd.f32 %v6066, %v6154
    %v6156 = vpop.f32.mrf.mxu0
    %6157 = vdwg.mxu0
    %6158 = vmatprep.subr.mxu0 0.0
    %v6159 = vand.u32 %v6065, 4294901760
    %v6160 = vsub.f32 %v6065, %v6159
    %v6161 = vand.u32 %v6160, 4294901760
    %v6162 = vsub.f32 %v6160, %v6161
    %v6163 = vand.u32 %v6162, 4294901760
    %6164 = vmatpush1.msra.mxu0 %v6163
    %6165 = vmatprep.subr.mxu0 0.0
    %v6166 = vand.u32 %v6064, 4294901760
    %v6167 = vsub.f32 %v6064, %v6166
    %v6168 = vand.u32 %v6167, 4294901760
    %v6169 = vsub.f32 %v6167, %v6168
    %v6170 = vand.u32 %v6169, 4294901760
    %6171 = vmatpush1.msra.mxu0 %v6170
    %6172 = vmatprep.subr.mxu0 0.0
    %v6173 = vand.u32 %v6063, 4294901760
    %v6174 = vsub.f32 %v6063, %v6173
    %v6175 = vand.u32 %v6174, 4294901760
    %v6176 = vsub.f32 %v6174, %v6175
    %v6177 = vand.u32 %v6176, 4294901760
    %6178 = vmatpush1.msra.mxu0 %v6177
    %6179 = vmatprep.subr.mxu0 0.0
    %v6180 = vand.u32 %v6062, 4294901760
    %v6181 = vsub.f32 %v6062, %v6180
    %v6182 = vand.u32 %v6181, 4294901760
    %v6183 = vsub.f32 %v6181, %v6182
    %v6184 = vand.u32 %v6183, 4294901760
    %6185 = vmatpush1.msra.mxu0 %v6184
    %6186 = vmatprep.subr.mxu0 0.0
    %v6187 = vand.u32 %v6061, 4294901760
    %v6188 = vsub.f32 %v6061, %v6187
    %v6189 = vand.u32 %v6188, 4294901760
    %v6190 = vsub.f32 %v6188, %v6189
    %v6191 = vand.u32 %v6190, 4294901760
    %6192 = vmatpush1.msra.mxu0 %v6191
    %6193 = vmatprep.subr.mxu0 0.0
    %v6194 = vand.u32 %v6060, 4294901760
    %v6195 = vsub.f32 %v6060, %v6194
    %v6196 = vand.u32 %v6195, 4294901760
    %v6197 = vsub.f32 %v6195, %v6196
    %v6198 = vand.u32 %v6197, 4294901760
    %6199 = vmatpush1.msra.mxu0 %v6198
    %6200 = vmatprep.subr.mxu0 0.0
    %v6201 = vand.u32 %v6059, 4294901760
    %v6202 = vsub.f32 %v6059, %v6201
    %v6203 = vand.u32 %v6202, 4294901760
    %v6204 = vsub.f32 %v6202, %v6203
    %v6205 = vand.u32 %v6204, 4294901760
    %6206 = vmatpush1.msra.mxu0 %v6205
    %6207 = vmatprep.subr.mxu0 0.0
    %v6208 = vand.u32 %v6058, 4294901760
    %v6209 = vsub.f32 %v6058, %v6208
    %v6210 = vand.u32 %v6209, 4294901760
    %v6211 = vsub.f32 %v6209, %v6210
    %v6212 = vand.u32 %v6211, 4294901760
    %6213 = vmatpush1.msra.mxu0 %v6212
    %6214 = vmatprep.subr.mxu0 0.0
    %v6215 = vand.u32 %v6057, 4294901760
    %v6216 = vsub.f32 %v6057, %v6215
    %v6217 = vand.u32 %v6216, 4294901760
    %v6218 = vsub.f32 %v6216, %v6217
    %v6219 = vand.u32 %v6218, 4294901760
    %6220 = vmatpush1.msra.mxu0 %v6219
    %6221 = vmatprep.subr.mxu0 0.0
    %v6222 = vand.u32 %v6056, 4294901760
    %v6223 = vsub.f32 %v6056, %v6222
    %v6224 = vand.u32 %v6223, 4294901760
    %v6225 = vsub.f32 %v6223, %v6224
    %v6226 = vand.u32 %v6225, 4294901760
    %6227 = vmatpush1.msra.mxu0 %v6226
    %6228 = vmatprep.subr.mxu0 0.0
    %v6229 = vand.u32 %v6055, 4294901760
    %v6230 = vsub.f32 %v6055, %v6229
    %v6231 = vand.u32 %v6230, 4294901760
    %v6232 = vsub.f32 %v6230, %v6231
    %v6233 = vand.u32 %v6232, 4294901760
    %6234 = vmatpush1.msra.mxu0 %v6233
    %6235 = vmatprep.subr.mxu0 0.0
    %v6236 = vand.u32 %v6054, 4294901760
    %v6237 = vsub.f32 %v6054, %v6236
    %v6238 = vand.u32 %v6237, 4294901760
    %v6239 = vsub.f32 %v6237, %v6238
    %v6240 = vand.u32 %v6239, 4294901760
    %6241 = vmatpush1.msra.mxu0 %v6240
    %6242 = vmatprep.subr.mxu0 0.0
    %v6243 = vand.u32 %v6053, 4294901760
    %v6244 = vsub.f32 %v6053, %v6243
    %v6245 = vand.u32 %v6244, 4294901760
    %v6246 = vsub.f32 %v6244, %v6245
    %v6247 = vand.u32 %v6246, 4294901760
    %6248 = vmatpush1.msra.mxu0 %v6247
    %6249 = vmatprep.subr.mxu0 0.0
    %v6250 = vand.u32 %v6052, 4294901760
    %v6251 = vsub.f32 %v6052, %v6250
    %v6252 = vand.u32 %v6251, 4294901760
    %v6253 = vsub.f32 %v6251, %v6252
    %v6254 = vand.u32 %v6253, 4294901760
    %6255 = vmatpush1.msra.mxu0 %v6254
    %6256 = vmatprep.subr.mxu0 0.0
    %v6257 = vand.u32 %v6051, 4294901760
    %v6258 = vsub.f32 %v6051, %v6257
    %v6259 = vand.u32 %v6258, 4294901760
    %v6260 = vsub.f32 %v6258, %v6259
    %v6261 = vand.u32 %v6260, 4294901760
    %6262 = vmatpush1.msra.mxu0 %v6261
    %6263 = vmatprep.subr.mxu0 0.0
    %v6264 = vand.u32 %v6050, 4294901760
    %v6265 = vsub.f32 %v6050, %v6264
    %v6266 = vand.u32 %v6265, 4294901760
    %v6267 = vsub.f32 %v6265, %v6266
    %v6268 = vand.u32 %v6267, 4294901760
    %6269 = vmatpush1.msra.mxu0 %v6268
    %6270 = vmatprep.subr.mxu0 0.0
    %6271 = vmatpush2.msra.mxu0 0.0
    %6272 = vmatprep.subr.mxu0 0.0
    %6273 = vmatpush2.msra.mxu0 0.0
    %6274 = vmatprep.subr.mxu0 0.0
    %6275 = vmatpush2.msra.mxu0 0.0
    %6276 = vmatprep.subr.mxu0 0.0
    %6277 = vmatpush2.msra.mxu0 0.0
    %6278 = vmatprep.subr.mxu0 0.0
    %6279 = vmatpush2.msra.mxu0 0.0
    %6280 = vmatprep.subr.mxu0 0.0
    %6281 = vmatpush2.msra.mxu0 0.0
    %6282 = vmatprep.subr.mxu0 0.0
    %6283 = vmatpush2.msra.mxu0 0.0
    %6284 = vmatprep.subr.mxu0 0.0
    %6285 = vmatpush2.msra.mxu0 0.0
    %6286 = vmatprep.subr.mxu0 0.0
    %6287 = vmatpush2.msra.mxu0 0.0
    %6288 = vmatprep.subr.mxu0 0.0
    %6289 = vmatpush2.msra.mxu0 0.0
    %6290 = vmatprep.subr.mxu0 0.0
    %6291 = vmatpush2.msra.mxu0 0.0
    %6292 = vmatprep.subr.mxu0 0.0
    %6293 = vmatpush2.msra.mxu0 0.0
    %6294 = vmatprep.subr.mxu0 0.0
    %6295 = vmatpush2.msra.mxu0 0.0
    %6296 = vmatprep.subr.mxu0 0.0
    %6297 = vmatpush2.msra.mxu0 0.0
    %6298 = vmatprep.subr.mxu0 0.0
    %6299 = vmatpush2.msra.mxu0 0.0
    %6300 = vmatprep.subr.mxu0 0.0
    %6301 = vmatpush2.msra.mxu0 0.0
    %6302 = vmatprep.mubr.f32.mxu0 0.0
    %v6303 = vand.u32 %v6049, 4294901760
    %6304 = vmatmul.mubr.f32.gmra.mxu0 %v6303
    %v6305 = vpop.f32.mrf.mxu0
    %v6306 = vadd.f32 %v6155, %v6305
    %v6307 = vpop.f32.mrf.mxu0
    %6308 = vdwg.mxu0
    %6309 = vmatprep.subr.mxu0 0.0
    %v6310 = vand.u32 %v6065, 4294901760
    %v6311 = vsub.f32 %v6065, %v6310
    %6312 = vmatpush1.msra.mxu0 %v6311
    %6313 = vmatprep.subr.mxu0 0.0
    %v6314 = vand.u32 %v6064, 4294901760
    %v6315 = vsub.f32 %v6064, %v6314
    %6316 = vmatpush1.msra.mxu0 %v6315
    %6317 = vmatprep.subr.mxu0 0.0
    %v6318 = vand.u32 %v6063, 4294901760
    %v6319 = vsub.f32 %v6063, %v6318
    %6320 = vmatpush1.msra.mxu0 %v6319
    %6321 = vmatprep.subr.mxu0 0.0
    %v6322 = vand.u32 %v6062, 4294901760
    %v6323 = vsub.f32 %v6062, %v6322
    %6324 = vmatpush1.msra.mxu0 %v6323
    %6325 = vmatprep.subr.mxu0 0.0
    %v6326 = vand.u32 %v6061, 4294901760
    %v6327 = vsub.f32 %v6061, %v6326
    %6328 = vmatpush1.msra.mxu0 %v6327
    %6329 = vmatprep.subr.mxu0 0.0
    %v6330 = vand.u32 %v6060, 4294901760
    %v6331 = vsub.f32 %v6060, %v6330
    %6332 = vmatpush1.msra.mxu0 %v6331
    %6333 = vmatprep.subr.mxu0 0.0
    %v6334 = vand.u32 %v6059, 4294901760
    %v6335 = vsub.f32 %v6059, %v6334
    %6336 = vmatpush1.msra.mxu0 %v6335
    %6337 = vmatprep.subr.mxu0 0.0
    %v6338 = vand.u32 %v6058, 4294901760
    %v6339 = vsub.f32 %v6058, %v6338
    %6340 = vmatpush1.msra.mxu0 %v6339
    %6341 = vmatprep.subr.mxu0 0.0
    %v6342 = vand.u32 %v6057, 4294901760
    %v6343 = vsub.f32 %v6057, %v6342
    %6344 = vmatpush1.msra.mxu0 %v6343
    %6345 = vmatprep.subr.mxu0 0.0
    %v6346 = vand.u32 %v6056, 4294901760
    %v6347 = vsub.f32 %v6056, %v6346
    %6348 = vmatpush1.msra.mxu0 %v6347
    %6349 = vmatprep.subr.mxu0 0.0
    %v6350 = vand.u32 %v6055, 4294901760
    %v6351 = vsub.f32 %v6055, %v6350
    %6352 = vmatpush1.msra.mxu0 %v6351
    %6353 = vmatprep.subr.mxu0 0.0
    %v6354 = vand.u32 %v6054, 4294901760
    %v6355 = vsub.f32 %v6054, %v6354
    %6356 = vmatpush1.msra.mxu0 %v6355
    %6357 = vmatprep.subr.mxu0 0.0
    %v6358 = vand.u32 %v6053, 4294901760
    %v6359 = vsub.f32 %v6053, %v6358
    %6360 = vmatpush1.msra.mxu0 %v6359
    %6361 = vmatprep.subr.mxu0 0.0
    %v6362 = vand.u32 %v6052, 4294901760
    %v6363 = vsub.f32 %v6052, %v6362
    %6364 = vmatpush1.msra.mxu0 %v6363
    %6365 = vmatprep.subr.mxu0 0.0
    %v6366 = vand.u32 %v6051, 4294901760
    %v6367 = vsub.f32 %v6051, %v6366
    %6368 = vmatpush1.msra.mxu0 %v6367
    %6369 = vmatprep.subr.mxu0 0.0
    %v6370 = vand.u32 %v6050, 4294901760
    %v6371 = vsub.f32 %v6050, %v6370
    %6372 = vmatpush1.msra.mxu0 %v6371
    %6373 = vmatprep.subr.mxu0 0.0
    %6374 = vmatpush2.msra.mxu0 0.0
    %6375 = vmatprep.subr.mxu0 0.0
    %6376 = vmatpush2.msra.mxu0 0.0
    %6377 = vmatprep.subr.mxu0 0.0
    %6378 = vmatpush2.msra.mxu0 0.0
    %6379 = vmatprep.subr.mxu0 0.0
    %6380 = vmatpush2.msra.mxu0 0.0
    %6381 = vmatprep.subr.mxu0 0.0
    %6382 = vmatpush2.msra.mxu0 0.0
    %6383 = vmatprep.subr.mxu0 0.0
    %6384 = vmatpush2.msra.mxu0 0.0
    %6385 = vmatprep.subr.mxu0 0.0
    %6386 = vmatpush2.msra.mxu0 0.0
    %6387 = vmatprep.subr.mxu0 0.0
    %6388 = vmatpush2.msra.mxu0 0.0
    %6389 = vmatprep.subr.mxu0 0.0
    %6390 = vmatpush2.msra.mxu0 0.0
    %6391 = vmatprep.subr.mxu0 0.0
    %6392 = vmatpush2.msra.mxu0 0.0
    %6393 = vmatprep.subr.mxu0 0.0
    %6394 = vmatpush2.msra.mxu0 0.0
    %6395 = vmatprep.subr.mxu0 0.0
    %6396 = vmatpush2.msra.mxu0 0.0
    %6397 = vmatprep.subr.mxu0 0.0
    %6398 = vmatpush2.msra.mxu0 0.0
    %6399 = vmatprep.subr.mxu0 0.0
    %6400 = vmatpush2.msra.mxu0 0.0
    %6401 = vmatprep.subr.mxu0 0.0
    %6402 = vmatpush2.msra.mxu0 0.0
    %6403 = vmatprep.subr.mxu0 0.0
    %6404 = vmatpush2.msra.mxu0 0.0
    %6405 = vmatprep.mubr.f32.mxu0 0.0
    %v6406 = vand.u32 %v6049, 4294901760
    %v6407 = vsub.f32 %v6049, %v6406
    %6408 = vmatmul.mubr.f32.gmra.mxu0 %v6407
    %v6409 = vpop.f32.mrf.mxu0
    %v6410 = vadd.f32 %v6306, %v6409
    %v6411 = vpop.f32.mrf.mxu0
    %6412 = vdwg.mxu0
    %6413 = vmatprep.subr.mxu0 0.0
    %v6414 = vand.u32 %v6065, 4294901760
    %6415 = vmatpush1.msra.mxu0 %v6414
    %6416 = vmatprep.subr.mxu0 0.0
    %v6417 = vand.u32 %v6064, 4294901760
    %6418 = vmatpush1.msra.mxu0 %v6417
    %6419 = vmatprep.subr.mxu0 0.0
    %v6420 = vand.u32 %v6063, 4294901760
    %6421 = vmatpush1.msra.mxu0 %v6420
    %6422 = vmatprep.subr.mxu0 0.0
    %v6423 = vand.u32 %v6062, 4294901760
    %6424 = vmatpush1.msra.mxu0 %v6423
    %6425 = vmatprep.subr.mxu0 0.0
    %v6426 = vand.u32 %v6061, 4294901760
    %6427 = vmatpush1.msra.mxu0 %v6426
    %6428 = vmatprep.subr.mxu0 0.0
    %v6429 = vand.u32 %v6060, 4294901760
    %6430 = vmatpush1.msra.mxu0 %v6429
    %6431 = vmatprep.subr.mxu0 0.0
    %v6432 = vand.u32 %v6059, 4294901760
    %6433 = vmatpush1.msra.mxu0 %v6432
    %6434 = vmatprep.subr.mxu0 0.0
    %v6435 = vand.u32 %v6058, 4294901760
    %6436 = vmatpush1.msra.mxu0 %v6435
    %6437 = vmatprep.subr.mxu0 0.0
    %v6438 = vand.u32 %v6057, 4294901760
    %6439 = vmatpush1.msra.mxu0 %v6438
    %6440 = vmatprep.subr.mxu0 0.0
    %v6441 = vand.u32 %v6056, 4294901760
    %6442 = vmatpush1.msra.mxu0 %v6441
    %6443 = vmatprep.subr.mxu0 0.0
    %v6444 = vand.u32 %v6055, 4294901760
    %6445 = vmatpush1.msra.mxu0 %v6444
    %6446 = vmatprep.subr.mxu0 0.0
    %v6447 = vand.u32 %v6054, 4294901760
    %6448 = vmatpush1.msra.mxu0 %v6447
    %6449 = vmatprep.subr.mxu0 0.0
    %v6450 = vand.u32 %v6053, 4294901760
    %6451 = vmatpush1.msra.mxu0 %v6450
    %6452 = vmatprep.subr.mxu0 0.0
    %v6453 = vand.u32 %v6052, 4294901760
    %6454 = vmatpush1.msra.mxu0 %v6453
    %6455 = vmatprep.subr.mxu0 0.0
    %v6456 = vand.u32 %v6051, 4294901760
    %6457 = vmatpush1.msra.mxu0 %v6456
    %6458 = vmatprep.subr.mxu0 0.0
    %v6459 = vand.u32 %v6050, 4294901760
    %6460 = vmatpush1.msra.mxu0 %v6459
    %6461 = vmatprep.subr.mxu0 0.0
    %6462 = vmatpush2.msra.mxu0 0.0
    %6463 = vmatprep.subr.mxu0 0.0
    %6464 = vmatpush2.msra.mxu0 0.0
    %6465 = vmatprep.subr.mxu0 0.0
    %6466 = vmatpush2.msra.mxu0 0.0
    %6467 = vmatprep.subr.mxu0 0.0
    %6468 = vmatpush2.msra.mxu0 0.0
    %6469 = vmatprep.subr.mxu0 0.0
    %6470 = vmatpush2.msra.mxu0 0.0
    %6471 = vmatprep.subr.mxu0 0.0
    %6472 = vmatpush2.msra.mxu0 0.0
    %6473 = vmatprep.subr.mxu0 0.0
    %6474 = vmatpush2.msra.mxu0 0.0
    %6475 = vmatprep.subr.mxu0 0.0
    %6476 = vmatpush2.msra.mxu0 0.0
    %6477 = vmatprep.subr.mxu0 0.0
    %6478 = vmatpush2.msra.mxu0 0.0
    %6479 = vmatprep.subr.mxu0 0.0
    %6480 = vmatpush2.msra.mxu0 0.0
    %6481 = vmatprep.subr.mxu0 0.0
    %6482 = vmatpush2.msra.mxu0 0.0
    %6483 = vmatprep.subr.mxu0 0.0
    %6484 = vmatpush2.msra.mxu0 0.0
    %6485 = vmatprep.subr.mxu0 0.0
    %6486 = vmatpush2.msra.mxu0 0.0
    %6487 = vmatprep.subr.mxu0 0.0
    %6488 = vmatpush2.msra.mxu0 0.0
    %6489 = vmatprep.subr.mxu0 0.0
    %6490 = vmatpush2.msra.mxu0 0.0
    %6491 = vmatprep.subr.mxu0 0.0
    %6492 = vmatpush2.msra.mxu0 0.0
    %6493 = vmatprep.mubr.f32.mxu0 0.0
    %v6494 = vand.u32 %v6049, 4294901760
    %v6495 = vsub.f32 %v6049, %v6494
    %v6496 = vand.u32 %v6495, 4294901760
    %6497 = vmatmul.mubr.f32.gmra.mxu0 %v6496
    %v6498 = vpop.f32.mrf.mxu0
    %v6499 = vadd.f32 %v6410, %v6498
    %v6500 = vpop.f32.mrf.mxu0
    %6501 = vdwg.mxu0
    %6502 = vmatprep.subr.mxu0 0.0
    %v6503 = vand.u32 %v6065, 4294901760
    %v6504 = vsub.f32 %v6065, %v6503
    %v6505 = vand.u32 %v6504, 4294901760
    %6506 = vmatpush1.msra.mxu0 %v6505
    %6507 = vmatprep.subr.mxu0 0.0
    %v6508 = vand.u32 %v6064, 4294901760
    %v6509 = vsub.f32 %v6064, %v6508
    %v6510 = vand.u32 %v6509, 4294901760
    %6511 = vmatpush1.msra.mxu0 %v6510
    %6512 = vmatprep.subr.mxu0 0.0
    %v6513 = vand.u32 %v6063, 4294901760
    %v6514 = vsub.f32 %v6063, %v6513
    %v6515 = vand.u32 %v6514, 4294901760
    %6516 = vmatpush1.msra.mxu0 %v6515
    %6517 = vmatprep.subr.mxu0 0.0
    %v6518 = vand.u32 %v6062, 4294901760
    %v6519 = vsub.f32 %v6062, %v6518
    %v6520 = vand.u32 %v6519, 4294901760
    %6521 = vmatpush1.msra.mxu0 %v6520
    %6522 = vmatprep.subr.mxu0 0.0
    %v6523 = vand.u32 %v6061, 4294901760
    %v6524 = vsub.f32 %v6061, %v6523
    %v6525 = vand.u32 %v6524, 4294901760
    %6526 = vmatpush1.msra.mxu0 %v6525
    %6527 = vmatprep.subr.mxu0 0.0
    %v6528 = vand.u32 %v6060, 4294901760
    %v6529 = vsub.f32 %v6060, %v6528
    %v6530 = vand.u32 %v6529, 4294901760
    %6531 = vmatpush1.msra.mxu0 %v6530
    %6532 = vmatprep.subr.mxu0 0.0
    %v6533 = vand.u32 %v6059, 4294901760
    %v6534 = vsub.f32 %v6059, %v6533
    %v6535 = vand.u32 %v6534, 4294901760
    %6536 = vmatpush1.msra.mxu0 %v6535
    %6537 = vmatprep.subr.mxu0 0.0
    %v6538 = vand.u32 %v6058, 4294901760
    %v6539 = vsub.f32 %v6058, %v6538
    %v6540 = vand.u32 %v6539, 4294901760
    %6541 = vmatpush1.msra.mxu0 %v6540
    %6542 = vmatprep.subr.mxu0 0.0
    %v6543 = vand.u32 %v6057, 4294901760
    %v6544 = vsub.f32 %v6057, %v6543
    %v6545 = vand.u32 %v6544, 4294901760
    %6546 = vmatpush1.msra.mxu0 %v6545
    %6547 = vmatprep.subr.mxu0 0.0
    %v6548 = vand.u32 %v6056, 4294901760
    %v6549 = vsub.f32 %v6056, %v6548
    %v6550 = vand.u32 %v6549, 4294901760
    %6551 = vmatpush1.msra.mxu0 %v6550
    %6552 = vmatprep.subr.mxu0 0.0
    %v6553 = vand.u32 %v6055, 4294901760
    %v6554 = vsub.f32 %v6055, %v6553
    %v6555 = vand.u32 %v6554, 4294901760
    %6556 = vmatpush1.msra.mxu0 %v6555
    %6557 = vmatprep.subr.mxu0 0.0
    %v6558 = vand.u32 %v6054, 4294901760
    %v6559 = vsub.f32 %v6054, %v6558
    %v6560 = vand.u32 %v6559, 4294901760
    %6561 = vmatpush1.msra.mxu0 %v6560
    %6562 = vmatprep.subr.mxu0 0.0
    %v6563 = vand.u32 %v6053, 4294901760
    %v6564 = vsub.f32 %v6053, %v6563
    %v6565 = vand.u32 %v6564, 4294901760
    %6566 = vmatpush1.msra.mxu0 %v6565
    %6567 = vmatprep.subr.mxu0 0.0
    %v6568 = vand.u32 %v6052, 4294901760
    %v6569 = vsub.f32 %v6052, %v6568
    %v6570 = vand.u32 %v6569, 4294901760
    %6571 = vmatpush1.msra.mxu0 %v6570
    %6572 = vmatprep.subr.mxu0 0.0
    %v6573 = vand.u32 %v6051, 4294901760
    %v6574 = vsub.f32 %v6051, %v6573
    %v6575 = vand.u32 %v6574, 4294901760
    %6576 = vmatpush1.msra.mxu0 %v6575
    %6577 = vmatprep.subr.mxu0 0.0
    %v6578 = vand.u32 %v6050, 4294901760
    %v6579 = vsub.f32 %v6050, %v6578
    %v6580 = vand.u32 %v6579, 4294901760
    %6581 = vmatpush1.msra.mxu0 %v6580
    %6582 = vmatprep.subr.mxu0 0.0
    %6583 = vmatpush2.msra.mxu0 0.0
    %6584 = vmatprep.subr.mxu0 0.0
    %6585 = vmatpush2.msra.mxu0 0.0
    %6586 = vmatprep.subr.mxu0 0.0
    %6587 = vmatpush2.msra.mxu0 0.0
    %6588 = vmatprep.subr.mxu0 0.0
    %6589 = vmatpush2.msra.mxu0 0.0
    %6590 = vmatprep.subr.mxu0 0.0
    %6591 = vmatpush2.msra.mxu0 0.0
    %6592 = vmatprep.subr.mxu0 0.0
    %6593 = vmatpush2.msra.mxu0 0.0
    %6594 = vmatprep.subr.mxu0 0.0
    %6595 = vmatpush2.msra.mxu0 0.0
    %6596 = vmatprep.subr.mxu0 0.0
    %6597 = vmatpush2.msra.mxu0 0.0
    %6598 = vmatprep.subr.mxu0 0.0
    %6599 = vmatpush2.msra.mxu0 0.0
    %6600 = vmatprep.subr.mxu0 0.0
    %6601 = vmatpush2.msra.mxu0 0.0
    %6602 = vmatprep.subr.mxu0 0.0
    %6603 = vmatpush2.msra.mxu0 0.0
    %6604 = vmatprep.subr.mxu0 0.0
    %6605 = vmatpush2.msra.mxu0 0.0
    %6606 = vmatprep.subr.mxu0 0.0
    %6607 = vmatpush2.msra.mxu0 0.0
    %6608 = vmatprep.subr.mxu0 0.0
    %6609 = vmatpush2.msra.mxu0 0.0
    %6610 = vmatprep.subr.mxu0 0.0
    %6611 = vmatpush2.msra.mxu0 0.0
    %6612 = vmatprep.subr.mxu0 0.0
    %6613 = vmatpush2.msra.mxu0 0.0
    %6614 = vmatprep.mubr.f32.mxu0 0.0
    %v6615 = vand.u32 %v6049, 4294901760
    %6616 = vmatmul.mubr.f32.gmra.mxu0 %v6615
    %v6617 = vpop.f32.mrf.mxu0
    %v6618 = vadd.f32 %v6499, %v6617
    %v6619 = vpop.f32.mrf.mxu0
    %6620 = vdwg.mxu0
    %6621 = vmatprep.subr.mxu0 0.0
    %v6622 = vand.u32 %v6065, 4294901760
    %6623 = vmatpush1.msra.mxu0 %v6622
    %6624 = vmatprep.subr.mxu0 0.0
    %v6625 = vand.u32 %v6064, 4294901760
    %6626 = vmatpush1.msra.mxu0 %v6625
    %6627 = vmatprep.subr.mxu0 0.0
    %v6628 = vand.u32 %v6063, 4294901760
    %6629 = vmatpush1.msra.mxu0 %v6628
    %6630 = vmatprep.subr.mxu0 0.0
    %v6631 = vand.u32 %v6062, 4294901760
    %6632 = vmatpush1.msra.mxu0 %v6631
    %6633 = vmatprep.subr.mxu0 0.0
    %v6634 = vand.u32 %v6061, 4294901760
    %6635 = vmatpush1.msra.mxu0 %v6634
    %6636 = vmatprep.subr.mxu0 0.0
    %v6637 = vand.u32 %v6060, 4294901760
    %6638 = vmatpush1.msra.mxu0 %v6637
    %6639 = vmatprep.subr.mxu0 0.0
    %v6640 = vand.u32 %v6059, 4294901760
    %6641 = vmatpush1.msra.mxu0 %v6640
    %6642 = vmatprep.subr.mxu0 0.0
    %v6643 = vand.u32 %v6058, 4294901760
    %6644 = vmatpush1.msra.mxu0 %v6643
    %6645 = vmatprep.subr.mxu0 0.0
    %v6646 = vand.u32 %v6057, 4294901760
    %6647 = vmatpush1.msra.mxu0 %v6646
    %6648 = vmatprep.subr.mxu0 0.0
    %v6649 = vand.u32 %v6056, 4294901760
    %6650 = vmatpush1.msra.mxu0 %v6649
    %6651 = vmatprep.subr.mxu0 0.0
    %v6652 = vand.u32 %v6055, 4294901760
    %6653 = vmatpush1.msra.mxu0 %v6652
    %6654 = vmatprep.subr.mxu0 0.0
    %v6655 = vand.u32 %v6054, 4294901760
    %6656 = vmatpush1.msra.mxu0 %v6655
    %6657 = vmatprep.subr.mxu0 0.0
    %v6658 = vand.u32 %v6053, 4294901760
    %6659 = vmatpush1.msra.mxu0 %v6658
    %6660 = vmatprep.subr.mxu0 0.0
    %v6661 = vand.u32 %v6052, 4294901760
    %6662 = vmatpush1.msra.mxu0 %v6661
    %6663 = vmatprep.subr.mxu0 0.0
    %v6664 = vand.u32 %v6051, 4294901760
    %6665 = vmatpush1.msra.mxu0 %v6664
    %6666 = vmatprep.subr.mxu0 0.0
    %v6667 = vand.u32 %v6050, 4294901760
    %6668 = vmatpush1.msra.mxu0 %v6667
    %6669 = vmatprep.subr.mxu0 0.0
    %6670 = vmatpush2.msra.mxu0 0.0
    %6671 = vmatprep.subr.mxu0 0.0
    %6672 = vmatpush2.msra.mxu0 0.0
    %6673 = vmatprep.subr.mxu0 0.0
    %6674 = vmatpush2.msra.mxu0 0.0
    %6675 = vmatprep.subr.mxu0 0.0
    %6676 = vmatpush2.msra.mxu0 0.0
    %6677 = vmatprep.subr.mxu0 0.0
    %6678 = vmatpush2.msra.mxu0 0.0
    %6679 = vmatprep.subr.mxu0 0.0
    %6680 = vmatpush2.msra.mxu0 0.0
    %6681 = vmatprep.subr.mxu0 0.0
    %6682 = vmatpush2.msra.mxu0 0.0
    %6683 = vmatprep.subr.mxu0 0.0
    %6684 = vmatpush2.msra.mxu0 0.0
    %6685 = vmatprep.subr.mxu0 0.0
    %6686 = vmatpush2.msra.mxu0 0.0
    %6687 = vmatprep.subr.mxu0 0.0
    %6688 = vmatpush2.msra.mxu0 0.0
    %6689 = vmatprep.subr.mxu0 0.0
    %6690 = vmatpush2.msra.mxu0 0.0
    %6691 = vmatprep.subr.mxu0 0.0
    %6692 = vmatpush2.msra.mxu0 0.0
    %6693 = vmatprep.subr.mxu0 0.0
    %6694 = vmatpush2.msra.mxu0 0.0
    %6695 = vmatprep.subr.mxu0 0.0
    %6696 = vmatpush2.msra.mxu0 0.0
    %6697 = vmatprep.subr.mxu0 0.0
    %6698 = vmatpush2.msra.mxu0 0.0
    %6699 = vmatprep.subr.mxu0 0.0
    %6700 = vmatpush2.msra.mxu0 0.0
    %6701 = vmatprep.mubr.f32.mxu0 0.0
    %v6702 = vand.u32 %v6049, 4294901760
    %6703 = vmatmul.mubr.f32.gmra.mxu0 %v6702
    %v6704 = vpop.f32.mrf.mxu0
    %v6705 = vadd.f32 %v6618, %v6704
    %v6706 = vpop.f32.mrf.mxu0
    %6707 = vdwg.mxu0
    %v6708 = vmax.f32 %v6705, 0.0
    %v6709 = vld [vmem:[#allocation2 + $0x50] sm:$0xff]
    %v6710 = vld [vmem:[#allocation2 + $0xb0] sm:$0xff]
    %v6711 = vld [vmem:[#allocation2 + $0x110] sm:$0xff]
    %v6712 = vld [vmem:[#allocation2 + $0x170] sm:$0xff]
    %v6713 = vld [vmem:[#allocation2 + $0x1d0] sm:$0xff]
    %v6714 = vld [vmem:[#allocation2 + $0x230] sm:$0xff]
    %v6715 = vld [vmem:[#allocation2 + $0x290] sm:$0xff]
    %v6716 = vld [vmem:[#allocation2 + $0x2f0] sm:$0xff]
    %v6717 = vld [vmem:[#allocation2 + $0x350] sm:$0xff]
    %v6718 = vld [vmem:[#allocation2 + $0x3b0] sm:$0xff]
    %v6719 = vld [vmem:[#allocation2 + $0x410] sm:$0xff]
    %v6720 = vld [vmem:[#allocation2 + $0x470] sm:$0xff]
    %v6721 = vld [vmem:[#allocation2 + $0x4d0] sm:$0xff]
    %v6722 = vld [vmem:[#allocation2 + $0x530] sm:$0xff]
    %v6723 = vld [vmem:[#allocation2 + $0x590] sm:$0xff]
    %v6724 = vld [vmem:[#allocation2 + $0x5f0] sm:$0xff]
    %v6725 = vld [vmem:[#allocation2 + $0x650] ss:$0 sm:$0xff]
    %6726 = vmatprep.subr.mxu0 0.0
    %v6727 = vand.u32 %v6724, 4294901760
    %6728 = vmatpush1.msra.mxu0 %v6727
    %6729 = vmatprep.subr.mxu0 0.0
    %v6730 = vand.u32 %v6723, 4294901760
    %6731 = vmatpush1.msra.mxu0 %v6730
    %6732 = vmatprep.subr.mxu0 0.0
    %v6733 = vand.u32 %v6722, 4294901760
    %6734 = vmatpush1.msra.mxu0 %v6733
    %6735 = vmatprep.subr.mxu0 0.0
    %v6736 = vand.u32 %v6721, 4294901760
    %6737 = vmatpush1.msra.mxu0 %v6736
    %6738 = vmatprep.subr.mxu0 0.0
    %v6739 = vand.u32 %v6720, 4294901760
    %6740 = vmatpush1.msra.mxu0 %v6739
    %6741 = vmatprep.subr.mxu0 0.0
    %v6742 = vand.u32 %v6719, 4294901760
    %6743 = vmatpush1.msra.mxu0 %v6742
    %6744 = vmatprep.subr.mxu0 0.0
    %v6745 = vand.u32 %v6718, 4294901760
    %6746 = vmatpush1.msra.mxu0 %v6745
    %6747 = vmatprep.subr.mxu0 0.0
    %v6748 = vand.u32 %v6717, 4294901760
    %6749 = vmatpush1.msra.mxu0 %v6748
    %6750 = vmatprep.subr.mxu0 0.0
    %v6751 = vand.u32 %v6716, 4294901760
    %6752 = vmatpush1.msra.mxu0 %v6751
    %6753 = vmatprep.subr.mxu0 0.0
    %v6754 = vand.u32 %v6715, 4294901760
    %6755 = vmatpush1.msra.mxu0 %v6754
    %6756 = vmatprep.subr.mxu0 0.0
    %v6757 = vand.u32 %v6714, 4294901760
    %6758 = vmatpush1.msra.mxu0 %v6757
    %6759 = vmatprep.subr.mxu0 0.0
    %v6760 = vand.u32 %v6713, 4294901760
    %6761 = vmatpush1.msra.mxu0 %v6760
    %6762 = vmatprep.subr.mxu0 0.0
    %v6763 = vand.u32 %v6712, 4294901760
    %6764 = vmatpush1.msra.mxu0 %v6763
    %6765 = vmatprep.subr.mxu0 0.0
    %v6766 = vand.u32 %v6711, 4294901760
    %6767 = vmatpush1.msra.mxu0 %v6766
    %6768 = vmatprep.subr.mxu0 0.0
    %v6769 = vand.u32 %v6710, 4294901760
    %6770 = vmatpush1.msra.mxu0 %v6769
    %6771 = vmatprep.subr.mxu0 0.0
    %v6772 = vand.u32 %v6709, 4294901760
    %6773 = vmatpush1.msra.mxu0 %v6772
    %6774 = vmatprep.subr.mxu0 0.0
    %6775 = vmatpush2.msra.mxu0 0.0
    %6776 = vmatprep.subr.mxu0 0.0
    %6777 = vmatpush2.msra.mxu0 0.0
    %6778 = vmatprep.subr.mxu0 0.0
    %6779 = vmatpush2.msra.mxu0 0.0
    %6780 = vmatprep.subr.mxu0 0.0
    %6781 = vmatpush2.msra.mxu0 0.0
    %6782 = vmatprep.subr.mxu0 0.0
    %6783 = vmatpush2.msra.mxu0 0.0
    %6784 = vmatprep.subr.mxu0 0.0
    %6785 = vmatpush2.msra.mxu0 0.0
    %6786 = vmatprep.subr.mxu0 0.0
    %6787 = vmatpush2.msra.mxu0 0.0
    %6788 = vmatprep.subr.mxu0 0.0
    %6789 = vmatpush2.msra.mxu0 0.0
    %6790 = vmatprep.subr.mxu0 0.0
    %6791 = vmatpush2.msra.mxu0 0.0
    %6792 = vmatprep.subr.mxu0 0.0
    %6793 = vmatpush2.msra.mxu0 0.0
    %6794 = vmatprep.subr.mxu0 0.0
    %6795 = vmatpush2.msra.mxu0 0.0
    %6796 = vmatprep.subr.mxu0 0.0
    %6797 = vmatpush2.msra.mxu0 0.0
    %6798 = vmatprep.subr.mxu0 0.0
    %6799 = vmatpush2.msra.mxu0 0.0
    %6800 = vmatprep.subr.mxu0 0.0
    %6801 = vmatpush2.msra.mxu0 0.0
    %6802 = vmatprep.subr.mxu0 0.0
    %6803 = vmatpush2.msra.mxu0 0.0
    %6804 = vmatprep.subr.mxu0 0.0
    %6805 = vmatpush2.msra.mxu0 0.0
    %6806 = vmatprep.mubr.f32.mxu0 0.0
    %v6807 = vand.u32 %v6708, 4294901760
    %v6808 = vsub.f32 %v6708, %v6807
    %v6809 = vand.u32 %v6808, 4294901760
    %v6810 = vsub.f32 %v6808, %v6809
    %v6811 = vand.u32 %v6810, 4294901760
    %6812 = vmatmul.mubr.f32.gmra.mxu0 %v6811
    %v6813 = vpop.f32.mrf.mxu0
    %v6814 = vadd.f32 %v6725, %v6813
    %v6815 = vpop.f32.mrf.mxu0
    %6816 = vdwg.mxu0
    %6817 = vmatprep.subr.mxu0 0.0
    %v6818 = vand.u32 %v6724, 4294901760
    %v6819 = vsub.f32 %v6724, %v6818
    %v6820 = vand.u32 %v6819, 4294901760
    %v6821 = vsub.f32 %v6819, %v6820
    %v6822 = vand.u32 %v6821, 4294901760
    %6823 = vmatpush1.msra.mxu0 %v6822
    %6824 = vmatprep.subr.mxu0 0.0
    %v6825 = vand.u32 %v6723, 4294901760
    %v6826 = vsub.f32 %v6723, %v6825
    %v6827 = vand.u32 %v6826, 4294901760
    %v6828 = vsub.f32 %v6826, %v6827
    %v6829 = vand.u32 %v6828, 4294901760
    %6830 = vmatpush1.msra.mxu0 %v6829
    %6831 = vmatprep.subr.mxu0 0.0
    %v6832 = vand.u32 %v6722, 4294901760
    %v6833 = vsub.f32 %v6722, %v6832
    %v6834 = vand.u32 %v6833, 4294901760
    %v6835 = vsub.f32 %v6833, %v6834
    %v6836 = vand.u32 %v6835, 4294901760
    %6837 = vmatpush1.msra.mxu0 %v6836
    %6838 = vmatprep.subr.mxu0 0.0
    %v6839 = vand.u32 %v6721, 4294901760
    %v6840 = vsub.f32 %v6721, %v6839
    %v6841 = vand.u32 %v6840, 4294901760
    %v6842 = vsub.f32 %v6840, %v6841
    %v6843 = vand.u32 %v6842, 4294901760
    %6844 = vmatpush1.msra.mxu0 %v6843
    %6845 = vmatprep.subr.mxu0 0.0
    %v6846 = vand.u32 %v6720, 4294901760
    %v6847 = vsub.f32 %v6720, %v6846
    %v6848 = vand.u32 %v6847, 4294901760
    %v6849 = vsub.f32 %v6847, %v6848
    %v6850 = vand.u32 %v6849, 4294901760
    %6851 = vmatpush1.msra.mxu0 %v6850
    %6852 = vmatprep.subr.mxu0 0.0
    %v6853 = vand.u32 %v6719, 4294901760
    %v6854 = vsub.f32 %v6719, %v6853
    %v6855 = vand.u32 %v6854, 4294901760
    %v6856 = vsub.f32 %v6854, %v6855
    %v6857 = vand.u32 %v6856, 4294901760
    %6858 = vmatpush1.msra.mxu0 %v6857
    %6859 = vmatprep.subr.mxu0 0.0
    %v6860 = vand.u32 %v6718, 4294901760
    %v6861 = vsub.f32 %v6718, %v6860
    %v6862 = vand.u32 %v6861, 4294901760
    %v6863 = vsub.f32 %v6861, %v6862
    %v6864 = vand.u32 %v6863, 4294901760
    %6865 = vmatpush1.msra.mxu0 %v6864
    %6866 = vmatprep.subr.mxu0 0.0
    %v6867 = vand.u32 %v6717, 4294901760
    %v6868 = vsub.f32 %v6717, %v6867
    %v6869 = vand.u32 %v6868, 4294901760
    %v6870 = vsub.f32 %v6868, %v6869
    %v6871 = vand.u32 %v6870, 4294901760
    %6872 = vmatpush1.msra.mxu0 %v6871
    %6873 = vmatprep.subr.mxu0 0.0
    %v6874 = vand.u32 %v6716, 4294901760
    %v6875 = vsub.f32 %v6716, %v6874
    %v6876 = vand.u32 %v6875, 4294901760
    %v6877 = vsub.f32 %v6875, %v6876
    %v6878 = vand.u32 %v6877, 4294901760
    %6879 = vmatpush1.msra.mxu0 %v6878
    %6880 = vmatprep.subr.mxu0 0.0
    %v6881 = vand.u32 %v6715, 4294901760
    %v6882 = vsub.f32 %v6715, %v6881
    %v6883 = vand.u32 %v6882, 4294901760
    %v6884 = vsub.f32 %v6882, %v6883
    %v6885 = vand.u32 %v6884, 4294901760
    %6886 = vmatpush1.msra.mxu0 %v6885
    %6887 = vmatprep.subr.mxu0 0.0
    %v6888 = vand.u32 %v6714, 4294901760
    %v6889 = vsub.f32 %v6714, %v6888
    %v6890 = vand.u32 %v6889, 4294901760
    %v6891 = vsub.f32 %v6889, %v6890
    %v6892 = vand.u32 %v6891, 4294901760
    %6893 = vmatpush1.msra.mxu0 %v6892
    %6894 = vmatprep.subr.mxu0 0.0
    %v6895 = vand.u32 %v6713, 4294901760
    %v6896 = vsub.f32 %v6713, %v6895
    %v6897 = vand.u32 %v6896, 4294901760
    %v6898 = vsub.f32 %v6896, %v6897
    %v6899 = vand.u32 %v6898, 4294901760
    %6900 = vmatpush1.msra.mxu0 %v6899
    %6901 = vmatprep.subr.mxu0 0.0
    %v6902 = vand.u32 %v6712, 4294901760
    %v6903 = vsub.f32 %v6712, %v6902
    %v6904 = vand.u32 %v6903, 4294901760
    %v6905 = vsub.f32 %v6903, %v6904
    %v6906 = vand.u32 %v6905, 4294901760
    %6907 = vmatpush1.msra.mxu0 %v6906
    %6908 = vmatprep.subr.mxu0 0.0
    %v6909 = vand.u32 %v6711, 4294901760
    %v6910 = vsub.f32 %v6711, %v6909
    %v6911 = vand.u32 %v6910, 4294901760
    %v6912 = vsub.f32 %v6910, %v6911
    %v6913 = vand.u32 %v6912, 4294901760
    %6914 = vmatpush1.msra.mxu0 %v6913
    %6915 = vmatprep.subr.mxu0 0.0
    %v6916 = vand.u32 %v6710, 4294901760
    %v6917 = vsub.f32 %v6710, %v6916
    %v6918 = vand.u32 %v6917, 4294901760
    %v6919 = vsub.f32 %v6917, %v6918
    %v6920 = vand.u32 %v6919, 4294901760
    %6921 = vmatpush1.msra.mxu0 %v6920
    %6922 = vmatprep.subr.mxu0 0.0
    %v6923 = vand.u32 %v6709, 4294901760
    %v6924 = vsub.f32 %v6709, %v6923
    %v6925 = vand.u32 %v6924, 4294901760
    %v6926 = vsub.f32 %v6924, %v6925
    %v6927 = vand.u32 %v6926, 4294901760
    %6928 = vmatpush1.msra.mxu0 %v6927
    %6929 = vmatprep.subr.mxu0 0.0
    %6930 = vmatpush2.msra.mxu0 0.0
    %6931 = vmatprep.subr.mxu0 0.0
    %6932 = vmatpush2.msra.mxu0 0.0
    %6933 = vmatprep.subr.mxu0 0.0
    %6934 = vmatpush2.msra.mxu0 0.0
    %6935 = vmatprep.subr.mxu0 0.0
    %6936 = vmatpush2.msra.mxu0 0.0
    %6937 = vmatprep.subr.mxu0 0.0
    %6938 = vmatpush2.msra.mxu0 0.0
    %6939 = vmatprep.subr.mxu0 0.0
    %6940 = vmatpush2.msra.mxu0 0.0
    %6941 = vmatprep.subr.mxu0 0.0
    %6942 = vmatpush2.msra.mxu0 0.0
    %6943 = vmatprep.subr.mxu0 0.0
    %6944 = vmatpush2.msra.mxu0 0.0
    %6945 = vmatprep.subr.mxu0 0.0
    %6946 = vmatpush2.msra.mxu0 0.0
    %6947 = vmatprep.subr.mxu0 0.0
    %6948 = vmatpush2.msra.mxu0 0.0
    %6949 = vmatprep.subr.mxu0 0.0
    %6950 = vmatpush2.msra.mxu0 0.0
    %6951 = vmatprep.subr.mxu0 0.0
    %6952 = vmatpush2.msra.mxu0 0.0
    %6953 = vmatprep.subr.mxu0 0.0
    %6954 = vmatpush2.msra.mxu0 0.0
    %6955 = vmatprep.subr.mxu0 0.0
    %6956 = vmatpush2.msra.mxu0 0.0
    %6957 = vmatprep.subr.mxu0 0.0
    %6958 = vmatpush2.msra.mxu0 0.0
    %6959 = vmatprep.subr.mxu0 0.0
    %6960 = vmatpush2.msra.mxu0 0.0
    %6961 = vmatprep.mubr.f32.mxu0 0.0
    %v6962 = vand.u32 %v6708, 4294901760
    %6963 = vmatmul.mubr.f32.gmra.mxu0 %v6962
    %v6964 = vpop.f32.mrf.mxu0
    %v6965 = vadd.f32 %v6814, %v6964
    %v6966 = vpop.f32.mrf.mxu0
    %6967 = vdwg.mxu0
    %6968 = vmatprep.subr.mxu0 0.0
    %v6969 = vand.u32 %v6724, 4294901760
    %v6970 = vsub.f32 %v6724, %v6969
    %6971 = vmatpush1.msra.mxu0 %v6970
    %6972 = vmatprep.subr.mxu0 0.0
    %v6973 = vand.u32 %v6723, 4294901760
    %v6974 = vsub.f32 %v6723, %v6973
    %6975 = vmatpush1.msra.mxu0 %v6974
    %6976 = vmatprep.subr.mxu0 0.0
    %v6977 = vand.u32 %v6722, 4294901760
    %v6978 = vsub.f32 %v6722, %v6977
    %6979 = vmatpush1.msra.mxu0 %v6978
    %6980 = vmatprep.subr.mxu0 0.0
    %v6981 = vand.u32 %v6721, 4294901760
    %v6982 = vsub.f32 %v6721, %v6981
    %6983 = vmatpush1.msra.mxu0 %v6982
    %6984 = vmatprep.subr.mxu0 0.0
    %v6985 = vand.u32 %v6720, 4294901760
    %v6986 = vsub.f32 %v6720, %v6985
    %6987 = vmatpush1.msra.mxu0 %v6986
    %6988 = vmatprep.subr.mxu0 0.0
    %v6989 = vand.u32 %v6719, 4294901760
    %v6990 = vsub.f32 %v6719, %v6989
    %6991 = vmatpush1.msra.mxu0 %v6990
    %6992 = vmatprep.subr.mxu0 0.0
    %v6993 = vand.u32 %v6718, 4294901760
    %v6994 = vsub.f32 %v6718, %v6993
    %6995 = vmatpush1.msra.mxu0 %v6994
    %6996 = vmatprep.subr.mxu0 0.0
    %v6997 = vand.u32 %v6717, 4294901760
    %v6998 = vsub.f32 %v6717, %v6997
    %6999 = vmatpush1.msra.mxu0 %v6998
    %7000 = vmatprep.subr.mxu0 0.0
    %v7001 = vand.u32 %v6716, 4294901760
    %v7002 = vsub.f32 %v6716, %v7001
    %7003 = vmatpush1.msra.mxu0 %v7002
    %7004 = vmatprep.subr.mxu0 0.0
    %v7005 = vand.u32 %v6715, 4294901760
    %v7006 = vsub.f32 %v6715, %v7005
    %7007 = vmatpush1.msra.mxu0 %v7006
    %7008 = vmatprep.subr.mxu0 0.0
    %v7009 = vand.u32 %v6714, 4294901760
    %v7010 = vsub.f32 %v6714, %v7009
    %7011 = vmatpush1.msra.mxu0 %v7010
    %7012 = vmatprep.subr.mxu0 0.0
    %v7013 = vand.u32 %v6713, 4294901760
    %v7014 = vsub.f32 %v6713, %v7013
    %7015 = vmatpush1.msra.mxu0 %v7014
    %7016 = vmatprep.subr.mxu0 0.0
    %v7017 = vand.u32 %v6712, 4294901760
    %v7018 = vsub.f32 %v6712, %v7017
    %7019 = vmatpush1.msra.mxu0 %v7018
    %7020 = vmatprep.subr.mxu0 0.0
    %v7021 = vand.u32 %v6711, 4294901760
    %v7022 = vsub.f32 %v6711, %v7021
    %7023 = vmatpush1.msra.mxu0 %v7022
    %7024 = vmatprep.subr.mxu0 0.0
    %v7025 = vand.u32 %v6710, 4294901760
    %v7026 = vsub.f32 %v6710, %v7025
    %7027 = vmatpush1.msra.mxu0 %v7026
    %7028 = vmatprep.subr.mxu0 0.0
    %v7029 = vand.u32 %v6709, 4294901760
    %v7030 = vsub.f32 %v6709, %v7029
    %7031 = vmatpush1.msra.mxu0 %v7030
    %7032 = vmatprep.subr.mxu0 0.0
    %7033 = vmatpush2.msra.mxu0 0.0
    %7034 = vmatprep.subr.mxu0 0.0
    %7035 = vmatpush2.msra.mxu0 0.0
    %7036 = vmatprep.subr.mxu0 0.0
    %7037 = vmatpush2.msra.mxu0 0.0
    %7038 = vmatprep.subr.mxu0 0.0
    %7039 = vmatpush2.msra.mxu0 0.0
    %7040 = vmatprep.subr.mxu0 0.0
    %7041 = vmatpush2.msra.mxu0 0.0
    %7042 = vmatprep.subr.mxu0 0.0
    %7043 = vmatpush2.msra.mxu0 0.0
    %7044 = vmatprep.subr.mxu0 0.0
    %7045 = vmatpush2.msra.mxu0 0.0
    %7046 = vmatprep.subr.mxu0 0.0
    %7047 = vmatpush2.msra.mxu0 0.0
    %7048 = vmatprep.subr.mxu0 0.0
    %7049 = vmatpush2.msra.mxu0 0.0
    %7050 = vmatprep.subr.mxu0 0.0
    %7051 = vmatpush2.msra.mxu0 0.0
    %7052 = vmatprep.subr.mxu0 0.0
    %7053 = vmatpush2.msra.mxu0 0.0
    %7054 = vmatprep.subr.mxu0 0.0
    %7055 = vmatpush2.msra.mxu0 0.0
    %7056 = vmatprep.subr.mxu0 0.0
    %7057 = vmatpush2.msra.mxu0 0.0
    %7058 = vmatprep.subr.mxu0 0.0
    %7059 = vmatpush2.msra.mxu0 0.0
    %7060 = vmatprep.subr.mxu0 0.0
    %7061 = vmatpush2.msra.mxu0 0.0
    %7062 = vmatprep.subr.mxu0 0.0
    %7063 = vmatpush2.msra.mxu0 0.0
    %7064 = vmatprep.mubr.f32.mxu0 0.0
    %v7065 = vand.u32 %v6708, 4294901760
    %v7066 = vsub.f32 %v6708, %v7065
    %7067 = vmatmul.mubr.f32.gmra.mxu0 %v7066
    %v7068 = vpop.f32.mrf.mxu0
    %v7069 = vadd.f32 %v6965, %v7068
    %v7070 = vpop.f32.mrf.mxu0
    %7071 = vdwg.mxu0
    %7072 = vmatprep.subr.mxu0 0.0
    %v7073 = vand.u32 %v6724, 4294901760
    %7074 = vmatpush1.msra.mxu0 %v7073
    %7075 = vmatprep.subr.mxu0 0.0
    %v7076 = vand.u32 %v6723, 4294901760
    %7077 = vmatpush1.msra.mxu0 %v7076
    %7078 = vmatprep.subr.mxu0 0.0
    %v7079 = vand.u32 %v6722, 4294901760
    %7080 = vmatpush1.msra.mxu0 %v7079
    %7081 = vmatprep.subr.mxu0 0.0
    %v7082 = vand.u32 %v6721, 4294901760
    %7083 = vmatpush1.msra.mxu0 %v7082
    %7084 = vmatprep.subr.mxu0 0.0
    %v7085 = vand.u32 %v6720, 4294901760
    %7086 = vmatpush1.msra.mxu0 %v7085
    %7087 = vmatprep.subr.mxu0 0.0
    %v7088 = vand.u32 %v6719, 4294901760
    %7089 = vmatpush1.msra.mxu0 %v7088
    %7090 = vmatprep.subr.mxu0 0.0
    %v7091 = vand.u32 %v6718, 4294901760
    %7092 = vmatpush1.msra.mxu0 %v7091
    %7093 = vmatprep.subr.mxu0 0.0
    %v7094 = vand.u32 %v6717, 4294901760
    %7095 = vmatpush1.msra.mxu0 %v7094
    %7096 = vmatprep.subr.mxu0 0.0
    %v7097 = vand.u32 %v6716, 4294901760
    %7098 = vmatpush1.msra.mxu0 %v7097
    %7099 = vmatprep.subr.mxu0 0.0
    %v7100 = vand.u32 %v6715, 4294901760
    %7101 = vmatpush1.msra.mxu0 %v7100
    %7102 = vmatprep.subr.mxu0 0.0
    %v7103 = vand.u32 %v6714, 4294901760
    %7104 = vmatpush1.msra.mxu0 %v7103
    %7105 = vmatprep.subr.mxu0 0.0
    %v7106 = vand.u32 %v6713, 4294901760
    %7107 = vmatpush1.msra.mxu0 %v7106
    %7108 = vmatprep.subr.mxu0 0.0
    %v7109 = vand.u32 %v6712, 4294901760
    %7110 = vmatpush1.msra.mxu0 %v7109
    %7111 = vmatprep.subr.mxu0 0.0
    %v7112 = vand.u32 %v6711, 4294901760
    %7113 = vmatpush1.msra.mxu0 %v7112
    %7114 = vmatprep.subr.mxu0 0.0
    %v7115 = vand.u32 %v6710, 4294901760
    %7116 = vmatpush1.msra.mxu0 %v7115
    %7117 = vmatprep.subr.mxu0 0.0
    %v7118 = vand.u32 %v6709, 4294901760
    %7119 = vmatpush1.msra.mxu0 %v7118
    %7120 = vmatprep.subr.mxu0 0.0
    %7121 = vmatpush2.msra.mxu0 0.0
    %7122 = vmatprep.subr.mxu0 0.0
    %7123 = vmatpush2.msra.mxu0 0.0
    %7124 = vmatprep.subr.mxu0 0.0
    %7125 = vmatpush2.msra.mxu0 0.0
    %7126 = vmatprep.subr.mxu0 0.0
    %7127 = vmatpush2.msra.mxu0 0.0
    %7128 = vmatprep.subr.mxu0 0.0
    %7129 = vmatpush2.msra.mxu0 0.0
    %7130 = vmatprep.subr.mxu0 0.0
    %7131 = vmatpush2.msra.mxu0 0.0
    %7132 = vmatprep.subr.mxu0 0.0
    %7133 = vmatpush2.msra.mxu0 0.0
    %7134 = vmatprep.subr.mxu0 0.0
    %7135 = vmatpush2.msra.mxu0 0.0
    %7136 = vmatprep.subr.mxu0 0.0
    %7137 = vmatpush2.msra.mxu0 0.0
    %7138 = vmatprep.subr.mxu0 0.0
    %7139 = vmatpush2.msra.mxu0 0.0
    %7140 = vmatprep.subr.mxu0 0.0
    %7141 = vmatpush2.msra.mxu0 0.0
    %7142 = vmatprep.subr.mxu0 0.0
    %7143 = vmatpush2.msra.mxu0 0.0
    %7144 = vmatprep.subr.mxu0 0.0
    %7145 = vmatpush2.msra.mxu0 0.0
    %7146 = vmatprep.subr.mxu0 0.0
    %7147 = vmatpush2.msra.mxu0 0.0
    %7148 = vmatprep.subr.mxu0 0.0
    %7149 = vmatpush2.msra.mxu0 0.0
    %7150 = vmatprep.subr.mxu0 0.0
    %7151 = vmatpush2.msra.mxu0 0.0
    %7152 = vmatprep.mubr.f32.mxu0 0.0
    %v7153 = vand.u32 %v6708, 4294901760
    %v7154 = vsub.f32 %v6708, %v7153
    %v7155 = vand.u32 %v7154, 4294901760
    %7156 = vmatmul.mubr.f32.gmra.mxu0 %v7155
    %v7157 = vpop.f32.mrf.mxu0
    %v7158 = vadd.f32 %v7069, %v7157
    %v7159 = vpop.f32.mrf.mxu0
    %7160 = vdwg.mxu0
    %7161 = vmatprep.subr.mxu0 0.0
    %v7162 = vand.u32 %v6724, 4294901760
    %v7163 = vsub.f32 %v6724, %v7162
    %v7164 = vand.u32 %v7163, 4294901760
    %7165 = vmatpush1.msra.mxu0 %v7164
    %7166 = vmatprep.subr.mxu0 0.0
    %v7167 = vand.u32 %v6723, 4294901760
    %v7168 = vsub.f32 %v6723, %v7167
    %v7169 = vand.u32 %v7168, 4294901760
    %7170 = vmatpush1.msra.mxu0 %v7169
    %7171 = vmatprep.subr.mxu0 0.0
    %v7172 = vand.u32 %v6722, 4294901760
    %v7173 = vsub.f32 %v6722, %v7172
    %v7174 = vand.u32 %v7173, 4294901760
    %7175 = vmatpush1.msra.mxu0 %v7174
    %7176 = vmatprep.subr.mxu0 0.0
    %v7177 = vand.u32 %v6721, 4294901760
    %v7178 = vsub.f32 %v6721, %v7177
    %v7179 = vand.u32 %v7178, 4294901760
    %7180 = vmatpush1.msra.mxu0 %v7179
    %7181 = vmatprep.subr.mxu0 0.0
    %v7182 = vand.u32 %v6720, 4294901760
    %v7183 = vsub.f32 %v6720, %v7182
    %v7184 = vand.u32 %v7183, 4294901760
    %7185 = vmatpush1.msra.mxu0 %v7184
    %7186 = vmatprep.subr.mxu0 0.0
    %v7187 = vand.u32 %v6719, 4294901760
    %v7188 = vsub.f32 %v6719, %v7187
    %v7189 = vand.u32 %v7188, 4294901760
    %7190 = vmatpush1.msra.mxu0 %v7189
    %7191 = vmatprep.subr.mxu0 0.0
    %v7192 = vand.u32 %v6718, 4294901760
    %v7193 = vsub.f32 %v6718, %v7192
    %v7194 = vand.u32 %v7193, 4294901760
    %7195 = vmatpush1.msra.mxu0 %v7194
    %7196 = vmatprep.subr.mxu0 0.0
    %v7197 = vand.u32 %v6717, 4294901760
    %v7198 = vsub.f32 %v6717, %v7197
    %v7199 = vand.u32 %v7198, 4294901760
    %7200 = vmatpush1.msra.mxu0 %v7199
    %7201 = vmatprep.subr.mxu0 0.0
    %v7202 = vand.u32 %v6716, 4294901760
    %v7203 = vsub.f32 %v6716, %v7202
    %v7204 = vand.u32 %v7203, 4294901760
    %7205 = vmatpush1.msra.mxu0 %v7204
    %7206 = vmatprep.subr.mxu0 0.0
    %v7207 = vand.u32 %v6715, 4294901760
    %v7208 = vsub.f32 %v6715, %v7207
    %v7209 = vand.u32 %v7208, 4294901760
    %7210 = vmatpush1.msra.mxu0 %v7209
    %7211 = vmatprep.subr.mxu0 0.0
    %v7212 = vand.u32 %v6714, 4294901760
    %v7213 = vsub.f32 %v6714, %v7212
    %v7214 = vand.u32 %v7213, 4294901760
    %7215 = vmatpush1.msra.mxu0 %v7214
    %7216 = vmatprep.subr.mxu0 0.0
    %v7217 = vand.u32 %v6713, 4294901760
    %v7218 = vsub.f32 %v6713, %v7217
    %v7219 = vand.u32 %v7218, 4294901760
    %7220 = vmatpush1.msra.mxu0 %v7219
    %7221 = vmatprep.subr.mxu0 0.0
    %v7222 = vand.u32 %v6712, 4294901760
    %v7223 = vsub.f32 %v6712, %v7222
    %v7224 = vand.u32 %v7223, 4294901760
    %7225 = vmatpush1.msra.mxu0 %v7224
    %7226 = vmatprep.subr.mxu0 0.0
    %v7227 = vand.u32 %v6711, 4294901760
    %v7228 = vsub.f32 %v6711, %v7227
    %v7229 = vand.u32 %v7228, 4294901760
    %7230 = vmatpush1.msra.mxu0 %v7229
    %7231 = vmatprep.subr.mxu0 0.0
    %v7232 = vand.u32 %v6710, 4294901760
    %v7233 = vsub.f32 %v6710, %v7232
    %v7234 = vand.u32 %v7233, 4294901760
    %7235 = vmatpush1.msra.mxu0 %v7234
    %7236 = vmatprep.subr.mxu0 0.0
    %v7237 = vand.u32 %v6709, 4294901760
    %v7238 = vsub.f32 %v6709, %v7237
    %v7239 = vand.u32 %v7238, 4294901760
    %7240 = vmatpush1.msra.mxu0 %v7239
    %7241 = vmatprep.subr.mxu0 0.0
    %7242 = vmatpush2.msra.mxu0 0.0
    %7243 = vmatprep.subr.mxu0 0.0
    %7244 = vmatpush2.msra.mxu0 0.0
    %7245 = vmatprep.subr.mxu0 0.0
    %7246 = vmatpush2.msra.mxu0 0.0
    %7247 = vmatprep.subr.mxu0 0.0
    %7248 = vmatpush2.msra.mxu0 0.0
    %7249 = vmatprep.subr.mxu0 0.0
    %7250 = vmatpush2.msra.mxu0 0.0
    %7251 = vmatprep.subr.mxu0 0.0
    %7252 = vmatpush2.msra.mxu0 0.0
    %7253 = vmatprep.subr.mxu0 0.0
    %7254 = vmatpush2.msra.mxu0 0.0
    %7255 = vmatprep.subr.mxu0 0.0
    %7256 = vmatpush2.msra.mxu0 0.0
    %7257 = vmatprep.subr.mxu0 0.0
    %7258 = vmatpush2.msra.mxu0 0.0
    %7259 = vmatprep.subr.mxu0 0.0
    %7260 = vmatpush2.msra.mxu0 0.0
    %7261 = vmatprep.subr.mxu0 0.0
    %7262 = vmatpush2.msra.mxu0 0.0
    %7263 = vmatprep.subr.mxu0 0.0
    %7264 = vmatpush2.msra.mxu0 0.0
    %7265 = vmatprep.subr.mxu0 0.0
    %7266 = vmatpush2.msra.mxu0 0.0
    %7267 = vmatprep.subr.mxu0 0.0
    %7268 = vmatpush2.msra.mxu0 0.0
    %7269 = vmatprep.subr.mxu0 0.0
    %7270 = vmatpush2.msra.mxu0 0.0
    %7271 = vmatprep.subr.mxu0 0.0
    %7272 = vmatpush2.msra.mxu0 0.0
    %7273 = vmatprep.mubr.f32.mxu0 0.0
    %v7274 = vand.u32 %v6708, 4294901760
    %7275 = vmatmul.mubr.f32.gmra.mxu0 %v7274
    %v7276 = vpop.f32.mrf.mxu0
    %v7277 = vadd.f32 %v7158, %v7276
    %v7278 = vpop.f32.mrf.mxu0
    %7279 = vdwg.mxu0
    %7280 = vmatprep.subr.mxu0 0.0
    %v7281 = vand.u32 %v6724, 4294901760
    %7282 = vmatpush1.msra.mxu0 %v7281
    %7283 = vmatprep.subr.mxu0 0.0
    %v7284 = vand.u32 %v6723, 4294901760
    %7285 = vmatpush1.msra.mxu0 %v7284
    %7286 = vmatprep.subr.mxu0 0.0
    %v7287 = vand.u32 %v6722, 4294901760
    %7288 = vmatpush1.msra.mxu0 %v7287
    %7289 = vmatprep.subr.mxu0 0.0
    %v7290 = vand.u32 %v6721, 4294901760
    %7291 = vmatpush1.msra.mxu0 %v7290
    %7292 = vmatprep.subr.mxu0 0.0
    %v7293 = vand.u32 %v6720, 4294901760
    %7294 = vmatpush1.msra.mxu0 %v7293
    %7295 = vmatprep.subr.mxu0 0.0
    %v7296 = vand.u32 %v6719, 4294901760
    %7297 = vmatpush1.msra.mxu0 %v7296
    %7298 = vmatprep.subr.mxu0 0.0
    %v7299 = vand.u32 %v6718, 4294901760
    %7300 = vmatpush1.msra.mxu0 %v7299
    %7301 = vmatprep.subr.mxu0 0.0
    %v7302 = vand.u32 %v6717, 4294901760
    %7303 = vmatpush1.msra.mxu0 %v7302
    %7304 = vmatprep.subr.mxu0 0.0
    %v7305 = vand.u32 %v6716, 4294901760
    %7306 = vmatpush1.msra.mxu0 %v7305
    %7307 = vmatprep.subr.mxu0 0.0
    %v7308 = vand.u32 %v6715, 4294901760
    %7309 = vmatpush1.msra.mxu0 %v7308
    %7310 = vmatprep.subr.mxu0 0.0
    %v7311 = vand.u32 %v6714, 4294901760
    %7312 = vmatpush1.msra.mxu0 %v7311
    %7313 = vmatprep.subr.mxu0 0.0
    %v7314 = vand.u32 %v6713, 4294901760
    %7315 = vmatpush1.msra.mxu0 %v7314
    %7316 = vmatprep.subr.mxu0 0.0
    %v7317 = vand.u32 %v6712, 4294901760
    %7318 = vmatpush1.msra.mxu0 %v7317
    %7319 = vmatprep.subr.mxu0 0.0
    %v7320 = vand.u32 %v6711, 4294901760
    %7321 = vmatpush1.msra.mxu0 %v7320
    %7322 = vmatprep.subr.mxu0 0.0
    %v7323 = vand.u32 %v6710, 4294901760
    %7324 = vmatpush1.msra.mxu0 %v7323
    %7325 = vmatprep.subr.mxu0 0.0
    %v7326 = vand.u32 %v6709, 4294901760
    %7327 = vmatpush1.msra.mxu0 %v7326
    %7328 = vmatprep.subr.mxu0 0.0
    %7329 = vmatpush2.msra.mxu0 0.0
    %7330 = vmatprep.subr.mxu0 0.0
    %7331 = vmatpush2.msra.mxu0 0.0
    %7332 = vmatprep.subr.mxu0 0.0
    %7333 = vmatpush2.msra.mxu0 0.0
    %7334 = vmatprep.subr.mxu0 0.0
    %7335 = vmatpush2.msra.mxu0 0.0
    %7336 = vmatprep.subr.mxu0 0.0
    %7337 = vmatpush2.msra.mxu0 0.0
    %7338 = vmatprep.subr.mxu0 0.0
    %7339 = vmatpush2.msra.mxu0 0.0
    %7340 = vmatprep.subr.mxu0 0.0
    %7341 = vmatpush2.msra.mxu0 0.0
    %7342 = vmatprep.subr.mxu0 0.0
    %7343 = vmatpush2.msra.mxu0 0.0
    %7344 = vmatprep.subr.mxu0 0.0
    %7345 = vmatpush2.msra.mxu0 0.0
    %7346 = vmatprep.subr.mxu0 0.0
    %7347 = vmatpush2.msra.mxu0 0.0
    %7348 = vmatprep.subr.mxu0 0.0
    %7349 = vmatpush2.msra.mxu0 0.0
    %7350 = vmatprep.subr.mxu0 0.0
    %7351 = vmatpush2.msra.mxu0 0.0
    %7352 = vmatprep.subr.mxu0 0.0
    %7353 = vmatpush2.msra.mxu0 0.0
    %7354 = vmatprep.subr.mxu0 0.0
    %7355 = vmatpush2.msra.mxu0 0.0
    %7356 = vmatprep.subr.mxu0 0.0
    %7357 = vmatpush2.msra.mxu0 0.0
    %7358 = vmatprep.subr.mxu0 0.0
    %7359 = vmatpush2.msra.mxu0 0.0
    %7360 = vmatprep.mubr.f32.mxu0 0.0
    %v7361 = vand.u32 %v6708, 4294901760
    %7362 = vmatmul.mubr.f32.gmra.mxu0 %v7361
    %v7363 = vpop.f32.mrf.mxu0
    %v7364 = vadd.f32 %v7277, %v7363
    %v7365 = vpop.f32.mrf.mxu0
    %7366 = vdwg.mxu0
    %v7367 = vmax.f32 %v7364, 0.0
    %v7368 = vld [vmem:[#allocation2 + $0x58] sm:$0xff]
    %v7369 = vld [vmem:[#allocation2 + $0xb8] sm:$0xff]
    %v7370 = vld [vmem:[#allocation2 + $0x118] sm:$0xff]
    %v7371 = vld [vmem:[#allocation2 + $0x178] sm:$0xff]
    %v7372 = vld [vmem:[#allocation2 + $0x1d8] sm:$0xff]
    %v7373 = vld [vmem:[#allocation2 + $0x238] sm:$0xff]
    %v7374 = vld [vmem:[#allocation2 + $0x298] sm:$0xff]
    %v7375 = vld [vmem:[#allocation2 + $0x2f8] sm:$0xff]
    %v7376 = vld [vmem:[#allocation2 + $0x358] sm:$0xff]
    %v7377 = vld [vmem:[#allocation2 + $0x3b8] sm:$0xff]
    %v7378 = vld [vmem:[#allocation2 + $0x418] sm:$0xff]
    %v7379 = vld [vmem:[#allocation2 + $0x478] sm:$0xff]
    %v7380 = vld [vmem:[#allocation2 + $0x4d8] sm:$0xff]
    %v7381 = vld [vmem:[#allocation2 + $0x538] sm:$0xff]
    %v7382 = vld [vmem:[#allocation2 + $0x598] sm:$0xff]
    %v7383 = vld [vmem:[#allocation2 + $0x5f8] sm:$0xff]
    %v7384 = vld [vmem:[#allocation2 + $0x658] ss:$0 sm:$0xff]
    %7385 = vmatprep.subr.mxu0 0.0
    %v7386 = vand.u32 %v7383, 4294901760
    %7387 = vmatpush1.msra.mxu0 %v7386
    %7388 = vmatprep.subr.mxu0 0.0
    %v7389 = vand.u32 %v7382, 4294901760
    %7390 = vmatpush1.msra.mxu0 %v7389
    %7391 = vmatprep.subr.mxu0 0.0
    %v7392 = vand.u32 %v7381, 4294901760
    %7393 = vmatpush1.msra.mxu0 %v7392
    %7394 = vmatprep.subr.mxu0 0.0
    %v7395 = vand.u32 %v7380, 4294901760
    %7396 = vmatpush1.msra.mxu0 %v7395
    %7397 = vmatprep.subr.mxu0 0.0
    %v7398 = vand.u32 %v7379, 4294901760
    %7399 = vmatpush1.msra.mxu0 %v7398
    %7400 = vmatprep.subr.mxu0 0.0
    %v7401 = vand.u32 %v7378, 4294901760
    %7402 = vmatpush1.msra.mxu0 %v7401
    %7403 = vmatprep.subr.mxu0 0.0
    %v7404 = vand.u32 %v7377, 4294901760
    %7405 = vmatpush1.msra.mxu0 %v7404
    %7406 = vmatprep.subr.mxu0 0.0
    %v7407 = vand.u32 %v7376, 4294901760
    %7408 = vmatpush1.msra.mxu0 %v7407
    %7409 = vmatprep.subr.mxu0 0.0
    %v7410 = vand.u32 %v7375, 4294901760
    %7411 = vmatpush1.msra.mxu0 %v7410
    %7412 = vmatprep.subr.mxu0 0.0
    %v7413 = vand.u32 %v7374, 4294901760
    %7414 = vmatpush1.msra.mxu0 %v7413
    %7415 = vmatprep.subr.mxu0 0.0
    %v7416 = vand.u32 %v7373, 4294901760
    %7417 = vmatpush1.msra.mxu0 %v7416
    %7418 = vmatprep.subr.mxu0 0.0
    %v7419 = vand.u32 %v7372, 4294901760
    %7420 = vmatpush1.msra.mxu0 %v7419
    %7421 = vmatprep.subr.mxu0 0.0
    %v7422 = vand.u32 %v7371, 4294901760
    %7423 = vmatpush1.msra.mxu0 %v7422
    %7424 = vmatprep.subr.mxu0 0.0
    %v7425 = vand.u32 %v7370, 4294901760
    %7426 = vmatpush1.msra.mxu0 %v7425
    %7427 = vmatprep.subr.mxu0 0.0
    %v7428 = vand.u32 %v7369, 4294901760
    %7429 = vmatpush1.msra.mxu0 %v7428
    %7430 = vmatprep.subr.mxu0 0.0
    %v7431 = vand.u32 %v7368, 4294901760
    %7432 = vmatpush1.msra.mxu0 %v7431
    %7433 = vmatprep.subr.mxu0 0.0
    %7434 = vmatpush2.msra.mxu0 0.0
    %7435 = vmatprep.subr.mxu0 0.0
    %7436 = vmatpush2.msra.mxu0 0.0
    %7437 = vmatprep.subr.mxu0 0.0
    %7438 = vmatpush2.msra.mxu0 0.0
    %7439 = vmatprep.subr.mxu0 0.0
    %7440 = vmatpush2.msra.mxu0 0.0
    %7441 = vmatprep.subr.mxu0 0.0
    %7442 = vmatpush2.msra.mxu0 0.0
    %7443 = vmatprep.subr.mxu0 0.0
    %7444 = vmatpush2.msra.mxu0 0.0
    %7445 = vmatprep.subr.mxu0 0.0
    %7446 = vmatpush2.msra.mxu0 0.0
    %7447 = vmatprep.subr.mxu0 0.0
    %7448 = vmatpush2.msra.mxu0 0.0
    %7449 = vmatprep.subr.mxu0 0.0
    %7450 = vmatpush2.msra.mxu0 0.0
    %7451 = vmatprep.subr.mxu0 0.0
    %7452 = vmatpush2.msra.mxu0 0.0
    %7453 = vmatprep.subr.mxu0 0.0
    %7454 = vmatpush2.msra.mxu0 0.0
    %7455 = vmatprep.subr.mxu0 0.0
    %7456 = vmatpush2.msra.mxu0 0.0
    %7457 = vmatprep.subr.mxu0 0.0
    %7458 = vmatpush2.msra.mxu0 0.0
    %7459 = vmatprep.subr.mxu0 0.0
    %7460 = vmatpush2.msra.mxu0 0.0
    %7461 = vmatprep.subr.mxu0 0.0
    %7462 = vmatpush2.msra.mxu0 0.0
    %7463 = vmatprep.subr.mxu0 0.0
    %7464 = vmatpush2.msra.mxu0 0.0
    %7465 = vmatprep.mubr.f32.mxu0 0.0
    %v7466 = vand.u32 %v7367, 4294901760
    %v7467 = vsub.f32 %v7367, %v7466
    %v7468 = vand.u32 %v7467, 4294901760
    %v7469 = vsub.f32 %v7467, %v7468
    %v7470 = vand.u32 %v7469, 4294901760
    %7471 = vmatmul.mubr.f32.gmra.mxu0 %v7470
    %v7472 = vpop.f32.mrf.mxu0
    %v7473 = vadd.f32 %v7384, %v7472
    %v7474 = vpop.f32.mrf.mxu0
    %7475 = vdwg.mxu0
    %7476 = vmatprep.subr.mxu0 0.0
    %v7477 = vand.u32 %v7383, 4294901760
    %v7478 = vsub.f32 %v7383, %v7477
    %v7479 = vand.u32 %v7478, 4294901760
    %v7480 = vsub.f32 %v7478, %v7479
    %v7481 = vand.u32 %v7480, 4294901760
    %7482 = vmatpush1.msra.mxu0 %v7481
    %7483 = vmatprep.subr.mxu0 0.0
    %v7484 = vand.u32 %v7382, 4294901760
    %v7485 = vsub.f32 %v7382, %v7484
    %v7486 = vand.u32 %v7485, 4294901760
    %v7487 = vsub.f32 %v7485, %v7486
    %v7488 = vand.u32 %v7487, 4294901760
    %7489 = vmatpush1.msra.mxu0 %v7488
    %7490 = vmatprep.subr.mxu0 0.0
    %v7491 = vand.u32 %v7381, 4294901760
    %v7492 = vsub.f32 %v7381, %v7491
    %v7493 = vand.u32 %v7492, 4294901760
    %v7494 = vsub.f32 %v7492, %v7493
    %v7495 = vand.u32 %v7494, 4294901760
    %7496 = vmatpush1.msra.mxu0 %v7495
    %7497 = vmatprep.subr.mxu0 0.0
    %v7498 = vand.u32 %v7380, 4294901760
    %v7499 = vsub.f32 %v7380, %v7498
    %v7500 = vand.u32 %v7499, 4294901760
    %v7501 = vsub.f32 %v7499, %v7500
    %v7502 = vand.u32 %v7501, 4294901760
    %7503 = vmatpush1.msra.mxu0 %v7502
    %7504 = vmatprep.subr.mxu0 0.0
    %v7505 = vand.u32 %v7379, 4294901760
    %v7506 = vsub.f32 %v7379, %v7505
    %v7507 = vand.u32 %v7506, 4294901760
    %v7508 = vsub.f32 %v7506, %v7507
    %v7509 = vand.u32 %v7508, 4294901760
    %7510 = vmatpush1.msra.mxu0 %v7509
    %7511 = vmatprep.subr.mxu0 0.0
    %v7512 = vand.u32 %v7378, 4294901760
    %v7513 = vsub.f32 %v7378, %v7512
    %v7514 = vand.u32 %v7513, 4294901760
    %v7515 = vsub.f32 %v7513, %v7514
    %v7516 = vand.u32 %v7515, 4294901760
    %7517 = vmatpush1.msra.mxu0 %v7516
    %7518 = vmatprep.subr.mxu0 0.0
    %v7519 = vand.u32 %v7377, 4294901760
    %v7520 = vsub.f32 %v7377, %v7519
    %v7521 = vand.u32 %v7520, 4294901760
    %v7522 = vsub.f32 %v7520, %v7521
    %v7523 = vand.u32 %v7522, 4294901760
    %7524 = vmatpush1.msra.mxu0 %v7523
    %7525 = vmatprep.subr.mxu0 0.0
    %v7526 = vand.u32 %v7376, 4294901760
    %v7527 = vsub.f32 %v7376, %v7526
    %v7528 = vand.u32 %v7527, 4294901760
    %v7529 = vsub.f32 %v7527, %v7528
    %v7530 = vand.u32 %v7529, 4294901760
    %7531 = vmatpush1.msra.mxu0 %v7530
    %7532 = vmatprep.subr.mxu0 0.0
    %v7533 = vand.u32 %v7375, 4294901760
    %v7534 = vsub.f32 %v7375, %v7533
    %v7535 = vand.u32 %v7534, 4294901760
    %v7536 = vsub.f32 %v7534, %v7535
    %v7537 = vand.u32 %v7536, 4294901760
    %7538 = vmatpush1.msra.mxu0 %v7537
    %7539 = vmatprep.subr.mxu0 0.0
    %v7540 = vand.u32 %v7374, 4294901760
    %v7541 = vsub.f32 %v7374, %v7540
    %v7542 = vand.u32 %v7541, 4294901760
    %v7543 = vsub.f32 %v7541, %v7542
    %v7544 = vand.u32 %v7543, 4294901760
    %7545 = vmatpush1.msra.mxu0 %v7544
    %7546 = vmatprep.subr.mxu0 0.0
    %v7547 = vand.u32 %v7373, 4294901760
    %v7548 = vsub.f32 %v7373, %v7547
    %v7549 = vand.u32 %v7548, 4294901760
    %v7550 = vsub.f32 %v7548, %v7549
    %v7551 = vand.u32 %v7550, 4294901760
    %7552 = vmatpush1.msra.mxu0 %v7551
    %7553 = vmatprep.subr.mxu0 0.0
    %v7554 = vand.u32 %v7372, 4294901760
    %v7555 = vsub.f32 %v7372, %v7554
    %v7556 = vand.u32 %v7555, 4294901760
    %v7557 = vsub.f32 %v7555, %v7556
    %v7558 = vand.u32 %v7557, 4294901760
    %7559 = vmatpush1.msra.mxu0 %v7558
    %7560 = vmatprep.subr.mxu0 0.0
    %v7561 = vand.u32 %v7371, 4294901760
    %v7562 = vsub.f32 %v7371, %v7561
    %v7563 = vand.u32 %v7562, 4294901760
    %v7564 = vsub.f32 %v7562, %v7563
    %v7565 = vand.u32 %v7564, 4294901760
    %7566 = vmatpush1.msra.mxu0 %v7565
    %7567 = vmatprep.subr.mxu0 0.0
    %v7568 = vand.u32 %v7370, 4294901760
    %v7569 = vsub.f32 %v7370, %v7568
    %v7570 = vand.u32 %v7569, 4294901760
    %v7571 = vsub.f32 %v7569, %v7570
    %v7572 = vand.u32 %v7571, 4294901760
    %7573 = vmatpush1.msra.mxu0 %v7572
    %7574 = vmatprep.subr.mxu0 0.0
    %v7575 = vand.u32 %v7369, 4294901760
    %v7576 = vsub.f32 %v7369, %v7575
    %v7577 = vand.u32 %v7576, 4294901760
    %v7578 = vsub.f32 %v7576, %v7577
    %v7579 = vand.u32 %v7578, 4294901760
    %7580 = vmatpush1.msra.mxu0 %v7579
    %7581 = vmatprep.subr.mxu0 0.0
    %v7582 = vand.u32 %v7368, 4294901760
    %v7583 = vsub.f32 %v7368, %v7582
    %v7584 = vand.u32 %v7583, 4294901760
    %v7585 = vsub.f32 %v7583, %v7584
    %v7586 = vand.u32 %v7585, 4294901760
    %7587 = vmatpush1.msra.mxu0 %v7586
    %7588 = vmatprep.subr.mxu0 0.0
    %7589 = vmatpush2.msra.mxu0 0.0
    %7590 = vmatprep.subr.mxu0 0.0
    %7591 = vmatpush2.msra.mxu0 0.0
    %7592 = vmatprep.subr.mxu0 0.0
    %7593 = vmatpush2.msra.mxu0 0.0
    %7594 = vmatprep.subr.mxu0 0.0
    %7595 = vmatpush2.msra.mxu0 0.0
    %7596 = vmatprep.subr.mxu0 0.0
    %7597 = vmatpush2.msra.mxu0 0.0
    %7598 = vmatprep.subr.mxu0 0.0
    %7599 = vmatpush2.msra.mxu0 0.0
    %7600 = vmatprep.subr.mxu0 0.0
    %7601 = vmatpush2.msra.mxu0 0.0
    %7602 = vmatprep.subr.mxu0 0.0
    %7603 = vmatpush2.msra.mxu0 0.0
    %7604 = vmatprep.subr.mxu0 0.0
    %7605 = vmatpush2.msra.mxu0 0.0
    %7606 = vmatprep.subr.mxu0 0.0
    %7607 = vmatpush2.msra.mxu0 0.0
    %7608 = vmatprep.subr.mxu0 0.0
    %7609 = vmatpush2.msra.mxu0 0.0
    %7610 = vmatprep.subr.mxu0 0.0
    %7611 = vmatpush2.msra.mxu0 0.0
    %7612 = vmatprep.subr.mxu0 0.0
    %7613 = vmatpush2.msra.mxu0 0.0
    %7614 = vmatprep.subr.mxu0 0.0
    %7615 = vmatpush2.msra.mxu0 0.0
    %7616 = vmatprep.subr.mxu0 0.0
    %7617 = vmatpush2.msra.mxu0 0.0
    %7618 = vmatprep.subr.mxu0 0.0
    %7619 = vmatpush2.msra.mxu0 0.0
    %7620 = vmatprep.mubr.f32.mxu0 0.0
    %v7621 = vand.u32 %v7367, 4294901760
    %7622 = vmatmul.mubr.f32.gmra.mxu0 %v7621
    %v7623 = vpop.f32.mrf.mxu0
    %v7624 = vadd.f32 %v7473, %v7623
    %v7625 = vpop.f32.mrf.mxu0
    %7626 = vdwg.mxu0
    %7627 = vmatprep.subr.mxu0 0.0
    %v7628 = vand.u32 %v7383, 4294901760
    %v7629 = vsub.f32 %v7383, %v7628
    %7630 = vmatpush1.msra.mxu0 %v7629
    %7631 = vmatprep.subr.mxu0 0.0
    %v7632 = vand.u32 %v7382, 4294901760
    %v7633 = vsub.f32 %v7382, %v7632
    %7634 = vmatpush1.msra.mxu0 %v7633
    %7635 = vmatprep.subr.mxu0 0.0
    %v7636 = vand.u32 %v7381, 4294901760
    %v7637 = vsub.f32 %v7381, %v7636
    %7638 = vmatpush1.msra.mxu0 %v7637
    %7639 = vmatprep.subr.mxu0 0.0
    %v7640 = vand.u32 %v7380, 4294901760
    %v7641 = vsub.f32 %v7380, %v7640
    %7642 = vmatpush1.msra.mxu0 %v7641
    %7643 = vmatprep.subr.mxu0 0.0
    %v7644 = vand.u32 %v7379, 4294901760
    %v7645 = vsub.f32 %v7379, %v7644
    %7646 = vmatpush1.msra.mxu0 %v7645
    %7647 = vmatprep.subr.mxu0 0.0
    %v7648 = vand.u32 %v7378, 4294901760
    %v7649 = vsub.f32 %v7378, %v7648
    %7650 = vmatpush1.msra.mxu0 %v7649
    %7651 = vmatprep.subr.mxu0 0.0
    %v7652 = vand.u32 %v7377, 4294901760
    %v7653 = vsub.f32 %v7377, %v7652
    %7654 = vmatpush1.msra.mxu0 %v7653
    %7655 = vmatprep.subr.mxu0 0.0
    %v7656 = vand.u32 %v7376, 4294901760
    %v7657 = vsub.f32 %v7376, %v7656
    %7658 = vmatpush1.msra.mxu0 %v7657
    %7659 = vmatprep.subr.mxu0 0.0
    %v7660 = vand.u32 %v7375, 4294901760
    %v7661 = vsub.f32 %v7375, %v7660
    %7662 = vmatpush1.msra.mxu0 %v7661
    %7663 = vmatprep.subr.mxu0 0.0
    %v7664 = vand.u32 %v7374, 4294901760
    %v7665 = vsub.f32 %v7374, %v7664
    %7666 = vmatpush1.msra.mxu0 %v7665
    %7667 = vmatprep.subr.mxu0 0.0
    %v7668 = vand.u32 %v7373, 4294901760
    %v7669 = vsub.f32 %v7373, %v7668
    %7670 = vmatpush1.msra.mxu0 %v7669
    %7671 = vmatprep.subr.mxu0 0.0
    %v7672 = vand.u32 %v7372, 4294901760
    %v7673 = vsub.f32 %v7372, %v7672
    %7674 = vmatpush1.msra.mxu0 %v7673
    %7675 = vmatprep.subr.mxu0 0.0
    %v7676 = vand.u32 %v7371, 4294901760
    %v7677 = vsub.f32 %v7371, %v7676
    %7678 = vmatpush1.msra.mxu0 %v7677
    %7679 = vmatprep.subr.mxu0 0.0
    %v7680 = vand.u32 %v7370, 4294901760
    %v7681 = vsub.f32 %v7370, %v7680
    %7682 = vmatpush1.msra.mxu0 %v7681
    %7683 = vmatprep.subr.mxu0 0.0
    %v7684 = vand.u32 %v7369, 4294901760
    %v7685 = vsub.f32 %v7369, %v7684
    %7686 = vmatpush1.msra.mxu0 %v7685
    %7687 = vmatprep.subr.mxu0 0.0
    %v7688 = vand.u32 %v7368, 4294901760
    %v7689 = vsub.f32 %v7368, %v7688
    %7690 = vmatpush1.msra.mxu0 %v7689
    %7691 = vmatprep.subr.mxu0 0.0
    %7692 = vmatpush2.msra.mxu0 0.0
    %7693 = vmatprep.subr.mxu0 0.0
    %7694 = vmatpush2.msra.mxu0 0.0
    %7695 = vmatprep.subr.mxu0 0.0
    %7696 = vmatpush2.msra.mxu0 0.0
    %7697 = vmatprep.subr.mxu0 0.0
    %7698 = vmatpush2.msra.mxu0 0.0
    %7699 = vmatprep.subr.mxu0 0.0
    %7700 = vmatpush2.msra.mxu0 0.0
    %7701 = vmatprep.subr.mxu0 0.0
    %7702 = vmatpush2.msra.mxu0 0.0
    %7703 = vmatprep.subr.mxu0 0.0
    %7704 = vmatpush2.msra.mxu0 0.0
    %7705 = vmatprep.subr.mxu0 0.0
    %7706 = vmatpush2.msra.mxu0 0.0
    %7707 = vmatprep.subr.mxu0 0.0
    %7708 = vmatpush2.msra.mxu0 0.0
    %7709 = vmatprep.subr.mxu0 0.0
    %7710 = vmatpush2.msra.mxu0 0.0
    %7711 = vmatprep.subr.mxu0 0.0
    %7712 = vmatpush2.msra.mxu0 0.0
    %7713 = vmatprep.subr.mxu0 0.0
    %7714 = vmatpush2.msra.mxu0 0.0
    %7715 = vmatprep.subr.mxu0 0.0
    %7716 = vmatpush2.msra.mxu0 0.0
    %7717 = vmatprep.subr.mxu0 0.0
    %7718 = vmatpush2.msra.mxu0 0.0
    %7719 = vmatprep.subr.mxu0 0.0
    %7720 = vmatpush2.msra.mxu0 0.0
    %7721 = vmatprep.subr.mxu0 0.0
    %7722 = vmatpush2.msra.mxu0 0.0
    %7723 = vmatprep.mubr.f32.mxu0 0.0
    %v7724 = vand.u32 %v7367, 4294901760
    %v7725 = vsub.f32 %v7367, %v7724
    %7726 = vmatmul.mubr.f32.gmra.mxu0 %v7725
    %v7727 = vpop.f32.mrf.mxu0
    %v7728 = vadd.f32 %v7624, %v7727
    %v7729 = vpop.f32.mrf.mxu0
    %7730 = vdwg.mxu0
    %7731 = vmatprep.subr.mxu0 0.0
    %v7732 = vand.u32 %v7383, 4294901760
    %7733 = vmatpush1.msra.mxu0 %v7732
    %7734 = vmatprep.subr.mxu0 0.0
    %v7735 = vand.u32 %v7382, 4294901760
    %7736 = vmatpush1.msra.mxu0 %v7735
    %7737 = vmatprep.subr.mxu0 0.0
    %v7738 = vand.u32 %v7381, 4294901760
    %7739 = vmatpush1.msra.mxu0 %v7738
    %7740 = vmatprep.subr.mxu0 0.0
    %v7741 = vand.u32 %v7380, 4294901760
    %7742 = vmatpush1.msra.mxu0 %v7741
    %7743 = vmatprep.subr.mxu0 0.0
    %v7744 = vand.u32 %v7379, 4294901760
    %7745 = vmatpush1.msra.mxu0 %v7744
    %7746 = vmatprep.subr.mxu0 0.0
    %v7747 = vand.u32 %v7378, 4294901760
    %7748 = vmatpush1.msra.mxu0 %v7747
    %7749 = vmatprep.subr.mxu0 0.0
    %v7750 = vand.u32 %v7377, 4294901760
    %7751 = vmatpush1.msra.mxu0 %v7750
    %7752 = vmatprep.subr.mxu0 0.0
    %v7753 = vand.u32 %v7376, 4294901760
    %7754 = vmatpush1.msra.mxu0 %v7753
    %7755 = vmatprep.subr.mxu0 0.0
    %v7756 = vand.u32 %v7375, 4294901760
    %7757 = vmatpush1.msra.mxu0 %v7756
    %7758 = vmatprep.subr.mxu0 0.0
    %v7759 = vand.u32 %v7374, 4294901760
    %7760 = vmatpush1.msra.mxu0 %v7759
    %7761 = vmatprep.subr.mxu0 0.0
    %v7762 = vand.u32 %v7373, 4294901760
    %7763 = vmatpush1.msra.mxu0 %v7762
    %7764 = vmatprep.subr.mxu0 0.0
    %v7765 = vand.u32 %v7372, 4294901760
    %7766 = vmatpush1.msra.mxu0 %v7765
    %7767 = vmatprep.subr.mxu0 0.0
    %v7768 = vand.u32 %v7371, 4294901760
    %7769 = vmatpush1.msra.mxu0 %v7768
    %7770 = vmatprep.subr.mxu0 0.0
    %v7771 = vand.u32 %v7370, 4294901760
    %7772 = vmatpush1.msra.mxu0 %v7771
    %7773 = vmatprep.subr.mxu0 0.0
    %v7774 = vand.u32 %v7369, 4294901760
    %7775 = vmatpush1.msra.mxu0 %v7774
    %7776 = vmatprep.subr.mxu0 0.0
    %v7777 = vand.u32 %v7368, 4294901760
    %7778 = vmatpush1.msra.mxu0 %v7777
    %7779 = vmatprep.subr.mxu0 0.0
    %7780 = vmatpush2.msra.mxu0 0.0
    %7781 = vmatprep.subr.mxu0 0.0
    %7782 = vmatpush2.msra.mxu0 0.0
    %7783 = vmatprep.subr.mxu0 0.0
    %7784 = vmatpush2.msra.mxu0 0.0
    %7785 = vmatprep.subr.mxu0 0.0
    %7786 = vmatpush2.msra.mxu0 0.0
    %7787 = vmatprep.subr.mxu0 0.0
    %7788 = vmatpush2.msra.mxu0 0.0
    %7789 = vmatprep.subr.mxu0 0.0
    %7790 = vmatpush2.msra.mxu0 0.0
    %7791 = vmatprep.subr.mxu0 0.0
    %7792 = vmatpush2.msra.mxu0 0.0
    %7793 = vmatprep.subr.mxu0 0.0
    %7794 = vmatpush2.msra.mxu0 0.0
    %7795 = vmatprep.subr.mxu0 0.0
    %7796 = vmatpush2.msra.mxu0 0.0
    %7797 = vmatprep.subr.mxu0 0.0
    %7798 = vmatpush2.msra.mxu0 0.0
    %7799 = vmatprep.subr.mxu0 0.0
    %7800 = vmatpush2.msra.mxu0 0.0
    %7801 = vmatprep.subr.mxu0 0.0
    %7802 = vmatpush2.msra.mxu0 0.0
    %7803 = vmatprep.subr.mxu0 0.0
    %7804 = vmatpush2.msra.mxu0 0.0
    %7805 = vmatprep.subr.mxu0 0.0
    %7806 = vmatpush2.msra.mxu0 0.0
    %7807 = vmatprep.subr.mxu0 0.0
    %7808 = vmatpush2.msra.mxu0 0.0
    %7809 = vmatprep.subr.mxu0 0.0
    %7810 = vmatpush2.msra.mxu0 0.0
    %7811 = vmatprep.mubr.f32.mxu0 0.0
    %v7812 = vand.u32 %v7367, 4294901760
    %v7813 = vsub.f32 %v7367, %v7812
    %v7814 = vand.u32 %v7813, 4294901760
    %7815 = vmatmul.mubr.f32.gmra.mxu0 %v7814
    %v7816 = vpop.f32.mrf.mxu0
    %v7817 = vadd.f32 %v7728, %v7816
    %v7818 = vpop.f32.mrf.mxu0
    %7819 = vdwg.mxu0
    %7820 = vmatprep.subr.mxu0 0.0
    %v7821 = vand.u32 %v7383, 4294901760
    %v7822 = vsub.f32 %v7383, %v7821
    %v7823 = vand.u32 %v7822, 4294901760
    %7824 = vmatpush1.msra.mxu0 %v7823
    %7825 = vmatprep.subr.mxu0 0.0
    %v7826 = vand.u32 %v7382, 4294901760
    %v7827 = vsub.f32 %v7382, %v7826
    %v7828 = vand.u32 %v7827, 4294901760
    %7829 = vmatpush1.msra.mxu0 %v7828
    %7830 = vmatprep.subr.mxu0 0.0
    %v7831 = vand.u32 %v7381, 4294901760
    %v7832 = vsub.f32 %v7381, %v7831
    %v7833 = vand.u32 %v7832, 4294901760
    %7834 = vmatpush1.msra.mxu0 %v7833
    %7835 = vmatprep.subr.mxu0 0.0
    %v7836 = vand.u32 %v7380, 4294901760
    %v7837 = vsub.f32 %v7380, %v7836
    %v7838 = vand.u32 %v7837, 4294901760
    %7839 = vmatpush1.msra.mxu0 %v7838
    %7840 = vmatprep.subr.mxu0 0.0
    %v7841 = vand.u32 %v7379, 4294901760
    %v7842 = vsub.f32 %v7379, %v7841
    %v7843 = vand.u32 %v7842, 4294901760
    %7844 = vmatpush1.msra.mxu0 %v7843
    %7845 = vmatprep.subr.mxu0 0.0
    %v7846 = vand.u32 %v7378, 4294901760
    %v7847 = vsub.f32 %v7378, %v7846
    %v7848 = vand.u32 %v7847, 4294901760
    %7849 = vmatpush1.msra.mxu0 %v7848
    %7850 = vmatprep.subr.mxu0 0.0
    %v7851 = vand.u32 %v7377, 4294901760
    %v7852 = vsub.f32 %v7377, %v7851
    %v7853 = vand.u32 %v7852, 4294901760
    %7854 = vmatpush1.msra.mxu0 %v7853
    %7855 = vmatprep.subr.mxu0 0.0
    %v7856 = vand.u32 %v7376, 4294901760
    %v7857 = vsub.f32 %v7376, %v7856
    %v7858 = vand.u32 %v7857, 4294901760
    %7859 = vmatpush1.msra.mxu0 %v7858
    %7860 = vmatprep.subr.mxu0 0.0
    %v7861 = vand.u32 %v7375, 4294901760
    %v7862 = vsub.f32 %v7375, %v7861
    %v7863 = vand.u32 %v7862, 4294901760
    %7864 = vmatpush1.msra.mxu0 %v7863
    %7865 = vmatprep.subr.mxu0 0.0
    %v7866 = vand.u32 %v7374, 4294901760
    %v7867 = vsub.f32 %v7374, %v7866
    %v7868 = vand.u32 %v7867, 4294901760
    %7869 = vmatpush1.msra.mxu0 %v7868
    %7870 = vmatprep.subr.mxu0 0.0
    %v7871 = vand.u32 %v7373, 4294901760
    %v7872 = vsub.f32 %v7373, %v7871
    %v7873 = vand.u32 %v7872, 4294901760
    %7874 = vmatpush1.msra.mxu0 %v7873
    %7875 = vmatprep.subr.mxu0 0.0
    %v7876 = vand.u32 %v7372, 4294901760
    %v7877 = vsub.f32 %v7372, %v7876
    %v7878 = vand.u32 %v7877, 4294901760
    %7879 = vmatpush1.msra.mxu0 %v7878
    %7880 = vmatprep.subr.mxu0 0.0
    %v7881 = vand.u32 %v7371, 4294901760
    %v7882 = vsub.f32 %v7371, %v7881
    %v7883 = vand.u32 %v7882, 4294901760
    %7884 = vmatpush1.msra.mxu0 %v7883
    %7885 = vmatprep.subr.mxu0 0.0
    %v7886 = vand.u32 %v7370, 4294901760
    %v7887 = vsub.f32 %v7370, %v7886
    %v7888 = vand.u32 %v7887, 4294901760
    %7889 = vmatpush1.msra.mxu0 %v7888
    %7890 = vmatprep.subr.mxu0 0.0
    %v7891 = vand.u32 %v7369, 4294901760
    %v7892 = vsub.f32 %v7369, %v7891
    %v7893 = vand.u32 %v7892, 4294901760
    %7894 = vmatpush1.msra.mxu0 %v7893
    %7895 = vmatprep.subr.mxu0 0.0
    %v7896 = vand.u32 %v7368, 4294901760
    %v7897 = vsub.f32 %v7368, %v7896
    %v7898 = vand.u32 %v7897, 4294901760
    %7899 = vmatpush1.msra.mxu0 %v7898
    %7900 = vmatprep.subr.mxu0 0.0
    %7901 = vmatpush2.msra.mxu0 0.0
    %7902 = vmatprep.subr.mxu0 0.0
    %7903 = vmatpush2.msra.mxu0 0.0
    %7904 = vmatprep.subr.mxu0 0.0
    %7905 = vmatpush2.msra.mxu0 0.0
    %7906 = vmatprep.subr.mxu0 0.0
    %7907 = vmatpush2.msra.mxu0 0.0
    %7908 = vmatprep.subr.mxu0 0.0
    %7909 = vmatpush2.msra.mxu0 0.0
    %7910 = vmatprep.subr.mxu0 0.0
    %7911 = vmatpush2.msra.mxu0 0.0
    %7912 = vmatprep.subr.mxu0 0.0
    %7913 = vmatpush2.msra.mxu0 0.0
    %7914 = vmatprep.subr.mxu0 0.0
    %7915 = vmatpush2.msra.mxu0 0.0
    %7916 = vmatprep.subr.mxu0 0.0
    %7917 = vmatpush2.msra.mxu0 0.0
    %7918 = vmatprep.subr.mxu0 0.0
    %7919 = vmatpush2.msra.mxu0 0.0
    %7920 = vmatprep.subr.mxu0 0.0
    %7921 = vmatpush2.msra.mxu0 0.0
    %7922 = vmatprep.subr.mxu0 0.0
    %7923 = vmatpush2.msra.mxu0 0.0
    %7924 = vmatprep.subr.mxu0 0.0
    %7925 = vmatpush2.msra.mxu0 0.0
    %7926 = vmatprep.subr.mxu0 0.0
    %7927 = vmatpush2.msra.mxu0 0.0
    %7928 = vmatprep.subr.mxu0 0.0
    %7929 = vmatpush2.msra.mxu0 0.0
    %7930 = vmatprep.subr.mxu0 0.0
    %7931 = vmatpush2.msra.mxu0 0.0
    %7932 = vmatprep.mubr.f32.mxu0 0.0
    %v7933 = vand.u32 %v7367, 4294901760
    %7934 = vmatmul.mubr.f32.gmra.mxu0 %v7933
    %v7935 = vpop.f32.mrf.mxu0
    %v7936 = vadd.f32 %v7817, %v7935
    %v7937 = vpop.f32.mrf.mxu0
    %7938 = vdwg.mxu0
    %7939 = vmatprep.subr.mxu0 0.0
    %v7940 = vand.u32 %v7383, 4294901760
    %7941 = vmatpush1.msra.mxu0 %v7940
    %7942 = vmatprep.subr.mxu0 0.0
    %v7943 = vand.u32 %v7382, 4294901760
    %7944 = vmatpush1.msra.mxu0 %v7943
    %7945 = vmatprep.subr.mxu0 0.0
    %v7946 = vand.u32 %v7381, 4294901760
    %7947 = vmatpush1.msra.mxu0 %v7946
    %7948 = vmatprep.subr.mxu0 0.0
    %v7949 = vand.u32 %v7380, 4294901760
    %7950 = vmatpush1.msra.mxu0 %v7949
    %7951 = vmatprep.subr.mxu0 0.0
    %v7952 = vand.u32 %v7379, 4294901760
    %7953 = vmatpush1.msra.mxu0 %v7952
    %7954 = vmatprep.subr.mxu0 0.0
    %v7955 = vand.u32 %v7378, 4294901760
    %7956 = vmatpush1.msra.mxu0 %v7955
    %7957 = vmatprep.subr.mxu0 0.0
    %v7958 = vand.u32 %v7377, 4294901760
    %7959 = vmatpush1.msra.mxu0 %v7958
    %7960 = vmatprep.subr.mxu0 0.0
    %v7961 = vand.u32 %v7376, 4294901760
    %7962 = vmatpush1.msra.mxu0 %v7961
    %7963 = vmatprep.subr.mxu0 0.0
    %v7964 = vand.u32 %v7375, 4294901760
    %7965 = vmatpush1.msra.mxu0 %v7964
    %7966 = vmatprep.subr.mxu0 0.0
    %v7967 = vand.u32 %v7374, 4294901760
    %7968 = vmatpush1.msra.mxu0 %v7967
    %7969 = vmatprep.subr.mxu0 0.0
    %v7970 = vand.u32 %v7373, 4294901760
    %7971 = vmatpush1.msra.mxu0 %v7970
    %7972 = vmatprep.subr.mxu0 0.0
    %v7973 = vand.u32 %v7372, 4294901760
    %7974 = vmatpush1.msra.mxu0 %v7973
    %7975 = vmatprep.subr.mxu0 0.0
    %v7976 = vand.u32 %v7371, 4294901760
    %7977 = vmatpush1.msra.mxu0 %v7976
    %7978 = vmatprep.subr.mxu0 0.0
    %v7979 = vand.u32 %v7370, 4294901760
    %7980 = vmatpush1.msra.mxu0 %v7979
    %7981 = vmatprep.subr.mxu0 0.0
    %v7982 = vand.u32 %v7369, 4294901760
    %7983 = vmatpush1.msra.mxu0 %v7982
    %7984 = vmatprep.subr.mxu0 0.0
    %v7985 = vand.u32 %v7368, 4294901760
    %7986 = vmatpush1.msra.mxu0 %v7985
    %7987 = vmatprep.subr.mxu0 0.0
    %7988 = vmatpush2.msra.mxu0 0.0
    %7989 = vmatprep.subr.mxu0 0.0
    %7990 = vmatpush2.msra.mxu0 0.0
    %7991 = vmatprep.subr.mxu0 0.0
    %7992 = vmatpush2.msra.mxu0 0.0
    %7993 = vmatprep.subr.mxu0 0.0
    %7994 = vmatpush2.msra.mxu0 0.0
    %7995 = vmatprep.subr.mxu0 0.0
    %7996 = vmatpush2.msra.mxu0 0.0
    %7997 = vmatprep.subr.mxu0 0.0
    %7998 = vmatpush2.msra.mxu0 0.0
    %7999 = vmatprep.subr.mxu0 0.0
    %8000 = vmatpush2.msra.mxu0 0.0
    %8001 = vmatprep.subr.mxu0 0.0
    %8002 = vmatpush2.msra.mxu0 0.0
    %8003 = vmatprep.subr.mxu0 0.0
    %8004 = vmatpush2.msra.mxu0 0.0
    %8005 = vmatprep.subr.mxu0 0.0
    %8006 = vmatpush2.msra.mxu0 0.0
    %8007 = vmatprep.subr.mxu0 0.0
    %8008 = vmatpush2.msra.mxu0 0.0
    %8009 = vmatprep.subr.mxu0 0.0
    %8010 = vmatpush2.msra.mxu0 0.0
    %8011 = vmatprep.subr.mxu0 0.0
    %8012 = vmatpush2.msra.mxu0 0.0
    %8013 = vmatprep.subr.mxu0 0.0
    %8014 = vmatpush2.msra.mxu0 0.0
    %8015 = vmatprep.subr.mxu0 0.0
    %8016 = vmatpush2.msra.mxu0 0.0
    %8017 = vmatprep.subr.mxu0 0.0
    %8018 = vmatpush2.msra.mxu0 0.0
    %8019 = vmatprep.mubr.f32.mxu0 0.0
    %v8020 = vand.u32 %v7367, 4294901760
    %8021 = vmatmul.mubr.f32.gmra.mxu0 %v8020
    %v8022 = vpop.f32.mrf.mxu0
    %v8023 = vadd.f32 %v7936, %v8022
    %v8024 = vpop.f32.mrf.mxu0
    %8025 = vdwg.mxu0
    %v8027 = vrot.slane %v8023, 2
    %v8029 = vsub.f32 %v8023, %v8027
    %v8030 = vmul.f32 %v8029, 0.5
    %v8031 = vadd.f32 %v8023, %v8027
    %v8032 = vmul.f32 %v8031, 0.5
    %v8033 = vmul.f32 %v5390, 1.442695
    %v8034 = vpow.pop %v8033
    %8036 = vset.pattern.permute.xlu0 0
    %8037 = vperm.xlu0 %8036, %v8034
    %v8038 = vpop.permute.xlu0 %8037
    %v8040 = vmul.f32 %v8038, %v8030
    %v8041 = vlaneseq
    %v8042 = vand.u32 %v8041, 127
    %v8043 = vcvt.s32.f32 %v8042
    %v8044 = vmul.f32 %v8043, 0.015873017
    %8046 = vrot.lane.b32.xlu0 %v8032, 64
    %v8047 = vpop.permute.xlu0 %8046
    %8049 = vxpose.xlu0.b32.start [1/16] %v8047, 128
    %8050 = vxpose.xlu0.b32.cont [2/16] 0.0, 128
    %8051 = vxpose.xlu0.b32.cont [3/16] 0.0, 128
    %8052 = vxpose.xlu0.b32.cont [4/16] 0.0, 128
    %8053 = vxpose.xlu0.b32.cont [5/16] 0.0, 128
    %8054 = vxpose.xlu0.b32.cont [6/16] 0.0, 128
    %8055 = vxpose.xlu0.b32.cont [7/16] 0.0, 128
    %8056 = vxpose.xlu0.b32.cont [8/16] 0.0, 128
    %8057 = vxpose.xlu0.b32.cont [9/16] 0.0, 128
    %8058 = vxpose.xlu0.b32.cont [10/16] 0.0, 128
    %8059 = vxpose.xlu0.b32.cont [11/16] 0.0, 128
    %8060 = vxpose.xlu0.b32.cont [12/16] 0.0, 128
    %8061 = vxpose.xlu0.b32.cont [13/16] 0.0, 128
    %8062 = vxpose.xlu0.b32.cont [14/16] 0.0, 128
    %8063 = vxpose.xlu0.b32.cont [15/16] 0.0, 128
    %8064 = vxpose.xlu0.b32.end [16/16] 0.0, 128
    %v8065 = vpop.trf.xlu0
    %v8066 = vpop.trf.xlu0
    %v8067 = vpop.trf.xlu0
    %v8068 = vpop.trf.xlu0
    %v8069 = vpop.trf.xlu0
    %v8070 = vpop.trf.xlu0
    %v8071 = vpop.trf.xlu0
    %v8072 = vpop.trf.xlu0
    %v8073 = vpop.trf.xlu0
    %v8074 = vpop.trf.xlu0
    %v8075 = vpop.trf.xlu0
    %v8076 = vpop.trf.xlu0
    %v8077 = vpop.trf.xlu0
    %v8078 = vpop.trf.xlu0
    %v8079 = vpop.trf.xlu0
    %v8080 = vpop.trf.xlu0
    %8082 = vset.pattern.permute.xlu0 0
    %8083 = vperm.xlu0 %8082, %v8065
    %v8084 = vpop.permute.xlu0 %8083
    %8087 = vset.pattern.permute.xlu0 0
    %8088 = vperm.xlu0 %8087, %v8066
    %v8089 = vpop.permute.xlu0 %8088
    %8092 = vset.pattern.permute.xlu0 0
    %8093 = vperm.xlu0 %8092, %v8067
    %v8094 = vpop.permute.xlu0 %8093
    %8097 = vset.pattern.permute.xlu0 0
    %8098 = vperm.xlu0 %8097, %v8068
    %v8099 = vpop.permute.xlu0 %8098
    %8102 = vset.pattern.permute.xlu0 0
    %8103 = vperm.xlu0 %8102, %v8069
    %v8104 = vpop.permute.xlu0 %8103
    %8107 = vset.pattern.permute.xlu0 0
    %8108 = vperm.xlu0 %8107, %v8070
    %v8109 = vpop.permute.xlu0 %8108
    %8112 = vset.pattern.permute.xlu0 0
    %8113 = vperm.xlu0 %8112, %v8071
    %v8114 = vpop.permute.xlu0 %8113
    %8117 = vset.pattern.permute.xlu0 0
    %8118 = vperm.xlu0 %8117, %v8072
    %v8119 = vpop.permute.xlu0 %8118
    %v8121 = vmul.f32 %v8084, %v8044
    %v8122 = vmul.f32 %v8089, %v8044
    %v8123 = vmul.f32 %v8094, %v8044
    %v8124 = vmul.f32 %v8099, %v8044
    %v8125 = vmul.f32 %v8104, %v8044
    %v8126 = vmul.f32 %v8109, %v8044
    %v8127 = vmul.f32 %v8114, %v8044
    %v8128 = vmul.f32 %v8119, %v8044
    %v8129 = vmul.f32 %v8121, 1.442695
    %v8130 = vpow.pop %v8129
    %v8131 = vmul.f32 %v8122, 1.442695
    %v8132 = vpow.pop %v8131
    %v8133 = vmul.f32 %v8123, 1.442695
    %v8134 = vpow.pop %v8133
    %v8135 = vmul.f32 %v8124, 1.442695
    %v8136 = vpow.pop %v8135
    %v8137 = vmul.f32 %v8125, 1.442695
    %v8138 = vpow.pop %v8137
    %v8139 = vmul.f32 %v8126, 1.442695
    %v8140 = vpow.pop %v8139
    %v8141 = vmul.f32 %v8127, 1.442695
    %v8142 = vpow.pop %v8141
    %v8143 = vmul.f32 %v8128, 1.442695
    %v8144 = vpow.pop %v8143
    %vm8145 = vcmask 523264
    %v8147 = vsel %vm8145, %v8040, 0
    %8149 = vmatprep.subr.mxu0 0.0
    %8150 = vmatpush1.msra.mxu0 0.0
    %8151 = vmatprep.subr.mxu0 0.0
    %8152 = vmatpush1.msra.mxu0 0.0
    %8153 = vmatprep.subr.mxu0 0.0
    %8154 = vmatpush1.msra.mxu0 0.0
    %8155 = vmatprep.subr.mxu0 0.0
    %8156 = vmatpush1.msra.mxu0 0.0
    %8157 = vmatprep.subr.mxu0 0.0
    %8158 = vmatpush1.msra.mxu0 0.0
    %8159 = vmatprep.subr.mxu0 0.0
    %8160 = vmatpush1.msra.mxu0 0.0
    %8161 = vmatprep.subr.mxu0 0.0
    %8162 = vmatpush1.msra.mxu0 0.0
    %8163 = vmatprep.subr.mxu0 0.0
    %8164 = vmatpush1.msra.mxu0 0.0
    %8165 = vmatprep.subr.mxu0 0.0
    %v8166 = vand.u32 %v8144, 4294901760
    %8167 = vmatpush1.msra.mxu0 %v8166
    %8168 = vmatprep.subr.mxu0 0.0
    %v8169 = vand.u32 %v8142, 4294901760
    %8170 = vmatpush1.msra.mxu0 %v8169
    %8171 = vmatprep.subr.mxu0 0.0
    %v8172 = vand.u32 %v8140, 4294901760
    %8173 = vmatpush1.msra.mxu0 %v8172
    %8174 = vmatprep.subr.mxu0 0.0
    %v8175 = vand.u32 %v8138, 4294901760
    %8176 = vmatpush1.msra.mxu0 %v8175
    %8177 = vmatprep.subr.mxu0 0.0
    %v8178 = vand.u32 %v8136, 4294901760
    %8179 = vmatpush1.msra.mxu0 %v8178
    %8180 = vmatprep.subr.mxu0 0.0
    %v8181 = vand.u32 %v8134, 4294901760
    %8182 = vmatpush1.msra.mxu0 %v8181
    %8183 = vmatprep.subr.mxu0 0.0
    %v8184 = vand.u32 %v8132, 4294901760
    %8185 = vmatpush1.msra.mxu0 %v8184
    %8186 = vmatprep.subr.mxu0 0.0
    %v8187 = vand.u32 %v8130, 4294901760
    %8188 = vmatpush1.msra.mxu0 %v8187
    %8189 = vmatprep.subr.mxu0 0.0
    %8190 = vmatpush2.msra.mxu0 0.0
    %8191 = vmatprep.subr.mxu0 0.0
    %8192 = vmatpush2.msra.mxu0 0.0
    %8193 = vmatprep.subr.mxu0 0.0
    %8194 = vmatpush2.msra.mxu0 0.0
    %8195 = vmatprep.subr.mxu0 0.0
    %8196 = vmatpush2.msra.mxu0 0.0
    %8197 = vmatprep.subr.mxu0 0.0
    %8198 = vmatpush2.msra.mxu0 0.0
    %8199 = vmatprep.subr.mxu0 0.0
    %8200 = vmatpush2.msra.mxu0 0.0
    %8201 = vmatprep.subr.mxu0 0.0
    %8202 = vmatpush2.msra.mxu0 0.0
    %8203 = vmatprep.subr.mxu0 0.0
    %8204 = vmatpush2.msra.mxu0 0.0
    %8205 = vmatprep.subr.mxu0 0.0
    %8206 = vmatpush2.msra.mxu0 0.0
    %8207 = vmatprep.subr.mxu0 0.0
    %8208 = vmatpush2.msra.mxu0 0.0
    %8209 = vmatprep.subr.mxu0 0.0
    %8210 = vmatpush2.msra.mxu0 0.0
    %8211 = vmatprep.subr.mxu0 0.0
    %8212 = vmatpush2.msra.mxu0 0.0
    %8213 = vmatprep.subr.mxu0 0.0
    %8214 = vmatpush2.msra.mxu0 0.0
    %8215 = vmatprep.subr.mxu0 0.0
    %8216 = vmatpush2.msra.mxu0 0.0
    %8217 = vmatprep.subr.mxu0 0.0
    %8218 = vmatpush2.msra.mxu0 0.0
    %8219 = vmatprep.subr.mxu0 0.0
    %8220 = vmatpush2.msra.mxu0 0.0
    %8221 = vmatprep.mubr.f32.mxu0 0.0
    %v8222 = vand.u32 %v8147, 4294901760
    %v8223 = vsub.f32 %v8147, %v8222
    %v8224 = vand.u32 %v8223, 4294901760
    %v8225 = vsub.f32 %v8223, %v8224
    %v8226 = vand.u32 %v8225, 4294901760
    %8227 = vmatmul.mubr.f32.gmra.mxu0 %v8226
    %v8228 = vpop.f32.mrf.mxu0
    %v8229 = vadd.f32 0.0, %v8228
    %v8230 = vpop.f32.mrf.mxu0
    %8231 = vdwg.mxu0
    %8232 = vmatprep.subr.mxu0 0.0
    %8233 = vmatpush1.msra.mxu0 0.0
    %8234 = vmatprep.subr.mxu0 0.0
    %8235 = vmatpush1.msra.mxu0 0.0
    %8236 = vmatprep.subr.mxu0 0.0
    %8237 = vmatpush1.msra.mxu0 0.0
    %8238 = vmatprep.subr.mxu0 0.0
    %8239 = vmatpush1.msra.mxu0 0.0
    %8240 = vmatprep.subr.mxu0 0.0
    %8241 = vmatpush1.msra.mxu0 0.0
    %8242 = vmatprep.subr.mxu0 0.0
    %8243 = vmatpush1.msra.mxu0 0.0
    %8244 = vmatprep.subr.mxu0 0.0
    %8245 = vmatpush1.msra.mxu0 0.0
    %8246 = vmatprep.subr.mxu0 0.0
    %8247 = vmatpush1.msra.mxu0 0.0
    %8248 = vmatprep.subr.mxu0 0.0
    %v8249 = vand.u32 %v8144, 4294901760
    %v8250 = vsub.f32 %v8144, %v8249
    %v8251 = vand.u32 %v8250, 4294901760
    %v8252 = vsub.f32 %v8250, %v8251
    %v8253 = vand.u32 %v8252, 4294901760
    %8254 = vmatpush1.msra.mxu0 %v8253
    %8255 = vmatprep.subr.mxu0 0.0
    %v8256 = vand.u32 %v8142, 4294901760
    %v8257 = vsub.f32 %v8142, %v8256
    %v8258 = vand.u32 %v8257, 4294901760
    %v8259 = vsub.f32 %v8257, %v8258
    %v8260 = vand.u32 %v8259, 4294901760
    %8261 = vmatpush1.msra.mxu0 %v8260
    %8262 = vmatprep.subr.mxu0 0.0
    %v8263 = vand.u32 %v8140, 4294901760
    %v8264 = vsub.f32 %v8140, %v8263
    %v8265 = vand.u32 %v8264, 4294901760
    %v8266 = vsub.f32 %v8264, %v8265
    %v8267 = vand.u32 %v8266, 4294901760
    %8268 = vmatpush1.msra.mxu0 %v8267
    %8269 = vmatprep.subr.mxu0 0.0
    %v8270 = vand.u32 %v8138, 4294901760
    %v8271 = vsub.f32 %v8138, %v8270
    %v8272 = vand.u32 %v8271, 4294901760
    %v8273 = vsub.f32 %v8271, %v8272
    %v8274 = vand.u32 %v8273, 4294901760
    %8275 = vmatpush1.msra.mxu0 %v8274
    %8276 = vmatprep.subr.mxu0 0.0
    %v8277 = vand.u32 %v8136, 4294901760
    %v8278 = vsub.f32 %v8136, %v8277
    %v8279 = vand.u32 %v8278, 4294901760
    %v8280 = vsub.f32 %v8278, %v8279
    %v8281 = vand.u32 %v8280, 4294901760
    %8282 = vmatpush1.msra.mxu0 %v8281
    %8283 = vmatprep.subr.mxu0 0.0
    %v8284 = vand.u32 %v8134, 4294901760
    %v8285 = vsub.f32 %v8134, %v8284
    %v8286 = vand.u32 %v8285, 4294901760
    %v8287 = vsub.f32 %v8285, %v8286
    %v8288 = vand.u32 %v8287, 4294901760
    %8289 = vmatpush1.msra.mxu0 %v8288
    %8290 = vmatprep.subr.mxu0 0.0
    %v8291 = vand.u32 %v8132, 4294901760
    %v8292 = vsub.f32 %v8132, %v8291
    %v8293 = vand.u32 %v8292, 4294901760
    %v8294 = vsub.f32 %v8292, %v8293
    %v8295 = vand.u32 %v8294, 4294901760
    %8296 = vmatpush1.msra.mxu0 %v8295
    %8297 = vmatprep.subr.mxu0 0.0
    %v8298 = vand.u32 %v8130, 4294901760
    %v8299 = vsub.f32 %v8130, %v8298
    %v8300 = vand.u32 %v8299, 4294901760
    %v8301 = vsub.f32 %v8299, %v8300
    %v8302 = vand.u32 %v8301, 4294901760
    %8303 = vmatpush1.msra.mxu0 %v8302
    %8304 = vmatprep.subr.mxu0 0.0
    %8305 = vmatpush2.msra.mxu0 0.0
    %8306 = vmatprep.subr.mxu0 0.0
    %8307 = vmatpush2.msra.mxu0 0.0
    %8308 = vmatprep.subr.mxu0 0.0
    %8309 = vmatpush2.msra.mxu0 0.0
    %8310 = vmatprep.subr.mxu0 0.0
    %8311 = vmatpush2.msra.mxu0 0.0
    %8312 = vmatprep.subr.mxu0 0.0
    %8313 = vmatpush2.msra.mxu0 0.0
    %8314 = vmatprep.subr.mxu0 0.0
    %8315 = vmatpush2.msra.mxu0 0.0
    %8316 = vmatprep.subr.mxu0 0.0
    %8317 = vmatpush2.msra.mxu0 0.0
    %8318 = vmatprep.subr.mxu0 0.0
    %8319 = vmatpush2.msra.mxu0 0.0
    %8320 = vmatprep.subr.mxu0 0.0
    %8321 = vmatpush2.msra.mxu0 0.0
    %8322 = vmatprep.subr.mxu0 0.0
    %8323 = vmatpush2.msra.mxu0 0.0
    %8324 = vmatprep.subr.mxu0 0.0
    %8325 = vmatpush2.msra.mxu0 0.0
    %8326 = vmatprep.subr.mxu0 0.0
    %8327 = vmatpush2.msra.mxu0 0.0
    %8328 = vmatprep.subr.mxu0 0.0
    %8329 = vmatpush2.msra.mxu0 0.0
    %8330 = vmatprep.subr.mxu0 0.0
    %8331 = vmatpush2.msra.mxu0 0.0
    %8332 = vmatprep.subr.mxu0 0.0
    %8333 = vmatpush2.msra.mxu0 0.0
    %8334 = vmatprep.subr.mxu0 0.0
    %8335 = vmatpush2.msra.mxu0 0.0
    %8336 = vmatprep.mubr.f32.mxu0 0.0
    %v8337 = vand.u32 %v8147, 4294901760
    %8338 = vmatmul.mubr.f32.gmra.mxu0 %v8337
    %v8339 = vpop.f32.mrf.mxu0
    %v8340 = vadd.f32 %v8229, %v8339
    %v8341 = vpop.f32.mrf.mxu0
    %8342 = vdwg.mxu0
    %8343 = vmatprep.subr.mxu0 0.0
    %8344 = vmatpush1.msra.mxu0 0.0
    %8345 = vmatprep.subr.mxu0 0.0
    %8346 = vmatpush1.msra.mxu0 0.0
    %8347 = vmatprep.subr.mxu0 0.0
    %8348 = vmatpush1.msra.mxu0 0.0
    %8349 = vmatprep.subr.mxu0 0.0
    %8350 = vmatpush1.msra.mxu0 0.0
    %8351 = vmatprep.subr.mxu0 0.0
    %8352 = vmatpush1.msra.mxu0 0.0
    %8353 = vmatprep.subr.mxu0 0.0
    %8354 = vmatpush1.msra.mxu0 0.0
    %8355 = vmatprep.subr.mxu0 0.0
    %8356 = vmatpush1.msra.mxu0 0.0
    %8357 = vmatprep.subr.mxu0 0.0
    %8358 = vmatpush1.msra.mxu0 0.0
    %8359 = vmatprep.subr.mxu0 0.0
    %v8360 = vand.u32 %v8144, 4294901760
    %v8361 = vsub.f32 %v8144, %v8360
    %8362 = vmatpush1.msra.mxu0 %v8361
    %8363 = vmatprep.subr.mxu0 0.0
    %v8364 = vand.u32 %v8142, 4294901760
    %v8365 = vsub.f32 %v8142, %v8364
    %8366 = vmatpush1.msra.mxu0 %v8365
    %8367 = vmatprep.subr.mxu0 0.0
    %v8368 = vand.u32 %v8140, 4294901760
    %v8369 = vsub.f32 %v8140, %v8368
    %8370 = vmatpush1.msra.mxu0 %v8369
    %8371 = vmatprep.subr.mxu0 0.0
    %v8372 = vand.u32 %v8138, 4294901760
    %v8373 = vsub.f32 %v8138, %v8372
    %8374 = vmatpush1.msra.mxu0 %v8373
    %8375 = vmatprep.subr.mxu0 0.0
    %v8376 = vand.u32 %v8136, 4294901760
    %v8377 = vsub.f32 %v8136, %v8376
    %8378 = vmatpush1.msra.mxu0 %v8377
    %8379 = vmatprep.subr.mxu0 0.0
    %v8380 = vand.u32 %v8134, 4294901760
    %v8381 = vsub.f32 %v8134, %v8380
    %8382 = vmatpush1.msra.mxu0 %v8381
    %8383 = vmatprep.subr.mxu0 0.0
    %v8384 = vand.u32 %v8132, 4294901760
    %v8385 = vsub.f32 %v8132, %v8384
    %8386 = vmatpush1.msra.mxu0 %v8385
    %8387 = vmatprep.subr.mxu0 0.0
    %v8388 = vand.u32 %v8130, 4294901760
    %v8389 = vsub.f32 %v8130, %v8388
    %8390 = vmatpush1.msra.mxu0 %v8389
    %8391 = vmatprep.subr.mxu0 0.0
    %8392 = vmatpush2.msra.mxu0 0.0
    %8393 = vmatprep.subr.mxu0 0.0
    %8394 = vmatpush2.msra.mxu0 0.0
    %8395 = vmatprep.subr.mxu0 0.0
    %8396 = vmatpush2.msra.mxu0 0.0
    %8397 = vmatprep.subr.mxu0 0.0
    %8398 = vmatpush2.msra.mxu0 0.0
    %8399 = vmatprep.subr.mxu0 0.0
    %8400 = vmatpush2.msra.mxu0 0.0
    %8401 = vmatprep.subr.mxu0 0.0
    %8402 = vmatpush2.msra.mxu0 0.0
    %8403 = vmatprep.subr.mxu0 0.0
    %8404 = vmatpush2.msra.mxu0 0.0
    %8405 = vmatprep.subr.mxu0 0.0
    %8406 = vmatpush2.msra.mxu0 0.0
    %8407 = vmatprep.subr.mxu0 0.0
    %8408 = vmatpush2.msra.mxu0 0.0
    %8409 = vmatprep.subr.mxu0 0.0
    %8410 = vmatpush2.msra.mxu0 0.0
    %8411 = vmatprep.subr.mxu0 0.0
    %8412 = vmatpush2.msra.mxu0 0.0
    %8413 = vmatprep.subr.mxu0 0.0
    %8414 = vmatpush2.msra.mxu0 0.0
    %8415 = vmatprep.subr.mxu0 0.0
    %8416 = vmatpush2.msra.mxu0 0.0
    %8417 = vmatprep.subr.mxu0 0.0
    %8418 = vmatpush2.msra.mxu0 0.0
    %8419 = vmatprep.subr.mxu0 0.0
    %8420 = vmatpush2.msra.mxu0 0.0
    %8421 = vmatprep.subr.mxu0 0.0
    %8422 = vmatpush2.msra.mxu0 0.0
    %8423 = vmatprep.mubr.f32.mxu0 0.0
    %v8424 = vand.u32 %v8147, 4294901760
    %v8425 = vsub.f32 %v8147, %v8424
    %8426 = vmatmul.mubr.f32.gmra.mxu0 %v8425
    %v8427 = vpop.f32.mrf.mxu0
    %v8428 = vadd.f32 %v8340, %v8427
    %v8429 = vpop.f32.mrf.mxu0
    %8430 = vdwg.mxu0
    %8431 = vmatprep.subr.mxu0 0.0
    %8432 = vmatpush1.msra.mxu0 0.0
    %8433 = vmatprep.subr.mxu0 0.0
    %8434 = vmatpush1.msra.mxu0 0.0
    %8435 = vmatprep.subr.mxu0 0.0
    %8436 = vmatpush1.msra.mxu0 0.0
    %8437 = vmatprep.subr.mxu0 0.0
    %8438 = vmatpush1.msra.mxu0 0.0
    %8439 = vmatprep.subr.mxu0 0.0
    %8440 = vmatpush1.msra.mxu0 0.0
    %8441 = vmatprep.subr.mxu0 0.0
    %8442 = vmatpush1.msra.mxu0 0.0
    %8443 = vmatprep.subr.mxu0 0.0
    %8444 = vmatpush1.msra.mxu0 0.0
    %8445 = vmatprep.subr.mxu0 0.0
    %8446 = vmatpush1.msra.mxu0 0.0
    %8447 = vmatprep.subr.mxu0 0.0
    %v8448 = vand.u32 %v8144, 4294901760
    %8449 = vmatpush1.msra.mxu0 %v8448
    %8450 = vmatprep.subr.mxu0 0.0
    %v8451 = vand.u32 %v8142, 4294901760
    %8452 = vmatpush1.msra.mxu0 %v8451
    %8453 = vmatprep.subr.mxu0 0.0
    %v8454 = vand.u32 %v8140, 4294901760
    %8455 = vmatpush1.msra.mxu0 %v8454
    %8456 = vmatprep.subr.mxu0 0.0
    %v8457 = vand.u32 %v8138, 4294901760
    %8458 = vmatpush1.msra.mxu0 %v8457
    %8459 = vmatprep.subr.mxu0 0.0
    %v8460 = vand.u32 %v8136, 4294901760
    %8461 = vmatpush1.msra.mxu0 %v8460
    %8462 = vmatprep.subr.mxu0 0.0
    %v8463 = vand.u32 %v8134, 4294901760
    %8464 = vmatpush1.msra.mxu0 %v8463
    %8465 = vmatprep.subr.mxu0 0.0
    %v8466 = vand.u32 %v8132, 4294901760
    %8467 = vmatpush1.msra.mxu0 %v8466
    %8468 = vmatprep.subr.mxu0 0.0
    %v8469 = vand.u32 %v8130, 4294901760
    %8470 = vmatpush1.msra.mxu0 %v8469
    %8471 = vmatprep.subr.mxu0 0.0
    %8472 = vmatpush2.msra.mxu0 0.0
    %8473 = vmatprep.subr.mxu0 0.0
    %8474 = vmatpush2.msra.mxu0 0.0
    %8475 = vmatprep.subr.mxu0 0.0
    %8476 = vmatpush2.msra.mxu0 0.0
    %8477 = vmatprep.subr.mxu0 0.0
    %8478 = vmatpush2.msra.mxu0 0.0
    %8479 = vmatprep.subr.mxu0 0.0
    %8480 = vmatpush2.msra.mxu0 0.0
    %8481 = vmatprep.subr.mxu0 0.0
    %8482 = vmatpush2.msra.mxu0 0.0
    %8483 = vmatprep.subr.mxu0 0.0
    %8484 = vmatpush2.msra.mxu0 0.0
    %8485 = vmatprep.subr.mxu0 0.0
    %8486 = vmatpush2.msra.mxu0 0.0
    %8487 = vmatprep.subr.mxu0 0.0
    %8488 = vmatpush2.msra.mxu0 0.0
    %8489 = vmatprep.subr.mxu0 0.0
    %8490 = vmatpush2.msra.mxu0 0.0
    %8491 = vmatprep.subr.mxu0 0.0
    %8492 = vmatpush2.msra.mxu0 0.0
    %8493 = vmatprep.subr.mxu0 0.0
    %8494 = vmatpush2.msra.mxu0 0.0
    %8495 = vmatprep.subr.mxu0 0.0
    %8496 = vmatpush2.msra.mxu0 0.0
    %8497 = vmatprep.subr.mxu0 0.0
    %8498 = vmatpush2.msra.mxu0 0.0
    %8499 = vmatprep.subr.mxu0 0.0
    %8500 = vmatpush2.msra.mxu0 0.0
    %8501 = vmatprep.subr.mxu0 0.0
    %8502 = vmatpush2.msra.mxu0 0.0
    %8503 = vmatprep.mubr.f32.mxu0 0.0
    %v8504 = vand.u32 %v8147, 4294901760
    %v8505 = vsub.f32 %v8147, %v8504
    %v8506 = vand.u32 %v8505, 4294901760
    %8507 = vmatmul.mubr.f32.gmra.mxu0 %v8506
    %v8508 = vpop.f32.mrf.mxu0
    %v8509 = vadd.f32 %v8428, %v8508
    %v8510 = vpop.f32.mrf.mxu0
    %8511 = vdwg.mxu0
    %8512 = vmatprep.subr.mxu0 0.0
    %8513 = vmatpush1.msra.mxu0 0.0
    %8514 = vmatprep.subr.mxu0 0.0
    %8515 = vmatpush1.msra.mxu0 0.0
    %8516 = vmatprep.subr.mxu0 0.0
    %8517 = vmatpush1.msra.mxu0 0.0
    %8518 = vmatprep.subr.mxu0 0.0
    %8519 = vmatpush1.msra.mxu0 0.0
    %8520 = vmatprep.subr.mxu0 0.0
    %8521 = vmatpush1.msra.mxu0 0.0
    %8522 = vmatprep.subr.mxu0 0.0
    %8523 = vmatpush1.msra.mxu0 0.0
    %8524 = vmatprep.subr.mxu0 0.0
    %8525 = vmatpush1.msra.mxu0 0.0
    %8526 = vmatprep.subr.mxu0 0.0
    %8527 = vmatpush1.msra.mxu0 0.0
    %8528 = vmatprep.subr.mxu0 0.0
    %v8529 = vand.u32 %v8144, 4294901760
    %v8530 = vsub.f32 %v8144, %v8529
    %v8531 = vand.u32 %v8530, 4294901760
    %8532 = vmatpush1.msra.mxu0 %v8531
    %8533 = vmatprep.subr.mxu0 0.0
    %v8534 = vand.u32 %v8142, 4294901760
    %v8535 = vsub.f32 %v8142, %v8534
    %v8536 = vand.u32 %v8535, 4294901760
    %8537 = vmatpush1.msra.mxu0 %v8536
    %8538 = vmatprep.subr.mxu0 0.0
    %v8539 = vand.u32 %v8140, 4294901760
    %v8540 = vsub.f32 %v8140, %v8539
    %v8541 = vand.u32 %v8540, 4294901760
    %8542 = vmatpush1.msra.mxu0 %v8541
    %8543 = vmatprep.subr.mxu0 0.0
    %v8544 = vand.u32 %v8138, 4294901760
    %v8545 = vsub.f32 %v8138, %v8544
    %v8546 = vand.u32 %v8545, 4294901760
    %8547 = vmatpush1.msra.mxu0 %v8546
    %8548 = vmatprep.subr.mxu0 0.0
    %v8549 = vand.u32 %v8136, 4294901760
    %v8550 = vsub.f32 %v8136, %v8549
    %v8551 = vand.u32 %v8550, 4294901760
    %8552 = vmatpush1.msra.mxu0 %v8551
    %8553 = vmatprep.subr.mxu0 0.0
    %v8554 = vand.u32 %v8134, 4294901760
    %v8555 = vsub.f32 %v8134, %v8554
    %v8556 = vand.u32 %v8555, 4294901760
    %8557 = vmatpush1.msra.mxu0 %v8556
    %8558 = vmatprep.subr.mxu0 0.0
    %v8559 = vand.u32 %v8132, 4294901760
    %v8560 = vsub.f32 %v8132, %v8559
    %v8561 = vand.u32 %v8560, 4294901760
    %8562 = vmatpush1.msra.mxu0 %v8561
    %8563 = vmatprep.subr.mxu0 0.0
    %v8564 = vand.u32 %v8130, 4294901760
    %v8565 = vsub.f32 %v8130, %v8564
    %v8566 = vand.u32 %v8565, 4294901760
    %8567 = vmatpush1.msra.mxu0 %v8566
    %8568 = vmatprep.subr.mxu0 0.0
    %8569 = vmatpush2.msra.mxu0 0.0
    %8570 = vmatprep.subr.mxu0 0.0
    %8571 = vmatpush2.msra.mxu0 0.0
    %8572 = vmatprep.subr.mxu0 0.0
    %8573 = vmatpush2.msra.mxu0 0.0
    %8574 = vmatprep.subr.mxu0 0.0
    %8575 = vmatpush2.msra.mxu0 0.0
    %8576 = vmatprep.subr.mxu0 0.0
    %8577 = vmatpush2.msra.mxu0 0.0
    %8578 = vmatprep.subr.mxu0 0.0
    %8579 = vmatpush2.msra.mxu0 0.0
    %8580 = vmatprep.subr.mxu0 0.0
    %8581 = vmatpush2.msra.mxu0 0.0
    %8582 = vmatprep.subr.mxu0 0.0
    %8583 = vmatpush2.msra.mxu0 0.0
    %8584 = vmatprep.subr.mxu0 0.0
    %8585 = vmatpush2.msra.mxu0 0.0
    %8586 = vmatprep.subr.mxu0 0.0
    %8587 = vmatpush2.msra.mxu0 0.0
    %8588 = vmatprep.subr.mxu0 0.0
    %8589 = vmatpush2.msra.mxu0 0.0
    %8590 = vmatprep.subr.mxu0 0.0
    %8591 = vmatpush2.msra.mxu0 0.0
    %8592 = vmatprep.subr.mxu0 0.0
    %8593 = vmatpush2.msra.mxu0 0.0
    %8594 = vmatprep.subr.mxu0 0.0
    %8595 = vmatpush2.msra.mxu0 0.0
    %8596 = vmatprep.subr.mxu0 0.0
    %8597 = vmatpush2.msra.mxu0 0.0
    %8598 = vmatprep.subr.mxu0 0.0
    %8599 = vmatpush2.msra.mxu0 0.0
    %8600 = vmatprep.mubr.f32.mxu0 0.0
    %v8601 = vand.u32 %v8147, 4294901760
    %8602 = vmatmul.mubr.f32.gmra.mxu0 %v8601
    %v8603 = vpop.f32.mrf.mxu0
    %v8604 = vadd.f32 %v8509, %v8603
    %v8605 = vpop.f32.mrf.mxu0
    %8606 = vdwg.mxu0
    %8607 = vmatprep.subr.mxu0 0.0
    %8608 = vmatpush1.msra.mxu0 0.0
    %8609 = vmatprep.subr.mxu0 0.0
    %8610 = vmatpush1.msra.mxu0 0.0
    %8611 = vmatprep.subr.mxu0 0.0
    %8612 = vmatpush1.msra.mxu0 0.0
    %8613 = vmatprep.subr.mxu0 0.0
    %8614 = vmatpush1.msra.mxu0 0.0
    %8615 = vmatprep.subr.mxu0 0.0
    %8616 = vmatpush1.msra.mxu0 0.0
    %8617 = vmatprep.subr.mxu0 0.0
    %8618 = vmatpush1.msra.mxu0 0.0
    %8619 = vmatprep.subr.mxu0 0.0
    %8620 = vmatpush1.msra.mxu0 0.0
    %8621 = vmatprep.subr.mxu0 0.0
    %8622 = vmatpush1.msra.mxu0 0.0
    %8623 = vmatprep.subr.mxu0 0.0
    %v8624 = vand.u32 %v8144, 4294901760
    %8625 = vmatpush1.msra.mxu0 %v8624
    %8626 = vmatprep.subr.mxu0 0.0
    %v8627 = vand.u32 %v8142, 4294901760
    %8628 = vmatpush1.msra.mxu0 %v8627
    %8629 = vmatprep.subr.mxu0 0.0
    %v8630 = vand.u32 %v8140, 4294901760
    %8631 = vmatpush1.msra.mxu0 %v8630
    %8632 = vmatprep.subr.mxu0 0.0
    %v8633 = vand.u32 %v8138, 4294901760
    %8634 = vmatpush1.msra.mxu0 %v8633
    %8635 = vmatprep.subr.mxu0 0.0
    %v8636 = vand.u32 %v8136, 4294901760
    %8637 = vmatpush1.msra.mxu0 %v8636
    %8638 = vmatprep.subr.mxu0 0.0
    %v8639 = vand.u32 %v8134, 4294901760
    %8640 = vmatpush1.msra.mxu0 %v8639
    %8641 = vmatprep.subr.mxu0 0.0
    %v8642 = vand.u32 %v8132, 4294901760
    %8643 = vmatpush1.msra.mxu0 %v8642
    %8644 = vmatprep.subr.mxu0 0.0
    %v8645 = vand.u32 %v8130, 4294901760
    %8646 = vmatpush1.msra.mxu0 %v8645
    %8647 = vmatprep.subr.mxu0 0.0
    %8648 = vmatpush2.msra.mxu0 0.0
    %8649 = vmatprep.subr.mxu0 0.0
    %8650 = vmatpush2.msra.mxu0 0.0
    %8651 = vmatprep.subr.mxu0 0.0
    %8652 = vmatpush2.msra.mxu0 0.0
    %8653 = vmatprep.subr.mxu0 0.0
    %8654 = vmatpush2.msra.mxu0 0.0
    %8655 = vmatprep.subr.mxu0 0.0
    %8656 = vmatpush2.msra.mxu0 0.0
    %8657 = vmatprep.subr.mxu0 0.0
    %8658 = vmatpush2.msra.mxu0 0.0
    %8659 = vmatprep.subr.mxu0 0.0
    %8660 = vmatpush2.msra.mxu0 0.0
    %8661 = vmatprep.subr.mxu0 0.0
    %8662 = vmatpush2.msra.mxu0 0.0
    %8663 = vmatprep.subr.mxu0 0.0
    %8664 = vmatpush2.msra.mxu0 0.0
    %8665 = vmatprep.subr.mxu0 0.0
    %8666 = vmatpush2.msra.mxu0 0.0
    %8667 = vmatprep.subr.mxu0 0.0
    %8668 = vmatpush2.msra.mxu0 0.0
    %8669 = vmatprep.subr.mxu0 0.0
    %8670 = vmatpush2.msra.mxu0 0.0
    %8671 = vmatprep.subr.mxu0 0.0
    %8672 = vmatpush2.msra.mxu0 0.0
    %8673 = vmatprep.subr.mxu0 0.0
    %8674 = vmatpush2.msra.mxu0 0.0
    %8675 = vmatprep.subr.mxu0 0.0
    %8676 = vmatpush2.msra.mxu0 0.0
    %8677 = vmatprep.subr.mxu0 0.0
    %8678 = vmatpush2.msra.mxu0 0.0
    %8679 = vmatprep.mubr.f32.mxu0 0.0
    %v8680 = vand.u32 %v8147, 4294901760
    %8681 = vmatmul.mubr.f32.gmra.mxu0 %v8680
    %v8682 = vpop.f32.mrf.mxu0
    %v8683 = vadd.f32 %v8604, %v8682
    %v8684 = vpop.f32.mrf.mxu0
    %8685 = vdwg.mxu0
    %8686 = vset.pattern.permute.xlu0 1
    %8687 = vperm.xlu0 %8686, %v8065
    %v8688 = vpop.permute.xlu0 %8687
    %8690 = vset.pattern.permute.xlu0 1
    %8691 = vperm.xlu0 %8690, %v8066
    %v8692 = vpop.permute.xlu0 %8691
    %8694 = vset.pattern.permute.xlu0 1
    %8695 = vperm.xlu0 %8694, %v8067
    %v8696 = vpop.permute.xlu0 %8695
    %8698 = vset.pattern.permute.xlu0 1
    %8699 = vperm.xlu0 %8698, %v8068
    %v8700 = vpop.permute.xlu0 %8699
    %8702 = vset.pattern.permute.xlu0 1
    %8703 = vperm.xlu0 %8702, %v8069
    %v8704 = vpop.permute.xlu0 %8703
    %8706 = vset.pattern.permute.xlu0 1
    %8707 = vperm.xlu0 %8706, %v8070
    %v8708 = vpop.permute.xlu0 %8707
    %8710 = vset.pattern.permute.xlu0 1
    %8711 = vperm.xlu0 %8710, %v8071
    %v8712 = vpop.permute.xlu0 %8711
    %8714 = vset.pattern.permute.xlu0 1
    %8715 = vperm.xlu0 %8714, %v8072
    %v8716 = vpop.permute.xlu0 %8715
    %v8718 = vmul.f32 %v8688, %v8044
    %v8719 = vmul.f32 %v8692, %v8044
    %v8720 = vmul.f32 %v8696, %v8044
    %v8721 = vmul.f32 %v8700, %v8044
    %v8722 = vmul.f32 %v8704, %v8044
    %v8723 = vmul.f32 %v8708, %v8044
    %v8724 = vmul.f32 %v8712, %v8044
    %v8725 = vmul.f32 %v8716, %v8044
    %v8726 = vmul.f32 %v8718, 1.442695
    %v8727 = vpow.pop %v8726
    %v8728 = vmul.f32 %v8719, 1.442695
    %v8729 = vpow.pop %v8728
    %v8730 = vmul.f32 %v8720, 1.442695
    %v8731 = vpow.pop %v8730
    %v8732 = vmul.f32 %v8721, 1.442695
    %v8733 = vpow.pop %v8732
    %v8734 = vmul.f32 %v8722, 1.442695
    %v8735 = vpow.pop %v8734
    %v8736 = vmul.f32 %v8723, 1.442695
    %v8737 = vpow.pop %v8736
    %v8738 = vmul.f32 %v8724, 1.442695
    %v8739 = vpow.pop %v8738
    %v8740 = vmul.f32 %v8725, 1.442695
    %v8741 = vpow.pop %v8740
    %v8742 = vrot.slane %v8040, 1
    %v8743 = vsel %vm8145, %v8742, 0
    %8745 = vmatprep.subr.mxu0 0.0
    %8746 = vmatpush1.msra.mxu0 0.0
    %8747 = vmatprep.subr.mxu0 0.0
    %8748 = vmatpush1.msra.mxu0 0.0
    %8749 = vmatprep.subr.mxu0 0.0
    %8750 = vmatpush1.msra.mxu0 0.0
    %8751 = vmatprep.subr.mxu0 0.0
    %8752 = vmatpush1.msra.mxu0 0.0
    %8753 = vmatprep.subr.mxu0 0.0
    %8754 = vmatpush1.msra.mxu0 0.0
    %8755 = vmatprep.subr.mxu0 0.0
    %8756 = vmatpush1.msra.mxu0 0.0
    %8757 = vmatprep.subr.mxu0 0.0
    %8758 = vmatpush1.msra.mxu0 0.0
    %8759 = vmatprep.subr.mxu0 0.0
    %8760 = vmatpush1.msra.mxu0 0.0
    %8761 = vmatprep.subr.mxu0 0.0
    %v8762 = vand.u32 %v8741, 4294901760
    %8763 = vmatpush1.msra.mxu0 %v8762
    %8764 = vmatprep.subr.mxu0 0.0
    %v8765 = vand.u32 %v8739, 4294901760
    %8766 = vmatpush1.msra.mxu0 %v8765
    %8767 = vmatprep.subr.mxu0 0.0
    %v8768 = vand.u32 %v8737, 4294901760
    %8769 = vmatpush1.msra.mxu0 %v8768
    %8770 = vmatprep.subr.mxu0 0.0
    %v8771 = vand.u32 %v8735, 4294901760
    %8772 = vmatpush1.msra.mxu0 %v8771
    %8773 = vmatprep.subr.mxu0 0.0
    %v8774 = vand.u32 %v8733, 4294901760
    %8775 = vmatpush1.msra.mxu0 %v8774
    %8776 = vmatprep.subr.mxu0 0.0
    %v8777 = vand.u32 %v8731, 4294901760
    %8778 = vmatpush1.msra.mxu0 %v8777
    %8779 = vmatprep.subr.mxu0 0.0
    %v8780 = vand.u32 %v8729, 4294901760
    %8781 = vmatpush1.msra.mxu0 %v8780
    %8782 = vmatprep.subr.mxu0 0.0
    %v8783 = vand.u32 %v8727, 4294901760
    %8784 = vmatpush1.msra.mxu0 %v8783
    %8785 = vmatprep.subr.mxu0 0.0
    %8786 = vmatpush2.msra.mxu0 0.0
    %8787 = vmatprep.subr.mxu0 0.0
    %8788 = vmatpush2.msra.mxu0 0.0
    %8789 = vmatprep.subr.mxu0 0.0
    %8790 = vmatpush2.msra.mxu0 0.0
    %8791 = vmatprep.subr.mxu0 0.0
    %8792 = vmatpush2.msra.mxu0 0.0
    %8793 = vmatprep.subr.mxu0 0.0
    %8794 = vmatpush2.msra.mxu0 0.0
    %8795 = vmatprep.subr.mxu0 0.0
    %8796 = vmatpush2.msra.mxu0 0.0
    %8797 = vmatprep.subr.mxu0 0.0
    %8798 = vmatpush2.msra.mxu0 0.0
    %8799 = vmatprep.subr.mxu0 0.0
    %8800 = vmatpush2.msra.mxu0 0.0
    %8801 = vmatprep.subr.mxu0 0.0
    %8802 = vmatpush2.msra.mxu0 0.0
    %8803 = vmatprep.subr.mxu0 0.0
    %8804 = vmatpush2.msra.mxu0 0.0
    %8805 = vmatprep.subr.mxu0 0.0
    %8806 = vmatpush2.msra.mxu0 0.0
    %8807 = vmatprep.subr.mxu0 0.0
    %8808 = vmatpush2.msra.mxu0 0.0
    %8809 = vmatprep.subr.mxu0 0.0
    %8810 = vmatpush2.msra.mxu0 0.0
    %8811 = vmatprep.subr.mxu0 0.0
    %8812 = vmatpush2.msra.mxu0 0.0
    %8813 = vmatprep.subr.mxu0 0.0
    %8814 = vmatpush2.msra.mxu0 0.0
    %8815 = vmatprep.subr.mxu0 0.0
    %8816 = vmatpush2.msra.mxu0 0.0
    %8817 = vmatprep.mubr.f32.mxu0 0.0
    %v8818 = vand.u32 %v8743, 4294901760
    %v8819 = vsub.f32 %v8743, %v8818
    %v8820 = vand.u32 %v8819, 4294901760
    %v8821 = vsub.f32 %v8819, %v8820
    %v8822 = vand.u32 %v8821, 4294901760
    %8823 = vmatmul.mubr.f32.gmra.mxu0 %v8822
    %v8824 = vpop.f32.mrf.mxu0
    %v8825 = vadd.f32 0.0, %v8824
    %v8826 = vpop.f32.mrf.mxu0
    %8827 = vdwg.mxu0
    %8828 = vmatprep.subr.mxu0 0.0
    %8829 = vmatpush1.msra.mxu0 0.0
    %8830 = vmatprep.subr.mxu0 0.0
    %8831 = vmatpush1.msra.mxu0 0.0
    %8832 = vmatprep.subr.mxu0 0.0
    %8833 = vmatpush1.msra.mxu0 0.0
    %8834 = vmatprep.subr.mxu0 0.0
    %8835 = vmatpush1.msra.mxu0 0.0
    %8836 = vmatprep.subr.mxu0 0.0
    %8837 = vmatpush1.msra.mxu0 0.0
    %8838 = vmatprep.subr.mxu0 0.0
    %8839 = vmatpush1.msra.mxu0 0.0
    %8840 = vmatprep.subr.mxu0 0.0
    %8841 = vmatpush1.msra.mxu0 0.0
    %8842 = vmatprep.subr.mxu0 0.0
    %8843 = vmatpush1.msra.mxu0 0.0
    %8844 = vmatprep.subr.mxu0 0.0
    %v8845 = vand.u32 %v8741, 4294901760
    %v8846 = vsub.f32 %v8741, %v8845
    %v8847 = vand.u32 %v8846, 4294901760
    %v8848 = vsub.f32 %v8846, %v8847
    %v8849 = vand.u32 %v8848, 4294901760
    %8850 = vmatpush1.msra.mxu0 %v8849
    %8851 = vmatprep.subr.mxu0 0.0
    %v8852 = vand.u32 %v8739, 4294901760
    %v8853 = vsub.f32 %v8739, %v8852
    %v8854 = vand.u32 %v8853, 4294901760
    %v8855 = vsub.f32 %v8853, %v8854
    %v8856 = vand.u32 %v8855, 4294901760
    %8857 = vmatpush1.msra.mxu0 %v8856
    %8858 = vmatprep.subr.mxu0 0.0
    %v8859 = vand.u32 %v8737, 4294901760
    %v8860 = vsub.f32 %v8737, %v8859
    %v8861 = vand.u32 %v8860, 4294901760
    %v8862 = vsub.f32 %v8860, %v8861
    %v8863 = vand.u32 %v8862, 4294901760
    %8864 = vmatpush1.msra.mxu0 %v8863
    %8865 = vmatprep.subr.mxu0 0.0
    %v8866 = vand.u32 %v8735, 4294901760
    %v8867 = vsub.f32 %v8735, %v8866
    %v8868 = vand.u32 %v8867, 4294901760
    %v8869 = vsub.f32 %v8867, %v8868
    %v8870 = vand.u32 %v8869, 4294901760
    %8871 = vmatpush1.msra.mxu0 %v8870
    %8872 = vmatprep.subr.mxu0 0.0
    %v8873 = vand.u32 %v8733, 4294901760
    %v8874 = vsub.f32 %v8733, %v8873
    %v8875 = vand.u32 %v8874, 4294901760
    %v8876 = vsub.f32 %v8874, %v8875
    %v8877 = vand.u32 %v8876, 4294901760
    %8878 = vmatpush1.msra.mxu0 %v8877
    %8879 = vmatprep.subr.mxu0 0.0
    %v8880 = vand.u32 %v8731, 4294901760
    %v8881 = vsub.f32 %v8731, %v8880
    %v8882 = vand.u32 %v8881, 4294901760
    %v8883 = vsub.f32 %v8881, %v8882
    %v8884 = vand.u32 %v8883, 4294901760
    %8885 = vmatpush1.msra.mxu0 %v8884
    %8886 = vmatprep.subr.mxu0 0.0
    %v8887 = vand.u32 %v8729, 4294901760
    %v8888 = vsub.f32 %v8729, %v8887
    %v8889 = vand.u32 %v8888, 4294901760
    %v8890 = vsub.f32 %v8888, %v8889
    %v8891 = vand.u32 %v8890, 4294901760
    %8892 = vmatpush1.msra.mxu0 %v8891
    %8893 = vmatprep.subr.mxu0 0.0
    %v8894 = vand.u32 %v8727, 4294901760
    %v8895 = vsub.f32 %v8727, %v8894
    %v8896 = vand.u32 %v8895, 4294901760
    %v8897 = vsub.f32 %v8895, %v8896
    %v8898 = vand.u32 %v8897, 4294901760
    %8899 = vmatpush1.msra.mxu0 %v8898
    %8900 = vmatprep.subr.mxu0 0.0
    %8901 = vmatpush2.msra.mxu0 0.0
    %8902 = vmatprep.subr.mxu0 0.0
    %8903 = vmatpush2.msra.mxu0 0.0
    %8904 = vmatprep.subr.mxu0 0.0
    %8905 = vmatpush2.msra.mxu0 0.0
    %8906 = vmatprep.subr.mxu0 0.0
    %8907 = vmatpush2.msra.mxu0 0.0
    %8908 = vmatprep.subr.mxu0 0.0
    %8909 = vmatpush2.msra.mxu0 0.0
    %8910 = vmatprep.subr.mxu0 0.0
    %8911 = vmatpush2.msra.mxu0 0.0
    %8912 = vmatprep.subr.mxu0 0.0
    %8913 = vmatpush2.msra.mxu0 0.0
    %8914 = vmatprep.subr.mxu0 0.0
    %8915 = vmatpush2.msra.mxu0 0.0
    %8916 = vmatprep.subr.mxu0 0.0
    %8917 = vmatpush2.msra.mxu0 0.0
    %8918 = vmatprep.subr.mxu0 0.0
    %8919 = vmatpush2.msra.mxu0 0.0
    %8920 = vmatprep.subr.mxu0 0.0
    %8921 = vmatpush2.msra.mxu0 0.0
    %8922 = vmatprep.subr.mxu0 0.0
    %8923 = vmatpush2.msra.mxu0 0.0
    %8924 = vmatprep.subr.mxu0 0.0
    %8925 = vmatpush2.msra.mxu0 0.0
    %8926 = vmatprep.subr.mxu0 0.0
    %8927 = vmatpush2.msra.mxu0 0.0
    %8928 = vmatprep.subr.mxu0 0.0
    %8929 = vmatpush2.msra.mxu0 0.0
    %8930 = vmatprep.subr.mxu0 0.0
    %8931 = vmatpush2.msra.mxu0 0.0
    %8932 = vmatprep.mubr.f32.mxu0 0.0
    %v8933 = vand.u32 %v8743, 4294901760
    %8934 = vmatmul.mubr.f32.gmra.mxu0 %v8933
    %v8935 = vpop.f32.mrf.mxu0
    %v8936 = vadd.f32 %v8825, %v8935
    %v8937 = vpop.f32.mrf.mxu0
    %8938 = vdwg.mxu0
    %8939 = vmatprep.subr.mxu0 0.0
    %8940 = vmatpush1.msra.mxu0 0.0
    %8941 = vmatprep.subr.mxu0 0.0
    %8942 = vmatpush1.msra.mxu0 0.0
    %8943 = vmatprep.subr.mxu0 0.0
    %8944 = vmatpush1.msra.mxu0 0.0
    %8945 = vmatprep.subr.mxu0 0.0
    %8946 = vmatpush1.msra.mxu0 0.0
    %8947 = vmatprep.subr.mxu0 0.0
    %8948 = vmatpush1.msra.mxu0 0.0
    %8949 = vmatprep.subr.mxu0 0.0
    %8950 = vmatpush1.msra.mxu0 0.0
    %8951 = vmatprep.subr.mxu0 0.0
    %8952 = vmatpush1.msra.mxu0 0.0
    %8953 = vmatprep.subr.mxu0 0.0
    %8954 = vmatpush1.msra.mxu0 0.0
    %8955 = vmatprep.subr.mxu0 0.0
    %v8956 = vand.u32 %v8741, 4294901760
    %v8957 = vsub.f32 %v8741, %v8956
    %8958 = vmatpush1.msra.mxu0 %v8957
    %8959 = vmatprep.subr.mxu0 0.0
    %v8960 = vand.u32 %v8739, 4294901760
    %v8961 = vsub.f32 %v8739, %v8960
    %8962 = vmatpush1.msra.mxu0 %v8961
    %8963 = vmatprep.subr.mxu0 0.0
    %v8964 = vand.u32 %v8737, 4294901760
    %v8965 = vsub.f32 %v8737, %v8964
    %8966 = vmatpush1.msra.mxu0 %v8965
    %8967 = vmatprep.subr.mxu0 0.0
    %v8968 = vand.u32 %v8735, 4294901760
    %v8969 = vsub.f32 %v8735, %v8968
    %8970 = vmatpush1.msra.mxu0 %v8969
    %8971 = vmatprep.subr.mxu0 0.0
    %v8972 = vand.u32 %v8733, 4294901760
    %v8973 = vsub.f32 %v8733, %v8972
    %8974 = vmatpush1.msra.mxu0 %v8973
    %8975 = vmatprep.subr.mxu0 0.0
    %v8976 = vand.u32 %v8731, 4294901760
    %v8977 = vsub.f32 %v8731, %v8976
    %8978 = vmatpush1.msra.mxu0 %v8977
    %8979 = vmatprep.subr.mxu0 0.0
    %v8980 = vand.u32 %v8729, 4294901760
    %v8981 = vsub.f32 %v8729, %v8980
    %8982 = vmatpush1.msra.mxu0 %v8981
    %8983 = vmatprep.subr.mxu0 0.0
    %v8984 = vand.u32 %v8727, 4294901760
    %v8985 = vsub.f32 %v8727, %v8984
    %8986 = vmatpush1.msra.mxu0 %v8985
    %8987 = vmatprep.subr.mxu0 0.0
    %8988 = vmatpush2.msra.mxu0 0.0
    %8989 = vmatprep.subr.mxu0 0.0
    %8990 = vmatpush2.msra.mxu0 0.0
    %8991 = vmatprep.subr.mxu0 0.0
    %8992 = vmatpush2.msra.mxu0 0.0
    %8993 = vmatprep.subr.mxu0 0.0
    %8994 = vmatpush2.msra.mxu0 0.0
    %8995 = vmatprep.subr.mxu0 0.0
    %8996 = vmatpush2.msra.mxu0 0.0
    %8997 = vmatprep.subr.mxu0 0.0
    %8998 = vmatpush2.msra.mxu0 0.0
    %8999 = vmatprep.subr.mxu0 0.0
    %9000 = vmatpush2.msra.mxu0 0.0
    %9001 = vmatprep.subr.mxu0 0.0
    %9002 = vmatpush2.msra.mxu0 0.0
    %9003 = vmatprep.subr.mxu0 0.0
    %9004 = vmatpush2.msra.mxu0 0.0
    %9005 = vmatprep.subr.mxu0 0.0
    %9006 = vmatpush2.msra.mxu0 0.0
    %9007 = vmatprep.subr.mxu0 0.0
    %9008 = vmatpush2.msra.mxu0 0.0
    %9009 = vmatprep.subr.mxu0 0.0
    %9010 = vmatpush2.msra.mxu0 0.0
    %9011 = vmatprep.subr.mxu0 0.0
    %9012 = vmatpush2.msra.mxu0 0.0
    %9013 = vmatprep.subr.mxu0 0.0
    %9014 = vmatpush2.msra.mxu0 0.0
    %9015 = vmatprep.subr.mxu0 0.0
    %9016 = vmatpush2.msra.mxu0 0.0
    %9017 = vmatprep.subr.mxu0 0.0
    %9018 = vmatpush2.msra.mxu0 0.0
    %9019 = vmatprep.mubr.f32.mxu0 0.0
    %v9020 = vand.u32 %v8743, 4294901760
    %v9021 = vsub.f32 %v8743, %v9020
    %9022 = vmatmul.mubr.f32.gmra.mxu0 %v9021
    %v9023 = vpop.f32.mrf.mxu0
    %v9024 = vadd.f32 %v8936, %v9023
    %v9025 = vpop.f32.mrf.mxu0
    %9026 = vdwg.mxu0
    %9027 = vmatprep.subr.mxu0 0.0
    %9028 = vmatpush1.msra.mxu0 0.0
    %9029 = vmatprep.subr.mxu0 0.0
    %9030 = vmatpush1.msra.mxu0 0.0
    %9031 = vmatprep.subr.mxu0 0.0
    %9032 = vmatpush1.msra.mxu0 0.0
    %9033 = vmatprep.subr.mxu0 0.0
    %9034 = vmatpush1.msra.mxu0 0.0
    %9035 = vmatprep.subr.mxu0 0.0
    %9036 = vmatpush1.msra.mxu0 0.0
    %9037 = vmatprep.subr.mxu0 0.0
    %9038 = vmatpush1.msra.mxu0 0.0
    %9039 = vmatprep.subr.mxu0 0.0
    %9040 = vmatpush1.msra.mxu0 0.0
    %9041 = vmatprep.subr.mxu0 0.0
    %9042 = vmatpush1.msra.mxu0 0.0
    %9043 = vmatprep.subr.mxu0 0.0
    %v9044 = vand.u32 %v8741, 4294901760
    %9045 = vmatpush1.msra.mxu0 %v9044
    %9046 = vmatprep.subr.mxu0 0.0
    %v9047 = vand.u32 %v8739, 4294901760
    %9048 = vmatpush1.msra.mxu0 %v9047
    %9049 = vmatprep.subr.mxu0 0.0
    %v9050 = vand.u32 %v8737, 4294901760
    %9051 = vmatpush1.msra.mxu0 %v9050
    %9052 = vmatprep.subr.mxu0 0.0
    %v9053 = vand.u32 %v8735, 4294901760
    %9054 = vmatpush1.msra.mxu0 %v9053
    %9055 = vmatprep.subr.mxu0 0.0
    %v9056 = vand.u32 %v8733, 4294901760
    %9057 = vmatpush1.msra.mxu0 %v9056
    %9058 = vmatprep.subr.mxu0 0.0
    %v9059 = vand.u32 %v8731, 4294901760
    %9060 = vmatpush1.msra.mxu0 %v9059
    %9061 = vmatprep.subr.mxu0 0.0
    %v9062 = vand.u32 %v8729, 4294901760
    %9063 = vmatpush1.msra.mxu0 %v9062
    %9064 = vmatprep.subr.mxu0 0.0
    %v9065 = vand.u32 %v8727, 4294901760
    %9066 = vmatpush1.msra.mxu0 %v9065
    %9067 = vmatprep.subr.mxu0 0.0
    %9068 = vmatpush2.msra.mxu0 0.0
    %9069 = vmatprep.subr.mxu0 0.0
    %9070 = vmatpush2.msra.mxu0 0.0
    %9071 = vmatprep.subr.mxu0 0.0
    %9072 = vmatpush2.msra.mxu0 0.0
    %9073 = vmatprep.subr.mxu0 0.0
    %9074 = vmatpush2.msra.mxu0 0.0
    %9075 = vmatprep.subr.mxu0 0.0
    %9076 = vmatpush2.msra.mxu0 0.0
    %9077 = vmatprep.subr.mxu0 0.0
    %9078 = vmatpush2.msra.mxu0 0.0
    %9079 = vmatprep.subr.mxu0 0.0
    %9080 = vmatpush2.msra.mxu0 0.0
    %9081 = vmatprep.subr.mxu0 0.0
    %9082 = vmatpush2.msra.mxu0 0.0
    %9083 = vmatprep.subr.mxu0 0.0
    %9084 = vmatpush2.msra.mxu0 0.0
    %9085 = vmatprep.subr.mxu0 0.0
    %9086 = vmatpush2.msra.mxu0 0.0
    %9087 = vmatprep.subr.mxu0 0.0
    %9088 = vmatpush2.msra.mxu0 0.0
    %9089 = vmatprep.subr.mxu0 0.0
    %9090 = vmatpush2.msra.mxu0 0.0
    %9091 = vmatprep.subr.mxu0 0.0
    %9092 = vmatpush2.msra.mxu0 0.0
    %9093 = vmatprep.subr.mxu0 0.0
    %9094 = vmatpush2.msra.mxu0 0.0
    %9095 = vmatprep.subr.mxu0 0.0
    %9096 = vmatpush2.msra.mxu0 0.0
    %9097 = vmatprep.subr.mxu0 0.0
    %9098 = vmatpush2.msra.mxu0 0.0
    %9099 = vmatprep.mubr.f32.mxu0 0.0
    %v9100 = vand.u32 %v8743, 4294901760
    %v9101 = vsub.f32 %v8743, %v9100
    %v9102 = vand.u32 %v9101, 4294901760
    %9103 = vmatmul.mubr.f32.gmra.mxu0 %v9102
    %v9104 = vpop.f32.mrf.mxu0
    %v9105 = vadd.f32 %v9024, %v9104
    %v9106 = vpop.f32.mrf.mxu0
    %9107 = vdwg.mxu0
    %9108 = vmatprep.subr.mxu0 0.0
    %9109 = vmatpush1.msra.mxu0 0.0
    %9110 = vmatprep.subr.mxu0 0.0
    %9111 = vmatpush1.msra.mxu0 0.0
    %9112 = vmatprep.subr.mxu0 0.0
    %9113 = vmatpush1.msra.mxu0 0.0
    %9114 = vmatprep.subr.mxu0 0.0
    %9115 = vmatpush1.msra.mxu0 0.0
    %9116 = vmatprep.subr.mxu0 0.0
    %9117 = vmatpush1.msra.mxu0 0.0
    %9118 = vmatprep.subr.mxu0 0.0
    %9119 = vmatpush1.msra.mxu0 0.0
    %9120 = vmatprep.subr.mxu0 0.0
    %9121 = vmatpush1.msra.mxu0 0.0
    %9122 = vmatprep.subr.mxu0 0.0
    %9123 = vmatpush1.msra.mxu0 0.0
    %9124 = vmatprep.subr.mxu0 0.0
    %v9125 = vand.u32 %v8741, 4294901760
    %v9126 = vsub.f32 %v8741, %v9125
    %v9127 = vand.u32 %v9126, 4294901760
    %9128 = vmatpush1.msra.mxu0 %v9127
    %9129 = vmatprep.subr.mxu0 0.0
    %v9130 = vand.u32 %v8739, 4294901760
    %v9131 = vsub.f32 %v8739, %v9130
    %v9132 = vand.u32 %v9131, 4294901760
    %9133 = vmatpush1.msra.mxu0 %v9132
    %9134 = vmatprep.subr.mxu0 0.0
    %v9135 = vand.u32 %v8737, 4294901760
    %v9136 = vsub.f32 %v8737, %v9135
    %v9137 = vand.u32 %v9136, 4294901760
    %9138 = vmatpush1.msra.mxu0 %v9137
    %9139 = vmatprep.subr.mxu0 0.0
    %v9140 = vand.u32 %v8735, 4294901760
    %v9141 = vsub.f32 %v8735, %v9140
    %v9142 = vand.u32 %v9141, 4294901760
    %9143 = vmatpush1.msra.mxu0 %v9142
    %9144 = vmatprep.subr.mxu0 0.0
    %v9145 = vand.u32 %v8733, 4294901760
    %v9146 = vsub.f32 %v8733, %v9145
    %v9147 = vand.u32 %v9146, 4294901760
    %9148 = vmatpush1.msra.mxu0 %v9147
    %9149 = vmatprep.subr.mxu0 0.0
    %v9150 = vand.u32 %v8731, 4294901760
    %v9151 = vsub.f32 %v8731, %v9150
    %v9152 = vand.u32 %v9151, 4294901760
    %9153 = vmatpush1.msra.mxu0 %v9152
    %9154 = vmatprep.subr.mxu0 0.0
    %v9155 = vand.u32 %v8729, 4294901760
    %v9156 = vsub.f32 %v8729, %v9155
    %v9157 = vand.u32 %v9156, 4294901760
    %9158 = vmatpush1.msra.mxu0 %v9157
    %9159 = vmatprep.subr.mxu0 0.0
    %v9160 = vand.u32 %v8727, 4294901760
    %v9161 = vsub.f32 %v8727, %v9160
    %v9162 = vand.u32 %v9161, 4294901760
    %9163 = vmatpush1.msra.mxu0 %v9162
    %9164 = vmatprep.subr.mxu0 0.0
    %9165 = vmatpush2.msra.mxu0 0.0
    %9166 = vmatprep.subr.mxu0 0.0
    %9167 = vmatpush2.msra.mxu0 0.0
    %9168 = vmatprep.subr.mxu0 0.0
    %9169 = vmatpush2.msra.mxu0 0.0
    %9170 = vmatprep.subr.mxu0 0.0
    %9171 = vmatpush2.msra.mxu0 0.0
    %9172 = vmatprep.subr.mxu0 0.0
    %9173 = vmatpush2.msra.mxu0 0.0
    %9174 = vmatprep.subr.mxu0 0.0
    %9175 = vmatpush2.msra.mxu0 0.0
    %9176 = vmatprep.subr.mxu0 0.0
    %9177 = vmatpush2.msra.mxu0 0.0
    %9178 = vmatprep.subr.mxu0 0.0
    %9179 = vmatpush2.msra.mxu0 0.0
    %9180 = vmatprep.subr.mxu0 0.0
    %9181 = vmatpush2.msra.mxu0 0.0
    %9182 = vmatprep.subr.mxu0 0.0
    %9183 = vmatpush2.msra.mxu0 0.0
    %9184 = vmatprep.subr.mxu0 0.0
    %9185 = vmatpush2.msra.mxu0 0.0
    %9186 = vmatprep.subr.mxu0 0.0
    %9187 = vmatpush2.msra.mxu0 0.0
    %9188 = vmatprep.subr.mxu0 0.0
    %9189 = vmatpush2.msra.mxu0 0.0
    %9190 = vmatprep.subr.mxu0 0.0
    %9191 = vmatpush2.msra.mxu0 0.0
    %9192 = vmatprep.subr.mxu0 0.0
    %9193 = vmatpush2.msra.mxu0 0.0
    %9194 = vmatprep.subr.mxu0 0.0
    %9195 = vmatpush2.msra.mxu0 0.0
    %9196 = vmatprep.mubr.f32.mxu0 0.0
    %v9197 = vand.u32 %v8743, 4294901760
    %9198 = vmatmul.mubr.f32.gmra.mxu0 %v9197
    %v9199 = vpop.f32.mrf.mxu0
    %v9200 = vadd.f32 %v9105, %v9199
    %v9201 = vpop.f32.mrf.mxu0
    %9202 = vdwg.mxu0
    %9203 = vmatprep.subr.mxu0 0.0
    %9204 = vmatpush1.msra.mxu0 0.0
    %9205 = vmatprep.subr.mxu0 0.0
    %9206 = vmatpush1.msra.mxu0 0.0
    %9207 = vmatprep.subr.mxu0 0.0
    %9208 = vmatpush1.msra.mxu0 0.0
    %9209 = vmatprep.subr.mxu0 0.0
    %9210 = vmatpush1.msra.mxu0 0.0
    %9211 = vmatprep.subr.mxu0 0.0
    %9212 = vmatpush1.msra.mxu0 0.0
    %9213 = vmatprep.subr.mxu0 0.0
    %9214 = vmatpush1.msra.mxu0 0.0
    %9215 = vmatprep.subr.mxu0 0.0
    %9216 = vmatpush1.msra.mxu0 0.0
    %9217 = vmatprep.subr.mxu0 0.0
    %9218 = vmatpush1.msra.mxu0 0.0
    %9219 = vmatprep.subr.mxu0 0.0
    %v9220 = vand.u32 %v8741, 4294901760
    %9221 = vmatpush1.msra.mxu0 %v9220
    %9222 = vmatprep.subr.mxu0 0.0
    %v9223 = vand.u32 %v8739, 4294901760
    %9224 = vmatpush1.msra.mxu0 %v9223
    %9225 = vmatprep.subr.mxu0 0.0
    %v9226 = vand.u32 %v8737, 4294901760
    %9227 = vmatpush1.msra.mxu0 %v9226
    %9228 = vmatprep.subr.mxu0 0.0
    %v9229 = vand.u32 %v8735, 4294901760
    %9230 = vmatpush1.msra.mxu0 %v9229
    %9231 = vmatprep.subr.mxu0 0.0
    %v9232 = vand.u32 %v8733, 4294901760
    %9233 = vmatpush1.msra.mxu0 %v9232
    %9234 = vmatprep.subr.mxu0 0.0
    %v9235 = vand.u32 %v8731, 4294901760
    %9236 = vmatpush1.msra.mxu0 %v9235
    %9237 = vmatprep.subr.mxu0 0.0
    %v9238 = vand.u32 %v8729, 4294901760
    %9239 = vmatpush1.msra.mxu0 %v9238
    %9240 = vmatprep.subr.mxu0 0.0
    %v9241 = vand.u32 %v8727, 4294901760
    %9242 = vmatpush1.msra.mxu0 %v9241
    %9243 = vmatprep.subr.mxu0 0.0
    %9244 = vmatpush2.msra.mxu0 0.0
    %9245 = vmatprep.subr.mxu0 0.0
    %9246 = vmatpush2.msra.mxu0 0.0
    %9247 = vmatprep.subr.mxu0 0.0
    %9248 = vmatpush2.msra.mxu0 0.0
    %9249 = vmatprep.subr.mxu0 0.0
    %9250 = vmatpush2.msra.mxu0 0.0
    %9251 = vmatprep.subr.mxu0 0.0
    %9252 = vmatpush2.msra.mxu0 0.0
    %9253 = vmatprep.subr.mxu0 0.0
    %9254 = vmatpush2.msra.mxu0 0.0
    %9255 = vmatprep.subr.mxu0 0.0
    %9256 = vmatpush2.msra.mxu0 0.0
    %9257 = vmatprep.subr.mxu0 0.0
    %9258 = vmatpush2.msra.mxu0 0.0
    %9259 = vmatprep.subr.mxu0 0.0
    %9260 = vmatpush2.msra.mxu0 0.0
    %9261 = vmatprep.subr.mxu0 0.0
    %9262 = vmatpush2.msra.mxu0 0.0
    %9263 = vmatprep.subr.mxu0 0.0
    %9264 = vmatpush2.msra.mxu0 0.0
    %9265 = vmatprep.subr.mxu0 0.0
    %9266 = vmatpush2.msra.mxu0 0.0
    %9267 = vmatprep.subr.mxu0 0.0
    %9268 = vmatpush2.msra.mxu0 0.0
    %9269 = vmatprep.subr.mxu0 0.0
    %9270 = vmatpush2.msra.mxu0 0.0
    %9271 = vmatprep.subr.mxu0 0.0
    %9272 = vmatpush2.msra.mxu0 0.0
    %9273 = vmatprep.subr.mxu0 0.0
    %9274 = vmatpush2.msra.mxu0 0.0
    %9275 = vmatprep.mubr.f32.mxu0 0.0
    %v9276 = vand.u32 %v8743, 4294901760
    %9277 = vmatmul.mubr.f32.gmra.mxu0 %v9276
    %v9278 = vpop.f32.mrf.mxu0
    %v9279 = vadd.f32 %v9200, %v9278
    %v9280 = vpop.f32.mrf.mxu0
    %9281 = vdwg.mxu0
    %v9283 = vrot.slane %v9279, 7
    %vm9285 = vcmask 1040384
    %v9286 = vsel %vm9285, %v8683, %v9283
    %9288 = vrot.lane.b32.xlu0 %v2701, 64
    %v9289 = vpop.permute.xlu0 %9288
    %9292 = vrot.lane.b32.xlu0 %v2712, 66
    %v9293 = vpop.permute.xlu0 %9292
    %v9295 = vsel %vm8145, %v9286, %v9289
    %vm9296 = vcmask 539648
    %v9297 = vsel %vm9296, %v9295, %v9293
    %vm9298 = vcmask 556032
    %v9299 = vsel %vm9298, %v9297, 0.0
    %9300 = vst [vmem:[%s2] sm:$0x3] %v9299
    // Predicated region
    $region14: #{vae_forward.1} parent=1 // pred_check
      _
    $region15: #{vae_forward.1} parent=1 // pred_check_branch
      %9302 = sbr.rel (0) target = $region17
    $region16: #{vae_forward.1} parent=1 // pred_region
      _
    $region17: #{vae_forward.1} parent=1 // pred_fallthru
      _
    // Predicated region
    $region18: #{vae_forward.1} parent=1 // pred_check
      _
    $region19: #{vae_forward.1} parent=1 // pred_check_branch
      %9304 = sbr.rel (0) target = $region21
    $region20: #{vae_forward.1} parent=1 // pred_region
      _
    $region21: #{vae_forward.1} parent=1 // pred_fallthru
      _
    %9305 = vsyncpa [#allocation3], 1

</llo_original>
